<compile_context>
chip_gen: v6e
topology: v6e:2x2x1
jax: 0.10.0
libtpu: 0.0.40
codegen_flags: <defaults>
</compile_context>

<pallas_src>
import functools

import jax
import jax.numpy as jnp
from jax.experimental import pallas as pl
from jax.experimental.pallas import tpu as pltpu

_VMEM = pl.BlockSpec(memory_space=pltpu.MemorySpace.VMEM)
_LANES = 128


def _round_up(x, m):
    return ((x + m - 1) // m) * m


# ----------------------------------------------------------------------------
# Static slab layout (shared by pack_params and the kernel wrapper)
# ----------------------------------------------------------------------------
def make_layout(E, H, P, L, out_dim):
    """Static (python-int) row/col offsets of every weight / bias inside the
    two packed slabs.  Weight blocks start at sublane-aligned rows; biases are
    one row each of a (rows, 128) slab."""
    Hh = H // 2

    w_shapes = [("sku_w", E, H), ("region_w", E, H),
                ("tin_sku", H, H), ("tin_reg", H, H)]
    for l in range(L):
        w_shapes += [(f"l{l}_wqkv", H, 3 * H), (f"l{l}_wo", H, H),
                     (f"l{l}_ff1", H, 2 * H), (f"l{l}_ff2", 2 * H, H)]
    w_shapes += [("fa_wqkv", H, 3 * H), ("fa_wo", H, H),
                 ("head_w1", H, 3 * Hh), ("head_w2", 3 * Hh, 1 + P + 2),
                 ("fc_w1_last", H, H), ("fc_w1_seas", P, H),
                 ("fc_w2", H, Hh), ("fc_w3", Hh, out_dim)]
    w_lane = _round_up(max(nc for _, _, nc in w_shapes), _LANES)
    w_index, r0 = {}, 0
    for name, nr, nc in w_shapes:
        w_index[name] = (r0, nr, nc)
        r0 += _round_up(nr, 8)
    w_rows = _round_up(r0, 8)

    v_shapes = [("sku_b", H), ("region_b", H), ("tin_sales", H), ("tin_b", H)]
    for l in range(L):
        v_shapes += [(f"l{l}_bqkv", 3 * H), (f"l{l}_bo", H),
                     (f"l{l}_ln1g", H), (f"l{l}_ln1b", H),
                     (f"l{l}_ff1b", 2 * H), (f"l{l}_ff2b", H),
                     (f"l{l}_ln2g", H), (f"l{l}_ln2b", H)]
    v_shapes += [("fa_bqkv", 3 * H), ("fa_bo", H),
                 ("head_b1", 3 * Hh), ("head_b2", 1 + P + 2),
                 ("fc_w1_trend", H), ("fc_b1", H), ("fc_b2", Hh),
                 ("fc_b3", out_dim)]
    v_lane = _round_up(max(nc for _, nc in v_shapes), _LANES)
    v_index = {name: (i, nc) for i, (name, nc) in enumerate(v_shapes)}
    v_rows = _round_up(len(v_shapes), 8)

    return w_index, v_index, w_rows, w_lane, v_rows, v_lane


# ----------------------------------------------------------------------------
# Fused forward kernel: ONE pallas_call, everything resident in VMEM
# ----------------------------------------------------------------------------
def _fused_forward_kernel(sku_ref, reg_ref, sales_ref, w_ref, v_ref, out_ref, *,
                          B, S, H, num_heads, num_layers, P, out_dim,
                          w_index, v_index):
    f32 = jnp.float32
    hd = H // num_heads
    scale = 1.0 / float(hd) ** 0.5

    def W(name):                                     # (nr, nc) weight view
        r0, nr, nc = w_index[name]
        return w_ref[r0:r0 + nr, 0:nc]

    def V(name):                                     # (1, nc) bias/LN view
        r, nc = v_index[name]
        return v_ref[r:r + 1, 0:nc]

    def mm(a, w):
        return jnp.dot(a, w, preferred_element_type=f32)

    def layernorm(z, g, b):
        m = jnp.mean(z, axis=-1, keepdims=True)
        var = jnp.mean((z - m) ** 2, axis=-1, keepdims=True)
        return (z - m) * jax.lax.rsqrt(var + 1e-5) * g + b

    def attention(x2d, prefix, last_query_only):
        # Fused Q/K/V projection on the flat (B*S, H) layout: one MXU push.
        qkv = mm(x2d, W(prefix + "_wqkv")) + V(prefix + "_bqkv")     # (N, 3H)
        qkv3 = qkv.reshape(B, S, 3 * H)              # free sublane split (S==8)
        q3 = qkv3[:, S - 1:S, 0:H] if last_query_only else qkv3[:, :, 0:H]
        k3 = qkv3[:, :, H:2 * H]
        v3 = qkv3[:, :, 2 * H:3 * H]
        Sq = 1 if last_query_only else S

        ctx_heads = []
        for hh in range(num_heads):                  # static unroll over heads
            sl = slice(hh * hd, (hh + 1) * hd)
            s = jnp.einsum("bqd,bkd->bqk", q3[:, :, sl], k3[:, :, sl],
                           preferred_element_type=f32) * scale
            s = s - jnp.max(s, axis=-1, keepdims=True)
            e = jnp.exp(s)
            p = e / jnp.sum(e, axis=-1, keepdims=True)
            ctx_heads.append(jnp.einsum("bqk,bkd->bqd", p, v3[:, :, sl],
                                        preferred_element_type=f32))
        # Lane-concat the heads -> single (B*Sq, H) x (H, H) output projection.
        ctx = jnp.concatenate(ctx_heads, axis=-1).reshape(B * Sq, H)
        return mm(ctx, W(prefix + "_wo")) + V(prefix + "_bo")        # (B*Sq, H)

    # --- SKUModel / RegionModel: Linear + ReLU (flat 2-D layout) -------------
    sku_feat = jnp.maximum(mm(sku_ref[...], W("sku_w")) + V("sku_b"), 0.0)
    reg_feat = jnp.maximum(mm(reg_ref[...], W("region_w")) + V("region_b"), 0.0)

    # --- Transformer input projection (split-row matmuls replace the concat) -
    h = (mm(sku_feat, W("tin_sku")) + mm(reg_feat, W("tin_reg"))
         + sales_ref[...] * V("tin_sales") + V("tin_b"))             # (N, H)

    # --- Post-norm transformer encoder layers (static unroll) ----------------
    for l in range(num_layers):
        attn = attention(h, f"l{l}", last_query_only=False)
        h = layernorm(h + attn, V(f"l{l}_ln1g"), V(f"l{l}_ln1b"))
        ff = jnp.maximum(mm(h, W(f"l{l}_ff1")) + V(f"l{l}_ff1b"), 0.0)
        ff = mm(ff, W(f"l{l}_ff2")) + V(f"l{l}_ff2b")
        h = layernorm(h + ff, V(f"l{l}_ln2g"), V(f"l{l}_ln2b"))

    # --- Final nn.MultiheadAttention: last query timestep only ---------------
    last = attention(h, "fa", last_query_only=True)                  # (B, H)

    # --- Fused trend / seasonality / confidence heads ------------------------
    hid = jnp.maximum(mm(last, W("head_w1")) + V("head_b1"), 0.0)    # (B, 3H/2)
    heads = mm(hid, W("head_w2")) + V("head_b2")                     # (B, 1+P+2)
    trend = heads[:, 0:1]
    seas = heads[:, 1:1 + P]

    # --- fc head (Dropout(0.2) is identity at inference) ---------------------
    f = (mm(last, W("fc_w1_last")) + trend * V("fc_w1_trend")
         + mm(seas, W("fc_w1_seas")) + V("fc_b1"))
    f = jnp.maximum(f, 0.0)
    f = jnp.maximum(mm(f, W("fc_w2")) + V("fc_b2"), 0.0)
    f = mm(f, W("fc_w3")) + V("fc_b3")                               # (B, out)

    # Single lane-contiguous writeback: [output | trend | seas | conf].
    out_ref[...] = jnp.concatenate([f, heads], axis=-1).astype(out_ref.dtype)


# ----------------------------------------------------------------------------
# Parameter initialization (deterministic, synthetic) — PyTorch-like structure
# ----------------------------------------------------------------------------
def init_params(key, *, num_skus, num_regions, E, H, out_dim, P, num_layers):
    keys = iter(jax.random.split(key, 256))

    def w(shape, scale=0.05):
        return scale * jax.random.normal(next(keys), shape, jnp.float32)

    def zeros(n):
        return jnp.zeros((1, n), jnp.float32)

    def ones(n):
        return jnp.ones((1, n), jnp.float32)

    def attn_params():
        return {
            "wq": w((H, H)), "wk": w((H, H)), "wv": w((H, H)), "wo": w((H, H)),
            "bq": zeros(H), "bk": zeros(H), "bv": zeros(H), "bo": zeros(H),
        }

    layers = []
    for _ in range(num_layers):
        layers.append({
            "attn": attn_params(),
            "ln1_g": ones(H), "ln1_b": zeros(H),
            "ff1_w": w((H, 2 * H)), "ff1_b": zeros(2 * H),
            "ff2_w": w((2 * H, H)), "ff2_b": zeros(H),
            "ln2_g": ones(H), "ln2_b": zeros(H),
        })

    return {
        "sku_emb": w((num_skus, E), 0.1),
        "region_emb": w((num_regions, E), 0.1),
        "sku_w": w((E, H)), "sku_b": zeros(H),
        "region_w": w((E, H)), "region_b": zeros(H),
        "t_in_w": w((2 * H + 1, H)), "t_in_b": zeros(H),
        "layers": layers,
        "final_attn": attn_params(),
        "trend_w1": w((H, H // 2)), "trend_b1": zeros(H // 2),
        "trend_w2": w((H // 2, 1)), "trend_b2": zeros(1),
        "seas_w1": w((H, H // 2)), "seas_b1": zeros(H // 2),
        "seas_w2": w((H // 2, P)), "seas_b2": zeros(P),
        "conf_w1": w((H, H // 2)), "conf_b1": zeros(H // 2),
        "conf_w2": w((H // 2, 2)), "conf_b2": zeros(2),
        "fc_w1": w((H + 1 + P, H)), "fc_b1": zeros(H),
        "fc_w2": w((H, H // 2)), "fc_b2": zeros(H // 2),
        "fc_w3": w((H // 2, out_dim)), "fc_b3": zeros(out_dim),
    }


# ----------------------------------------------------------------------------
# One-time packing of all weights/biases into TWO tile-aligned VMEM slabs
# ----------------------------------------------------------------------------
def pack_params(params):
    E, H = params["sku_w"].shape
    P = params["seas_w2"].shape[1]
    out_dim = params["fc_w3"].shape[1]
    L = len(params["layers"])
    Hh = H // 2
    w_index, v_index, w_rows, w_lane, v_rows, v_lane = make_layout(
        E, H, P, L, out_dim)

    def qkv_w(a):
        return jnp.concatenate([a["wq"], a["wk"], a["wv"]], axis=1)

    def qkv_b(a):
        return jnp.concatenate([a["bq"], a["bk"], a["bv"]], axis=1)

    # Block-diagonal second-stage head weight: cols [trend(1)|seas(P)|conf(2)].
    head_w2 = jnp.zeros((3 * Hh, 1 + P + 2), jnp.float32)
    head_w2 = head_w2.at[0:Hh, 0:1].set(params["trend_w2"])
    head_w2 = head_w2.at[Hh:2 * Hh, 1:1 + P].set(params["seas_w2"])
    head_w2 = head_w2.at[2 * Hh:, 1 + P:].set(params["conf_w2"])

    fa = params["final_attn"]
    w_vals = {
        "sku_w": params["sku_w"], "region_w": params["region_w"],
        "tin_sku": params["t_in_w"][0:H], "tin_reg": params["t_in_w"][H:2 * H],
        "fa_wqkv": qkv_w(fa), "fa_wo": fa["wo"],
        "head_w1": jnp.concatenate(
            [params["trend_w1"], params["seas_w1"], params["conf_w1"]], axis=1),
        "head_w2": head_w2,
        "fc_w1_last": params["fc_w1"][0:H],
        "fc_w1_seas": params["fc_w1"][H + 1:H + 1 + P],
        "fc_w2": params["fc_w2"], "fc_w3": params["fc_w3"],
    }
    v_vals = {
        "sku_b": params["sku_b"], "region_b": params["region_b"],
        "tin_sales": params["t_in_w"][2 * H:2 * H + 1], "tin_b": params["t_in_b"],
        "fa_bqkv": qkv_b(fa), "fa_bo": fa["bo"],
        "head_b1": jnp.concatenate(
            [params["trend_b1"], params["seas_b1"], params["conf_b1"]], axis=1),
        "head_b2": jnp.concatenate(
            [params["trend_b2"], params["seas_b2"], params["conf_b2"]], axis=1),
        "fc_w1_trend": params["fc_w1"][H:H + 1],
        "fc_b1": params["fc_b1"], "fc_b2": params["fc_b2"],
        "fc_b3": params["fc_b3"],
    }
    for l, lp in enumerate(params["layers"]):
        a = lp["attn"]
        w_vals[f"l{l}_wqkv"] = qkv_w(a)
        w_vals[f"l{l}_wo"] = a["wo"]
        w_vals[f"l{l}_ff1"] = lp["ff1_w"]
        w_vals[f"l{l}_ff2"] = lp["ff2_w"]
        v_vals[f"l{l}_bqkv"] = qkv_b(a)
        v_vals[f"l{l}_bo"] = a["bo"]
        v_vals[f"l{l}_ln1g"] = lp["ln1_g"]
        v_vals[f"l{l}_ln1b"] = lp["ln1_b"]
        v_vals[f"l{l}_ff1b"] = lp["ff1_b"]
        v_vals[f"l{l}_ff2b"] = lp["ff2_b"]
        v_vals[f"l{l}_ln2g"] = lp["ln2_g"]
        v_vals[f"l{l}_ln2b"] = lp["ln2_b"]

    wslab = jnp.zeros((w_rows, w_lane), jnp.float32)
    for name, (r0, nr, nc) in w_index.items():
        wslab = wslab.at[r0:r0 + nr, 0:nc].set(w_vals[name])

    vslab = jnp.zeros((v_rows, v_lane), jnp.float32)
    for name, (r, nc) in v_index.items():
        vslab = vslab.at[r, 0:nc].set(v_vals[name].reshape(-1))

    return wslab, vslab


# ----------------------------------------------------------------------------
# Forward pass: embedding gather (JAX glue) + ONE fused Pallas kernel
# ----------------------------------------------------------------------------
def ultra_forward(params, wslab, vslab, sku, region, sales_history, *,
                  num_heads, num_layers):
    B, S = sales_history.shape
    E, H = params["sku_w"].shape
    P = params["seas_w2"].shape[1]
    out_dim = params["fc_w3"].shape[1]
    w_index, v_index, *_ = make_layout(E, H, P, num_layers, out_dim)

    # TODO(synk): embedding lookup is a dynamic gather; kept in JAX glue
    # rather than inside the Pallas kernel.
    sku_emb = params["sku_emb"][sku].reshape(B * S, E)
    reg_emb = params["region_emb"][region].reshape(B * S, E)
    sales = sales_history.reshape(B * S, 1)

    kernel = functools.partial(
        _fused_forward_kernel,
        B=B, S=S, H=H, num_heads=num_heads, num_layers=num_layers,
        P=P, out_dim=out_dim, w_index=w_index, v_index=v_index)

    packed = pl.pallas_call(
        kernel,
        out_shape=jax.ShapeDtypeStruct((B, out_dim + 1 + P + 2), jnp.float32),
        in_specs=[_VMEM] * 5,
        out_specs=_VMEM,
        compiler_params=pltpu.CompilerParams(vmem_limit_bytes=32 * 1024 * 1024),
    )(sku_emb, reg_emb, sales, wslab, vslab)

    output = packed[:, 0:out_dim]
    trend = packed[:, out_dim:out_dim + 1]
    seasonality = packed[:, out_dim + 1:out_dim + 1 + P]
    confidence = packed[:, out_dim + 1 + P:]
    return output, trend, seasonality, confidence


# ----------------------------------------------------------------------------
if __name__ == "__main__":
    num_skus, num_regions = 10, 6
    embedding_dim, hidden_dim, output_dim = 16, 32, 4
    num_heads, num_layers, seasonality_period = 4, 2, 7
    B, S = 2, 8

    params = init_params(
        jax.random.PRNGKey(0),
        num_skus=num_skus, num_regions=num_regions,
        E=embedding_dim, H=hidden_dim, out_dim=output_dim,
        P=seasonality_period, num_layers=num_layers)
    wslab, vslab = pack_params(params)

    k1, k2, k3 = jax.random.split(jax.random.PRNGKey(0), 3)
    sku = jax.random.randint(k1, (B, S), 0, num_skus, dtype=jnp.int32)
    region = jax.random.randint(k2, (B, S), 0, num_regions, dtype=jnp.int32)
    sales_history = jax.random.normal(k3, (B, S), jnp.float32)

    fwd = jax.jit(functools.partial(
        ultra_forward, num_heads=num_heads, num_layers=num_layers))
    out, trend, seas, conf = fwd(params, wslab, vslab, sku, region,
                                 sales_history)
    jax.block_until_ready((out, trend, seas, conf))

    assert out.shape == (B, output_dim)
    assert trend.shape == (B, 1)
    assert seas.shape == (B, seasonality_period)
    assert conf.shape == (B, 2)
    assert all(bool(jnp.all(jnp.isfinite(x))) for x in (out, trend, seas, conf))
    print("KERNEL_OK")
</pallas_src>

<mosaic_0001>
module attributes {stable_mosaic.version = 11 : i64} {
  func.func @_fused_forward_kernel(%arg0: memref<16x16xf32, #tpu.memory_space<vmem>>, %arg1: memref<16x16xf32, #tpu.memory_space<vmem>>, %arg2: memref<16x1xf32, #tpu.memory_space<vmem>>, %arg3: memref<648x128xf32, #tpu.memory_space<vmem>>, %arg4: memref<32x128xf32, #tpu.memory_space<vmem>>, %arg5: memref<2x14xf32, #tpu.memory_space<vmem>>) attributes {dimension_semantics = [], scalar_prefetch = 0 : i64, scratch_operands = 0 : i64, tpu.core_type = #tpu.core_type<tc>} {
    %c0 = arith.constant 0 : index
    %c0_0 = arith.constant 0 : index
    %0 = vector.load %arg0[%c0, %c0_0] : memref<16x16xf32, #tpu.memory_space<vmem>>, vector<16x16xf32>
    %c0_1 = arith.constant 0 : index
    %c0_2 = arith.constant 0 : index
    %1 = vector.load %arg3[%c0_1, %c0_2] : memref<648x128xf32, #tpu.memory_space<vmem>>, vector<16x32xf32>
    %cst = arith.constant dense<0.000000e+00> : vector<16x32xf32>
    %2 = tpu.matmul %0, %1, %cst {dimension_numbers = #tpu.dot_dimension_numbers<[1], [0], [0], [1], [0, 0, 1, 1], [], []>} : vector<16x16xf32>, vector<16x32xf32>, vector<16x32xf32> -> vector<16x32xf32>
    %c0_3 = arith.constant 0 : index
    %c0_4 = arith.constant 0 : index
    %3 = vector.load %arg4[%c0_3, %c0_4] : memref<32x128xf32, #tpu.memory_space<vmem>>, vector<1x32xf32>
    %4 = vector.broadcast %3 : vector<1x32xf32> to vector<16x32xf32>
    %5 = arith.addf %2, %4 : vector<16x32xf32>
    %cst_5 = arith.constant 0.000000e+00 : f32
    %6 = vector.broadcast %cst_5 : f32 to vector<16x32xf32>
    %7 = arith.maximumf %5, %6 : vector<16x32xf32>
    %c0_6 = arith.constant 0 : index
    %c0_7 = arith.constant 0 : index
    %8 = vector.load %arg1[%c0_6, %c0_7] : memref<16x16xf32, #tpu.memory_space<vmem>>, vector<16x16xf32>
    %c16 = arith.constant 16 : index
    %c0_8 = arith.constant 0 : index
    %9 = vector.load %arg3[%c16, %c0_8] : memref<648x128xf32, #tpu.memory_space<vmem>>, vector<16x32xf32>
    %cst_9 = arith.constant dense<0.000000e+00> : vector<16x32xf32>
    %10 = tpu.matmul %8, %9, %cst_9 {dimension_numbers = #tpu.dot_dimension_numbers<[1], [0], [0], [1], [0, 0, 1, 1], [], []>} : vector<16x16xf32>, vector<16x32xf32>, vector<16x32xf32> -> vector<16x32xf32>
    %c1 = arith.constant 1 : index
    %c0_10 = arith.constant 0 : index
    %11 = vector.load %arg4[%c1, %c0_10] : memref<32x128xf32, #tpu.memory_space<vmem>>, vector<1x32xf32>
    %12 = vector.broadcast %11 : vector<1x32xf32> to vector<16x32xf32>
    %13 = arith.addf %10, %12 : vector<16x32xf32>
    %cst_11 = arith.constant 0.000000e+00 : f32
    %14 = vector.broadcast %cst_11 : f32 to vector<16x32xf32>
    %15 = arith.maximumf %13, %14 : vector<16x32xf32>
    %c32 = arith.constant 32 : index
    %c0_12 = arith.constant 0 : index
    %16 = vector.load %arg3[%c32, %c0_12] : memref<648x128xf32, #tpu.memory_space<vmem>>, vector<32x32xf32>
    %cst_13 = arith.constant dense<0.000000e+00> : vector<16x32xf32>
    %17 = tpu.matmul %7, %16, %cst_13 {dimension_numbers = #tpu.dot_dimension_numbers<[1], [0], [0], [1], [0, 0, 1, 1], [], []>} : vector<16x32xf32>, vector<32x32xf32>, vector<16x32xf32> -> vector<16x32xf32>
    %c64 = arith.constant 64 : index
    %c0_14 = arith.constant 0 : index
    %18 = vector.load %arg3[%c64, %c0_14] : memref<648x128xf32, #tpu.memory_space<vmem>>, vector<32x32xf32>
    %cst_15 = arith.constant dense<0.000000e+00> : vector<16x32xf32>
    %19 = tpu.matmul %15, %18, %cst_15 {dimension_numbers = #tpu.dot_dimension_numbers<[1], [0], [0], [1], [0, 0, 1, 1], [], []>} : vector<16x32xf32>, vector<32x32xf32>, vector<16x32xf32> -> vector<16x32xf32>
    %20 = arith.addf %17, %19 : vector<16x32xf32>
    %c0_16 = arith.constant 0 : index
    %c0_17 = arith.constant 0 : index
    %21 = vector.load %arg2[%c0_16, %c0_17] : memref<16x1xf32, #tpu.memory_space<vmem>>, vector<16x1xf32>
    %c2 = arith.constant 2 : index
    %c0_18 = arith.constant 0 : index
    %22 = vector.load %arg4[%c2, %c0_18] : memref<32x128xf32, #tpu.memory_space<vmem>>, vector<1x32xf32>
    %23 = vector.broadcast %21 : vector<16x1xf32> to vector<16x32xf32>
    %24 = vector.broadcast %22 : vector<1x32xf32> to vector<16x32xf32>
    %25 = arith.mulf %23, %24 : vector<16x32xf32>
    %26 = arith.addf %20, %25 : vector<16x32xf32>
    %c3 = arith.constant 3 : index
    %c0_19 = arith.constant 0 : index
    %27 = vector.load %arg4[%c3, %c0_19] : memref<32x128xf32, #tpu.memory_space<vmem>>, vector<1x32xf32>
    %28 = vector.broadcast %27 : vector<1x32xf32> to vector<16x32xf32>
    %29 = arith.addf %26, %28 : vector<16x32xf32>
    %c96 = arith.constant 96 : index
    %c0_20 = arith.constant 0 : index
    %30 = vector.load %arg3[%c96, %c0_20] : memref<648x128xf32, #tpu.memory_space<vmem>>, vector<32x96xf32>
    %cst_21 = arith.constant dense<0.000000e+00> : vector<16x96xf32>
    %31 = tpu.matmul %29, %30, %cst_21 {dimension_numbers = #tpu.dot_dimension_numbers<[1], [0], [0], [1], [0, 0, 1, 1], [], []>} : vector<16x32xf32>, vector<32x96xf32>, vector<16x96xf32> -> vector<16x96xf32>
    %c4 = arith.constant 4 : index
    %c0_22 = arith.constant 0 : index
    %32 = vector.load %arg4[%c4, %c0_22] : memref<32x128xf32, #tpu.memory_space<vmem>>, vector<1x96xf32>
    %33 = vector.broadcast %32 : vector<1x96xf32> to vector<16x96xf32>
    %34 = arith.addf %31, %33 : vector<16x96xf32>
    %35 = vector.shape_cast %34 : vector<16x96xf32> to vector<2x8x96xf32>
    %36 = vector.extract_strided_slice %35 {offsets = [0, 0, 0], sizes = [2, 8, 32], strides = [1, 1, 1]} : vector<2x8x96xf32> to vector<2x8x32xf32>
    %37 = vector.extract_strided_slice %35 {offsets = [0, 0, 32], sizes = [2, 8, 32], strides = [1, 1, 1]} : vector<2x8x96xf32> to vector<2x8x32xf32>
    %38 = vector.extract_strided_slice %35 {offsets = [0, 0, 64], sizes = [2, 8, 32], strides = [1, 1, 1]} : vector<2x8x96xf32> to vector<2x8x32xf32>
    %39 = vector.extract_strided_slice %36 {offsets = [0, 0, 0], sizes = [2, 8, 8], strides = [1, 1, 1]} : vector<2x8x32xf32> to vector<2x8x8xf32>
    %40 = vector.extract_strided_slice %37 {offsets = [0, 0, 0], sizes = [2, 8, 8], strides = [1, 1, 1]} : vector<2x8x32xf32> to vector<2x8x8xf32>
    "tpu.trace_start"() <{level = 10 : i32, message = "bqd,bkd->bqk"}> : () -> ()
    %cst_23 = arith.constant dense<0.000000e+00> : vector<2x8x8xf32>
    %41 = tpu.matmul %39, %40, %cst_23 {dimension_numbers = #tpu.dot_dimension_numbers<[2], [2], [1], [1], [0, 0, 0, 1, 1, 1], [0], [0]>} : vector<2x8x8xf32>, vector<2x8x8xf32>, vector<2x8x8xf32> -> vector<2x8x8xf32>
    "tpu.trace_stop"() : () -> ()
    %cst_24 = arith.constant 0.353553385 : f32
    %42 = vector.broadcast %cst_24 : f32 to vector<2x8x8xf32>
    %43 = arith.mulf %41, %42 : vector<2x8x8xf32>
    %cst_25 = arith.constant dense<0xFF800000> : vector<2x8xf32>
    %44 = vector.multi_reduction <maximumf>, %43, %cst_25 [2] : vector<2x8x8xf32> to vector<2x8xf32>
    %45 = vector.shape_cast %44 : vector<2x8xf32> to vector<2x8x1xf32>
    %46 = vector.broadcast %45 : vector<2x8x1xf32> to vector<2x8x8xf32>
    %47 = arith.subf %43, %46 : vector<2x8x8xf32>
    %48 = math.exp %47 : vector<2x8x8xf32>
    %cst_26 = arith.constant dense<0.000000e+00> : vector<2x8xf32>
    %49 = vector.multi_reduction <add>, %48, %cst_26 [2] : vector<2x8x8xf32> to vector<2x8xf32>
    %50 = vector.shape_cast %49 : vector<2x8xf32> to vector<2x8x1xf32>
    %51 = vector.broadcast %50 : vector<2x8x1xf32> to vector<2x8x8xf32>
    %52 = arith.divf %48, %51 : vector<2x8x8xf32>
    %53 = vector.extract_strided_slice %38 {offsets = [0, 0, 0], sizes = [2, 8, 8], strides = [1, 1, 1]} : vector<2x8x32xf32> to vector<2x8x8xf32>
    "tpu.trace_start"() <{level = 10 : i32, message = "bqk,bkd->bqd"}> : () -> ()
    %cst_27 = arith.constant dense<0.000000e+00> : vector<2x8x8xf32>
    %54 = tpu.matmul %52, %53, %cst_27 {dimension_numbers = #tpu.dot_dimension_numbers<[2], [1], [1], [2], [0, 0, 0, 1, 1, 2], [0], [0]>} : vector<2x8x8xf32>, vector<2x8x8xf32>, vector<2x8x8xf32> -> vector<2x8x8xf32>
    "tpu.trace_stop"() : () -> ()
    %55 = vector.extract_strided_slice %36 {offsets = [0, 0, 8], sizes = [2, 8, 8], strides = [1, 1, 1]} : vector<2x8x32xf32> to vector<2x8x8xf32>
    %56 = vector.extract_strided_slice %37 {offsets = [0, 0, 8], sizes = [2, 8, 8], strides = [1, 1, 1]} : vector<2x8x32xf32> to vector<2x8x8xf32>
    "tpu.trace_start"() <{level = 10 : i32, message = "bqd,bkd->bqk"}> : () -> ()
    %cst_28 = arith.constant dense<0.000000e+00> : vector<2x8x8xf32>
    %57 = tpu.matmul %55, %56, %cst_28 {dimension_numbers = #tpu.dot_dimension_numbers<[2], [2], [1], [1], [0, 0, 0, 1, 1, 1], [0], [0]>} : vector<2x8x8xf32>, vector<2x8x8xf32>, vector<2x8x8xf32> -> vector<2x8x8xf32>
    "tpu.trace_stop"() : () -> ()
    %cst_29 = arith.constant 0.353553385 : f32
    %58 = vector.broadcast %cst_29 : f32 to vector<2x8x8xf32>
    %59 = arith.mulf %57, %58 : vector<2x8x8xf32>
    %cst_30 = arith.constant dense<0xFF800000> : vector<2x8xf32>
    %60 = vector.multi_reduction <maximumf>, %59, %cst_30 [2] : vector<2x8x8xf32> to vector<2x8xf32>
    %61 = vector.shape_cast %60 : vector<2x8xf32> to vector<2x8x1xf32>
    %62 = vector.broadcast %61 : vector<2x8x1xf32> to vector<2x8x8xf32>
    %63 = arith.subf %59, %62 : vector<2x8x8xf32>
    %64 = math.exp %63 : vector<2x8x8xf32>
    %cst_31 = arith.constant dense<0.000000e+00> : vector<2x8xf32>
    %65 = vector.multi_reduction <add>, %64, %cst_31 [2] : vector<2x8x8xf32> to vector<2x8xf32>
    %66 = vector.shape_cast %65 : vector<2x8xf32> to vector<2x8x1xf32>
    %67 = vector.broadcast %66 : vector<2x8x1xf32> to vector<2x8x8xf32>
    %68 = arith.divf %64, %67 : vector<2x8x8xf32>
    %69 = vector.extract_strided_slice %38 {offsets = [0, 0, 8], sizes = [2, 8, 8], strides = [1, 1, 1]} : vector<2x8x32xf32> to vector<2x8x8xf32>
    "tpu.trace_start"() <{level = 10 : i32, message = "bqk,bkd->bqd"}> : () -> ()
    %cst_32 = arith.constant dense<0.000000e+00> : vector<2x8x8xf32>
    %70 = tpu.matmul %68, %69, %cst_32 {dimension_numbers = #tpu.dot_dimension_numbers<[2], [1], [1], [2], [0, 0, 0, 1, 1, 2], [0], [0]>} : vector<2x8x8xf32>, vector<2x8x8xf32>, vector<2x8x8xf32> -> vector<2x8x8xf32>
    "tpu.trace_stop"() : () -> ()
    %71 = vector.extract_strided_slice %36 {offsets = [0, 0, 16], sizes = [2, 8, 8], strides = [1, 1, 1]} : vector<2x8x32xf32> to vector<2x8x8xf32>
    %72 = vector.extract_strided_slice %37 {offsets = [0, 0, 16], sizes = [2, 8, 8], strides = [1, 1, 1]} : vector<2x8x32xf32> to vector<2x8x8xf32>
    "tpu.trace_start"() <{level = 10 : i32, message = "bqd,bkd->bqk"}> : () -> ()
    %cst_33 = arith.constant dense<0.000000e+00> : vector<2x8x8xf32>
    %73 = tpu.matmul %71, %72, %cst_33 {dimension_numbers = #tpu.dot_dimension_numbers<[2], [2], [1], [1], [0, 0, 0, 1, 1, 1], [0], [0]>} : vector<2x8x8xf32>, vector<2x8x8xf32>, vector<2x8x8xf32> -> vector<2x8x8xf32>
    "tpu.trace_stop"() : () -> ()
    %cst_34 = arith.constant 0.353553385 : f32
    %74 = vector.broadcast %cst_34 : f32 to vector<2x8x8xf32>
    %75 = arith.mulf %73, %74 : vector<2x8x8xf32>
    %cst_35 = arith.constant dense<0xFF800000> : vector<2x8xf32>
    %76 = vector.multi_reduction <maximumf>, %75, %cst_35 [2] : vector<2x8x8xf32> to vector<2x8xf32>
    %77 = vector.shape_cast %76 : vector<2x8xf32> to vector<2x8x1xf32>
    %78 = vector.broadcast %77 : vector<2x8x1xf32> to vector<2x8x8xf32>
    %79 = arith.subf %75, %78 : vector<2x8x8xf32>
    %80 = math.exp %79 : vector<2x8x8xf32>
    %cst_36 = arith.constant dense<0.000000e+00> : vector<2x8xf32>
    %81 = vector.multi_reduction <add>, %80, %cst_36 [2] : vector<2x8x8xf32> to vector<2x8xf32>
    %82 = vector.shape_cast %81 : vector<2x8xf32> to vector<2x8x1xf32>
    %83 = vector.broadcast %82 : vector<2x8x1xf32> to vector<2x8x8xf32>
    %84 = arith.divf %80, %83 : vector<2x8x8xf32>
    %85 = vector.extract_strided_slice %38 {offsets = [0, 0, 16], sizes = [2, 8, 8], strides = [1, 1, 1]} : vector<2x8x32xf32> to vector<2x8x8xf32>
    "tpu.trace_start"() <{level = 10 : i32, message = "bqk,bkd->bqd"}> : () -> ()
    %cst_37 = arith.constant dense<0.000000e+00> : vector<2x8x8xf32>
    %86 = tpu.matmul %84, %85, %cst_37 {dimension_numbers = #tpu.dot_dimension_numbers<[2], [1], [1], [2], [0, 0, 0, 1, 1, 2], [0], [0]>} : vector<2x8x8xf32>, vector<2x8x8xf32>, vector<2x8x8xf32> -> vector<2x8x8xf32>
    "tpu.trace_stop"() : () -> ()
    %87 = vector.extract_strided_slice %36 {offsets = [0, 0, 24], sizes = [2, 8, 8], strides = [1, 1, 1]} : vector<2x8x32xf32> to vector<2x8x8xf32>
    %88 = vector.extract_strided_slice %37 {offsets = [0, 0, 24], sizes = [2, 8, 8], strides = [1, 1, 1]} : vector<2x8x32xf32> to vector<2x8x8xf32>
    "tpu.trace_start"() <{level = 10 : i32, message = "bqd,bkd->bqk"}> : () -> ()
    %cst_38 = arith.constant dense<0.000000e+00> : vector<2x8x8xf32>
    %89 = tpu.matmul %87, %88, %cst_38 {dimension_numbers = #tpu.dot_dimension_numbers<[2], [2], [1], [1], [0, 0, 0, 1, 1, 1], [0], [0]>} : vector<2x8x8xf32>, vector<2x8x8xf32>, vector<2x8x8xf32> -> vector<2x8x8xf32>
    "tpu.trace_stop"() : () -> ()
    %cst_39 = arith.constant 0.353553385 : f32
    %90 = vector.broadcast %cst_39 : f32 to vector<2x8x8xf32>
    %91 = arith.mulf %89, %90 : vector<2x8x8xf32>
    %cst_40 = arith.constant dense<0xFF800000> : vector<2x8xf32>
    %92 = vector.multi_reduction <maximumf>, %91, %cst_40 [2] : vector<2x8x8xf32> to vector<2x8xf32>
    %93 = vector.shape_cast %92 : vector<2x8xf32> to vector<2x8x1xf32>
    %94 = vector.broadcast %93 : vector<2x8x1xf32> to vector<2x8x8xf32>
    %95 = arith.subf %91, %94 : vector<2x8x8xf32>
    %96 = math.exp %95 : vector<2x8x8xf32>
    %cst_41 = arith.constant dense<0.000000e+00> : vector<2x8xf32>
    %97 = vector.multi_reduction <add>, %96, %cst_41 [2] : vector<2x8x8xf32> to vector<2x8xf32>
    %98 = vector.shape_cast %97 : vector<2x8xf32> to vector<2x8x1xf32>
    %99 = vector.broadcast %98 : vector<2x8x1xf32> to vector<2x8x8xf32>
    %100 = arith.divf %96, %99 : vector<2x8x8xf32>
    %101 = vector.extract_strided_slice %38 {offsets = [0, 0, 24], sizes = [2, 8, 8], strides = [1, 1, 1]} : vector<2x8x32xf32> to vector<2x8x8xf32>
    "tpu.trace_start"() <{level = 10 : i32, message = "bqk,bkd->bqd"}> : () -> ()
    %cst_42 = arith.constant dense<0.000000e+00> : vector<2x8x8xf32>
    %102 = tpu.matmul %100, %101, %cst_42 {dimension_numbers = #tpu.dot_dimension_numbers<[2], [1], [1], [2], [0, 0, 0, 1, 1, 2], [0], [0]>} : vector<2x8x8xf32>, vector<2x8x8xf32>, vector<2x8x8xf32> -> vector<2x8x8xf32>
    "tpu.trace_stop"() : () -> ()
    %103 = tpu.concatenate %54, %70, %86, %102 in 2 : vector<2x8x8xf32>, vector<2x8x8xf32>, vector<2x8x8xf32>, vector<2x8x8xf32> -> vector<2x8x32xf32>
    %104 = vector.shape_cast %103 : vector<2x8x32xf32> to vector<16x32xf32>
    %c128 = arith.constant 128 : index
    %c0_43 = arith.constant 0 : index
    %105 = vector.load %arg3[%c128, %c0_43] : memref<648x128xf32, #tpu.memory_space<vmem>>, vector<32x32xf32>
    %cst_44 = arith.constant dense<0.000000e+00> : vector<16x32xf32>
    %106 = tpu.matmul %104, %105, %cst_44 {dimension_numbers = #tpu.dot_dimension_numbers<[1], [0], [0], [1], [0, 0, 1, 1], [], []>} : vector<16x32xf32>, vector<32x32xf32>, vector<16x32xf32> -> vector<16x32xf32>
    %c5 = arith.constant 5 : index
    %c0_45 = arith.constant 0 : index
    %107 = vector.load %arg4[%c5, %c0_45] : memref<32x128xf32, #tpu.memory_space<vmem>>, vector<1x32xf32>
    %108 = vector.broadcast %107 : vector<1x32xf32> to vector<16x32xf32>
    %109 = arith.addf %106, %108 : vector<16x32xf32>
    %110 = arith.addf %29, %109 : vector<16x32xf32>
    %c6 = arith.constant 6 : index
    %c0_46 = arith.constant 0 : index
    %111 = vector.load %arg4[%c6, %c0_46] : memref<32x128xf32, #tpu.memory_space<vmem>>, vector<1x32xf32>
    %c7 = arith.constant 7 : index
    %c0_47 = arith.constant 0 : index
    %112 = vector.load %arg4[%c7, %c0_47] : memref<32x128xf32, #tpu.memory_space<vmem>>, vector<1x32xf32>
    %cst_48 = arith.constant dense<0.000000e+00> : vector<16xf32>
    %113 = vector.multi_reduction <add>, %110, %cst_48 [1] : vector<16x32xf32> to vector<16xf32>
    %114 = vector.shape_cast %113 : vector<16xf32> to vector<16x1xf32>
    %cst_49 = arith.constant 3.200000e+01 : f32
    %115 = vector.broadcast %cst_49 : f32 to vector<16x1xf32>
    %116 = arith.divf %114, %115 : vector<16x1xf32>
    %117 = vector.broadcast %116 : vector<16x1xf32> to vector<16x32xf32>
    %118 = arith.subf %110, %117 : vector<16x32xf32>
    %119 = arith.mulf %118, %118 : vector<16x32xf32>
    %cst_50 = arith.constant dense<0.000000e+00> : vector<16xf32>
    %120 = vector.multi_reduction <add>, %119, %cst_50 [1] : vector<16x32xf32> to vector<16xf32>
    %121 = vector.shape_cast %120 : vector<16xf32> to vector<16x1xf32>
    %cst_51 = arith.constant 3.200000e+01 : f32
    %122 = vector.broadcast %cst_51 : f32 to vector<16x1xf32>
    %123 = arith.divf %121, %122 : vector<16x1xf32>
    %124 = vector.broadcast %116 : vector<16x1xf32> to vector<16x32xf32>
    %125 = arith.subf %110, %124 : vector<16x32xf32>
    %cst_52 = arith.constant 9.99999974E-6 : f32
    %126 = vector.broadcast %cst_52 : f32 to vector<16x1xf32>
    %127 = arith.addf %123, %126 : vector<16x1xf32>
    %128 = math.rsqrt %127 : vector<16x1xf32>
    %129 = vector.broadcast %128 : vector<16x1xf32> to vector<16x32xf32>
    %130 = arith.mulf %125, %129 : vector<16x32xf32>
    %131 = vector.broadcast %111 : vector<1x32xf32> to vector<16x32xf32>
    %132 = arith.mulf %130, %131 : vector<16x32xf32>
    %133 = vector.broadcast %112 : vector<1x32xf32> to vector<16x32xf32>
    %134 = arith.addf %132, %133 : vector<16x32xf32>
    %c160 = arith.constant 160 : index
    %c0_53 = arith.constant 0 : index
    %135 = vector.load %arg3[%c160, %c0_53] : memref<648x128xf32, #tpu.memory_space<vmem>>, vector<32x64xf32>
    %cst_54 = arith.constant dense<0.000000e+00> : vector<16x64xf32>
    %136 = tpu.matmul %134, %135, %cst_54 {dimension_numbers = #tpu.dot_dimension_numbers<[1], [0], [0], [1], [0, 0, 1, 1], [], []>} : vector<16x32xf32>, vector<32x64xf32>, vector<16x64xf32> -> vector<16x64xf32>
    %c8 = arith.constant 8 : index
    %c0_55 = arith.constant 0 : index
    %137 = vector.load %arg4[%c8, %c0_55] : memref<32x128xf32, #tpu.memory_space<vmem>>, vector<1x64xf32>
    %138 = vector.broadcast %137 : vector<1x64xf32> to vector<16x64xf32>
    %139 = arith.addf %136, %138 : vector<16x64xf32>
    %cst_56 = arith.constant 0.000000e+00 : f32
    %140 = vector.broadcast %cst_56 : f32 to vector<16x64xf32>
    %141 = arith.maximumf %139, %140 : vector<16x64xf32>
    %c192 = arith.constant 192 : index
    %c0_57 = arith.constant 0 : index
    %142 = vector.load %arg3[%c192, %c0_57] : memref<648x128xf32, #tpu.memory_space<vmem>>, vector<64x32xf32>
    %cst_58 = arith.constant dense<0.000000e+00> : vector<16x32xf32>
    %143 = tpu.matmul %141, %142, %cst_58 {dimension_numbers = #tpu.dot_dimension_numbers<[1], [0], [0], [1], [0, 0, 1, 1], [], []>} : vector<16x64xf32>, vector<64x32xf32>, vector<16x32xf32> -> vector<16x32xf32>
    %c9 = arith.constant 9 : index
    %c0_59 = arith.constant 0 : index
    %144 = vector.load %arg4[%c9, %c0_59] : memref<32x128xf32, #tpu.memory_space<vmem>>, vector<1x32xf32>
    %145 = vector.broadcast %144 : vector<1x32xf32> to vector<16x32xf32>
    %146 = arith.addf %143, %145 : vector<16x32xf32>
    %147 = arith.addf %134, %146 : vector<16x32xf32>
    %c10 = arith.constant 10 : index
    %c0_60 = arith.constant 0 : index
    %148 = vector.load %arg4[%c10, %c0_60] : memref<32x128xf32, #tpu.memory_space<vmem>>, vector<1x32xf32>
    %c11 = arith.constant 11 : index
    %c0_61 = arith.constant 0 : index
    %149 = vector.load %arg4[%c11, %c0_61] : memref<32x128xf32, #tpu.memory_space<vmem>>, vector<1x32xf32>
    %cst_62 = arith.constant dense<0.000000e+00> : vector<16xf32>
    %150 = vector.multi_reduction <add>, %147, %cst_62 [1] : vector<16x32xf32> to vector<16xf32>
    %151 = vector.shape_cast %150 : vector<16xf32> to vector<16x1xf32>
    %cst_63 = arith.constant 3.200000e+01 : f32
    %152 = vector.broadcast %cst_63 : f32 to vector<16x1xf32>
    %153 = arith.divf %151, %152 : vector<16x1xf32>
    %154 = vector.broadcast %153 : vector<16x1xf32> to vector<16x32xf32>
    %155 = arith.subf %147, %154 : vector<16x32xf32>
    %156 = arith.mulf %155, %155 : vector<16x32xf32>
    %cst_64 = arith.constant dense<0.000000e+00> : vector<16xf32>
    %157 = vector.multi_reduction <add>, %156, %cst_64 [1] : vector<16x32xf32> to vector<16xf32>
    %158 = vector.shape_cast %157 : vector<16xf32> to vector<16x1xf32>
    %cst_65 = arith.constant 3.200000e+01 : f32
    %159 = vector.broadcast %cst_65 : f32 to vector<16x1xf32>
    %160 = arith.divf %158, %159 : vector<16x1xf32>
    %161 = vector.broadcast %153 : vector<16x1xf32> to vector<16x32xf32>
    %162 = arith.subf %147, %161 : vector<16x32xf32>
    %cst_66 = arith.constant 9.99999974E-6 : f32
    %163 = vector.broadcast %cst_66 : f32 to vector<16x1xf32>
    %164 = arith.addf %160, %163 : vector<16x1xf32>
    %165 = math.rsqrt %164 : vector<16x1xf32>
    %166 = vector.broadcast %165 : vector<16x1xf32> to vector<16x32xf32>
    %167 = arith.mulf %162, %166 : vector<16x32xf32>
    %168 = vector.broadcast %148 : vector<1x32xf32> to vector<16x32xf32>
    %169 = arith.mulf %167, %168 : vector<16x32xf32>
    %170 = vector.broadcast %149 : vector<1x32xf32> to vector<16x32xf32>
    %171 = arith.addf %169, %170 : vector<16x32xf32>
    %c256 = arith.constant 256 : index
    %c0_67 = arith.constant 0 : index
    %172 = vector.load %arg3[%c256, %c0_67] : memref<648x128xf32, #tpu.memory_space<vmem>>, vector<32x96xf32>
    %cst_68 = arith.constant dense<0.000000e+00> : vector<16x96xf32>
    %173 = tpu.matmul %171, %172, %cst_68 {dimension_numbers = #tpu.dot_dimension_numbers<[1], [0], [0], [1], [0, 0, 1, 1], [], []>} : vector<16x32xf32>, vector<32x96xf32>, vector<16x96xf32> -> vector<16x96xf32>
    %c12 = arith.constant 12 : index
    %c0_69 = arith.constant 0 : index
    %174 = vector.load %arg4[%c12, %c0_69] : memref<32x128xf32, #tpu.memory_space<vmem>>, vector<1x96xf32>
    %175 = vector.broadcast %174 : vector<1x96xf32> to vector<16x96xf32>
    %176 = arith.addf %173, %175 : vector<16x96xf32>
    %177 = vector.shape_cast %176 : vector<16x96xf32> to vector<2x8x96xf32>
    %178 = vector.extract_strided_slice %177 {offsets = [0, 0, 0], sizes = [2, 8, 32], strides = [1, 1, 1]} : vector<2x8x96xf32> to vector<2x8x32xf32>
    %179 = vector.extract_strided_slice %177 {offsets = [0, 0, 32], sizes = [2, 8, 32], strides = [1, 1, 1]} : vector<2x8x96xf32> to vector<2x8x32xf32>
    %180 = vector.extract_strided_slice %177 {offsets = [0, 0, 64], sizes = [2, 8, 32], strides = [1, 1, 1]} : vector<2x8x96xf32> to vector<2x8x32xf32>
    %181 = vector.extract_strided_slice %178 {offsets = [0, 0, 0], sizes = [2, 8, 8], strides = [1, 1, 1]} : vector<2x8x32xf32> to vector<2x8x8xf32>
    %182 = vector.extract_strided_slice %179 {offsets = [0, 0, 0], sizes = [2, 8, 8], strides = [1, 1, 1]} : vector<2x8x32xf32> to vector<2x8x8xf32>
    "tpu.trace_start"() <{level = 10 : i32, message = "bqd,bkd->bqk"}> : () -> ()
    %cst_70 = arith.constant dense<0.000000e+00> : vector<2x8x8xf32>
    %183 = tpu.matmul %181, %182, %cst_70 {dimension_numbers = #tpu.dot_dimension_numbers<[2], [2], [1], [1], [0, 0, 0, 1, 1, 1], [0], [0]>} : vector<2x8x8xf32>, vector<2x8x8xf32>, vector<2x8x8xf32> -> vector<2x8x8xf32>
    "tpu.trace_stop"() : () -> ()
    %cst_71 = arith.constant 0.353553385 : f32
    %184 = vector.broadcast %cst_71 : f32 to vector<2x8x8xf32>
    %185 = arith.mulf %183, %184 : vector<2x8x8xf32>
    %cst_72 = arith.constant dense<0xFF800000> : vector<2x8xf32>
    %186 = vector.multi_reduction <maximumf>, %185, %cst_72 [2] : vector<2x8x8xf32> to vector<2x8xf32>
    %187 = vector.shape_cast %186 : vector<2x8xf32> to vector<2x8x1xf32>
    %188 = vector.broadcast %187 : vector<2x8x1xf32> to vector<2x8x8xf32>
    %189 = arith.subf %185, %188 : vector<2x8x8xf32>
    %190 = math.exp %189 : vector<2x8x8xf32>
    %cst_73 = arith.constant dense<0.000000e+00> : vector<2x8xf32>
    %191 = vector.multi_reduction <add>, %190, %cst_73 [2] : vector<2x8x8xf32> to vector<2x8xf32>
    %192 = vector.shape_cast %191 : vector<2x8xf32> to vector<2x8x1xf32>
    %193 = vector.broadcast %192 : vector<2x8x1xf32> to vector<2x8x8xf32>
    %194 = arith.divf %190, %193 : vector<2x8x8xf32>
    %195 = vector.extract_strided_slice %180 {offsets = [0, 0, 0], sizes = [2, 8, 8], strides = [1, 1, 1]} : vector<2x8x32xf32> to vector<2x8x8xf32>
    "tpu.trace_start"() <{level = 10 : i32, message = "bqk,bkd->bqd"}> : () -> ()
    %cst_74 = arith.constant dense<0.000000e+00> : vector<2x8x8xf32>
    %196 = tpu.matmul %194, %195, %cst_74 {dimension_numbers = #tpu.dot_dimension_numbers<[2], [1], [1], [2], [0, 0, 0, 1, 1, 2], [0], [0]>} : vector<2x8x8xf32>, vector<2x8x8xf32>, vector<2x8x8xf32> -> vector<2x8x8xf32>
    "tpu.trace_stop"() : () -> ()
    %197 = vector.extract_strided_slice %178 {offsets = [0, 0, 8], sizes = [2, 8, 8], strides = [1, 1, 1]} : vector<2x8x32xf32> to vector<2x8x8xf32>
    %198 = vector.extract_strided_slice %179 {offsets = [0, 0, 8], sizes = [2, 8, 8], strides = [1, 1, 1]} : vector<2x8x32xf32> to vector<2x8x8xf32>
    "tpu.trace_start"() <{level = 10 : i32, message = "bqd,bkd->bqk"}> : () -> ()
    %cst_75 = arith.constant dense<0.000000e+00> : vector<2x8x8xf32>
    %199 = tpu.matmul %197, %198, %cst_75 {dimension_numbers = #tpu.dot_dimension_numbers<[2], [2], [1], [1], [0, 0, 0, 1, 1, 1], [0], [0]>} : vector<2x8x8xf32>, vector<2x8x8xf32>, vector<2x8x8xf32> -> vector<2x8x8xf32>
    "tpu.trace_stop"() : () -> ()
    %cst_76 = arith.constant 0.353553385 : f32
    %200 = vector.broadcast %cst_76 : f32 to vector<2x8x8xf32>
    %201 = arith.mulf %199, %200 : vector<2x8x8xf32>
    %cst_77 = arith.constant dense<0xFF800000> : vector<2x8xf32>
    %202 = vector.multi_reduction <maximumf>, %201, %cst_77 [2] : vector<2x8x8xf32> to vector<2x8xf32>
    %203 = vector.shape_cast %202 : vector<2x8xf32> to vector<2x8x1xf32>
    %204 = vector.broadcast %203 : vector<2x8x1xf32> to vector<2x8x8xf32>
    %205 = arith.subf %201, %204 : vector<2x8x8xf32>
    %206 = math.exp %205 : vector<2x8x8xf32>
    %cst_78 = arith.constant dense<0.000000e+00> : vector<2x8xf32>
    %207 = vector.multi_reduction <add>, %206, %cst_78 [2] : vector<2x8x8xf32> to vector<2x8xf32>
    %208 = vector.shape_cast %207 : vector<2x8xf32> to vector<2x8x1xf32>
    %209 = vector.broadcast %208 : vector<2x8x1xf32> to vector<2x8x8xf32>
    %210 = arith.divf %206, %209 : vector<2x8x8xf32>
    %211 = vector.extract_strided_slice %180 {offsets = [0, 0, 8], sizes = [2, 8, 8], strides = [1, 1, 1]} : vector<2x8x32xf32> to vector<2x8x8xf32>
    "tpu.trace_start"() <{level = 10 : i32, message = "bqk,bkd->bqd"}> : () -> ()
    %cst_79 = arith.constant dense<0.000000e+00> : vector<2x8x8xf32>
    %212 = tpu.matmul %210, %211, %cst_79 {dimension_numbers = #tpu.dot_dimension_numbers<[2], [1], [1], [2], [0, 0, 0, 1, 1, 2], [0], [0]>} : vector<2x8x8xf32>, vector<2x8x8xf32>, vector<2x8x8xf32> -> vector<2x8x8xf32>
    "tpu.trace_stop"() : () -> ()
    %213 = vector.extract_strided_slice %178 {offsets = [0, 0, 16], sizes = [2, 8, 8], strides = [1, 1, 1]} : vector<2x8x32xf32> to vector<2x8x8xf32>
    %214 = vector.extract_strided_slice %179 {offsets = [0, 0, 16], sizes = [2, 8, 8], strides = [1, 1, 1]} : vector<2x8x32xf32> to vector<2x8x8xf32>
    "tpu.trace_start"() <{level = 10 : i32, message = "bqd,bkd->bqk"}> : () -> ()
    %cst_80 = arith.constant dense<0.000000e+00> : vector<2x8x8xf32>
    %215 = tpu.matmul %213, %214, %cst_80 {dimension_numbers = #tpu.dot_dimension_numbers<[2], [2], [1], [1], [0, 0, 0, 1, 1, 1], [0], [0]>} : vector<2x8x8xf32>, vector<2x8x8xf32>, vector<2x8x8xf32> -> vector<2x8x8xf32>
    "tpu.trace_stop"() : () -> ()
    %cst_81 = arith.constant 0.353553385 : f32
    %216 = vector.broadcast %cst_81 : f32 to vector<2x8x8xf32>
    %217 = arith.mulf %215, %216 : vector<2x8x8xf32>
    %cst_82 = arith.constant dense<0xFF800000> : vector<2x8xf32>
    %218 = vector.multi_reduction <maximumf>, %217, %cst_82 [2] : vector<2x8x8xf32> to vector<2x8xf32>
    %219 = vector.shape_cast %218 : vector<2x8xf32> to vector<2x8x1xf32>
    %220 = vector.broadcast %219 : vector<2x8x1xf32> to vector<2x8x8xf32>
    %221 = arith.subf %217, %220 : vector<2x8x8xf32>
    %222 = math.exp %221 : vector<2x8x8xf32>
    %cst_83 = arith.constant dense<0.000000e+00> : vector<2x8xf32>
    %223 = vector.multi_reduction <add>, %222, %cst_83 [2] : vector<2x8x8xf32> to vector<2x8xf32>
    %224 = vector.shape_cast %223 : vector<2x8xf32> to vector<2x8x1xf32>
    %225 = vector.broadcast %224 : vector<2x8x1xf32> to vector<2x8x8xf32>
    %226 = arith.divf %222, %225 : vector<2x8x8xf32>
    %227 = vector.extract_strided_slice %180 {offsets = [0, 0, 16], sizes = [2, 8, 8], strides = [1, 1, 1]} : vector<2x8x32xf32> to vector<2x8x8xf32>
    "tpu.trace_start"() <{level = 10 : i32, message = "bqk,bkd->bqd"}> : () -> ()
    %cst_84 = arith.constant dense<0.000000e+00> : vector<2x8x8xf32>
    %228 = tpu.matmul %226, %227, %cst_84 {dimension_numbers = #tpu.dot_dimension_numbers<[2], [1], [1], [2], [0, 0, 0, 1, 1, 2], [0], [0]>} : vector<2x8x8xf32>, vector<2x8x8xf32>, vector<2x8x8xf32> -> vector<2x8x8xf32>
    "tpu.trace_stop"() : () -> ()
    %229 = vector.extract_strided_slice %178 {offsets = [0, 0, 24], sizes = [2, 8, 8], strides = [1, 1, 1]} : vector<2x8x32xf32> to vector<2x8x8xf32>
    %230 = vector.extract_strided_slice %179 {offsets = [0, 0, 24], sizes = [2, 8, 8], strides = [1, 1, 1]} : vector<2x8x32xf32> to vector<2x8x8xf32>
    "tpu.trace_start"() <{level = 10 : i32, message = "bqd,bkd->bqk"}> : () -> ()
    %cst_85 = arith.constant dense<0.000000e+00> : vector<2x8x8xf32>
    %231 = tpu.matmul %229, %230, %cst_85 {dimension_numbers = #tpu.dot_dimension_numbers<[2], [2], [1], [1], [0, 0, 0, 1, 1, 1], [0], [0]>} : vector<2x8x8xf32>, vector<2x8x8xf32>, vector<2x8x8xf32> -> vector<2x8x8xf32>
    "tpu.trace_stop"() : () -> ()
    %cst_86 = arith.constant 0.353553385 : f32
    %232 = vector.broadcast %cst_86 : f32 to vector<2x8x8xf32>
    %233 = arith.mulf %231, %232 : vector<2x8x8xf32>
    %cst_87 = arith.constant dense<0xFF800000> : vector<2x8xf32>
    %234 = vector.multi_reduction <maximumf>, %233, %cst_87 [2] : vector<2x8x8xf32> to vector<2x8xf32>
    %235 = vector.shape_cast %234 : vector<2x8xf32> to vector<2x8x1xf32>
    %236 = vector.broadcast %235 : vector<2x8x1xf32> to vector<2x8x8xf32>
    %237 = arith.subf %233, %236 : vector<2x8x8xf32>
    %238 = math.exp %237 : vector<2x8x8xf32>
    %cst_88 = arith.constant dense<0.000000e+00> : vector<2x8xf32>
    %239 = vector.multi_reduction <add>, %238, %cst_88 [2] : vector<2x8x8xf32> to vector<2x8xf32>
    %240 = vector.shape_cast %239 : vector<2x8xf32> to vector<2x8x1xf32>
    %241 = vector.broadcast %240 : vector<2x8x1xf32> to vector<2x8x8xf32>
    %242 = arith.divf %238, %241 : vector<2x8x8xf32>
    %243 = vector.extract_strided_slice %180 {offsets = [0, 0, 24], sizes = [2, 8, 8], strides = [1, 1, 1]} : vector<2x8x32xf32> to vector<2x8x8xf32>
    "tpu.trace_start"() <{level = 10 : i32, message = "bqk,bkd->bqd"}> : () -> ()
    %cst_89 = arith.constant dense<0.000000e+00> : vector<2x8x8xf32>
    %244 = tpu.matmul %242, %243, %cst_89 {dimension_numbers = #tpu.dot_dimension_numbers<[2], [1], [1], [2], [0, 0, 0, 1, 1, 2], [0], [0]>} : vector<2x8x8xf32>, vector<2x8x8xf32>, vector<2x8x8xf32> -> vector<2x8x8xf32>
    "tpu.trace_stop"() : () -> ()
    %245 = tpu.concatenate %196, %212, %228, %244 in 2 : vector<2x8x8xf32>, vector<2x8x8xf32>, vector<2x8x8xf32>, vector<2x8x8xf32> -> vector<2x8x32xf32>
    %246 = vector.shape_cast %245 : vector<2x8x32xf32> to vector<16x32xf32>
    %c288 = arith.constant 288 : index
    %c0_90 = arith.constant 0 : index
    %247 = vector.load %arg3[%c288, %c0_90] : memref<648x128xf32, #tpu.memory_space<vmem>>, vector<32x32xf32>
    %cst_91 = arith.constant dense<0.000000e+00> : vector<16x32xf32>
    %248 = tpu.matmul %246, %247, %cst_91 {dimension_numbers = #tpu.dot_dimension_numbers<[1], [0], [0], [1], [0, 0, 1, 1], [], []>} : vector<16x32xf32>, vector<32x32xf32>, vector<16x32xf32> -> vector<16x32xf32>
    %c13 = arith.constant 13 : index
    %c0_92 = arith.constant 0 : index
    %249 = vector.load %arg4[%c13, %c0_92] : memref<32x128xf32, #tpu.memory_space<vmem>>, vector<1x32xf32>
    %250 = vector.broadcast %249 : vector<1x32xf32> to vector<16x32xf32>
    %251 = arith.addf %248, %250 : vector<16x32xf32>
    %252 = arith.addf %171, %251 : vector<16x32xf32>
    %c14 = arith.constant 14 : index
    %c0_93 = arith.constant 0 : index
    %253 = vector.load %arg4[%c14, %c0_93] : memref<32x128xf32, #tpu.memory_space<vmem>>, vector<1x32xf32>
    %c15 = arith.constant 15 : index
    %c0_94 = arith.constant 0 : index
    %254 = vector.load %arg4[%c15, %c0_94] : memref<32x128xf32, #tpu.memory_space<vmem>>, vector<1x32xf32>
    %cst_95 = arith.constant dense<0.000000e+00> : vector<16xf32>
    %255 = vector.multi_reduction <add>, %252, %cst_95 [1] : vector<16x32xf32> to vector<16xf32>
    %256 = vector.shape_cast %255 : vector<16xf32> to vector<16x1xf32>
    %cst_96 = arith.constant 3.200000e+01 : f32
    %257 = vector.broadcast %cst_96 : f32 to vector<16x1xf32>
    %258 = arith.divf %256, %257 : vector<16x1xf32>
    %259 = vector.broadcast %258 : vector<16x1xf32> to vector<16x32xf32>
    %260 = arith.subf %252, %259 : vector<16x32xf32>
    %261 = arith.mulf %260, %260 : vector<16x32xf32>
    %cst_97 = arith.constant dense<0.000000e+00> : vector<16xf32>
    %262 = vector.multi_reduction <add>, %261, %cst_97 [1] : vector<16x32xf32> to vector<16xf32>
    %263 = vector.shape_cast %262 : vector<16xf32> to vector<16x1xf32>
    %cst_98 = arith.constant 3.200000e+01 : f32
    %264 = vector.broadcast %cst_98 : f32 to vector<16x1xf32>
    %265 = arith.divf %263, %264 : vector<16x1xf32>
    %266 = vector.broadcast %258 : vector<16x1xf32> to vector<16x32xf32>
    %267 = arith.subf %252, %266 : vector<16x32xf32>
    %cst_99 = arith.constant 9.99999974E-6 : f32
    %268 = vector.broadcast %cst_99 : f32 to vector<16x1xf32>
    %269 = arith.addf %265, %268 : vector<16x1xf32>
    %270 = math.rsqrt %269 : vector<16x1xf32>
    %271 = vector.broadcast %270 : vector<16x1xf32> to vector<16x32xf32>
    %272 = arith.mulf %267, %271 : vector<16x32xf32>
    %273 = vector.broadcast %253 : vector<1x32xf32> to vector<16x32xf32>
    %274 = arith.mulf %272, %273 : vector<16x32xf32>
    %275 = vector.broadcast %254 : vector<1x32xf32> to vector<16x32xf32>
    %276 = arith.addf %274, %275 : vector<16x32xf32>
    %c320 = arith.constant 320 : index
    %c0_100 = arith.constant 0 : index
    %277 = vector.load %arg3[%c320, %c0_100] : memref<648x128xf32, #tpu.memory_space<vmem>>, vector<32x64xf32>
    %cst_101 = arith.constant dense<0.000000e+00> : vector<16x64xf32>
    %278 = tpu.matmul %276, %277, %cst_101 {dimension_numbers = #tpu.dot_dimension_numbers<[1], [0], [0], [1], [0, 0, 1, 1], [], []>} : vector<16x32xf32>, vector<32x64xf32>, vector<16x64xf32> -> vector<16x64xf32>
    %c16_102 = arith.constant 16 : index
    %c0_103 = arith.constant 0 : index
    %279 = vector.load %arg4[%c16_102, %c0_103] : memref<32x128xf32, #tpu.memory_space<vmem>>, vector<1x64xf32>
    %280 = vector.broadcast %279 : vector<1x64xf32> to vector<16x64xf32>
    %281 = arith.addf %278, %280 : vector<16x64xf32>
    %cst_104 = arith.constant 0.000000e+00 : f32
    %282 = vector.broadcast %cst_104 : f32 to vector<16x64xf32>
    %283 = arith.maximumf %281, %282 : vector<16x64xf32>
    %c352 = arith.constant 352 : index
    %c0_105 = arith.constant 0 : index
    %284 = vector.load %arg3[%c352, %c0_105] : memref<648x128xf32, #tpu.memory_space<vmem>>, vector<64x32xf32>
    %cst_106 = arith.constant dense<0.000000e+00> : vector<16x32xf32>
    %285 = tpu.matmul %283, %284, %cst_106 {dimension_numbers = #tpu.dot_dimension_numbers<[1], [0], [0], [1], [0, 0, 1, 1], [], []>} : vector<16x64xf32>, vector<64x32xf32>, vector<16x32xf32> -> vector<16x32xf32>
    %c17 = arith.constant 17 : index
    %c0_107 = arith.constant 0 : index
    %286 = vector.load %arg4[%c17, %c0_107] : memref<32x128xf32, #tpu.memory_space<vmem>>, vector<1x32xf32>
    %287 = vector.broadcast %286 : vector<1x32xf32> to vector<16x32xf32>
    %288 = arith.addf %285, %287 : vector<16x32xf32>
    %289 = arith.addf %276, %288 : vector<16x32xf32>
    %c18 = arith.constant 18 : index
    %c0_108 = arith.constant 0 : index
    %290 = vector.load %arg4[%c18, %c0_108] : memref<32x128xf32, #tpu.memory_space<vmem>>, vector<1x32xf32>
    %c19 = arith.constant 19 : index
    %c0_109 = arith.constant 0 : index
    %291 = vector.load %arg4[%c19, %c0_109] : memref<32x128xf32, #tpu.memory_space<vmem>>, vector<1x32xf32>
    %cst_110 = arith.constant dense<0.000000e+00> : vector<16xf32>
    %292 = vector.multi_reduction <add>, %289, %cst_110 [1] : vector<16x32xf32> to vector<16xf32>
    %293 = vector.shape_cast %292 : vector<16xf32> to vector<16x1xf32>
    %cst_111 = arith.constant 3.200000e+01 : f32
    %294 = vector.broadcast %cst_111 : f32 to vector<16x1xf32>
    %295 = arith.divf %293, %294 : vector<16x1xf32>
    %296 = vector.broadcast %295 : vector<16x1xf32> to vector<16x32xf32>
    %297 = arith.subf %289, %296 : vector<16x32xf32>
    %298 = arith.mulf %297, %297 : vector<16x32xf32>
    %cst_112 = arith.constant dense<0.000000e+00> : vector<16xf32>
    %299 = vector.multi_reduction <add>, %298, %cst_112 [1] : vector<16x32xf32> to vector<16xf32>
    %300 = vector.shape_cast %299 : vector<16xf32> to vector<16x1xf32>
    %cst_113 = arith.constant 3.200000e+01 : f32
    %301 = vector.broadcast %cst_113 : f32 to vector<16x1xf32>
    %302 = arith.divf %300, %301 : vector<16x1xf32>
    %303 = vector.broadcast %295 : vector<16x1xf32> to vector<16x32xf32>
    %304 = arith.subf %289, %303 : vector<16x32xf32>
    %cst_114 = arith.constant 9.99999974E-6 : f32
    %305 = vector.broadcast %cst_114 : f32 to vector<16x1xf32>
    %306 = arith.addf %302, %305 : vector<16x1xf32>
    %307 = math.rsqrt %306 : vector<16x1xf32>
    %308 = vector.broadcast %307 : vector<16x1xf32> to vector<16x32xf32>
    %309 = arith.mulf %304, %308 : vector<16x32xf32>
    %310 = vector.broadcast %290 : vector<1x32xf32> to vector<16x32xf32>
    %311 = arith.mulf %309, %310 : vector<16x32xf32>
    %312 = vector.broadcast %291 : vector<1x32xf32> to vector<16x32xf32>
    %313 = arith.addf %311, %312 : vector<16x32xf32>
    %c416 = arith.constant 416 : index
    %c0_115 = arith.constant 0 : index
    %314 = vector.load %arg3[%c416, %c0_115] : memref<648x128xf32, #tpu.memory_space<vmem>>, vector<32x96xf32>
    %cst_116 = arith.constant dense<0.000000e+00> : vector<16x96xf32>
    %315 = tpu.matmul %313, %314, %cst_116 {dimension_numbers = #tpu.dot_dimension_numbers<[1], [0], [0], [1], [0, 0, 1, 1], [], []>} : vector<16x32xf32>, vector<32x96xf32>, vector<16x96xf32> -> vector<16x96xf32>
    %c20 = arith.constant 20 : index
    %c0_117 = arith.constant 0 : index
    %316 = vector.load %arg4[%c20, %c0_117] : memref<32x128xf32, #tpu.memory_space<vmem>>, vector<1x96xf32>
    %317 = vector.broadcast %316 : vector<1x96xf32> to vector<16x96xf32>
    %318 = arith.addf %315, %317 : vector<16x96xf32>
    %319 = vector.shape_cast %318 : vector<16x96xf32> to vector<2x8x96xf32>
    %320 = vector.extract_strided_slice %319 {offsets = [0, 7, 0], sizes = [2, 1, 32], strides = [1, 1, 1]} : vector<2x8x96xf32> to vector<2x1x32xf32>
    %321 = vector.extract_strided_slice %319 {offsets = [0, 0, 32], sizes = [2, 8, 32], strides = [1, 1, 1]} : vector<2x8x96xf32> to vector<2x8x32xf32>
    %322 = vector.extract_strided_slice %319 {offsets = [0, 0, 64], sizes = [2, 8, 32], strides = [1, 1, 1]} : vector<2x8x96xf32> to vector<2x8x32xf32>
    %323 = vector.extract_strided_slice %320 {offsets = [0, 0, 0], sizes = [2, 1, 8], strides = [1, 1, 1]} : vector<2x1x32xf32> to vector<2x1x8xf32>
    %324 = vector.extract_strided_slice %321 {offsets = [0, 0, 0], sizes = [2, 8, 8], strides = [1, 1, 1]} : vector<2x8x32xf32> to vector<2x8x8xf32>
    "tpu.trace_start"() <{level = 10 : i32, message = "bqd,bkd->bqk"}> : () -> ()
    %cst_118 = arith.constant dense<0.000000e+00> : vector<2x1x8xf32>
    %325 = tpu.matmul %323, %324, %cst_118 {dimension_numbers = #tpu.dot_dimension_numbers<[2], [2], [1], [1], [0, 0, 0, 1, 1, 1], [0], [0]>} : vector<2x1x8xf32>, vector<2x8x8xf32>, vector<2x1x8xf32> -> vector<2x1x8xf32>
    "tpu.trace_stop"() : () -> ()
    %cst_119 = arith.constant 0.353553385 : f32
    %326 = vector.broadcast %cst_119 : f32 to vector<2x1x8xf32>
    %327 = arith.mulf %325, %326 : vector<2x1x8xf32>
    %cst_120 = arith.constant dense<0xFF800000> : vector<2x1xf32>
    %328 = vector.multi_reduction <maximumf>, %327, %cst_120 [2] : vector<2x1x8xf32> to vector<2x1xf32>
    %329 = vector.shape_cast %328 : vector<2x1xf32> to vector<2x1x1xf32>
    %330 = vector.broadcast %329 : vector<2x1x1xf32> to vector<2x1x8xf32>
    %331 = arith.subf %327, %330 : vector<2x1x8xf32>
    %332 = math.exp %331 : vector<2x1x8xf32>
    %cst_121 = arith.constant dense<0.000000e+00> : vector<2x1xf32>
    %333 = vector.multi_reduction <add>, %332, %cst_121 [2] : vector<2x1x8xf32> to vector<2x1xf32>
    %334 = vector.shape_cast %333 : vector<2x1xf32> to vector<2x1x1xf32>
    %335 = vector.broadcast %334 : vector<2x1x1xf32> to vector<2x1x8xf32>
    %336 = arith.divf %332, %335 : vector<2x1x8xf32>
    %337 = vector.extract_strided_slice %322 {offsets = [0, 0, 0], sizes = [2, 8, 8], strides = [1, 1, 1]} : vector<2x8x32xf32> to vector<2x8x8xf32>
    "tpu.trace_start"() <{level = 10 : i32, message = "bqk,bkd->bqd"}> : () -> ()
    %cst_122 = arith.constant dense<0.000000e+00> : vector<2x1x8xf32>
    %338 = tpu.matmul %336, %337, %cst_122 {dimension_numbers = #tpu.dot_dimension_numbers<[2], [1], [1], [2], [0, 0, 0, 1, 1, 2], [0], [0]>} : vector<2x1x8xf32>, vector<2x8x8xf32>, vector<2x1x8xf32> -> vector<2x1x8xf32>
    "tpu.trace_stop"() : () -> ()
    %339 = vector.extract_strided_slice %320 {offsets = [0, 0, 8], sizes = [2, 1, 8], strides = [1, 1, 1]} : vector<2x1x32xf32> to vector<2x1x8xf32>
    %340 = vector.extract_strided_slice %321 {offsets = [0, 0, 8], sizes = [2, 8, 8], strides = [1, 1, 1]} : vector<2x8x32xf32> to vector<2x8x8xf32>
    "tpu.trace_start"() <{level = 10 : i32, message = "bqd,bkd->bqk"}> : () -> ()
    %cst_123 = arith.constant dense<0.000000e+00> : vector<2x1x8xf32>
    %341 = tpu.matmul %339, %340, %cst_123 {dimension_numbers = #tpu.dot_dimension_numbers<[2], [2], [1], [1], [0, 0, 0, 1, 1, 1], [0], [0]>} : vector<2x1x8xf32>, vector<2x8x8xf32>, vector<2x1x8xf32> -> vector<2x1x8xf32>
    "tpu.trace_stop"() : () -> ()
    %cst_124 = arith.constant 0.353553385 : f32
    %342 = vector.broadcast %cst_124 : f32 to vector<2x1x8xf32>
    %343 = arith.mulf %341, %342 : vector<2x1x8xf32>
    %cst_125 = arith.constant dense<0xFF800000> : vector<2x1xf32>
    %344 = vector.multi_reduction <maximumf>, %343, %cst_125 [2] : vector<2x1x8xf32> to vector<2x1xf32>
    %345 = vector.shape_cast %344 : vector<2x1xf32> to vector<2x1x1xf32>
    %346 = vector.broadcast %345 : vector<2x1x1xf32> to vector<2x1x8xf32>
    %347 = arith.subf %343, %346 : vector<2x1x8xf32>
    %348 = math.exp %347 : vector<2x1x8xf32>
    %cst_126 = arith.constant dense<0.000000e+00> : vector<2x1xf32>
    %349 = vector.multi_reduction <add>, %348, %cst_126 [2] : vector<2x1x8xf32> to vector<2x1xf32>
    %350 = vector.shape_cast %349 : vector<2x1xf32> to vector<2x1x1xf32>
    %351 = vector.broadcast %350 : vector<2x1x1xf32> to vector<2x1x8xf32>
    %352 = arith.divf %348, %351 : vector<2x1x8xf32>
    %353 = vector.extract_strided_slice %322 {offsets = [0, 0, 8], sizes = [2, 8, 8], strides = [1, 1, 1]} : vector<2x8x32xf32> to vector<2x8x8xf32>
    "tpu.trace_start"() <{level = 10 : i32, message = "bqk,bkd->bqd"}> : () -> ()
    %cst_127 = arith.constant dense<0.000000e+00> : vector<2x1x8xf32>
    %354 = tpu.matmul %352, %353, %cst_127 {dimension_numbers = #tpu.dot_dimension_numbers<[2], [1], [1], [2], [0, 0, 0, 1, 1, 2], [0], [0]>} : vector<2x1x8xf32>, vector<2x8x8xf32>, vector<2x1x8xf32> -> vector<2x1x8xf32>
    "tpu.trace_stop"() : () -> ()
    %355 = vector.extract_strided_slice %320 {offsets = [0, 0, 16], sizes = [2, 1, 8], strides = [1, 1, 1]} : vector<2x1x32xf32> to vector<2x1x8xf32>
    %356 = vector.extract_strided_slice %321 {offsets = [0, 0, 16], sizes = [2, 8, 8], strides = [1, 1, 1]} : vector<2x8x32xf32> to vector<2x8x8xf32>
    "tpu.trace_start"() <{level = 10 : i32, message = "bqd,bkd->bqk"}> : () -> ()
    %cst_128 = arith.constant dense<0.000000e+00> : vector<2x1x8xf32>
    %357 = tpu.matmul %355, %356, %cst_128 {dimension_numbers = #tpu.dot_dimension_numbers<[2], [2], [1], [1], [0, 0, 0, 1, 1, 1], [0], [0]>} : vector<2x1x8xf32>, vector<2x8x8xf32>, vector<2x1x8xf32> -> vector<2x1x8xf32>
    "tpu.trace_stop"() : () -> ()
    %cst_129 = arith.constant 0.353553385 : f32
    %358 = vector.broadcast %cst_129 : f32 to vector<2x1x8xf32>
    %359 = arith.mulf %357, %358 : vector<2x1x8xf32>
    %cst_130 = arith.constant dense<0xFF800000> : vector<2x1xf32>
    %360 = vector.multi_reduction <maximumf>, %359, %cst_130 [2] : vector<2x1x8xf32> to vector<2x1xf32>
    %361 = vector.shape_cast %360 : vector<2x1xf32> to vector<2x1x1xf32>
    %362 = vector.broadcast %361 : vector<2x1x1xf32> to vector<2x1x8xf32>
    %363 = arith.subf %359, %362 : vector<2x1x8xf32>
    %364 = math.exp %363 : vector<2x1x8xf32>
    %cst_131 = arith.constant dense<0.000000e+00> : vector<2x1xf32>
    %365 = vector.multi_reduction <add>, %364, %cst_131 [2] : vector<2x1x8xf32> to vector<2x1xf32>
    %366 = vector.shape_cast %365 : vector<2x1xf32> to vector<2x1x1xf32>
    %367 = vector.broadcast %366 : vector<2x1x1xf32> to vector<2x1x8xf32>
    %368 = arith.divf %364, %367 : vector<2x1x8xf32>
    %369 = vector.extract_strided_slice %322 {offsets = [0, 0, 16], sizes = [2, 8, 8], strides = [1, 1, 1]} : vector<2x8x32xf32> to vector<2x8x8xf32>
    "tpu.trace_start"() <{level = 10 : i32, message = "bqk,bkd->bqd"}> : () -> ()
    %cst_132 = arith.constant dense<0.000000e+00> : vector<2x1x8xf32>
    %370 = tpu.matmul %368, %369, %cst_132 {dimension_numbers = #tpu.dot_dimension_numbers<[2], [1], [1], [2], [0, 0, 0, 1, 1, 2], [0], [0]>} : vector<2x1x8xf32>, vector<2x8x8xf32>, vector<2x1x8xf32> -> vector<2x1x8xf32>
    "tpu.trace_stop"() : () -> ()
    %371 = vector.extract_strided_slice %320 {offsets = [0, 0, 24], sizes = [2, 1, 8], strides = [1, 1, 1]} : vector<2x1x32xf32> to vector<2x1x8xf32>
    %372 = vector.extract_strided_slice %321 {offsets = [0, 0, 24], sizes = [2, 8, 8], strides = [1, 1, 1]} : vector<2x8x32xf32> to vector<2x8x8xf32>
    "tpu.trace_start"() <{level = 10 : i32, message = "bqd,bkd->bqk"}> : () -> ()
    %cst_133 = arith.constant dense<0.000000e+00> : vector<2x1x8xf32>
    %373 = tpu.matmul %371, %372, %cst_133 {dimension_numbers = #tpu.dot_dimension_numbers<[2], [2], [1], [1], [0, 0, 0, 1, 1, 1], [0], [0]>} : vector<2x1x8xf32>, vector<2x8x8xf32>, vector<2x1x8xf32> -> vector<2x1x8xf32>
    "tpu.trace_stop"() : () -> ()
    %cst_134 = arith.constant 0.353553385 : f32
    %374 = vector.broadcast %cst_134 : f32 to vector<2x1x8xf32>
    %375 = arith.mulf %373, %374 : vector<2x1x8xf32>
    %cst_135 = arith.constant dense<0xFF800000> : vector<2x1xf32>
    %376 = vector.multi_reduction <maximumf>, %375, %cst_135 [2] : vector<2x1x8xf32> to vector<2x1xf32>
    %377 = vector.shape_cast %376 : vector<2x1xf32> to vector<2x1x1xf32>
    %378 = vector.broadcast %377 : vector<2x1x1xf32> to vector<2x1x8xf32>
    %379 = arith.subf %375, %378 : vector<2x1x8xf32>
    %380 = math.exp %379 : vector<2x1x8xf32>
    %cst_136 = arith.constant dense<0.000000e+00> : vector<2x1xf32>
    %381 = vector.multi_reduction <add>, %380, %cst_136 [2] : vector<2x1x8xf32> to vector<2x1xf32>
    %382 = vector.shape_cast %381 : vector<2x1xf32> to vector<2x1x1xf32>
    %383 = vector.broadcast %382 : vector<2x1x1xf32> to vector<2x1x8xf32>
    %384 = arith.divf %380, %383 : vector<2x1x8xf32>
    %385 = vector.extract_strided_slice %322 {offsets = [0, 0, 24], sizes = [2, 8, 8], strides = [1, 1, 1]} : vector<2x8x32xf32> to vector<2x8x8xf32>
    "tpu.trace_start"() <{level = 10 : i32, message = "bqk,bkd->bqd"}> : () -> ()
    %cst_137 = arith.constant dense<0.000000e+00> : vector<2x1x8xf32>
    %386 = tpu.matmul %384, %385, %cst_137 {dimension_numbers = #tpu.dot_dimension_numbers<[2], [1], [1], [2], [0, 0, 0, 1, 1, 2], [0], [0]>} : vector<2x1x8xf32>, vector<2x8x8xf32>, vector<2x1x8xf32> -> vector<2x1x8xf32>
    "tpu.trace_stop"() : () -> ()
    %387 = tpu.concatenate %338, %354, %370, %386 in 2 : vector<2x1x8xf32>, vector<2x1x8xf32>, vector<2x1x8xf32>, vector<2x1x8xf32> -> vector<2x1x32xf32>
    %388 = vector.shape_cast %387 : vector<2x1x32xf32> to vector<2x32xf32>
    %c448 = arith.constant 448 : index
    %c0_138 = arith.constant 0 : index
    %389 = vector.load %arg3[%c448, %c0_138] : memref<648x128xf32, #tpu.memory_space<vmem>>, vector<32x32xf32>
    %cst_139 = arith.constant dense<0.000000e+00> : vector<2x32xf32>
    %390 = tpu.matmul %388, %389, %cst_139 {dimension_numbers = #tpu.dot_dimension_numbers<[1], [0], [0], [1], [0, 0, 1, 1], [], []>} : vector<2x32xf32>, vector<32x32xf32>, vector<2x32xf32> -> vector<2x32xf32>
    %c21 = arith.constant 21 : index
    %c0_140 = arith.constant 0 : index
    %391 = vector.load %arg4[%c21, %c0_140] : memref<32x128xf32, #tpu.memory_space<vmem>>, vector<1x32xf32>
    %392 = vector.broadcast %391 : vector<1x32xf32> to vector<2x32xf32>
    %393 = arith.addf %390, %392 : vector<2x32xf32>
    %c480 = arith.constant 480 : index
    %c0_141 = arith.constant 0 : index
    %394 = vector.load %arg3[%c480, %c0_141] : memref<648x128xf32, #tpu.memory_space<vmem>>, vector<32x48xf32>
    %cst_142 = arith.constant dense<0.000000e+00> : vector<2x48xf32>
    %395 = tpu.matmul %393, %394, %cst_142 {dimension_numbers = #tpu.dot_dimension_numbers<[1], [0], [0], [1], [0, 0, 1, 1], [], []>} : vector<2x32xf32>, vector<32x48xf32>, vector<2x48xf32> -> vector<2x48xf32>
    %c22 = arith.constant 22 : index
    %c0_143 = arith.constant 0 : index
    %396 = vector.load %arg4[%c22, %c0_143] : memref<32x128xf32, #tpu.memory_space<vmem>>, vector<1x48xf32>
    %397 = vector.broadcast %396 : vector<1x48xf32> to vector<2x48xf32>
    %398 = arith.addf %395, %397 : vector<2x48xf32>
    %cst_144 = arith.constant 0.000000e+00 : f32
    %399 = vector.broadcast %cst_144 : f32 to vector<2x48xf32>
    %400 = arith.maximumf %398, %399 : vector<2x48xf32>
    %c512 = arith.constant 512 : index
    %c0_145 = arith.constant 0 : index
    %401 = vector.load %arg3[%c512, %c0_145] : memref<648x128xf32, #tpu.memory_space<vmem>>, vector<48x10xf32>
    %cst_146 = arith.constant dense<0.000000e+00> : vector<2x10xf32>
    %402 = tpu.matmul %400, %401, %cst_146 {dimension_numbers = #tpu.dot_dimension_numbers<[1], [0], [0], [1], [0, 0, 1, 1], [], []>} : vector<2x48xf32>, vector<48x10xf32>, vector<2x10xf32> -> vector<2x10xf32>
    %c23 = arith.constant 23 : index
    %c0_147 = arith.constant 0 : index
    %403 = vector.load %arg4[%c23, %c0_147] : memref<32x128xf32, #tpu.memory_space<vmem>>, vector<1x10xf32>
    %404 = vector.broadcast %403 : vector<1x10xf32> to vector<2x10xf32>
    %405 = arith.addf %402, %404 : vector<2x10xf32>
    %406 = vector.extract_strided_slice %405 {offsets = [0, 0], sizes = [2, 1], strides = [1, 1]} : vector<2x10xf32> to vector<2x1xf32>
    %407 = vector.extract_strided_slice %405 {offsets = [0, 1], sizes = [2, 7], strides = [1, 1]} : vector<2x10xf32> to vector<2x7xf32>
    %c560 = arith.constant 560 : index
    %c0_148 = arith.constant 0 : index
    %408 = vector.load %arg3[%c560, %c0_148] : memref<648x128xf32, #tpu.memory_space<vmem>>, vector<32x32xf32>
    %cst_149 = arith.constant dense<0.000000e+00> : vector<2x32xf32>
    %409 = tpu.matmul %393, %408, %cst_149 {dimension_numbers = #tpu.dot_dimension_numbers<[1], [0], [0], [1], [0, 0, 1, 1], [], []>} : vector<2x32xf32>, vector<32x32xf32>, vector<2x32xf32> -> vector<2x32xf32>
    %c24 = arith.constant 24 : index
    %c0_150 = arith.constant 0 : index
    %410 = vector.load %arg4[%c24, %c0_150] : memref<32x128xf32, #tpu.memory_space<vmem>>, vector<1x32xf32>
    %411 = vector.broadcast %406 : vector<2x1xf32> to vector<2x32xf32>
    %412 = vector.broadcast %410 : vector<1x32xf32> to vector<2x32xf32>
    %413 = arith.mulf %411, %412 : vector<2x32xf32>
    %414 = arith.addf %409, %413 : vector<2x32xf32>
    %c592 = arith.constant 592 : index
    %c0_151 = arith.constant 0 : index
    %415 = vector.load %arg3[%c592, %c0_151] : memref<648x128xf32, #tpu.memory_space<vmem>>, vector<7x32xf32>
    %cst_152 = arith.constant dense<0.000000e+00> : vector<2x32xf32>
    %416 = tpu.matmul %407, %415, %cst_152 {dimension_numbers = #tpu.dot_dimension_numbers<[1], [0], [0], [1], [0, 0, 1, 1], [], []>} : vector<2x7xf32>, vector<7x32xf32>, vector<2x32xf32> -> vector<2x32xf32>
    %417 = arith.addf %414, %416 : vector<2x32xf32>
    %c25 = arith.constant 25 : index
    %c0_153 = arith.constant 0 : index
    %418 = vector.load %arg4[%c25, %c0_153] : memref<32x128xf32, #tpu.memory_space<vmem>>, vector<1x32xf32>
    %419 = vector.broadcast %418 : vector<1x32xf32> to vector<2x32xf32>
    %420 = arith.addf %417, %419 : vector<2x32xf32>
    %cst_154 = arith.constant 0.000000e+00 : f32
    %421 = vector.broadcast %cst_154 : f32 to vector<2x32xf32>
    %422 = arith.maximumf %420, %421 : vector<2x32xf32>
    %c600 = arith.constant 600 : index
    %c0_155 = arith.constant 0 : index
    %423 = vector.load %arg3[%c600, %c0_155] : memref<648x128xf32, #tpu.memory_space<vmem>>, vector<32x16xf32>
    %cst_156 = arith.constant dense<0.000000e+00> : vector<2x16xf32>
    %424 = tpu.matmul %422, %423, %cst_156 {dimension_numbers = #tpu.dot_dimension_numbers<[1], [0], [0], [1], [0, 0, 1, 1], [], []>} : vector<2x32xf32>, vector<32x16xf32>, vector<2x16xf32> -> vector<2x16xf32>
    %c26 = arith.constant 26 : index
    %c0_157 = arith.constant 0 : index
    %425 = vector.load %arg4[%c26, %c0_157] : memref<32x128xf32, #tpu.memory_space<vmem>>, vector<1x16xf32>
    %426 = vector.broadcast %425 : vector<1x16xf32> to vector<2x16xf32>
    %427 = arith.addf %424, %426 : vector<2x16xf32>
    %cst_158 = arith.constant 0.000000e+00 : f32
    %428 = vector.broadcast %cst_158 : f32 to vector<2x16xf32>
    %429 = arith.maximumf %427, %428 : vector<2x16xf32>
    %c632 = arith.constant 632 : index
    %c0_159 = arith.constant 0 : index
    %430 = vector.load %arg3[%c632, %c0_159] : memref<648x128xf32, #tpu.memory_space<vmem>>, vector<16x4xf32>
    %cst_160 = arith.constant dense<0.000000e+00> : vector<2x4xf32>
    %431 = tpu.matmul %429, %430, %cst_160 {dimension_numbers = #tpu.dot_dimension_numbers<[1], [0], [0], [1], [0, 0, 1, 1], [], []>} : vector<2x16xf32>, vector<16x4xf32>, vector<2x4xf32> -> vector<2x4xf32>
    %c27 = arith.constant 27 : index
    %c0_161 = arith.constant 0 : index
    %432 = vector.load %arg4[%c27, %c0_161] : memref<32x128xf32, #tpu.memory_space<vmem>>, vector<1x4xf32>
    %433 = vector.broadcast %432 : vector<1x4xf32> to vector<2x4xf32>
    %434 = arith.addf %431, %433 : vector<2x4xf32>
    %435 = tpu.concatenate %434, %405 in 1 : vector<2x4xf32>, vector<2x10xf32> -> vector<2x14xf32>
    %c0_162 = arith.constant 0 : index
    %c0_163 = arith.constant 0 : index
    %436 = vector.load %arg5[%c0_162, %c0_163] : memref<2x14xf32, #tpu.memory_space<vmem>>, vector<2x14xf32>
    tpu.vector_store %arg5[%c0_162, %c0_163], %435 {strides = array<i32>} : memref<2x14xf32, #tpu.memory_space<vmem>>, vector<2x14xf32>,
    return
  }
}

</mosaic_0001>

<llo_original>
// kernel: ultra_forward.1
$region0: #{ultra_forward.1}
  #allocation0 [shape = 'u32[]', space=smem, size = 0x4, offset = 0x4, fixed_abs, tag = 'smem constant byte address 0x4 - core index']
  #allocation1 [shape = 'u32[144,128]{1,0:T(1,128)}', space=vmem, size = 0x12000, scoped, tag = 'internal scratch']
  %s0 = inlined_call_operand.vmem [shape: f32[16,16], index: 0, kind: input, shape index: {}]
  %s1 = inlined_call_operand.vmem [shape: f32[16,16], index: 1, kind: input, shape index: {}]
  %s2 = inlined_call_operand.vmem [shape: f32[16,1], index: 2, kind: input, shape index: {}]
  %s3 = inlined_call_operand.hbm [shape: f32[648,128], index: 3, kind: input, shape index: {}]
  %s4 = inlined_call_operand.vmem [shape: f32[32,128], index: 4, kind: input, shape index: {}]
  %s5 = inlined_call_operand.vmem [shape: f32[2,14], index: 5, kind: output, shape index: {}]
  %s6 = sld [smem:[#allocation0]]
  $region34: #{ultra_forward.1} parent=0
    _
  %s8 = ssub.s32 1, %s6
  %s9 = scalar_select 0, %s8, %s6
  $region1: #{ultra_forward.1} parent=0
    #allocation2 [shape = 'u8[331776]{0}', space=vmem, size = 0x51000, scoped, tag = 'input window, operand 3, single buffered']
    #allocation3 [shape = 's32[1]{0}', space=sflag, size = 0x4, scoped, tag = 'scoped memory for ultra_forward.1']
    %10 = vsyncpa [#allocation3], 0
    // Predicated region
    $region2: #{ultra_forward.1} parent=1 // pred_check
      _
    $region3: #{ultra_forward.1} parent=1 // pred_check_branch
      %12 = sbr.rel (0) target = $region5
    $region4: #{ultra_forward.1} parent=1 // pred_region
      _
    $region5: #{ultra_forward.1} parent=1 // pred_fallthru
      _
    // Predicated region
    $region6: #{ultra_forward.1} parent=1 // pred_check
      _
    $region7: #{ultra_forward.1} parent=1 // pred_check_branch
      %14 = sbr.rel (0) target = $region9
    $region8: #{ultra_forward.1} parent=1 // pred_region
      _
    $region9: #{ultra_forward.1} parent=1 // pred_fallthru
      _
    // Predicated region
    $region10: #{ultra_forward.1} parent=1 // pred_check
      _
    $region11: #{ultra_forward.1} parent=1 // pred_check_branch
      %16 = sbr.rel (0) target = $region13
    $region12: #{ultra_forward.1} parent=1 // pred_region
      _
    $region13: #{ultra_forward.1} parent=1 // pred_fallthru
      _
    // Predicated region
    $region14: #{ultra_forward.1} parent=1 // pred_check
      _
    $region15: #{ultra_forward.1} parent=1 // pred_check_branch
      %18 = sbr.rel (0) target = $region17
    $region16: #{ultra_forward.1} parent=1 // pred_region
      %s20 = ssub.s32 10368, 10368
      %21 = vsyncadd [#allocation3], %s20
      %s22 = sshll.u32 [#allocation2], 4
      %s23 = int_to_ptr.vmem [resolvable:$true] %s22
      %28 = dma.hbm_to_vmem [thread:$0]  %s3, 10368, %s23, [#allocation3], 128, 128, 8
    $region17: #{ultra_forward.1} parent=1 // pred_fallthru
      _
    // Predicated region
    $region18: #{ultra_forward.1} parent=1 // pred_check
      _
    $region19: #{ultra_forward.1} parent=1 // pred_check_branch
      %30 = sbr.rel (0) target = $region21
    $region20: #{ultra_forward.1} parent=1 // pred_region
      _
    $region21: #{ultra_forward.1} parent=1 // pred_fallthru
      _
    // Predicated region
    $region22: #{ultra_forward.1} parent=1 // pred_check
      _
    $region23: #{ultra_forward.1} parent=1 // pred_check_branch
      %32 = sbr.rel (0) target = $region25
    $region24: #{ultra_forward.1} parent=1 // pred_region
      %33 = dma.done [#allocation3], 10368
    $region25: #{ultra_forward.1} parent=1 // pred_fallthru
      _
    %v34 = vld [vmem:[%s0] sm:$0xff]
    %v35 = vld [vmem:[%s0 + $0x8] sm:$0xff]
    %v36 = vld [vmem:[#allocation2] sm:$0xff]
    %v37 = vld [vmem:[#allocation2 + $0x8] sm:$0xff]
    %v38 = vld [vmem:[%s4] sm:$0x1]
    %v39 = vlaneseq
    %v40 = vshrl.u32 %v39, 7
    %v41 = vsub.s32 0, %v40
    %v42 = vrot.slane %v38, %v41
    %vm43 = vcmask 130048
    %v45 = vsel %vm43, %v34, 0
    %v48 = vsel %vm43, %v35, 0
    %50 = vmatprep.subr.mxu0 0.0
    %51 = vmatpush1.msra.mxu0 0.0
    %52 = vmatprep.subr.mxu0 0.0
    %53 = vmatpush1.msra.mxu0 0.0
    %54 = vmatprep.subr.mxu0 0.0
    %55 = vmatpush1.msra.mxu0 0.0
    %56 = vmatprep.subr.mxu0 0.0
    %57 = vmatpush1.msra.mxu0 0.0
    %58 = vmatprep.subr.mxu0 0.0
    %59 = vmatpush1.msra.mxu0 0.0
    %60 = vmatprep.subr.mxu0 0.0
    %61 = vmatpush1.msra.mxu0 0.0
    %62 = vmatprep.subr.mxu0 0.0
    %63 = vmatpush1.msra.mxu0 0.0
    %64 = vmatprep.subr.mxu0 0.0
    %65 = vmatpush1.msra.mxu0 0.0
    %66 = vmatprep.subr.mxu0 0.0
    %67 = vmatpush1.msra.mxu0 0.0
    %68 = vmatprep.subr.mxu0 0.0
    %69 = vmatpush1.msra.mxu0 0.0
    %70 = vmatprep.subr.mxu0 0.0
    %71 = vmatpush1.msra.mxu0 0.0
    %72 = vmatprep.subr.mxu0 0.0
    %73 = vmatpush1.msra.mxu0 0.0
    %74 = vmatprep.subr.mxu0 0.0
    %75 = vmatpush1.msra.mxu0 0.0
    %76 = vmatprep.subr.mxu0 0.0
    %77 = vmatpush1.msra.mxu0 0.0
    %78 = vmatprep.subr.mxu0 0.0
    %79 = vmatpush1.msra.mxu0 %v37
    %80 = vmatprep.subr.mxu0 0.0
    %81 = vmatpush1.msra.mxu0 %v36
    %82 = vmatprep.subr.mxu0 0.0
    %83 = vmatpush2.msra.mxu0 0.0
    %84 = vmatprep.subr.mxu0 0.0
    %85 = vmatpush2.msra.mxu0 0.0
    %86 = vmatprep.subr.mxu0 0.0
    %87 = vmatpush2.msra.mxu0 0.0
    %88 = vmatprep.subr.mxu0 0.0
    %89 = vmatpush2.msra.mxu0 0.0
    %90 = vmatprep.subr.mxu0 0.0
    %91 = vmatpush2.msra.mxu0 0.0
    %92 = vmatprep.subr.mxu0 0.0
    %93 = vmatpush2.msra.mxu0 0.0
    %94 = vmatprep.subr.mxu0 0.0
    %95 = vmatpush2.msra.mxu0 0.0
    %96 = vmatprep.subr.mxu0 0.0
    %97 = vmatpush2.msra.mxu0 0.0
    %98 = vmatprep.subr.mxu0 0.0
    %99 = vmatpush2.msra.mxu0 0.0
    %100 = vmatprep.subr.mxu0 0.0
    %101 = vmatpush2.msra.mxu0 0.0
    %102 = vmatprep.subr.mxu0 0.0
    %103 = vmatpush2.msra.mxu0 0.0
    %104 = vmatprep.subr.mxu0 0.0
    %105 = vmatpush2.msra.mxu0 0.0
    %106 = vmatprep.subr.mxu0 0.0
    %107 = vmatpush2.msra.mxu0 0.0
    %108 = vmatprep.subr.mxu0 0.0
    %109 = vmatpush2.msra.mxu0 0.0
    %110 = vmatprep.subr.mxu0 0.0
    %111 = vmatpush2.msra.mxu0 0.0
    %112 = vmatprep.subr.mxu0 0.0
    %113 = vmatpush2.msra.mxu0 0.0
    %114 = vmatprep.mubr.f32.mxu0 0.0
    %115 = vmatmul.mubr.f32.gmra.mxu0 %v45
    %v116 = vpop.f32.mrf.mxu0
    %v117 = vadd.f32 %v42, %v116
    %v118 = vpop.f32.mrf.mxu0
    %119 = vmatprep.mubr.f32.mxu0 0.0
    %120 = vmatmul.mubr.f32.gmra.mxu0 %v48
    %v121 = vpop.f32.mrf.mxu0
    %v122 = vadd.f32 %v42, %v121
    %v123 = vpop.f32.mrf.mxu0
    %124 = vdwg.mxu0
    %v125 = vmax.f32 %v117, 0.0
    %v126 = vmax.f32 %v122, 0.0
    %v127 = vld [vmem:[%s1] sm:$0xff]
    %v128 = vld [vmem:[%s1 + $0x8] sm:$0xff]
    %v129 = vld [vmem:[#allocation2 + $0x10] sm:$0xff]
    %v130 = vld [vmem:[#allocation2 + $0x18] sm:$0xff]
    %v131 = vld [vmem:[%s4 + $0x1] sm:$0x1]
    %v132 = vlaneseq
    %v133 = vshrl.u32 %v132, 7
    %v134 = vsub.s32 0, %v133
    %v135 = vrot.slane %v131, %v134
    %v137 = vsel %vm43, %v127, 0
    %v140 = vsel %vm43, %v128, 0
    %142 = vmatprep.subr.mxu0 0.0
    %143 = vmatpush1.msra.mxu0 0.0
    %144 = vmatprep.subr.mxu0 0.0
    %145 = vmatpush1.msra.mxu0 0.0
    %146 = vmatprep.subr.mxu0 0.0
    %147 = vmatpush1.msra.mxu0 0.0
    %148 = vmatprep.subr.mxu0 0.0
    %149 = vmatpush1.msra.mxu0 0.0
    %150 = vmatprep.subr.mxu0 0.0
    %151 = vmatpush1.msra.mxu0 0.0
    %152 = vmatprep.subr.mxu0 0.0
    %153 = vmatpush1.msra.mxu0 0.0
    %154 = vmatprep.subr.mxu0 0.0
    %155 = vmatpush1.msra.mxu0 0.0
    %156 = vmatprep.subr.mxu0 0.0
    %157 = vmatpush1.msra.mxu0 0.0
    %158 = vmatprep.subr.mxu0 0.0
    %159 = vmatpush1.msra.mxu0 0.0
    %160 = vmatprep.subr.mxu0 0.0
    %161 = vmatpush1.msra.mxu0 0.0
    %162 = vmatprep.subr.mxu0 0.0
    %163 = vmatpush1.msra.mxu0 0.0
    %164 = vmatprep.subr.mxu0 0.0
    %165 = vmatpush1.msra.mxu0 0.0
    %166 = vmatprep.subr.mxu0 0.0
    %167 = vmatpush1.msra.mxu0 0.0
    %168 = vmatprep.subr.mxu0 0.0
    %169 = vmatpush1.msra.mxu0 0.0
    %170 = vmatprep.subr.mxu0 0.0
    %171 = vmatpush1.msra.mxu0 %v130
    %172 = vmatprep.subr.mxu0 0.0
    %173 = vmatpush1.msra.mxu0 %v129
    %174 = vmatprep.subr.mxu0 0.0
    %175 = vmatpush2.msra.mxu0 0.0
    %176 = vmatprep.subr.mxu0 0.0
    %177 = vmatpush2.msra.mxu0 0.0
    %178 = vmatprep.subr.mxu0 0.0
    %179 = vmatpush2.msra.mxu0 0.0
    %180 = vmatprep.subr.mxu0 0.0
    %181 = vmatpush2.msra.mxu0 0.0
    %182 = vmatprep.subr.mxu0 0.0
    %183 = vmatpush2.msra.mxu0 0.0
    %184 = vmatprep.subr.mxu0 0.0
    %185 = vmatpush2.msra.mxu0 0.0
    %186 = vmatprep.subr.mxu0 0.0
    %187 = vmatpush2.msra.mxu0 0.0
    %188 = vmatprep.subr.mxu0 0.0
    %189 = vmatpush2.msra.mxu0 0.0
    %190 = vmatprep.subr.mxu0 0.0
    %191 = vmatpush2.msra.mxu0 0.0
    %192 = vmatprep.subr.mxu0 0.0
    %193 = vmatpush2.msra.mxu0 0.0
    %194 = vmatprep.subr.mxu0 0.0
    %195 = vmatpush2.msra.mxu0 0.0
    %196 = vmatprep.subr.mxu0 0.0
    %197 = vmatpush2.msra.mxu0 0.0
    %198 = vmatprep.subr.mxu0 0.0
    %199 = vmatpush2.msra.mxu0 0.0
    %200 = vmatprep.subr.mxu0 0.0
    %201 = vmatpush2.msra.mxu0 0.0
    %202 = vmatprep.subr.mxu0 0.0
    %203 = vmatpush2.msra.mxu0 0.0
    %204 = vmatprep.subr.mxu0 0.0
    %205 = vmatpush2.msra.mxu0 0.0
    %206 = vmatprep.mubr.f32.mxu0 0.0
    %207 = vmatmul.mubr.f32.gmra.mxu0 %v137
    %v208 = vpop.f32.mrf.mxu0
    %v209 = vadd.f32 %v135, %v208
    %v210 = vpop.f32.mrf.mxu0
    %211 = vmatprep.mubr.f32.mxu0 0.0
    %212 = vmatmul.mubr.f32.gmra.mxu0 %v140
    %v213 = vpop.f32.mrf.mxu0
    %v214 = vadd.f32 %v135, %v213
    %v215 = vpop.f32.mrf.mxu0
    %216 = vdwg.mxu0
    %v217 = vmax.f32 %v209, 0.0
    %v218 = vmax.f32 %v214, 0.0
    %v219 = vld [vmem:[#allocation2 + $0x20] sm:$0xff]
    %v220 = vld [vmem:[#allocation2 + $0x28] sm:$0xff]
    %v221 = vld [vmem:[#allocation2 + $0x30] sm:$0xff]
    %v222 = vld [vmem:[#allocation2 + $0x38] sm:$0xff]
    %v223 = vld [vmem:[#allocation2 + $0x40] sm:$0xff]
    %v224 = vld [vmem:[#allocation2 + $0x48] sm:$0xff]
    %v225 = vld [vmem:[#allocation2 + $0x50] sm:$0xff]
    %v226 = vld [vmem:[#allocation2 + $0x58] sm:$0xff]
    %vm227 = vcmask 261120
    %v229 = vsel %vm227, %v217, 0
    %v232 = vsel %vm227, %v218, 0
    %234 = vmatprep.subr.mxu0 0.0
    %235 = vmatpush1.msra.mxu0 0.0
    %236 = vmatprep.subr.mxu0 0.0
    %237 = vmatpush1.msra.mxu0 0.0
    %238 = vmatprep.subr.mxu0 0.0
    %239 = vmatpush1.msra.mxu0 0.0
    %240 = vmatprep.subr.mxu0 0.0
    %241 = vmatpush1.msra.mxu0 0.0
    %242 = vmatprep.subr.mxu0 0.0
    %243 = vmatpush1.msra.mxu0 0.0
    %244 = vmatprep.subr.mxu0 0.0
    %245 = vmatpush1.msra.mxu0 0.0
    %246 = vmatprep.subr.mxu0 0.0
    %247 = vmatpush1.msra.mxu0 0.0
    %248 = vmatprep.subr.mxu0 0.0
    %249 = vmatpush1.msra.mxu0 0.0
    %250 = vmatprep.subr.mxu0 0.0
    %251 = vmatpush1.msra.mxu0 0.0
    %252 = vmatprep.subr.mxu0 0.0
    %253 = vmatpush1.msra.mxu0 0.0
    %254 = vmatprep.subr.mxu0 0.0
    %255 = vmatpush1.msra.mxu0 0.0
    %256 = vmatprep.subr.mxu0 0.0
    %257 = vmatpush1.msra.mxu0 0.0
    %258 = vmatprep.subr.mxu0 0.0
    %259 = vmatpush1.msra.mxu0 %v226
    %260 = vmatprep.subr.mxu0 0.0
    %261 = vmatpush1.msra.mxu0 %v225
    %262 = vmatprep.subr.mxu0 0.0
    %263 = vmatpush1.msra.mxu0 %v224
    %264 = vmatprep.subr.mxu0 0.0
    %265 = vmatpush1.msra.mxu0 %v223
    %266 = vmatprep.subr.mxu0 0.0
    %267 = vmatpush2.msra.mxu0 0.0
    %268 = vmatprep.subr.mxu0 0.0
    %269 = vmatpush2.msra.mxu0 0.0
    %270 = vmatprep.subr.mxu0 0.0
    %271 = vmatpush2.msra.mxu0 0.0
    %272 = vmatprep.subr.mxu0 0.0
    %273 = vmatpush2.msra.mxu0 0.0
    %274 = vmatprep.subr.mxu0 0.0
    %275 = vmatpush2.msra.mxu0 0.0
    %276 = vmatprep.subr.mxu0 0.0
    %277 = vmatpush2.msra.mxu0 0.0
    %278 = vmatprep.subr.mxu0 0.0
    %279 = vmatpush2.msra.mxu0 0.0
    %280 = vmatprep.subr.mxu0 0.0
    %281 = vmatpush2.msra.mxu0 0.0
    %282 = vmatprep.subr.mxu0 0.0
    %283 = vmatpush2.msra.mxu0 0.0
    %284 = vmatprep.subr.mxu0 0.0
    %285 = vmatpush2.msra.mxu0 0.0
    %286 = vmatprep.subr.mxu0 0.0
    %287 = vmatpush2.msra.mxu0 0.0
    %288 = vmatprep.subr.mxu0 0.0
    %289 = vmatpush2.msra.mxu0 0.0
    %290 = vmatprep.subr.mxu0 0.0
    %291 = vmatpush2.msra.mxu0 0.0
    %292 = vmatprep.subr.mxu0 0.0
    %293 = vmatpush2.msra.mxu0 0.0
    %294 = vmatprep.subr.mxu0 0.0
    %295 = vmatpush2.msra.mxu0 0.0
    %296 = vmatprep.subr.mxu0 0.0
    %297 = vmatpush2.msra.mxu0 0.0
    %298 = vmatprep.mubr.f32.mxu0 0.0
    %299 = vmatmul.mubr.f32.gmra.mxu0 %v229
    %v300 = vpop.f32.mrf.mxu0
    %v301 = vadd.f32 0.0, %v300
    %v302 = vpop.f32.mrf.mxu0
    %303 = vmatprep.mubr.f32.mxu0 0.0
    %304 = vmatmul.mubr.f32.gmra.mxu0 %v232
    %v305 = vpop.f32.mrf.mxu0
    %v306 = vadd.f32 0.0, %v305
    %v307 = vpop.f32.mrf.mxu0
    %308 = vdwg.mxu0
    %v310 = vsel %vm227, %v125, 0
    %v313 = vsel %vm227, %v126, 0
    %315 = vmatprep.subr.mxu0 0.0
    %316 = vmatpush1.msra.mxu0 0.0
    %317 = vmatprep.subr.mxu0 0.0
    %318 = vmatpush1.msra.mxu0 0.0
    %319 = vmatprep.subr.mxu0 0.0
    %320 = vmatpush1.msra.mxu0 0.0
    %321 = vmatprep.subr.mxu0 0.0
    %322 = vmatpush1.msra.mxu0 0.0
    %323 = vmatprep.subr.mxu0 0.0
    %324 = vmatpush1.msra.mxu0 0.0
    %325 = vmatprep.subr.mxu0 0.0
    %326 = vmatpush1.msra.mxu0 0.0
    %327 = vmatprep.subr.mxu0 0.0
    %328 = vmatpush1.msra.mxu0 0.0
    %329 = vmatprep.subr.mxu0 0.0
    %330 = vmatpush1.msra.mxu0 0.0
    %331 = vmatprep.subr.mxu0 0.0
    %332 = vmatpush1.msra.mxu0 0.0
    %333 = vmatprep.subr.mxu0 0.0
    %334 = vmatpush1.msra.mxu0 0.0
    %335 = vmatprep.subr.mxu0 0.0
    %336 = vmatpush1.msra.mxu0 0.0
    %337 = vmatprep.subr.mxu0 0.0
    %338 = vmatpush1.msra.mxu0 0.0
    %339 = vmatprep.subr.mxu0 0.0
    %340 = vmatpush1.msra.mxu0 %v222
    %341 = vmatprep.subr.mxu0 0.0
    %342 = vmatpush1.msra.mxu0 %v221
    %343 = vmatprep.subr.mxu0 0.0
    %344 = vmatpush1.msra.mxu0 %v220
    %345 = vmatprep.subr.mxu0 0.0
    %346 = vmatpush1.msra.mxu0 %v219
    %347 = vmatprep.subr.mxu0 0.0
    %348 = vmatpush2.msra.mxu0 0.0
    %349 = vmatprep.subr.mxu0 0.0
    %350 = vmatpush2.msra.mxu0 0.0
    %351 = vmatprep.subr.mxu0 0.0
    %352 = vmatpush2.msra.mxu0 0.0
    %353 = vmatprep.subr.mxu0 0.0
    %354 = vmatpush2.msra.mxu0 0.0
    %355 = vmatprep.subr.mxu0 0.0
    %356 = vmatpush2.msra.mxu0 0.0
    %357 = vmatprep.subr.mxu0 0.0
    %358 = vmatpush2.msra.mxu0 0.0
    %359 = vmatprep.subr.mxu0 0.0
    %360 = vmatpush2.msra.mxu0 0.0
    %361 = vmatprep.subr.mxu0 0.0
    %362 = vmatpush2.msra.mxu0 0.0
    %363 = vmatprep.subr.mxu0 0.0
    %364 = vmatpush2.msra.mxu0 0.0
    %365 = vmatprep.subr.mxu0 0.0
    %366 = vmatpush2.msra.mxu0 0.0
    %367 = vmatprep.subr.mxu0 0.0
    %368 = vmatpush2.msra.mxu0 0.0
    %369 = vmatprep.subr.mxu0 0.0
    %370 = vmatpush2.msra.mxu0 0.0
    %371 = vmatprep.subr.mxu0 0.0
    %372 = vmatpush2.msra.mxu0 0.0
    %373 = vmatprep.subr.mxu0 0.0
    %374 = vmatpush2.msra.mxu0 0.0
    %375 = vmatprep.subr.mxu0 0.0
    %376 = vmatpush2.msra.mxu0 0.0
    %377 = vmatprep.subr.mxu0 0.0
    %378 = vmatpush2.msra.mxu0 0.0
    %379 = vmatprep.mubr.f32.mxu0 0.0
    %380 = vmatmul.mubr.f32.gmra.mxu0 %v310
    %v381 = vpop.f32.mrf.mxu0
    %v382 = vadd.f32 %v301, %v381
    %v383 = vpop.f32.mrf.mxu0
    %384 = vmatprep.mubr.f32.mxu0 0.0
    %385 = vmatmul.mubr.f32.gmra.mxu0 %v313
    %v386 = vpop.f32.mrf.mxu0
    %v387 = vadd.f32 %v306, %v386
    %v388 = vpop.f32.mrf.mxu0
    %389 = vdwg.mxu0
    %v390 = vld [vmem:[%s2] sm:$0xff]
    %v391 = vld [vmem:[%s2 + $0x8] sm:$0xff]
    %v392 = vld [vmem:[%s4 + $0x2] sm:$0x1]
    %394 = vset.pattern.permute.xlu0 0
    %395 = vperm.xlu0 %394, %v390
    %v396 = vpop.permute.xlu0 %395
    %399 = vset.pattern.permute.xlu0 0
    %400 = vperm.xlu0 %399, %v391
    %v401 = vpop.permute.xlu0 %400
    %v403 = vlaneseq
    %v404 = vshrl.u32 %v403, 7
    %v405 = vsub.s32 0, %v404
    %v406 = vrot.slane %v392, %v405
    %v407 = vmul.f32 %v396, %v406
    %v408 = vmul.f32 %v401, %v406
    %v409 = vadd.f32 %v382, %v407
    %v410 = vadd.f32 %v387, %v408
    %v411 = vld [vmem:[%s4 + $0x3] sm:$0x1]
    %v412 = vlaneseq
    %v413 = vshrl.u32 %v412, 7
    %v414 = vsub.s32 0, %v413
    %v415 = vrot.slane %v411, %v414
    %v416 = vadd.f32 %v409, %v415
    %v417 = vadd.f32 %v410, %v415
    %v418 = vld [vmem:[#allocation2 + $0x60] sm:$0xff]
    %v419 = vld [vmem:[#allocation2 + $0x68] sm:$0xff]
    %v420 = vld [vmem:[#allocation2 + $0x70] sm:$0xff]
    %v421 = vld [vmem:[#allocation2 + $0x78] sm:$0xff]
    %v422 = vld [vmem:[%s4 + $0x4] sm:$0x1]
    %v423 = vlaneseq
    %v424 = vshrl.u32 %v423, 7
    %v425 = vsub.s32 0, %v424
    %v426 = vrot.slane %v422, %v425
    %v428 = vsel %vm227, %v416, 0
    %v431 = vsel %vm227, %v417, 0
    %433 = vmatprep.subr.mxu0 0.0
    %434 = vmatpush1.msra.mxu0 0.0
    %435 = vmatprep.subr.mxu0 0.0
    %436 = vmatpush1.msra.mxu0 0.0
    %437 = vmatprep.subr.mxu0 0.0
    %438 = vmatpush1.msra.mxu0 0.0
    %439 = vmatprep.subr.mxu0 0.0
    %440 = vmatpush1.msra.mxu0 0.0
    %441 = vmatprep.subr.mxu0 0.0
    %442 = vmatpush1.msra.mxu0 0.0
    %443 = vmatprep.subr.mxu0 0.0
    %444 = vmatpush1.msra.mxu0 0.0
    %445 = vmatprep.subr.mxu0 0.0
    %446 = vmatpush1.msra.mxu0 0.0
    %447 = vmatprep.subr.mxu0 0.0
    %448 = vmatpush1.msra.mxu0 0.0
    %449 = vmatprep.subr.mxu0 0.0
    %450 = vmatpush1.msra.mxu0 0.0
    %451 = vmatprep.subr.mxu0 0.0
    %452 = vmatpush1.msra.mxu0 0.0
    %453 = vmatprep.subr.mxu0 0.0
    %454 = vmatpush1.msra.mxu0 0.0
    %455 = vmatprep.subr.mxu0 0.0
    %456 = vmatpush1.msra.mxu0 0.0
    %457 = vmatprep.subr.mxu0 0.0
    %458 = vmatpush1.msra.mxu0 %v421
    %459 = vmatprep.subr.mxu0 0.0
    %460 = vmatpush1.msra.mxu0 %v420
    %461 = vmatprep.subr.mxu0 0.0
    %462 = vmatpush1.msra.mxu0 %v419
    %463 = vmatprep.subr.mxu0 0.0
    %464 = vmatpush1.msra.mxu0 %v418
    %465 = vmatprep.subr.mxu0 0.0
    %466 = vmatpush2.msra.mxu0 0.0
    %467 = vmatprep.subr.mxu0 0.0
    %468 = vmatpush2.msra.mxu0 0.0
    %469 = vmatprep.subr.mxu0 0.0
    %470 = vmatpush2.msra.mxu0 0.0
    %471 = vmatprep.subr.mxu0 0.0
    %472 = vmatpush2.msra.mxu0 0.0
    %473 = vmatprep.subr.mxu0 0.0
    %474 = vmatpush2.msra.mxu0 0.0
    %475 = vmatprep.subr.mxu0 0.0
    %476 = vmatpush2.msra.mxu0 0.0
    %477 = vmatprep.subr.mxu0 0.0
    %478 = vmatpush2.msra.mxu0 0.0
    %479 = vmatprep.subr.mxu0 0.0
    %480 = vmatpush2.msra.mxu0 0.0
    %481 = vmatprep.subr.mxu0 0.0
    %482 = vmatpush2.msra.mxu0 0.0
    %483 = vmatprep.subr.mxu0 0.0
    %484 = vmatpush2.msra.mxu0 0.0
    %485 = vmatprep.subr.mxu0 0.0
    %486 = vmatpush2.msra.mxu0 0.0
    %487 = vmatprep.subr.mxu0 0.0
    %488 = vmatpush2.msra.mxu0 0.0
    %489 = vmatprep.subr.mxu0 0.0
    %490 = vmatpush2.msra.mxu0 0.0
    %491 = vmatprep.subr.mxu0 0.0
    %492 = vmatpush2.msra.mxu0 0.0
    %493 = vmatprep.subr.mxu0 0.0
    %494 = vmatpush2.msra.mxu0 0.0
    %495 = vmatprep.subr.mxu0 0.0
    %496 = vmatpush2.msra.mxu0 0.0
    %497 = vmatprep.mubr.f32.mxu0 0.0
    %498 = vmatmul.mubr.f32.gmra.mxu0 %v428
    %v499 = vpop.f32.mrf.mxu0
    %v500 = vadd.f32 %v426, %v499
    %v501 = vpop.f32.mrf.mxu0
    %502 = vmatprep.mubr.f32.mxu0 0.0
    %503 = vmatmul.mubr.f32.gmra.mxu0 %v431
    %v504 = vpop.f32.mrf.mxu0
    %v505 = vadd.f32 %v426, %v504
    %v506 = vpop.f32.mrf.mxu0
    %507 = vdwg.mxu0
    %509 = vrot.lane.b32.xlu0 %v500, 96
    %v510 = vpop.permute.xlu0 %509
    %vm511 = vcmask 64512
    %v512 = vsel %vm511, %v500, 0
    %v514 = vsel %vm511, %v510, 0
    %516 = vmatprep.subr.mxu0 0.0
    %517 = vmatpush1.xpose.msra.mxu0 0.0
    %518 = vmatprep.subr.mxu0 0.0
    %519 = vmatpush1.xpose.msra.mxu0 0.0
    %520 = vmatprep.subr.mxu0 0.0
    %521 = vmatpush1.xpose.msra.mxu0 0.0
    %522 = vmatprep.subr.mxu0 0.0
    %523 = vmatpush1.xpose.msra.mxu0 0.0
    %524 = vmatprep.subr.mxu0 0.0
    %525 = vmatpush1.xpose.msra.mxu0 0.0
    %526 = vmatprep.subr.mxu0 0.0
    %527 = vmatpush1.xpose.msra.mxu0 0.0
    %528 = vmatprep.subr.mxu0 0.0
    %529 = vmatpush1.xpose.msra.mxu0 0.0
    %530 = vmatprep.subr.mxu0 0.0
    %531 = vmatpush1.xpose.msra.mxu0 0.0
    %532 = vmatprep.subr.mxu0 0.0
    %533 = vmatpush1.xpose.msra.mxu0 0.0
    %534 = vmatprep.subr.mxu0 0.0
    %535 = vmatpush1.xpose.msra.mxu0 0.0
    %536 = vmatprep.subr.mxu0 0.0
    %537 = vmatpush1.xpose.msra.mxu0 0.0
    %538 = vmatprep.subr.mxu0 0.0
    %539 = vmatpush1.xpose.msra.mxu0 0.0
    %540 = vmatprep.subr.mxu0 0.0
    %541 = vmatpush1.xpose.msra.mxu0 0.0
    %542 = vmatprep.subr.mxu0 0.0
    %543 = vmatpush1.xpose.msra.mxu0 0.0
    %544 = vmatprep.subr.mxu0 0.0
    %545 = vmatpush1.xpose.msra.mxu0 0.0
    %546 = vmatprep.subr.mxu0 0.0
    %547 = vmatpush1.xpose.msra.mxu0 %v514
    %548 = vmatprep.subr.mxu0 0.0
    %549 = vmatpush2.xpose.msra.mxu0 0.0
    %550 = vmatprep.subr.mxu0 0.0
    %551 = vmatpush2.xpose.msra.mxu0 0.0
    %552 = vmatprep.subr.mxu0 0.0
    %553 = vmatpush2.xpose.msra.mxu0 0.0
    %554 = vmatprep.subr.mxu0 0.0
    %555 = vmatpush2.xpose.msra.mxu0 0.0
    %556 = vmatprep.subr.mxu0 0.0
    %557 = vmatpush2.xpose.msra.mxu0 0.0
    %558 = vmatprep.subr.mxu0 0.0
    %559 = vmatpush2.xpose.msra.mxu0 0.0
    %560 = vmatprep.subr.mxu0 0.0
    %561 = vmatpush2.xpose.msra.mxu0 0.0
    %562 = vmatprep.subr.mxu0 0.0
    %563 = vmatpush2.xpose.msra.mxu0 0.0
    %564 = vmatprep.subr.mxu0 0.0
    %565 = vmatpush2.xpose.msra.mxu0 0.0
    %566 = vmatprep.subr.mxu0 0.0
    %567 = vmatpush2.xpose.msra.mxu0 0.0
    %568 = vmatprep.subr.mxu0 0.0
    %569 = vmatpush2.xpose.msra.mxu0 0.0
    %570 = vmatprep.subr.mxu0 0.0
    %571 = vmatpush2.xpose.msra.mxu0 0.0
    %572 = vmatprep.subr.mxu0 0.0
    %573 = vmatpush2.xpose.msra.mxu0 0.0
    %574 = vmatprep.subr.mxu0 0.0
    %575 = vmatpush2.xpose.msra.mxu0 0.0
    %576 = vmatprep.subr.mxu0 0.0
    %577 = vmatpush2.xpose.msra.mxu0 0.0
    %578 = vmatprep.subr.mxu0 0.0
    %579 = vmatpush2.xpose.msra.mxu0 0.0
    %580 = vmatprep.mubr.f32.mxu0 0.0
    %581 = vmatmul.mubr.f32.gmra.mxu0 %v512
    %v582 = vpop.f32.mrf.mxu0
    %v583 = vadd.f32 0.0, %v582
    %v584 = vpop.f32.mrf.mxu0
    %585 = vdwg.mxu0
    %587 = vrot.lane.b32.xlu0 %v505, 96
    %v588 = vpop.permute.xlu0 %587
    %v589 = vsel %vm511, %v505, 0
    %v591 = vsel %vm511, %v588, 0
    %593 = vmatprep.subr.mxu0 0.0
    %594 = vmatpush1.xpose.msra.mxu0 0.0
    %595 = vmatprep.subr.mxu0 0.0
    %596 = vmatpush1.xpose.msra.mxu0 0.0
    %597 = vmatprep.subr.mxu0 0.0
    %598 = vmatpush1.xpose.msra.mxu0 0.0
    %599 = vmatprep.subr.mxu0 0.0
    %600 = vmatpush1.xpose.msra.mxu0 0.0
    %601 = vmatprep.subr.mxu0 0.0
    %602 = vmatpush1.xpose.msra.mxu0 0.0
    %603 = vmatprep.subr.mxu0 0.0
    %604 = vmatpush1.xpose.msra.mxu0 0.0
    %605 = vmatprep.subr.mxu0 0.0
    %606 = vmatpush1.xpose.msra.mxu0 0.0
    %607 = vmatprep.subr.mxu0 0.0
    %608 = vmatpush1.xpose.msra.mxu0 0.0
    %609 = vmatprep.subr.mxu0 0.0
    %610 = vmatpush1.xpose.msra.mxu0 0.0
    %611 = vmatprep.subr.mxu0 0.0
    %612 = vmatpush1.xpose.msra.mxu0 0.0
    %613 = vmatprep.subr.mxu0 0.0
    %614 = vmatpush1.xpose.msra.mxu0 0.0
    %615 = vmatprep.subr.mxu0 0.0
    %616 = vmatpush1.xpose.msra.mxu0 0.0
    %617 = vmatprep.subr.mxu0 0.0
    %618 = vmatpush1.xpose.msra.mxu0 0.0
    %619 = vmatprep.subr.mxu0 0.0
    %620 = vmatpush1.xpose.msra.mxu0 0.0
    %621 = vmatprep.subr.mxu0 0.0
    %622 = vmatpush1.xpose.msra.mxu0 0.0
    %623 = vmatprep.subr.mxu0 0.0
    %624 = vmatpush1.xpose.msra.mxu0 %v591
    %625 = vmatprep.subr.mxu0 0.0
    %626 = vmatpush2.xpose.msra.mxu0 0.0
    %627 = vmatprep.subr.mxu0 0.0
    %628 = vmatpush2.xpose.msra.mxu0 0.0
    %629 = vmatprep.subr.mxu0 0.0
    %630 = vmatpush2.xpose.msra.mxu0 0.0
    %631 = vmatprep.subr.mxu0 0.0
    %632 = vmatpush2.xpose.msra.mxu0 0.0
    %633 = vmatprep.subr.mxu0 0.0
    %634 = vmatpush2.xpose.msra.mxu0 0.0
    %635 = vmatprep.subr.mxu0 0.0
    %636 = vmatpush2.xpose.msra.mxu0 0.0
    %637 = vmatprep.subr.mxu0 0.0
    %638 = vmatpush2.xpose.msra.mxu0 0.0
    %639 = vmatprep.subr.mxu0 0.0
    %640 = vmatpush2.xpose.msra.mxu0 0.0
    %641 = vmatprep.subr.mxu0 0.0
    %642 = vmatpush2.xpose.msra.mxu0 0.0
    %643 = vmatprep.subr.mxu0 0.0
    %644 = vmatpush2.xpose.msra.mxu0 0.0
    %645 = vmatprep.subr.mxu0 0.0
    %646 = vmatpush2.xpose.msra.mxu0 0.0
    %647 = vmatprep.subr.mxu0 0.0
    %648 = vmatpush2.xpose.msra.mxu0 0.0
    %649 = vmatprep.subr.mxu0 0.0
    %650 = vmatpush2.xpose.msra.mxu0 0.0
    %651 = vmatprep.subr.mxu0 0.0
    %652 = vmatpush2.xpose.msra.mxu0 0.0
    %653 = vmatprep.subr.mxu0 0.0
    %654 = vmatpush2.xpose.msra.mxu0 0.0
    %655 = vmatprep.subr.mxu0 0.0
    %656 = vmatpush2.xpose.msra.mxu0 0.0
    %657 = vmatprep.mubr.f32.mxu0 0.0
    %658 = vmatmul.mubr.f32.gmra.mxu0 %v589
    %v659 = vpop.f32.mrf.mxu0
    %v660 = vadd.f32 0.0, %v659
    %v661 = vpop.f32.mrf.mxu0
    %662 = vdwg.mxu0
    %v663 = vmul.f32 %v583, 0.35355338
    %v664 = vmul.f32 %v660, 0.35355338
    %v665 = vsel %vm511, %v663, -inf
    %666 = vmax.xlane.f32.xlu0 %v665
    %v667 = vpop.xlane.xlu0 %666
    %v668 = vsel %vm511, %v664, -inf
    %669 = vmax.xlane.f32.xlu0 %v668
    %v670 = vpop.xlane.xlu0 %669
    %v671 = vsub.f32 %v663, %v667
    %v672 = vsub.f32 %v664, %v670
    %v673 = vmul.f32 %v671, 1.442695
    %v674 = vpow.pop %v673
    %v675 = vmul.f32 %v672, 1.442695
    %v676 = vpow.pop %v675
    %v677 = vsel %vm511, %v674, 0.0
    %678 = vadd.xlane.f32.xlu0 %v677
    %v679 = vpop.xlane.xlu0 %678
    %v680 = vsel %vm511, %v676, 0.0
    %681 = vadd.xlane.f32.xlu0 %v680
    %v682 = vpop.xlane.xlu0 %681
    %v683 = vrcp.pop %v679
    %v684 = vmul.f32 %v674, %v683
    %v685 = vrcp.pop %v682
    %v686 = vmul.f32 %v676, %v685
    %687 = vrot.lane.b32.xlu0 %v500, 64
    %v688 = vpop.permute.xlu0 %687
    %v691 = vsel %vm511, %v684, 0
    %693 = vmatprep.subr.mxu0 0.0
    %694 = vmatpush1.msra.mxu0 0.0
    %695 = vmatprep.subr.mxu0 0.0
    %696 = vmatpush1.msra.mxu0 0.0
    %697 = vmatprep.subr.mxu0 0.0
    %698 = vmatpush1.msra.mxu0 0.0
    %699 = vmatprep.subr.mxu0 0.0
    %700 = vmatpush1.msra.mxu0 0.0
    %701 = vmatprep.subr.mxu0 0.0
    %702 = vmatpush1.msra.mxu0 0.0
    %703 = vmatprep.subr.mxu0 0.0
    %704 = vmatpush1.msra.mxu0 0.0
    %705 = vmatprep.subr.mxu0 0.0
    %706 = vmatpush1.msra.mxu0 0.0
    %707 = vmatprep.subr.mxu0 0.0
    %708 = vmatpush1.msra.mxu0 0.0
    %709 = vmatprep.subr.mxu0 0.0
    %710 = vmatpush1.msra.mxu0 0.0
    %711 = vmatprep.subr.mxu0 0.0
    %712 = vmatpush1.msra.mxu0 0.0
    %713 = vmatprep.subr.mxu0 0.0
    %714 = vmatpush1.msra.mxu0 0.0
    %715 = vmatprep.subr.mxu0 0.0
    %716 = vmatpush1.msra.mxu0 0.0
    %717 = vmatprep.subr.mxu0 0.0
    %718 = vmatpush1.msra.mxu0 0.0
    %719 = vmatprep.subr.mxu0 0.0
    %720 = vmatpush1.msra.mxu0 0.0
    %721 = vmatprep.subr.mxu0 0.0
    %722 = vmatpush1.msra.mxu0 0.0
    %723 = vmatprep.subr.mxu0 0.0
    %724 = vmatpush1.msra.mxu0 %v688
    %725 = vmatprep.subr.mxu0 0.0
    %726 = vmatpush2.msra.mxu0 0.0
    %727 = vmatprep.subr.mxu0 0.0
    %728 = vmatpush2.msra.mxu0 0.0
    %729 = vmatprep.subr.mxu0 0.0
    %730 = vmatpush2.msra.mxu0 0.0
    %731 = vmatprep.subr.mxu0 0.0
    %732 = vmatpush2.msra.mxu0 0.0
    %733 = vmatprep.subr.mxu0 0.0
    %734 = vmatpush2.msra.mxu0 0.0
    %735 = vmatprep.subr.mxu0 0.0
    %736 = vmatpush2.msra.mxu0 0.0
    %737 = vmatprep.subr.mxu0 0.0
    %738 = vmatpush2.msra.mxu0 0.0
    %739 = vmatprep.subr.mxu0 0.0
    %740 = vmatpush2.msra.mxu0 0.0
    %741 = vmatprep.subr.mxu0 0.0
    %742 = vmatpush2.msra.mxu0 0.0
    %743 = vmatprep.subr.mxu0 0.0
    %744 = vmatpush2.msra.mxu0 0.0
    %745 = vmatprep.subr.mxu0 0.0
    %746 = vmatpush2.msra.mxu0 0.0
    %747 = vmatprep.subr.mxu0 0.0
    %748 = vmatpush2.msra.mxu0 0.0
    %749 = vmatprep.subr.mxu0 0.0
    %750 = vmatpush2.msra.mxu0 0.0
    %751 = vmatprep.subr.mxu0 0.0
    %752 = vmatpush2.msra.mxu0 0.0
    %753 = vmatprep.subr.mxu0 0.0
    %754 = vmatpush2.msra.mxu0 0.0
    %755 = vmatprep.subr.mxu0 0.0
    %756 = vmatpush2.msra.mxu0 0.0
    %757 = vmatprep.mubr.f32.mxu0 0.0
    %758 = vmatmul.mubr.f32.gmra.mxu0 %v691
    %v759 = vpop.f32.mrf.mxu0
    %v760 = vadd.f32 0.0, %v759
    %v761 = vpop.f32.mrf.mxu0
    %762 = vdwg.mxu0
    %763 = vrot.lane.b32.xlu0 %v505, 64
    %v764 = vpop.permute.xlu0 %763
    %v767 = vsel %vm511, %v686, 0
    %769 = vmatprep.subr.mxu0 0.0
    %770 = vmatpush1.msra.mxu0 0.0
    %771 = vmatprep.subr.mxu0 0.0
    %772 = vmatpush1.msra.mxu0 0.0
    %773 = vmatprep.subr.mxu0 0.0
    %774 = vmatpush1.msra.mxu0 0.0
    %775 = vmatprep.subr.mxu0 0.0
    %776 = vmatpush1.msra.mxu0 0.0
    %777 = vmatprep.subr.mxu0 0.0
    %778 = vmatpush1.msra.mxu0 0.0
    %779 = vmatprep.subr.mxu0 0.0
    %780 = vmatpush1.msra.mxu0 0.0
    %781 = vmatprep.subr.mxu0 0.0
    %782 = vmatpush1.msra.mxu0 0.0
    %783 = vmatprep.subr.mxu0 0.0
    %784 = vmatpush1.msra.mxu0 0.0
    %785 = vmatprep.subr.mxu0 0.0
    %786 = vmatpush1.msra.mxu0 0.0
    %787 = vmatprep.subr.mxu0 0.0
    %788 = vmatpush1.msra.mxu0 0.0
    %789 = vmatprep.subr.mxu0 0.0
    %790 = vmatpush1.msra.mxu0 0.0
    %791 = vmatprep.subr.mxu0 0.0
    %792 = vmatpush1.msra.mxu0 0.0
    %793 = vmatprep.subr.mxu0 0.0
    %794 = vmatpush1.msra.mxu0 0.0
    %795 = vmatprep.subr.mxu0 0.0
    %796 = vmatpush1.msra.mxu0 0.0
    %797 = vmatprep.subr.mxu0 0.0
    %798 = vmatpush1.msra.mxu0 0.0
    %799 = vmatprep.subr.mxu0 0.0
    %800 = vmatpush1.msra.mxu0 %v764
    %801 = vmatprep.subr.mxu0 0.0
    %802 = vmatpush2.msra.mxu0 0.0
    %803 = vmatprep.subr.mxu0 0.0
    %804 = vmatpush2.msra.mxu0 0.0
    %805 = vmatprep.subr.mxu0 0.0
    %806 = vmatpush2.msra.mxu0 0.0
    %807 = vmatprep.subr.mxu0 0.0
    %808 = vmatpush2.msra.mxu0 0.0
    %809 = vmatprep.subr.mxu0 0.0
    %810 = vmatpush2.msra.mxu0 0.0
    %811 = vmatprep.subr.mxu0 0.0
    %812 = vmatpush2.msra.mxu0 0.0
    %813 = vmatprep.subr.mxu0 0.0
    %814 = vmatpush2.msra.mxu0 0.0
    %815 = vmatprep.subr.mxu0 0.0
    %816 = vmatpush2.msra.mxu0 0.0
    %817 = vmatprep.subr.mxu0 0.0
    %818 = vmatpush2.msra.mxu0 0.0
    %819 = vmatprep.subr.mxu0 0.0
    %820 = vmatpush2.msra.mxu0 0.0
    %821 = vmatprep.subr.mxu0 0.0
    %822 = vmatpush2.msra.mxu0 0.0
    %823 = vmatprep.subr.mxu0 0.0
    %824 = vmatpush2.msra.mxu0 0.0
    %825 = vmatprep.subr.mxu0 0.0
    %826 = vmatpush2.msra.mxu0 0.0
    %827 = vmatprep.subr.mxu0 0.0
    %828 = vmatpush2.msra.mxu0 0.0
    %829 = vmatprep.subr.mxu0 0.0
    %830 = vmatpush2.msra.mxu0 0.0
    %831 = vmatprep.subr.mxu0 0.0
    %832 = vmatpush2.msra.mxu0 0.0
    %833 = vmatprep.mubr.f32.mxu0 0.0
    %834 = vmatmul.mubr.f32.gmra.mxu0 %v767
    %v835 = vpop.f32.mrf.mxu0
    %v836 = vadd.f32 0.0, %v835
    %v837 = vpop.f32.mrf.mxu0
    %838 = vdwg.mxu0
    %839 = vrot.lane.b32.xlu0 %v500, 120
    %v840 = vpop.permute.xlu0 %839
    %841 = vrot.lane.b32.xlu0 %v500, 88
    %v842 = vpop.permute.xlu0 %841
    %v843 = vsel %vm511, %v840, 0
    %v845 = vsel %vm511, %v842, 0
    %847 = vmatprep.subr.mxu0 0.0
    %848 = vmatpush1.xpose.msra.mxu0 0.0
    %849 = vmatprep.subr.mxu0 0.0
    %850 = vmatpush1.xpose.msra.mxu0 0.0
    %851 = vmatprep.subr.mxu0 0.0
    %852 = vmatpush1.xpose.msra.mxu0 0.0
    %853 = vmatprep.subr.mxu0 0.0
    %854 = vmatpush1.xpose.msra.mxu0 0.0
    %855 = vmatprep.subr.mxu0 0.0
    %856 = vmatpush1.xpose.msra.mxu0 0.0
    %857 = vmatprep.subr.mxu0 0.0
    %858 = vmatpush1.xpose.msra.mxu0 0.0
    %859 = vmatprep.subr.mxu0 0.0
    %860 = vmatpush1.xpose.msra.mxu0 0.0
    %861 = vmatprep.subr.mxu0 0.0
    %862 = vmatpush1.xpose.msra.mxu0 0.0
    %863 = vmatprep.subr.mxu0 0.0
    %864 = vmatpush1.xpose.msra.mxu0 0.0
    %865 = vmatprep.subr.mxu0 0.0
    %866 = vmatpush1.xpose.msra.mxu0 0.0
    %867 = vmatprep.subr.mxu0 0.0
    %868 = vmatpush1.xpose.msra.mxu0 0.0
    %869 = vmatprep.subr.mxu0 0.0
    %870 = vmatpush1.xpose.msra.mxu0 0.0
    %871 = vmatprep.subr.mxu0 0.0
    %872 = vmatpush1.xpose.msra.mxu0 0.0
    %873 = vmatprep.subr.mxu0 0.0
    %874 = vmatpush1.xpose.msra.mxu0 0.0
    %875 = vmatprep.subr.mxu0 0.0
    %876 = vmatpush1.xpose.msra.mxu0 0.0
    %877 = vmatprep.subr.mxu0 0.0
    %878 = vmatpush1.xpose.msra.mxu0 %v845
    %879 = vmatprep.subr.mxu0 0.0
    %880 = vmatpush2.xpose.msra.mxu0 0.0
    %881 = vmatprep.subr.mxu0 0.0
    %882 = vmatpush2.xpose.msra.mxu0 0.0
    %883 = vmatprep.subr.mxu0 0.0
    %884 = vmatpush2.xpose.msra.mxu0 0.0
    %885 = vmatprep.subr.mxu0 0.0
    %886 = vmatpush2.xpose.msra.mxu0 0.0
    %887 = vmatprep.subr.mxu0 0.0
    %888 = vmatpush2.xpose.msra.mxu0 0.0
    %889 = vmatprep.subr.mxu0 0.0
    %890 = vmatpush2.xpose.msra.mxu0 0.0
    %891 = vmatprep.subr.mxu0 0.0
    %892 = vmatpush2.xpose.msra.mxu0 0.0
    %893 = vmatprep.subr.mxu0 0.0
    %894 = vmatpush2.xpose.msra.mxu0 0.0
    %895 = vmatprep.subr.mxu0 0.0
    %896 = vmatpush2.xpose.msra.mxu0 0.0
    %897 = vmatprep.subr.mxu0 0.0
    %898 = vmatpush2.xpose.msra.mxu0 0.0
    %899 = vmatprep.subr.mxu0 0.0
    %900 = vmatpush2.xpose.msra.mxu0 0.0
    %901 = vmatprep.subr.mxu0 0.0
    %902 = vmatpush2.xpose.msra.mxu0 0.0
    %903 = vmatprep.subr.mxu0 0.0
    %904 = vmatpush2.xpose.msra.mxu0 0.0
    %905 = vmatprep.subr.mxu0 0.0
    %906 = vmatpush2.xpose.msra.mxu0 0.0
    %907 = vmatprep.subr.mxu0 0.0
    %908 = vmatpush2.xpose.msra.mxu0 0.0
    %909 = vmatprep.subr.mxu0 0.0
    %910 = vmatpush2.xpose.msra.mxu0 0.0
    %911 = vmatprep.mubr.f32.mxu0 0.0
    %912 = vmatmul.mubr.f32.gmra.mxu0 %v843
    %v913 = vpop.f32.mrf.mxu0
    %v914 = vadd.f32 0.0, %v913
    %v915 = vpop.f32.mrf.mxu0
    %916 = vdwg.mxu0
    %917 = vrot.lane.b32.xlu0 %v505, 120
    %v918 = vpop.permute.xlu0 %917
    %919 = vrot.lane.b32.xlu0 %v505, 88
    %v920 = vpop.permute.xlu0 %919
    %v921 = vsel %vm511, %v918, 0
    %v923 = vsel %vm511, %v920, 0
    %925 = vmatprep.subr.mxu0 0.0
    %926 = vmatpush1.xpose.msra.mxu0 0.0
    %927 = vmatprep.subr.mxu0 0.0
    %928 = vmatpush1.xpose.msra.mxu0 0.0
    %929 = vmatprep.subr.mxu0 0.0
    %930 = vmatpush1.xpose.msra.mxu0 0.0
    %931 = vmatprep.subr.mxu0 0.0
    %932 = vmatpush1.xpose.msra.mxu0 0.0
    %933 = vmatprep.subr.mxu0 0.0
    %934 = vmatpush1.xpose.msra.mxu0 0.0
    %935 = vmatprep.subr.mxu0 0.0
    %936 = vmatpush1.xpose.msra.mxu0 0.0
    %937 = vmatprep.subr.mxu0 0.0
    %938 = vmatpush1.xpose.msra.mxu0 0.0
    %939 = vmatprep.subr.mxu0 0.0
    %940 = vmatpush1.xpose.msra.mxu0 0.0
    %941 = vmatprep.subr.mxu0 0.0
    %942 = vmatpush1.xpose.msra.mxu0 0.0
    %943 = vmatprep.subr.mxu0 0.0
    %944 = vmatpush1.xpose.msra.mxu0 0.0
    %945 = vmatprep.subr.mxu0 0.0
    %946 = vmatpush1.xpose.msra.mxu0 0.0
    %947 = vmatprep.subr.mxu0 0.0
    %948 = vmatpush1.xpose.msra.mxu0 0.0
    %949 = vmatprep.subr.mxu0 0.0
    %950 = vmatpush1.xpose.msra.mxu0 0.0
    %951 = vmatprep.subr.mxu0 0.0
    %952 = vmatpush1.xpose.msra.mxu0 0.0
    %953 = vmatprep.subr.mxu0 0.0
    %954 = vmatpush1.xpose.msra.mxu0 0.0
    %955 = vmatprep.subr.mxu0 0.0
    %956 = vmatpush1.xpose.msra.mxu0 %v923
    %957 = vmatprep.subr.mxu0 0.0
    %958 = vmatpush2.xpose.msra.mxu0 0.0
    %959 = vmatprep.subr.mxu0 0.0
    %960 = vmatpush2.xpose.msra.mxu0 0.0
    %961 = vmatprep.subr.mxu0 0.0
    %962 = vmatpush2.xpose.msra.mxu0 0.0
    %963 = vmatprep.subr.mxu0 0.0
    %964 = vmatpush2.xpose.msra.mxu0 0.0
    %965 = vmatprep.subr.mxu0 0.0
    %966 = vmatpush2.xpose.msra.mxu0 0.0
    %967 = vmatprep.subr.mxu0 0.0
    %968 = vmatpush2.xpose.msra.mxu0 0.0
    %969 = vmatprep.subr.mxu0 0.0
    %970 = vmatpush2.xpose.msra.mxu0 0.0
    %971 = vmatprep.subr.mxu0 0.0
    %972 = vmatpush2.xpose.msra.mxu0 0.0
    %973 = vmatprep.subr.mxu0 0.0
    %974 = vmatpush2.xpose.msra.mxu0 0.0
    %975 = vmatprep.subr.mxu0 0.0
    %976 = vmatpush2.xpose.msra.mxu0 0.0
    %977 = vmatprep.subr.mxu0 0.0
    %978 = vmatpush2.xpose.msra.mxu0 0.0
    %979 = vmatprep.subr.mxu0 0.0
    %980 = vmatpush2.xpose.msra.mxu0 0.0
    %981 = vmatprep.subr.mxu0 0.0
    %982 = vmatpush2.xpose.msra.mxu0 0.0
    %983 = vmatprep.subr.mxu0 0.0
    %984 = vmatpush2.xpose.msra.mxu0 0.0
    %985 = vmatprep.subr.mxu0 0.0
    %986 = vmatpush2.xpose.msra.mxu0 0.0
    %987 = vmatprep.subr.mxu0 0.0
    %988 = vmatpush2.xpose.msra.mxu0 0.0
    %989 = vmatprep.mubr.f32.mxu0 0.0
    %990 = vmatmul.mubr.f32.gmra.mxu0 %v921
    %v991 = vpop.f32.mrf.mxu0
    %v992 = vadd.f32 0.0, %v991
    %v993 = vpop.f32.mrf.mxu0
    %994 = vdwg.mxu0
    %v995 = vmul.f32 %v914, 0.35355338
    %v996 = vmul.f32 %v992, 0.35355338
    %v997 = vsel %vm511, %v995, -inf
    %998 = vmax.xlane.f32.xlu0 %v997
    %v999 = vpop.xlane.xlu0 %998
    %v1000 = vsel %vm511, %v996, -inf
    %1001 = vmax.xlane.f32.xlu0 %v1000
    %v1002 = vpop.xlane.xlu0 %1001
    %v1003 = vsub.f32 %v995, %v999
    %v1004 = vsub.f32 %v996, %v1002
    %v1005 = vmul.f32 %v1003, 1.442695
    %v1006 = vpow.pop %v1005
    %v1007 = vmul.f32 %v1004, 1.442695
    %v1008 = vpow.pop %v1007
    %v1009 = vsel %vm511, %v1006, 0.0
    %1010 = vadd.xlane.f32.xlu0 %v1009
    %v1011 = vpop.xlane.xlu0 %1010
    %v1012 = vsel %vm511, %v1008, 0.0
    %1013 = vadd.xlane.f32.xlu0 %v1012
    %v1014 = vpop.xlane.xlu0 %1013
    %v1015 = vrcp.pop %v1011
    %v1016 = vmul.f32 %v1006, %v1015
    %v1017 = vrcp.pop %v1014
    %v1018 = vmul.f32 %v1008, %v1017
    %1019 = vrot.lane.b32.xlu0 %v500, 56
    %v1020 = vpop.permute.xlu0 %1019
    %v1023 = vsel %vm511, %v1016, 0
    %1025 = vmatprep.subr.mxu0 0.0
    %1026 = vmatpush1.msra.mxu0 0.0
    %1027 = vmatprep.subr.mxu0 0.0
    %1028 = vmatpush1.msra.mxu0 0.0
    %1029 = vmatprep.subr.mxu0 0.0
    %1030 = vmatpush1.msra.mxu0 0.0
    %1031 = vmatprep.subr.mxu0 0.0
    %1032 = vmatpush1.msra.mxu0 0.0
    %1033 = vmatprep.subr.mxu0 0.0
    %1034 = vmatpush1.msra.mxu0 0.0
    %1035 = vmatprep.subr.mxu0 0.0
    %1036 = vmatpush1.msra.mxu0 0.0
    %1037 = vmatprep.subr.mxu0 0.0
    %1038 = vmatpush1.msra.mxu0 0.0
    %1039 = vmatprep.subr.mxu0 0.0
    %1040 = vmatpush1.msra.mxu0 0.0
    %1041 = vmatprep.subr.mxu0 0.0
    %1042 = vmatpush1.msra.mxu0 0.0
    %1043 = vmatprep.subr.mxu0 0.0
    %1044 = vmatpush1.msra.mxu0 0.0
    %1045 = vmatprep.subr.mxu0 0.0
    %1046 = vmatpush1.msra.mxu0 0.0
    %1047 = vmatprep.subr.mxu0 0.0
    %1048 = vmatpush1.msra.mxu0 0.0
    %1049 = vmatprep.subr.mxu0 0.0
    %1050 = vmatpush1.msra.mxu0 0.0
    %1051 = vmatprep.subr.mxu0 0.0
    %1052 = vmatpush1.msra.mxu0 0.0
    %1053 = vmatprep.subr.mxu0 0.0
    %1054 = vmatpush1.msra.mxu0 0.0
    %1055 = vmatprep.subr.mxu0 0.0
    %1056 = vmatpush1.msra.mxu0 %v1020
    %1057 = vmatprep.subr.mxu0 0.0
    %1058 = vmatpush2.msra.mxu0 0.0
    %1059 = vmatprep.subr.mxu0 0.0
    %1060 = vmatpush2.msra.mxu0 0.0
    %1061 = vmatprep.subr.mxu0 0.0
    %1062 = vmatpush2.msra.mxu0 0.0
    %1063 = vmatprep.subr.mxu0 0.0
    %1064 = vmatpush2.msra.mxu0 0.0
    %1065 = vmatprep.subr.mxu0 0.0
    %1066 = vmatpush2.msra.mxu0 0.0
    %1067 = vmatprep.subr.mxu0 0.0
    %1068 = vmatpush2.msra.mxu0 0.0
    %1069 = vmatprep.subr.mxu0 0.0
    %1070 = vmatpush2.msra.mxu0 0.0
    %1071 = vmatprep.subr.mxu0 0.0
    %1072 = vmatpush2.msra.mxu0 0.0
    %1073 = vmatprep.subr.mxu0 0.0
    %1074 = vmatpush2.msra.mxu0 0.0
    %1075 = vmatprep.subr.mxu0 0.0
    %1076 = vmatpush2.msra.mxu0 0.0
    %1077 = vmatprep.subr.mxu0 0.0
    %1078 = vmatpush2.msra.mxu0 0.0
    %1079 = vmatprep.subr.mxu0 0.0
    %1080 = vmatpush2.msra.mxu0 0.0
    %1081 = vmatprep.subr.mxu0 0.0
    %1082 = vmatpush2.msra.mxu0 0.0
    %1083 = vmatprep.subr.mxu0 0.0
    %1084 = vmatpush2.msra.mxu0 0.0
    %1085 = vmatprep.subr.mxu0 0.0
    %1086 = vmatpush2.msra.mxu0 0.0
    %1087 = vmatprep.subr.mxu0 0.0
    %1088 = vmatpush2.msra.mxu0 0.0
    %1089 = vmatprep.mubr.f32.mxu0 0.0
    %1090 = vmatmul.mubr.f32.gmra.mxu0 %v1023
    %v1091 = vpop.f32.mrf.mxu0
    %v1092 = vadd.f32 0.0, %v1091
    %v1093 = vpop.f32.mrf.mxu0
    %1094 = vdwg.mxu0
    %1095 = vrot.lane.b32.xlu0 %v505, 56
    %v1096 = vpop.permute.xlu0 %1095
    %v1099 = vsel %vm511, %v1018, 0
    %1101 = vmatprep.subr.mxu0 0.0
    %1102 = vmatpush1.msra.mxu0 0.0
    %1103 = vmatprep.subr.mxu0 0.0
    %1104 = vmatpush1.msra.mxu0 0.0
    %1105 = vmatprep.subr.mxu0 0.0
    %1106 = vmatpush1.msra.mxu0 0.0
    %1107 = vmatprep.subr.mxu0 0.0
    %1108 = vmatpush1.msra.mxu0 0.0
    %1109 = vmatprep.subr.mxu0 0.0
    %1110 = vmatpush1.msra.mxu0 0.0
    %1111 = vmatprep.subr.mxu0 0.0
    %1112 = vmatpush1.msra.mxu0 0.0
    %1113 = vmatprep.subr.mxu0 0.0
    %1114 = vmatpush1.msra.mxu0 0.0
    %1115 = vmatprep.subr.mxu0 0.0
    %1116 = vmatpush1.msra.mxu0 0.0
    %1117 = vmatprep.subr.mxu0 0.0
    %1118 = vmatpush1.msra.mxu0 0.0
    %1119 = vmatprep.subr.mxu0 0.0
    %1120 = vmatpush1.msra.mxu0 0.0
    %1121 = vmatprep.subr.mxu0 0.0
    %1122 = vmatpush1.msra.mxu0 0.0
    %1123 = vmatprep.subr.mxu0 0.0
    %1124 = vmatpush1.msra.mxu0 0.0
    %1125 = vmatprep.subr.mxu0 0.0
    %1126 = vmatpush1.msra.mxu0 0.0
    %1127 = vmatprep.subr.mxu0 0.0
    %1128 = vmatpush1.msra.mxu0 0.0
    %1129 = vmatprep.subr.mxu0 0.0
    %1130 = vmatpush1.msra.mxu0 0.0
    %1131 = vmatprep.subr.mxu0 0.0
    %1132 = vmatpush1.msra.mxu0 %v1096
    %1133 = vmatprep.subr.mxu0 0.0
    %1134 = vmatpush2.msra.mxu0 0.0
    %1135 = vmatprep.subr.mxu0 0.0
    %1136 = vmatpush2.msra.mxu0 0.0
    %1137 = vmatprep.subr.mxu0 0.0
    %1138 = vmatpush2.msra.mxu0 0.0
    %1139 = vmatprep.subr.mxu0 0.0
    %1140 = vmatpush2.msra.mxu0 0.0
    %1141 = vmatprep.subr.mxu0 0.0
    %1142 = vmatpush2.msra.mxu0 0.0
    %1143 = vmatprep.subr.mxu0 0.0
    %1144 = vmatpush2.msra.mxu0 0.0
    %1145 = vmatprep.subr.mxu0 0.0
    %1146 = vmatpush2.msra.mxu0 0.0
    %1147 = vmatprep.subr.mxu0 0.0
    %1148 = vmatpush2.msra.mxu0 0.0
    %1149 = vmatprep.subr.mxu0 0.0
    %1150 = vmatpush2.msra.mxu0 0.0
    %1151 = vmatprep.subr.mxu0 0.0
    %1152 = vmatpush2.msra.mxu0 0.0
    %1153 = vmatprep.subr.mxu0 0.0
    %1154 = vmatpush2.msra.mxu0 0.0
    %1155 = vmatprep.subr.mxu0 0.0
    %1156 = vmatpush2.msra.mxu0 0.0
    %1157 = vmatprep.subr.mxu0 0.0
    %1158 = vmatpush2.msra.mxu0 0.0
    %1159 = vmatprep.subr.mxu0 0.0
    %1160 = vmatpush2.msra.mxu0 0.0
    %1161 = vmatprep.subr.mxu0 0.0
    %1162 = vmatpush2.msra.mxu0 0.0
    %1163 = vmatprep.subr.mxu0 0.0
    %1164 = vmatpush2.msra.mxu0 0.0
    %1165 = vmatprep.mubr.f32.mxu0 0.0
    %1166 = vmatmul.mubr.f32.gmra.mxu0 %v1099
    %v1167 = vpop.f32.mrf.mxu0
    %v1168 = vadd.f32 0.0, %v1167
    %v1169 = vpop.f32.mrf.mxu0
    %1170 = vdwg.mxu0
    %1171 = vrot.lane.b32.xlu0 %v500, 112
    %v1172 = vpop.permute.xlu0 %1171
    %1173 = vrot.lane.b32.xlu0 %v500, 80
    %v1174 = vpop.permute.xlu0 %1173
    %v1175 = vsel %vm511, %v1172, 0
    %v1177 = vsel %vm511, %v1174, 0
    %1179 = vmatprep.subr.mxu0 0.0
    %1180 = vmatpush1.xpose.msra.mxu0 0.0
    %1181 = vmatprep.subr.mxu0 0.0
    %1182 = vmatpush1.xpose.msra.mxu0 0.0
    %1183 = vmatprep.subr.mxu0 0.0
    %1184 = vmatpush1.xpose.msra.mxu0 0.0
    %1185 = vmatprep.subr.mxu0 0.0
    %1186 = vmatpush1.xpose.msra.mxu0 0.0
    %1187 = vmatprep.subr.mxu0 0.0
    %1188 = vmatpush1.xpose.msra.mxu0 0.0
    %1189 = vmatprep.subr.mxu0 0.0
    %1190 = vmatpush1.xpose.msra.mxu0 0.0
    %1191 = vmatprep.subr.mxu0 0.0
    %1192 = vmatpush1.xpose.msra.mxu0 0.0
    %1193 = vmatprep.subr.mxu0 0.0
    %1194 = vmatpush1.xpose.msra.mxu0 0.0
    %1195 = vmatprep.subr.mxu0 0.0
    %1196 = vmatpush1.xpose.msra.mxu0 0.0
    %1197 = vmatprep.subr.mxu0 0.0
    %1198 = vmatpush1.xpose.msra.mxu0 0.0
    %1199 = vmatprep.subr.mxu0 0.0
    %1200 = vmatpush1.xpose.msra.mxu0 0.0
    %1201 = vmatprep.subr.mxu0 0.0
    %1202 = vmatpush1.xpose.msra.mxu0 0.0
    %1203 = vmatprep.subr.mxu0 0.0
    %1204 = vmatpush1.xpose.msra.mxu0 0.0
    %1205 = vmatprep.subr.mxu0 0.0
    %1206 = vmatpush1.xpose.msra.mxu0 0.0
    %1207 = vmatprep.subr.mxu0 0.0
    %1208 = vmatpush1.xpose.msra.mxu0 0.0
    %1209 = vmatprep.subr.mxu0 0.0
    %1210 = vmatpush1.xpose.msra.mxu0 %v1177
    %1211 = vmatprep.subr.mxu0 0.0
    %1212 = vmatpush2.xpose.msra.mxu0 0.0
    %1213 = vmatprep.subr.mxu0 0.0
    %1214 = vmatpush2.xpose.msra.mxu0 0.0
    %1215 = vmatprep.subr.mxu0 0.0
    %1216 = vmatpush2.xpose.msra.mxu0 0.0
    %1217 = vmatprep.subr.mxu0 0.0
    %1218 = vmatpush2.xpose.msra.mxu0 0.0
    %1219 = vmatprep.subr.mxu0 0.0
    %1220 = vmatpush2.xpose.msra.mxu0 0.0
    %1221 = vmatprep.subr.mxu0 0.0
    %1222 = vmatpush2.xpose.msra.mxu0 0.0
    %1223 = vmatprep.subr.mxu0 0.0
    %1224 = vmatpush2.xpose.msra.mxu0 0.0
    %1225 = vmatprep.subr.mxu0 0.0
    %1226 = vmatpush2.xpose.msra.mxu0 0.0
    %1227 = vmatprep.subr.mxu0 0.0
    %1228 = vmatpush2.xpose.msra.mxu0 0.0
    %1229 = vmatprep.subr.mxu0 0.0
    %1230 = vmatpush2.xpose.msra.mxu0 0.0
    %1231 = vmatprep.subr.mxu0 0.0
    %1232 = vmatpush2.xpose.msra.mxu0 0.0
    %1233 = vmatprep.subr.mxu0 0.0
    %1234 = vmatpush2.xpose.msra.mxu0 0.0
    %1235 = vmatprep.subr.mxu0 0.0
    %1236 = vmatpush2.xpose.msra.mxu0 0.0
    %1237 = vmatprep.subr.mxu0 0.0
    %1238 = vmatpush2.xpose.msra.mxu0 0.0
    %1239 = vmatprep.subr.mxu0 0.0
    %1240 = vmatpush2.xpose.msra.mxu0 0.0
    %1241 = vmatprep.subr.mxu0 0.0
    %1242 = vmatpush2.xpose.msra.mxu0 0.0
    %1243 = vmatprep.mubr.f32.mxu0 0.0
    %1244 = vmatmul.mubr.f32.gmra.mxu0 %v1175
    %v1245 = vpop.f32.mrf.mxu0
    %v1246 = vadd.f32 0.0, %v1245
    %v1247 = vpop.f32.mrf.mxu0
    %1248 = vdwg.mxu0
    %1249 = vrot.lane.b32.xlu0 %v505, 112
    %v1250 = vpop.permute.xlu0 %1249
    %1251 = vrot.lane.b32.xlu0 %v505, 80
    %v1252 = vpop.permute.xlu0 %1251
    %v1253 = vsel %vm511, %v1250, 0
    %v1255 = vsel %vm511, %v1252, 0
    %1257 = vmatprep.subr.mxu0 0.0
    %1258 = vmatpush1.xpose.msra.mxu0 0.0
    %1259 = vmatprep.subr.mxu0 0.0
    %1260 = vmatpush1.xpose.msra.mxu0 0.0
    %1261 = vmatprep.subr.mxu0 0.0
    %1262 = vmatpush1.xpose.msra.mxu0 0.0
    %1263 = vmatprep.subr.mxu0 0.0
    %1264 = vmatpush1.xpose.msra.mxu0 0.0
    %1265 = vmatprep.subr.mxu0 0.0
    %1266 = vmatpush1.xpose.msra.mxu0 0.0
    %1267 = vmatprep.subr.mxu0 0.0
    %1268 = vmatpush1.xpose.msra.mxu0 0.0
    %1269 = vmatprep.subr.mxu0 0.0
    %1270 = vmatpush1.xpose.msra.mxu0 0.0
    %1271 = vmatprep.subr.mxu0 0.0
    %1272 = vmatpush1.xpose.msra.mxu0 0.0
    %1273 = vmatprep.subr.mxu0 0.0
    %1274 = vmatpush1.xpose.msra.mxu0 0.0
    %1275 = vmatprep.subr.mxu0 0.0
    %1276 = vmatpush1.xpose.msra.mxu0 0.0
    %1277 = vmatprep.subr.mxu0 0.0
    %1278 = vmatpush1.xpose.msra.mxu0 0.0
    %1279 = vmatprep.subr.mxu0 0.0
    %1280 = vmatpush1.xpose.msra.mxu0 0.0
    %1281 = vmatprep.subr.mxu0 0.0
    %1282 = vmatpush1.xpose.msra.mxu0 0.0
    %1283 = vmatprep.subr.mxu0 0.0
    %1284 = vmatpush1.xpose.msra.mxu0 0.0
    %1285 = vmatprep.subr.mxu0 0.0
    %1286 = vmatpush1.xpose.msra.mxu0 0.0
    %1287 = vmatprep.subr.mxu0 0.0
    %1288 = vmatpush1.xpose.msra.mxu0 %v1255
    %1289 = vmatprep.subr.mxu0 0.0
    %1290 = vmatpush2.xpose.msra.mxu0 0.0
    %1291 = vmatprep.subr.mxu0 0.0
    %1292 = vmatpush2.xpose.msra.mxu0 0.0
    %1293 = vmatprep.subr.mxu0 0.0
    %1294 = vmatpush2.xpose.msra.mxu0 0.0
    %1295 = vmatprep.subr.mxu0 0.0
    %1296 = vmatpush2.xpose.msra.mxu0 0.0
    %1297 = vmatprep.subr.mxu0 0.0
    %1298 = vmatpush2.xpose.msra.mxu0 0.0
    %1299 = vmatprep.subr.mxu0 0.0
    %1300 = vmatpush2.xpose.msra.mxu0 0.0
    %1301 = vmatprep.subr.mxu0 0.0
    %1302 = vmatpush2.xpose.msra.mxu0 0.0
    %1303 = vmatprep.subr.mxu0 0.0
    %1304 = vmatpush2.xpose.msra.mxu0 0.0
    %1305 = vmatprep.subr.mxu0 0.0
    %1306 = vmatpush2.xpose.msra.mxu0 0.0
    %1307 = vmatprep.subr.mxu0 0.0
    %1308 = vmatpush2.xpose.msra.mxu0 0.0
    %1309 = vmatprep.subr.mxu0 0.0
    %1310 = vmatpush2.xpose.msra.mxu0 0.0
    %1311 = vmatprep.subr.mxu0 0.0
    %1312 = vmatpush2.xpose.msra.mxu0 0.0
    %1313 = vmatprep.subr.mxu0 0.0
    %1314 = vmatpush2.xpose.msra.mxu0 0.0
    %1315 = vmatprep.subr.mxu0 0.0
    %1316 = vmatpush2.xpose.msra.mxu0 0.0
    %1317 = vmatprep.subr.mxu0 0.0
    %1318 = vmatpush2.xpose.msra.mxu0 0.0
    %1319 = vmatprep.subr.mxu0 0.0
    %1320 = vmatpush2.xpose.msra.mxu0 0.0
    %1321 = vmatprep.mubr.f32.mxu0 0.0
    %1322 = vmatmul.mubr.f32.gmra.mxu0 %v1253
    %v1323 = vpop.f32.mrf.mxu0
    %v1324 = vadd.f32 0.0, %v1323
    %v1325 = vpop.f32.mrf.mxu0
    %1326 = vdwg.mxu0
    %v1327 = vmul.f32 %v1246, 0.35355338
    %v1328 = vmul.f32 %v1324, 0.35355338
    %v1329 = vsel %vm511, %v1327, -inf
    %1330 = vmax.xlane.f32.xlu0 %v1329
    %v1331 = vpop.xlane.xlu0 %1330
    %v1332 = vsel %vm511, %v1328, -inf
    %1333 = vmax.xlane.f32.xlu0 %v1332
    %v1334 = vpop.xlane.xlu0 %1333
    %v1335 = vsub.f32 %v1327, %v1331
    %v1336 = vsub.f32 %v1328, %v1334
    %v1337 = vmul.f32 %v1335, 1.442695
    %v1338 = vpow.pop %v1337
    %v1339 = vmul.f32 %v1336, 1.442695
    %v1340 = vpow.pop %v1339
    %v1341 = vsel %vm511, %v1338, 0.0
    %1342 = vadd.xlane.f32.xlu0 %v1341
    %v1343 = vpop.xlane.xlu0 %1342
    %v1344 = vsel %vm511, %v1340, 0.0
    %1345 = vadd.xlane.f32.xlu0 %v1344
    %v1346 = vpop.xlane.xlu0 %1345
    %v1347 = vrcp.pop %v1343
    %v1348 = vmul.f32 %v1338, %v1347
    %v1349 = vrcp.pop %v1346
    %v1350 = vmul.f32 %v1340, %v1349
    %1351 = vrot.lane.b32.xlu0 %v500, 48
    %v1352 = vpop.permute.xlu0 %1351
    %v1355 = vsel %vm511, %v1348, 0
    %1357 = vmatprep.subr.mxu0 0.0
    %1358 = vmatpush1.msra.mxu0 0.0
    %1359 = vmatprep.subr.mxu0 0.0
    %1360 = vmatpush1.msra.mxu0 0.0
    %1361 = vmatprep.subr.mxu0 0.0
    %1362 = vmatpush1.msra.mxu0 0.0
    %1363 = vmatprep.subr.mxu0 0.0
    %1364 = vmatpush1.msra.mxu0 0.0
    %1365 = vmatprep.subr.mxu0 0.0
    %1366 = vmatpush1.msra.mxu0 0.0
    %1367 = vmatprep.subr.mxu0 0.0
    %1368 = vmatpush1.msra.mxu0 0.0
    %1369 = vmatprep.subr.mxu0 0.0
    %1370 = vmatpush1.msra.mxu0 0.0
    %1371 = vmatprep.subr.mxu0 0.0
    %1372 = vmatpush1.msra.mxu0 0.0
    %1373 = vmatprep.subr.mxu0 0.0
    %1374 = vmatpush1.msra.mxu0 0.0
    %1375 = vmatprep.subr.mxu0 0.0
    %1376 = vmatpush1.msra.mxu0 0.0
    %1377 = vmatprep.subr.mxu0 0.0
    %1378 = vmatpush1.msra.mxu0 0.0
    %1379 = vmatprep.subr.mxu0 0.0
    %1380 = vmatpush1.msra.mxu0 0.0
    %1381 = vmatprep.subr.mxu0 0.0
    %1382 = vmatpush1.msra.mxu0 0.0
    %1383 = vmatprep.subr.mxu0 0.0
    %1384 = vmatpush1.msra.mxu0 0.0
    %1385 = vmatprep.subr.mxu0 0.0
    %1386 = vmatpush1.msra.mxu0 0.0
    %1387 = vmatprep.subr.mxu0 0.0
    %1388 = vmatpush1.msra.mxu0 %v1352
    %1389 = vmatprep.subr.mxu0 0.0
    %1390 = vmatpush2.msra.mxu0 0.0
    %1391 = vmatprep.subr.mxu0 0.0
    %1392 = vmatpush2.msra.mxu0 0.0
    %1393 = vmatprep.subr.mxu0 0.0
    %1394 = vmatpush2.msra.mxu0 0.0
    %1395 = vmatprep.subr.mxu0 0.0
    %1396 = vmatpush2.msra.mxu0 0.0
    %1397 = vmatprep.subr.mxu0 0.0
    %1398 = vmatpush2.msra.mxu0 0.0
    %1399 = vmatprep.subr.mxu0 0.0
    %1400 = vmatpush2.msra.mxu0 0.0
    %1401 = vmatprep.subr.mxu0 0.0
    %1402 = vmatpush2.msra.mxu0 0.0
    %1403 = vmatprep.subr.mxu0 0.0
    %1404 = vmatpush2.msra.mxu0 0.0
    %1405 = vmatprep.subr.mxu0 0.0
    %1406 = vmatpush2.msra.mxu0 0.0
    %1407 = vmatprep.subr.mxu0 0.0
    %1408 = vmatpush2.msra.mxu0 0.0
    %1409 = vmatprep.subr.mxu0 0.0
    %1410 = vmatpush2.msra.mxu0 0.0
    %1411 = vmatprep.subr.mxu0 0.0
    %1412 = vmatpush2.msra.mxu0 0.0
    %1413 = vmatprep.subr.mxu0 0.0
    %1414 = vmatpush2.msra.mxu0 0.0
    %1415 = vmatprep.subr.mxu0 0.0
    %1416 = vmatpush2.msra.mxu0 0.0
    %1417 = vmatprep.subr.mxu0 0.0
    %1418 = vmatpush2.msra.mxu0 0.0
    %1419 = vmatprep.subr.mxu0 0.0
    %1420 = vmatpush2.msra.mxu0 0.0
    %1421 = vmatprep.mubr.f32.mxu0 0.0
    %1422 = vmatmul.mubr.f32.gmra.mxu0 %v1355
    %v1423 = vpop.f32.mrf.mxu0
    %v1424 = vadd.f32 0.0, %v1423
    %v1425 = vpop.f32.mrf.mxu0
    %1426 = vdwg.mxu0
    %1427 = vrot.lane.b32.xlu0 %v505, 48
    %v1428 = vpop.permute.xlu0 %1427
    %v1431 = vsel %vm511, %v1350, 0
    %1433 = vmatprep.subr.mxu0 0.0
    %1434 = vmatpush1.msra.mxu0 0.0
    %1435 = vmatprep.subr.mxu0 0.0
    %1436 = vmatpush1.msra.mxu0 0.0
    %1437 = vmatprep.subr.mxu0 0.0
    %1438 = vmatpush1.msra.mxu0 0.0
    %1439 = vmatprep.subr.mxu0 0.0
    %1440 = vmatpush1.msra.mxu0 0.0
    %1441 = vmatprep.subr.mxu0 0.0
    %1442 = vmatpush1.msra.mxu0 0.0
    %1443 = vmatprep.subr.mxu0 0.0
    %1444 = vmatpush1.msra.mxu0 0.0
    %1445 = vmatprep.subr.mxu0 0.0
    %1446 = vmatpush1.msra.mxu0 0.0
    %1447 = vmatprep.subr.mxu0 0.0
    %1448 = vmatpush1.msra.mxu0 0.0
    %1449 = vmatprep.subr.mxu0 0.0
    %1450 = vmatpush1.msra.mxu0 0.0
    %1451 = vmatprep.subr.mxu0 0.0
    %1452 = vmatpush1.msra.mxu0 0.0
    %1453 = vmatprep.subr.mxu0 0.0
    %1454 = vmatpush1.msra.mxu0 0.0
    %1455 = vmatprep.subr.mxu0 0.0
    %1456 = vmatpush1.msra.mxu0 0.0
    %1457 = vmatprep.subr.mxu0 0.0
    %1458 = vmatpush1.msra.mxu0 0.0
    %1459 = vmatprep.subr.mxu0 0.0
    %1460 = vmatpush1.msra.mxu0 0.0
    %1461 = vmatprep.subr.mxu0 0.0
    %1462 = vmatpush1.msra.mxu0 0.0
    %1463 = vmatprep.subr.mxu0 0.0
    %1464 = vmatpush1.msra.mxu0 %v1428
    %1465 = vmatprep.subr.mxu0 0.0
    %1466 = vmatpush2.msra.mxu0 0.0
    %1467 = vmatprep.subr.mxu0 0.0
    %1468 = vmatpush2.msra.mxu0 0.0
    %1469 = vmatprep.subr.mxu0 0.0
    %1470 = vmatpush2.msra.mxu0 0.0
    %1471 = vmatprep.subr.mxu0 0.0
    %1472 = vmatpush2.msra.mxu0 0.0
    %1473 = vmatprep.subr.mxu0 0.0
    %1474 = vmatpush2.msra.mxu0 0.0
    %1475 = vmatprep.subr.mxu0 0.0
    %1476 = vmatpush2.msra.mxu0 0.0
    %1477 = vmatprep.subr.mxu0 0.0
    %1478 = vmatpush2.msra.mxu0 0.0
    %1479 = vmatprep.subr.mxu0 0.0
    %1480 = vmatpush2.msra.mxu0 0.0
    %1481 = vmatprep.subr.mxu0 0.0
    %1482 = vmatpush2.msra.mxu0 0.0
    %1483 = vmatprep.subr.mxu0 0.0
    %1484 = vmatpush2.msra.mxu0 0.0
    %1485 = vmatprep.subr.mxu0 0.0
    %1486 = vmatpush2.msra.mxu0 0.0
    %1487 = vmatprep.subr.mxu0 0.0
    %1488 = vmatpush2.msra.mxu0 0.0
    %1489 = vmatprep.subr.mxu0 0.0
    %1490 = vmatpush2.msra.mxu0 0.0
    %1491 = vmatprep.subr.mxu0 0.0
    %1492 = vmatpush2.msra.mxu0 0.0
    %1493 = vmatprep.subr.mxu0 0.0
    %1494 = vmatpush2.msra.mxu0 0.0
    %1495 = vmatprep.subr.mxu0 0.0
    %1496 = vmatpush2.msra.mxu0 0.0
    %1497 = vmatprep.mubr.f32.mxu0 0.0
    %1498 = vmatmul.mubr.f32.gmra.mxu0 %v1431
    %v1499 = vpop.f32.mrf.mxu0
    %v1500 = vadd.f32 0.0, %v1499
    %v1501 = vpop.f32.mrf.mxu0
    %1502 = vdwg.mxu0
    %1503 = vrot.lane.b32.xlu0 %v500, 104
    %v1504 = vpop.permute.xlu0 %1503
    %1505 = vrot.lane.b32.xlu0 %v500, 72
    %v1506 = vpop.permute.xlu0 %1505
    %v1507 = vsel %vm511, %v1504, 0
    %v1509 = vsel %vm511, %v1506, 0
    %1511 = vmatprep.subr.mxu0 0.0
    %1512 = vmatpush1.xpose.msra.mxu0 0.0
    %1513 = vmatprep.subr.mxu0 0.0
    %1514 = vmatpush1.xpose.msra.mxu0 0.0
    %1515 = vmatprep.subr.mxu0 0.0
    %1516 = vmatpush1.xpose.msra.mxu0 0.0
    %1517 = vmatprep.subr.mxu0 0.0
    %1518 = vmatpush1.xpose.msra.mxu0 0.0
    %1519 = vmatprep.subr.mxu0 0.0
    %1520 = vmatpush1.xpose.msra.mxu0 0.0
    %1521 = vmatprep.subr.mxu0 0.0
    %1522 = vmatpush1.xpose.msra.mxu0 0.0
    %1523 = vmatprep.subr.mxu0 0.0
    %1524 = vmatpush1.xpose.msra.mxu0 0.0
    %1525 = vmatprep.subr.mxu0 0.0
    %1526 = vmatpush1.xpose.msra.mxu0 0.0
    %1527 = vmatprep.subr.mxu0 0.0
    %1528 = vmatpush1.xpose.msra.mxu0 0.0
    %1529 = vmatprep.subr.mxu0 0.0
    %1530 = vmatpush1.xpose.msra.mxu0 0.0
    %1531 = vmatprep.subr.mxu0 0.0
    %1532 = vmatpush1.xpose.msra.mxu0 0.0
    %1533 = vmatprep.subr.mxu0 0.0
    %1534 = vmatpush1.xpose.msra.mxu0 0.0
    %1535 = vmatprep.subr.mxu0 0.0
    %1536 = vmatpush1.xpose.msra.mxu0 0.0
    %1537 = vmatprep.subr.mxu0 0.0
    %1538 = vmatpush1.xpose.msra.mxu0 0.0
    %1539 = vmatprep.subr.mxu0 0.0
    %1540 = vmatpush1.xpose.msra.mxu0 0.0
    %1541 = vmatprep.subr.mxu0 0.0
    %1542 = vmatpush1.xpose.msra.mxu0 %v1509
    %1543 = vmatprep.subr.mxu0 0.0
    %1544 = vmatpush2.xpose.msra.mxu0 0.0
    %1545 = vmatprep.subr.mxu0 0.0
    %1546 = vmatpush2.xpose.msra.mxu0 0.0
    %1547 = vmatprep.subr.mxu0 0.0
    %1548 = vmatpush2.xpose.msra.mxu0 0.0
    %1549 = vmatprep.subr.mxu0 0.0
    %1550 = vmatpush2.xpose.msra.mxu0 0.0
    %1551 = vmatprep.subr.mxu0 0.0
    %1552 = vmatpush2.xpose.msra.mxu0 0.0
    %1553 = vmatprep.subr.mxu0 0.0
    %1554 = vmatpush2.xpose.msra.mxu0 0.0
    %1555 = vmatprep.subr.mxu0 0.0
    %1556 = vmatpush2.xpose.msra.mxu0 0.0
    %1557 = vmatprep.subr.mxu0 0.0
    %1558 = vmatpush2.xpose.msra.mxu0 0.0
    %1559 = vmatprep.subr.mxu0 0.0
    %1560 = vmatpush2.xpose.msra.mxu0 0.0
    %1561 = vmatprep.subr.mxu0 0.0
    %1562 = vmatpush2.xpose.msra.mxu0 0.0
    %1563 = vmatprep.subr.mxu0 0.0
    %1564 = vmatpush2.xpose.msra.mxu0 0.0
    %1565 = vmatprep.subr.mxu0 0.0
    %1566 = vmatpush2.xpose.msra.mxu0 0.0
    %1567 = vmatprep.subr.mxu0 0.0
    %1568 = vmatpush2.xpose.msra.mxu0 0.0
    %1569 = vmatprep.subr.mxu0 0.0
    %1570 = vmatpush2.xpose.msra.mxu0 0.0
    %1571 = vmatprep.subr.mxu0 0.0
    %1572 = vmatpush2.xpose.msra.mxu0 0.0
    %1573 = vmatprep.subr.mxu0 0.0
    %1574 = vmatpush2.xpose.msra.mxu0 0.0
    %1575 = vmatprep.mubr.f32.mxu0 0.0
    %1576 = vmatmul.mubr.f32.gmra.mxu0 %v1507
    %v1577 = vpop.f32.mrf.mxu0
    %v1578 = vadd.f32 0.0, %v1577
    %v1579 = vpop.f32.mrf.mxu0
    %1580 = vdwg.mxu0
    %1581 = vrot.lane.b32.xlu0 %v505, 104
    %v1582 = vpop.permute.xlu0 %1581
    %1583 = vrot.lane.b32.xlu0 %v505, 72
    %v1584 = vpop.permute.xlu0 %1583
    %v1585 = vsel %vm511, %v1582, 0
    %v1587 = vsel %vm511, %v1584, 0
    %1589 = vmatprep.subr.mxu0 0.0
    %1590 = vmatpush1.xpose.msra.mxu0 0.0
    %1591 = vmatprep.subr.mxu0 0.0
    %1592 = vmatpush1.xpose.msra.mxu0 0.0
    %1593 = vmatprep.subr.mxu0 0.0
    %1594 = vmatpush1.xpose.msra.mxu0 0.0
    %1595 = vmatprep.subr.mxu0 0.0
    %1596 = vmatpush1.xpose.msra.mxu0 0.0
    %1597 = vmatprep.subr.mxu0 0.0
    %1598 = vmatpush1.xpose.msra.mxu0 0.0
    %1599 = vmatprep.subr.mxu0 0.0
    %1600 = vmatpush1.xpose.msra.mxu0 0.0
    %1601 = vmatprep.subr.mxu0 0.0
    %1602 = vmatpush1.xpose.msra.mxu0 0.0
    %1603 = vmatprep.subr.mxu0 0.0
    %1604 = vmatpush1.xpose.msra.mxu0 0.0
    %1605 = vmatprep.subr.mxu0 0.0
    %1606 = vmatpush1.xpose.msra.mxu0 0.0
    %1607 = vmatprep.subr.mxu0 0.0
    %1608 = vmatpush1.xpose.msra.mxu0 0.0
    %1609 = vmatprep.subr.mxu0 0.0
    %1610 = vmatpush1.xpose.msra.mxu0 0.0
    %1611 = vmatprep.subr.mxu0 0.0
    %1612 = vmatpush1.xpose.msra.mxu0 0.0
    %1613 = vmatprep.subr.mxu0 0.0
    %1614 = vmatpush1.xpose.msra.mxu0 0.0
    %1615 = vmatprep.subr.mxu0 0.0
    %1616 = vmatpush1.xpose.msra.mxu0 0.0
    %1617 = vmatprep.subr.mxu0 0.0
    %1618 = vmatpush1.xpose.msra.mxu0 0.0
    %1619 = vmatprep.subr.mxu0 0.0
    %1620 = vmatpush1.xpose.msra.mxu0 %v1587
    %1621 = vmatprep.subr.mxu0 0.0
    %1622 = vmatpush2.xpose.msra.mxu0 0.0
    %1623 = vmatprep.subr.mxu0 0.0
    %1624 = vmatpush2.xpose.msra.mxu0 0.0
    %1625 = vmatprep.subr.mxu0 0.0
    %1626 = vmatpush2.xpose.msra.mxu0 0.0
    %1627 = vmatprep.subr.mxu0 0.0
    %1628 = vmatpush2.xpose.msra.mxu0 0.0
    %1629 = vmatprep.subr.mxu0 0.0
    %1630 = vmatpush2.xpose.msra.mxu0 0.0
    %1631 = vmatprep.subr.mxu0 0.0
    %1632 = vmatpush2.xpose.msra.mxu0 0.0
    %1633 = vmatprep.subr.mxu0 0.0
    %1634 = vmatpush2.xpose.msra.mxu0 0.0
    %1635 = vmatprep.subr.mxu0 0.0
    %1636 = vmatpush2.xpose.msra.mxu0 0.0
    %1637 = vmatprep.subr.mxu0 0.0
    %1638 = vmatpush2.xpose.msra.mxu0 0.0
    %1639 = vmatprep.subr.mxu0 0.0
    %1640 = vmatpush2.xpose.msra.mxu0 0.0
    %1641 = vmatprep.subr.mxu0 0.0
    %1642 = vmatpush2.xpose.msra.mxu0 0.0
    %1643 = vmatprep.subr.mxu0 0.0
    %1644 = vmatpush2.xpose.msra.mxu0 0.0
    %1645 = vmatprep.subr.mxu0 0.0
    %1646 = vmatpush2.xpose.msra.mxu0 0.0
    %1647 = vmatprep.subr.mxu0 0.0
    %1648 = vmatpush2.xpose.msra.mxu0 0.0
    %1649 = vmatprep.subr.mxu0 0.0
    %1650 = vmatpush2.xpose.msra.mxu0 0.0
    %1651 = vmatprep.subr.mxu0 0.0
    %1652 = vmatpush2.xpose.msra.mxu0 0.0
    %1653 = vmatprep.mubr.f32.mxu0 0.0
    %1654 = vmatmul.mubr.f32.gmra.mxu0 %v1585
    %v1655 = vpop.f32.mrf.mxu0
    %v1656 = vadd.f32 0.0, %v1655
    %v1657 = vpop.f32.mrf.mxu0
    %1658 = vdwg.mxu0
    %v1659 = vmul.f32 %v1578, 0.35355338
    %v1660 = vmul.f32 %v1656, 0.35355338
    %v1661 = vsel %vm511, %v1659, -inf
    %1662 = vmax.xlane.f32.xlu0 %v1661
    %v1663 = vpop.xlane.xlu0 %1662
    %v1664 = vsel %vm511, %v1660, -inf
    %1665 = vmax.xlane.f32.xlu0 %v1664
    %v1666 = vpop.xlane.xlu0 %1665
    %v1667 = vsub.f32 %v1659, %v1663
    %v1668 = vsub.f32 %v1660, %v1666
    %v1669 = vmul.f32 %v1667, 1.442695
    %v1670 = vpow.pop %v1669
    %v1671 = vmul.f32 %v1668, 1.442695
    %v1672 = vpow.pop %v1671
    %v1673 = vsel %vm511, %v1670, 0.0
    %1674 = vadd.xlane.f32.xlu0 %v1673
    %v1675 = vpop.xlane.xlu0 %1674
    %v1676 = vsel %vm511, %v1672, 0.0
    %1677 = vadd.xlane.f32.xlu0 %v1676
    %v1678 = vpop.xlane.xlu0 %1677
    %v1679 = vrcp.pop %v1675
    %v1680 = vmul.f32 %v1670, %v1679
    %v1681 = vrcp.pop %v1678
    %v1682 = vmul.f32 %v1672, %v1681
    %1683 = vrot.lane.b32.xlu0 %v500, 40
    %v1684 = vpop.permute.xlu0 %1683
    %v1687 = vsel %vm511, %v1680, 0
    %1689 = vmatprep.subr.mxu0 0.0
    %1690 = vmatpush1.msra.mxu0 0.0
    %1691 = vmatprep.subr.mxu0 0.0
    %1692 = vmatpush1.msra.mxu0 0.0
    %1693 = vmatprep.subr.mxu0 0.0
    %1694 = vmatpush1.msra.mxu0 0.0
    %1695 = vmatprep.subr.mxu0 0.0
    %1696 = vmatpush1.msra.mxu0 0.0
    %1697 = vmatprep.subr.mxu0 0.0
    %1698 = vmatpush1.msra.mxu0 0.0
    %1699 = vmatprep.subr.mxu0 0.0
    %1700 = vmatpush1.msra.mxu0 0.0
    %1701 = vmatprep.subr.mxu0 0.0
    %1702 = vmatpush1.msra.mxu0 0.0
    %1703 = vmatprep.subr.mxu0 0.0
    %1704 = vmatpush1.msra.mxu0 0.0
    %1705 = vmatprep.subr.mxu0 0.0
    %1706 = vmatpush1.msra.mxu0 0.0
    %1707 = vmatprep.subr.mxu0 0.0
    %1708 = vmatpush1.msra.mxu0 0.0
    %1709 = vmatprep.subr.mxu0 0.0
    %1710 = vmatpush1.msra.mxu0 0.0
    %1711 = vmatprep.subr.mxu0 0.0
    %1712 = vmatpush1.msra.mxu0 0.0
    %1713 = vmatprep.subr.mxu0 0.0
    %1714 = vmatpush1.msra.mxu0 0.0
    %1715 = vmatprep.subr.mxu0 0.0
    %1716 = vmatpush1.msra.mxu0 0.0
    %1717 = vmatprep.subr.mxu0 0.0
    %1718 = vmatpush1.msra.mxu0 0.0
    %1719 = vmatprep.subr.mxu0 0.0
    %1720 = vmatpush1.msra.mxu0 %v1684
    %1721 = vmatprep.subr.mxu0 0.0
    %1722 = vmatpush2.msra.mxu0 0.0
    %1723 = vmatprep.subr.mxu0 0.0
    %1724 = vmatpush2.msra.mxu0 0.0
    %1725 = vmatprep.subr.mxu0 0.0
    %1726 = vmatpush2.msra.mxu0 0.0
    %1727 = vmatprep.subr.mxu0 0.0
    %1728 = vmatpush2.msra.mxu0 0.0
    %1729 = vmatprep.subr.mxu0 0.0
    %1730 = vmatpush2.msra.mxu0 0.0
    %1731 = vmatprep.subr.mxu0 0.0
    %1732 = vmatpush2.msra.mxu0 0.0
    %1733 = vmatprep.subr.mxu0 0.0
    %1734 = vmatpush2.msra.mxu0 0.0
    %1735 = vmatprep.subr.mxu0 0.0
    %1736 = vmatpush2.msra.mxu0 0.0
    %1737 = vmatprep.subr.mxu0 0.0
    %1738 = vmatpush2.msra.mxu0 0.0
    %1739 = vmatprep.subr.mxu0 0.0
    %1740 = vmatpush2.msra.mxu0 0.0
    %1741 = vmatprep.subr.mxu0 0.0
    %1742 = vmatpush2.msra.mxu0 0.0
    %1743 = vmatprep.subr.mxu0 0.0
    %1744 = vmatpush2.msra.mxu0 0.0
    %1745 = vmatprep.subr.mxu0 0.0
    %1746 = vmatpush2.msra.mxu0 0.0
    %1747 = vmatprep.subr.mxu0 0.0
    %1748 = vmatpush2.msra.mxu0 0.0
    %1749 = vmatprep.subr.mxu0 0.0
    %1750 = vmatpush2.msra.mxu0 0.0
    %1751 = vmatprep.subr.mxu0 0.0
    %1752 = vmatpush2.msra.mxu0 0.0
    %1753 = vmatprep.mubr.f32.mxu0 0.0
    %1754 = vmatmul.mubr.f32.gmra.mxu0 %v1687
    %v1755 = vpop.f32.mrf.mxu0
    %v1756 = vadd.f32 0.0, %v1755
    %v1757 = vpop.f32.mrf.mxu0
    %1758 = vdwg.mxu0
    %1759 = vrot.lane.b32.xlu0 %v505, 40
    %v1760 = vpop.permute.xlu0 %1759
    %v1763 = vsel %vm511, %v1682, 0
    %1765 = vmatprep.subr.mxu0 0.0
    %1766 = vmatpush1.msra.mxu0 0.0
    %1767 = vmatprep.subr.mxu0 0.0
    %1768 = vmatpush1.msra.mxu0 0.0
    %1769 = vmatprep.subr.mxu0 0.0
    %1770 = vmatpush1.msra.mxu0 0.0
    %1771 = vmatprep.subr.mxu0 0.0
    %1772 = vmatpush1.msra.mxu0 0.0
    %1773 = vmatprep.subr.mxu0 0.0
    %1774 = vmatpush1.msra.mxu0 0.0
    %1775 = vmatprep.subr.mxu0 0.0
    %1776 = vmatpush1.msra.mxu0 0.0
    %1777 = vmatprep.subr.mxu0 0.0
    %1778 = vmatpush1.msra.mxu0 0.0
    %1779 = vmatprep.subr.mxu0 0.0
    %1780 = vmatpush1.msra.mxu0 0.0
    %1781 = vmatprep.subr.mxu0 0.0
    %1782 = vmatpush1.msra.mxu0 0.0
    %1783 = vmatprep.subr.mxu0 0.0
    %1784 = vmatpush1.msra.mxu0 0.0
    %1785 = vmatprep.subr.mxu0 0.0
    %1786 = vmatpush1.msra.mxu0 0.0
    %1787 = vmatprep.subr.mxu0 0.0
    %1788 = vmatpush1.msra.mxu0 0.0
    %1789 = vmatprep.subr.mxu0 0.0
    %1790 = vmatpush1.msra.mxu0 0.0
    %1791 = vmatprep.subr.mxu0 0.0
    %1792 = vmatpush1.msra.mxu0 0.0
    %1793 = vmatprep.subr.mxu0 0.0
    %1794 = vmatpush1.msra.mxu0 0.0
    %1795 = vmatprep.subr.mxu0 0.0
    %1796 = vmatpush1.msra.mxu0 %v1760
    %1797 = vmatprep.subr.mxu0 0.0
    %1798 = vmatpush2.msra.mxu0 0.0
    %1799 = vmatprep.subr.mxu0 0.0
    %1800 = vmatpush2.msra.mxu0 0.0
    %1801 = vmatprep.subr.mxu0 0.0
    %1802 = vmatpush2.msra.mxu0 0.0
    %1803 = vmatprep.subr.mxu0 0.0
    %1804 = vmatpush2.msra.mxu0 0.0
    %1805 = vmatprep.subr.mxu0 0.0
    %1806 = vmatpush2.msra.mxu0 0.0
    %1807 = vmatprep.subr.mxu0 0.0
    %1808 = vmatpush2.msra.mxu0 0.0
    %1809 = vmatprep.subr.mxu0 0.0
    %1810 = vmatpush2.msra.mxu0 0.0
    %1811 = vmatprep.subr.mxu0 0.0
    %1812 = vmatpush2.msra.mxu0 0.0
    %1813 = vmatprep.subr.mxu0 0.0
    %1814 = vmatpush2.msra.mxu0 0.0
    %1815 = vmatprep.subr.mxu0 0.0
    %1816 = vmatpush2.msra.mxu0 0.0
    %1817 = vmatprep.subr.mxu0 0.0
    %1818 = vmatpush2.msra.mxu0 0.0
    %1819 = vmatprep.subr.mxu0 0.0
    %1820 = vmatpush2.msra.mxu0 0.0
    %1821 = vmatprep.subr.mxu0 0.0
    %1822 = vmatpush2.msra.mxu0 0.0
    %1823 = vmatprep.subr.mxu0 0.0
    %1824 = vmatpush2.msra.mxu0 0.0
    %1825 = vmatprep.subr.mxu0 0.0
    %1826 = vmatpush2.msra.mxu0 0.0
    %1827 = vmatprep.subr.mxu0 0.0
    %1828 = vmatpush2.msra.mxu0 0.0
    %1829 = vmatprep.mubr.f32.mxu0 0.0
    %1830 = vmatmul.mubr.f32.gmra.mxu0 %v1763
    %v1831 = vpop.f32.mrf.mxu0
    %v1832 = vadd.f32 0.0, %v1831
    %v1833 = vpop.f32.mrf.mxu0
    %1834 = vdwg.mxu0
    %1837 = vrot.lane.b32.xlu0 %v1092, 8
    %v1838 = vpop.permute.xlu0 %1837
    %1839 = vrot.lane.b32.xlu0 %v1168, 8
    %v1840 = vpop.permute.xlu0 %1839
    %1845 = vrot.lane.b32.xlu0 %v1424, 16
    %v1846 = vpop.permute.xlu0 %1845
    %1847 = vrot.lane.b32.xlu0 %v1500, 16
    %v1848 = vpop.permute.xlu0 %1847
    %1853 = vrot.lane.b32.xlu0 %v1756, 24
    %v1854 = vpop.permute.xlu0 %1853
    %1855 = vrot.lane.b32.xlu0 %v1832, 24
    %v1856 = vpop.permute.xlu0 %1855
    %v1859 = vsel %vm511, %v760, %v1838
    %v1860 = vsel %vm511, %v836, %v1840
    %v1861 = vsel %vm43, %v1859, %v1846
    %v1862 = vsel %vm43, %v1860, %v1848
    %vm1863 = vcmask 195584
    %v1864 = vsel %vm1863, %v1861, %v1854
    %v1865 = vsel %vm1863, %v1862, %v1856
    %v1866 = vld [vmem:[#allocation2 + $0x80] sm:$0xff]
    %v1867 = vld [vmem:[#allocation2 + $0x88] sm:$0xff]
    %v1868 = vld [vmem:[#allocation2 + $0x90] sm:$0xff]
    %v1869 = vld [vmem:[#allocation2 + $0x98] sm:$0xff]
    %v1870 = vld [vmem:[%s4 + $0x5] sm:$0x1]
    %v1871 = vlaneseq
    %v1872 = vshrl.u32 %v1871, 7
    %v1873 = vsub.s32 0, %v1872
    %v1874 = vrot.slane %v1870, %v1873
    %v1876 = vsel %vm227, %v1864, 0
    %v1879 = vsel %vm227, %v1865, 0
    %1881 = vmatprep.subr.mxu0 0.0
    %1882 = vmatpush1.msra.mxu0 0.0
    %1883 = vmatprep.subr.mxu0 0.0
    %1884 = vmatpush1.msra.mxu0 0.0
    %1885 = vmatprep.subr.mxu0 0.0
    %1886 = vmatpush1.msra.mxu0 0.0
    %1887 = vmatprep.subr.mxu0 0.0
    %1888 = vmatpush1.msra.mxu0 0.0
    %1889 = vmatprep.subr.mxu0 0.0
    %1890 = vmatpush1.msra.mxu0 0.0
    %1891 = vmatprep.subr.mxu0 0.0
    %1892 = vmatpush1.msra.mxu0 0.0
    %1893 = vmatprep.subr.mxu0 0.0
    %1894 = vmatpush1.msra.mxu0 0.0
    %1895 = vmatprep.subr.mxu0 0.0
    %1896 = vmatpush1.msra.mxu0 0.0
    %1897 = vmatprep.subr.mxu0 0.0
    %1898 = vmatpush1.msra.mxu0 0.0
    %1899 = vmatprep.subr.mxu0 0.0
    %1900 = vmatpush1.msra.mxu0 0.0
    %1901 = vmatprep.subr.mxu0 0.0
    %1902 = vmatpush1.msra.mxu0 0.0
    %1903 = vmatprep.subr.mxu0 0.0
    %1904 = vmatpush1.msra.mxu0 0.0
    %1905 = vmatprep.subr.mxu0 0.0
    %1906 = vmatpush1.msra.mxu0 %v1869
    %1907 = vmatprep.subr.mxu0 0.0
    %1908 = vmatpush1.msra.mxu0 %v1868
    %1909 = vmatprep.subr.mxu0 0.0
    %1910 = vmatpush1.msra.mxu0 %v1867
    %1911 = vmatprep.subr.mxu0 0.0
    %1912 = vmatpush1.msra.mxu0 %v1866
    %1913 = vmatprep.subr.mxu0 0.0
    %1914 = vmatpush2.msra.mxu0 0.0
    %1915 = vmatprep.subr.mxu0 0.0
    %1916 = vmatpush2.msra.mxu0 0.0
    %1917 = vmatprep.subr.mxu0 0.0
    %1918 = vmatpush2.msra.mxu0 0.0
    %1919 = vmatprep.subr.mxu0 0.0
    %1920 = vmatpush2.msra.mxu0 0.0
    %1921 = vmatprep.subr.mxu0 0.0
    %1922 = vmatpush2.msra.mxu0 0.0
    %1923 = vmatprep.subr.mxu0 0.0
    %1924 = vmatpush2.msra.mxu0 0.0
    %1925 = vmatprep.subr.mxu0 0.0
    %1926 = vmatpush2.msra.mxu0 0.0
    %1927 = vmatprep.subr.mxu0 0.0
    %1928 = vmatpush2.msra.mxu0 0.0
    %1929 = vmatprep.subr.mxu0 0.0
    %1930 = vmatpush2.msra.mxu0 0.0
    %1931 = vmatprep.subr.mxu0 0.0
    %1932 = vmatpush2.msra.mxu0 0.0
    %1933 = vmatprep.subr.mxu0 0.0
    %1934 = vmatpush2.msra.mxu0 0.0
    %1935 = vmatprep.subr.mxu0 0.0
    %1936 = vmatpush2.msra.mxu0 0.0
    %1937 = vmatprep.subr.mxu0 0.0
    %1938 = vmatpush2.msra.mxu0 0.0
    %1939 = vmatprep.subr.mxu0 0.0
    %1940 = vmatpush2.msra.mxu0 0.0
    %1941 = vmatprep.subr.mxu0 0.0
    %1942 = vmatpush2.msra.mxu0 0.0
    %1943 = vmatprep.subr.mxu0 0.0
    %1944 = vmatpush2.msra.mxu0 0.0
    %1945 = vmatprep.mubr.f32.mxu0 0.0
    %1946 = vmatmul.mubr.f32.gmra.mxu0 %v1876
    %v1947 = vpop.f32.mrf.mxu0
    %v1948 = vadd.f32 %v1874, %v1947
    %v1949 = vpop.f32.mrf.mxu0
    %1950 = vmatprep.mubr.f32.mxu0 0.0
    %1951 = vmatmul.mubr.f32.gmra.mxu0 %v1879
    %v1952 = vpop.f32.mrf.mxu0
    %v1953 = vadd.f32 %v1874, %v1952
    %v1954 = vpop.f32.mrf.mxu0
    %1955 = vdwg.mxu0
    %v1956 = vadd.f32 %v416, %v1948
    %v1957 = vadd.f32 %v417, %v1953
    %v1958 = vld [vmem:[%s4 + $0x6] sm:$0x1]
    %v1959 = vld [vmem:[%s4 + $0x7] sm:$0x1]
    %v1960 = vsel %vm227, %v1956, 0.0
    %1961 = vadd.xlane.f32.xlu0 %v1960
    %v1962 = vpop.xlane.xlu0 %1961
    %v1963 = vsel %vm227, %v1957, 0.0
    %1964 = vadd.xlane.f32.xlu0 %v1963
    %v1965 = vpop.xlane.xlu0 %1964
    %v1966 = vrcp.pop 32.0
    %v1967 = vmul.f32 %v1962, %v1966
    %v1968 = vmul.f32 %v1965, %v1966
    %v1969 = vsub.f32 %v1956, %v1967
    %v1970 = vsub.f32 %v1957, %v1968
    %v1971 = vmul.f32 %v1969, %v1969
    %v1972 = vmul.f32 %v1970, %v1970
    %v1973 = vsel %vm227, %v1971, 0.0
    %1974 = vadd.xlane.f32.xlu0 %v1973
    %v1975 = vpop.xlane.xlu0 %1974
    %v1976 = vsel %vm227, %v1972, 0.0
    %1977 = vadd.xlane.f32.xlu0 %v1976
    %v1978 = vpop.xlane.xlu0 %1977
    %v1979 = vmul.f32 %v1975, %v1966
    %v1980 = vmul.f32 %v1978, %v1966
    %v1981 = vadd.f32 %v1979, 1e-05
    %v1982 = vadd.f32 %v1980, 1e-05
    %v1983 = vrsqrt.pop %v1981
    %v1984 = vrsqrt.pop %v1982
    %v1985 = vmul.f32 %v1969, %v1983
    %v1986 = vmul.f32 %v1970, %v1984
    %v1987 = vlaneseq
    %v1988 = vshrl.u32 %v1987, 7
    %v1989 = vsub.s32 0, %v1988
    %v1990 = vrot.slane %v1958, %v1989
    %v1991 = vmul.f32 %v1985, %v1990
    %v1992 = vmul.f32 %v1986, %v1990
    %v1993 = vlaneseq
    %v1994 = vshrl.u32 %v1993, 7
    %v1995 = vsub.s32 0, %v1994
    %v1996 = vrot.slane %v1959, %v1995
    %v1997 = vadd.f32 %v1991, %v1996
    %v1998 = vadd.f32 %v1992, %v1996
    %v1999 = vld [vmem:[#allocation2 + $0xa0] sm:$0xff]
    %v2000 = vld [vmem:[#allocation2 + $0xa8] sm:$0xff]
    %v2001 = vld [vmem:[#allocation2 + $0xb0] sm:$0xff]
    %v2002 = vld [vmem:[#allocation2 + $0xb8] sm:$0xff]
    %v2003 = vld [vmem:[%s4 + $0x8] sm:$0x1]
    %v2004 = vlaneseq
    %v2005 = vshrl.u32 %v2004, 7
    %v2006 = vsub.s32 0, %v2005
    %v2007 = vrot.slane %v2003, %v2006
    %v2009 = vsel %vm227, %v1997, 0
    %v2012 = vsel %vm227, %v1998, 0
    %2014 = vmatprep.subr.mxu0 0.0
    %2015 = vmatpush1.msra.mxu0 0.0
    %2016 = vmatprep.subr.mxu0 0.0
    %2017 = vmatpush1.msra.mxu0 0.0
    %2018 = vmatprep.subr.mxu0 0.0
    %2019 = vmatpush1.msra.mxu0 0.0
    %2020 = vmatprep.subr.mxu0 0.0
    %2021 = vmatpush1.msra.mxu0 0.0
    %2022 = vmatprep.subr.mxu0 0.0
    %2023 = vmatpush1.msra.mxu0 0.0
    %2024 = vmatprep.subr.mxu0 0.0
    %2025 = vmatpush1.msra.mxu0 0.0
    %2026 = vmatprep.subr.mxu0 0.0
    %2027 = vmatpush1.msra.mxu0 0.0
    %2028 = vmatprep.subr.mxu0 0.0
    %2029 = vmatpush1.msra.mxu0 0.0
    %2030 = vmatprep.subr.mxu0 0.0
    %2031 = vmatpush1.msra.mxu0 0.0
    %2032 = vmatprep.subr.mxu0 0.0
    %2033 = vmatpush1.msra.mxu0 0.0
    %2034 = vmatprep.subr.mxu0 0.0
    %2035 = vmatpush1.msra.mxu0 0.0
    %2036 = vmatprep.subr.mxu0 0.0
    %2037 = vmatpush1.msra.mxu0 0.0
    %2038 = vmatprep.subr.mxu0 0.0
    %2039 = vmatpush1.msra.mxu0 %v2002
    %2040 = vmatprep.subr.mxu0 0.0
    %2041 = vmatpush1.msra.mxu0 %v2001
    %2042 = vmatprep.subr.mxu0 0.0
    %2043 = vmatpush1.msra.mxu0 %v2000
    %2044 = vmatprep.subr.mxu0 0.0
    %2045 = vmatpush1.msra.mxu0 %v1999
    %2046 = vmatprep.subr.mxu0 0.0
    %2047 = vmatpush2.msra.mxu0 0.0
    %2048 = vmatprep.subr.mxu0 0.0
    %2049 = vmatpush2.msra.mxu0 0.0
    %2050 = vmatprep.subr.mxu0 0.0
    %2051 = vmatpush2.msra.mxu0 0.0
    %2052 = vmatprep.subr.mxu0 0.0
    %2053 = vmatpush2.msra.mxu0 0.0
    %2054 = vmatprep.subr.mxu0 0.0
    %2055 = vmatpush2.msra.mxu0 0.0
    %2056 = vmatprep.subr.mxu0 0.0
    %2057 = vmatpush2.msra.mxu0 0.0
    %2058 = vmatprep.subr.mxu0 0.0
    %2059 = vmatpush2.msra.mxu0 0.0
    %2060 = vmatprep.subr.mxu0 0.0
    %2061 = vmatpush2.msra.mxu0 0.0
    %2062 = vmatprep.subr.mxu0 0.0
    %2063 = vmatpush2.msra.mxu0 0.0
    %2064 = vmatprep.subr.mxu0 0.0
    %2065 = vmatpush2.msra.mxu0 0.0
    %2066 = vmatprep.subr.mxu0 0.0
    %2067 = vmatpush2.msra.mxu0 0.0
    %2068 = vmatprep.subr.mxu0 0.0
    %2069 = vmatpush2.msra.mxu0 0.0
    %2070 = vmatprep.subr.mxu0 0.0
    %2071 = vmatpush2.msra.mxu0 0.0
    %2072 = vmatprep.subr.mxu0 0.0
    %2073 = vmatpush2.msra.mxu0 0.0
    %2074 = vmatprep.subr.mxu0 0.0
    %2075 = vmatpush2.msra.mxu0 0.0
    %2076 = vmatprep.subr.mxu0 0.0
    %2077 = vmatpush2.msra.mxu0 0.0
    %2078 = vmatprep.mubr.f32.mxu0 0.0
    %2079 = vmatmul.mubr.f32.gmra.mxu0 %v2009
    %v2080 = vpop.f32.mrf.mxu0
    %v2081 = vadd.f32 %v2007, %v2080
    %v2082 = vpop.f32.mrf.mxu0
    %2083 = vmatprep.mubr.f32.mxu0 0.0
    %2084 = vmatmul.mubr.f32.gmra.mxu0 %v2012
    %v2085 = vpop.f32.mrf.mxu0
    %v2086 = vadd.f32 %v2007, %v2085
    %v2087 = vpop.f32.mrf.mxu0
    %2088 = vdwg.mxu0
    %v2089 = vmax.f32 %v2081, 0.0
    %v2090 = vmax.f32 %v2086, 0.0
    %v2091 = vld [vmem:[#allocation2 + $0xc0] sm:$0xff]
    %v2092 = vld [vmem:[#allocation2 + $0xc8] sm:$0xff]
    %v2093 = vld [vmem:[#allocation2 + $0xd0] sm:$0xff]
    %v2094 = vld [vmem:[#allocation2 + $0xd8] sm:$0xff]
    %v2095 = vld [vmem:[#allocation2 + $0xe0] sm:$0xff]
    %v2096 = vld [vmem:[#allocation2 + $0xe8] sm:$0xff]
    %v2097 = vld [vmem:[#allocation2 + $0xf0] sm:$0xff]
    %v2098 = vld [vmem:[#allocation2 + $0xf8] sm:$0xff]
    %v2099 = vld [vmem:[%s4 + $0x9] sm:$0x1]
    %v2100 = vlaneseq
    %v2101 = vshrl.u32 %v2100, 7
    %v2102 = vsub.s32 0, %v2101
    %v2103 = vrot.slane %v2099, %v2102
    %vm2104 = vcmask 523264
    %v2106 = vsel %vm2104, %v2089, 0
    %v2109 = vsel %vm2104, %v2090, 0
    %2111 = vmatprep.subr.mxu0 0.0
    %2112 = vmatpush1.msra.mxu0 0.0
    %2113 = vmatprep.subr.mxu0 0.0
    %2114 = vmatpush1.msra.mxu0 0.0
    %2115 = vmatprep.subr.mxu0 0.0
    %2116 = vmatpush1.msra.mxu0 0.0
    %2117 = vmatprep.subr.mxu0 0.0
    %2118 = vmatpush1.msra.mxu0 0.0
    %2119 = vmatprep.subr.mxu0 0.0
    %2120 = vmatpush1.msra.mxu0 0.0
    %2121 = vmatprep.subr.mxu0 0.0
    %2122 = vmatpush1.msra.mxu0 0.0
    %2123 = vmatprep.subr.mxu0 0.0
    %2124 = vmatpush1.msra.mxu0 0.0
    %2125 = vmatprep.subr.mxu0 0.0
    %2126 = vmatpush1.msra.mxu0 0.0
    %2127 = vmatprep.subr.mxu0 0.0
    %2128 = vmatpush1.msra.mxu0 %v2098
    %2129 = vmatprep.subr.mxu0 0.0
    %2130 = vmatpush1.msra.mxu0 %v2097
    %2131 = vmatprep.subr.mxu0 0.0
    %2132 = vmatpush1.msra.mxu0 %v2096
    %2133 = vmatprep.subr.mxu0 0.0
    %2134 = vmatpush1.msra.mxu0 %v2095
    %2135 = vmatprep.subr.mxu0 0.0
    %2136 = vmatpush1.msra.mxu0 %v2094
    %2137 = vmatprep.subr.mxu0 0.0
    %2138 = vmatpush1.msra.mxu0 %v2093
    %2139 = vmatprep.subr.mxu0 0.0
    %2140 = vmatpush1.msra.mxu0 %v2092
    %2141 = vmatprep.subr.mxu0 0.0
    %2142 = vmatpush1.msra.mxu0 %v2091
    %2143 = vmatprep.subr.mxu0 0.0
    %2144 = vmatpush2.msra.mxu0 0.0
    %2145 = vmatprep.subr.mxu0 0.0
    %2146 = vmatpush2.msra.mxu0 0.0
    %2147 = vmatprep.subr.mxu0 0.0
    %2148 = vmatpush2.msra.mxu0 0.0
    %2149 = vmatprep.subr.mxu0 0.0
    %2150 = vmatpush2.msra.mxu0 0.0
    %2151 = vmatprep.subr.mxu0 0.0
    %2152 = vmatpush2.msra.mxu0 0.0
    %2153 = vmatprep.subr.mxu0 0.0
    %2154 = vmatpush2.msra.mxu0 0.0
    %2155 = vmatprep.subr.mxu0 0.0
    %2156 = vmatpush2.msra.mxu0 0.0
    %2157 = vmatprep.subr.mxu0 0.0
    %2158 = vmatpush2.msra.mxu0 0.0
    %2159 = vmatprep.subr.mxu0 0.0
    %2160 = vmatpush2.msra.mxu0 0.0
    %2161 = vmatprep.subr.mxu0 0.0
    %2162 = vmatpush2.msra.mxu0 0.0
    %2163 = vmatprep.subr.mxu0 0.0
    %2164 = vmatpush2.msra.mxu0 0.0
    %2165 = vmatprep.subr.mxu0 0.0
    %2166 = vmatpush2.msra.mxu0 0.0
    %2167 = vmatprep.subr.mxu0 0.0
    %2168 = vmatpush2.msra.mxu0 0.0
    %2169 = vmatprep.subr.mxu0 0.0
    %2170 = vmatpush2.msra.mxu0 0.0
    %2171 = vmatprep.subr.mxu0 0.0
    %2172 = vmatpush2.msra.mxu0 0.0
    %2173 = vmatprep.subr.mxu0 0.0
    %2174 = vmatpush2.msra.mxu0 0.0
    %2175 = vmatprep.mubr.f32.mxu0 0.0
    %2176 = vmatmul.mubr.f32.gmra.mxu0 %v2106
    %v2177 = vpop.f32.mrf.mxu0
    %v2178 = vadd.f32 %v2103, %v2177
    %v2179 = vpop.f32.mrf.mxu0
    %2180 = vmatprep.mubr.f32.mxu0 0.0
    %2181 = vmatmul.mubr.f32.gmra.mxu0 %v2109
    %v2182 = vpop.f32.mrf.mxu0
    %v2183 = vadd.f32 %v2103, %v2182
    %v2184 = vpop.f32.mrf.mxu0
    %2185 = vdwg.mxu0
    %v2186 = vadd.f32 %v1997, %v2178
    %v2187 = vadd.f32 %v1998, %v2183
    %v2188 = vld [vmem:[%s4 + $0xa] sm:$0x1]
    %v2189 = vld [vmem:[%s4 + $0xb] sm:$0x1]
    %v2190 = vsel %vm227, %v2186, 0.0
    %2191 = vadd.xlane.f32.xlu0 %v2190
    %v2192 = vpop.xlane.xlu0 %2191
    %v2193 = vsel %vm227, %v2187, 0.0
    %2194 = vadd.xlane.f32.xlu0 %v2193
    %v2195 = vpop.xlane.xlu0 %2194
    %v2196 = vmul.f32 %v2192, %v1966
    %v2197 = vmul.f32 %v2195, %v1966
    %v2198 = vsub.f32 %v2186, %v2196
    %v2199 = vsub.f32 %v2187, %v2197
    %v2200 = vmul.f32 %v2198, %v2198
    %v2201 = vmul.f32 %v2199, %v2199
    %v2202 = vsel %vm227, %v2200, 0.0
    %2203 = vadd.xlane.f32.xlu0 %v2202
    %v2204 = vpop.xlane.xlu0 %2203
    %v2205 = vsel %vm227, %v2201, 0.0
    %2206 = vadd.xlane.f32.xlu0 %v2205
    %v2207 = vpop.xlane.xlu0 %2206
    %v2208 = vmul.f32 %v2204, %v1966
    %v2209 = vmul.f32 %v2207, %v1966
    %v2210 = vadd.f32 %v2208, 1e-05
    %v2211 = vadd.f32 %v2209, 1e-05
    %v2212 = vrsqrt.pop %v2210
    %v2213 = vrsqrt.pop %v2211
    %v2214 = vmul.f32 %v2198, %v2212
    %v2215 = vmul.f32 %v2199, %v2213
    %v2216 = vlaneseq
    %v2217 = vshrl.u32 %v2216, 7
    %v2218 = vsub.s32 0, %v2217
    %v2219 = vrot.slane %v2188, %v2218
    %v2220 = vmul.f32 %v2214, %v2219
    %v2221 = vmul.f32 %v2215, %v2219
    %v2222 = vlaneseq
    %v2223 = vshrl.u32 %v2222, 7
    %v2224 = vsub.s32 0, %v2223
    %v2225 = vrot.slane %v2189, %v2224
    %v2226 = vadd.f32 %v2220, %v2225
    %v2227 = vadd.f32 %v2221, %v2225
    %v2228 = vld [vmem:[#allocation2 + $0x100] sm:$0xff]
    %v2229 = vld [vmem:[#allocation2 + $0x108] sm:$0xff]
    %v2230 = vld [vmem:[#allocation2 + $0x110] sm:$0xff]
    %v2231 = vld [vmem:[#allocation2 + $0x118] sm:$0xff]
    %v2232 = vld [vmem:[%s4 + $0xc] sm:$0x1]
    %v2233 = vlaneseq
    %v2234 = vshrl.u32 %v2233, 7
    %v2235 = vsub.s32 0, %v2234
    %v2236 = vrot.slane %v2232, %v2235
    %v2238 = vsel %vm227, %v2226, 0
    %v2241 = vsel %vm227, %v2227, 0
    %2243 = vmatprep.subr.mxu0 0.0
    %2244 = vmatpush1.msra.mxu0 0.0
    %2245 = vmatprep.subr.mxu0 0.0
    %2246 = vmatpush1.msra.mxu0 0.0
    %2247 = vmatprep.subr.mxu0 0.0
    %2248 = vmatpush1.msra.mxu0 0.0
    %2249 = vmatprep.subr.mxu0 0.0
    %2250 = vmatpush1.msra.mxu0 0.0
    %2251 = vmatprep.subr.mxu0 0.0
    %2252 = vmatpush1.msra.mxu0 0.0
    %2253 = vmatprep.subr.mxu0 0.0
    %2254 = vmatpush1.msra.mxu0 0.0
    %2255 = vmatprep.subr.mxu0 0.0
    %2256 = vmatpush1.msra.mxu0 0.0
    %2257 = vmatprep.subr.mxu0 0.0
    %2258 = vmatpush1.msra.mxu0 0.0
    %2259 = vmatprep.subr.mxu0 0.0
    %2260 = vmatpush1.msra.mxu0 0.0
    %2261 = vmatprep.subr.mxu0 0.0
    %2262 = vmatpush1.msra.mxu0 0.0
    %2263 = vmatprep.subr.mxu0 0.0
    %2264 = vmatpush1.msra.mxu0 0.0
    %2265 = vmatprep.subr.mxu0 0.0
    %2266 = vmatpush1.msra.mxu0 0.0
    %2267 = vmatprep.subr.mxu0 0.0
    %2268 = vmatpush1.msra.mxu0 %v2231
    %2269 = vmatprep.subr.mxu0 0.0
    %2270 = vmatpush1.msra.mxu0 %v2230
    %2271 = vmatprep.subr.mxu0 0.0
    %2272 = vmatpush1.msra.mxu0 %v2229
    %2273 = vmatprep.subr.mxu0 0.0
    %2274 = vmatpush1.msra.mxu0 %v2228
    %2275 = vmatprep.subr.mxu0 0.0
    %2276 = vmatpush2.msra.mxu0 0.0
    %2277 = vmatprep.subr.mxu0 0.0
    %2278 = vmatpush2.msra.mxu0 0.0
    %2279 = vmatprep.subr.mxu0 0.0
    %2280 = vmatpush2.msra.mxu0 0.0
    %2281 = vmatprep.subr.mxu0 0.0
    %2282 = vmatpush2.msra.mxu0 0.0
    %2283 = vmatprep.subr.mxu0 0.0
    %2284 = vmatpush2.msra.mxu0 0.0
    %2285 = vmatprep.subr.mxu0 0.0
    %2286 = vmatpush2.msra.mxu0 0.0
    %2287 = vmatprep.subr.mxu0 0.0
    %2288 = vmatpush2.msra.mxu0 0.0
    %2289 = vmatprep.subr.mxu0 0.0
    %2290 = vmatpush2.msra.mxu0 0.0
    %2291 = vmatprep.subr.mxu0 0.0
    %2292 = vmatpush2.msra.mxu0 0.0
    %2293 = vmatprep.subr.mxu0 0.0
    %2294 = vmatpush2.msra.mxu0 0.0
    %2295 = vmatprep.subr.mxu0 0.0
    %2296 = vmatpush2.msra.mxu0 0.0
    %2297 = vmatprep.subr.mxu0 0.0
    %2298 = vmatpush2.msra.mxu0 0.0
    %2299 = vmatprep.subr.mxu0 0.0
    %2300 = vmatpush2.msra.mxu0 0.0
    %2301 = vmatprep.subr.mxu0 0.0
    %2302 = vmatpush2.msra.mxu0 0.0
    %2303 = vmatprep.subr.mxu0 0.0
    %2304 = vmatpush2.msra.mxu0 0.0
    %2305 = vmatprep.subr.mxu0 0.0
    %2306 = vmatpush2.msra.mxu0 0.0
    %2307 = vmatprep.mubr.f32.mxu0 0.0
    %2308 = vmatmul.mubr.f32.gmra.mxu0 %v2238
    %v2309 = vpop.f32.mrf.mxu0
    %v2310 = vadd.f32 %v2236, %v2309
    %v2311 = vpop.f32.mrf.mxu0
    %2312 = vmatprep.mubr.f32.mxu0 0.0
    %2313 = vmatmul.mubr.f32.gmra.mxu0 %v2241
    %v2314 = vpop.f32.mrf.mxu0
    %v2315 = vadd.f32 %v2236, %v2314
    %v2316 = vpop.f32.mrf.mxu0
    %2317 = vdwg.mxu0
    %2319 = vrot.lane.b32.xlu0 %v2310, 96
    %v2320 = vpop.permute.xlu0 %2319
    %v2321 = vsel %vm511, %v2310, 0
    %v2323 = vsel %vm511, %v2320, 0
    %2325 = vmatprep.subr.mxu0 0.0
    %2326 = vmatpush1.xpose.msra.mxu0 0.0
    %2327 = vmatprep.subr.mxu0 0.0
    %2328 = vmatpush1.xpose.msra.mxu0 0.0
    %2329 = vmatprep.subr.mxu0 0.0
    %2330 = vmatpush1.xpose.msra.mxu0 0.0
    %2331 = vmatprep.subr.mxu0 0.0
    %2332 = vmatpush1.xpose.msra.mxu0 0.0
    %2333 = vmatprep.subr.mxu0 0.0
    %2334 = vmatpush1.xpose.msra.mxu0 0.0
    %2335 = vmatprep.subr.mxu0 0.0
    %2336 = vmatpush1.xpose.msra.mxu0 0.0
    %2337 = vmatprep.subr.mxu0 0.0
    %2338 = vmatpush1.xpose.msra.mxu0 0.0
    %2339 = vmatprep.subr.mxu0 0.0
    %2340 = vmatpush1.xpose.msra.mxu0 0.0
    %2341 = vmatprep.subr.mxu0 0.0
    %2342 = vmatpush1.xpose.msra.mxu0 0.0
    %2343 = vmatprep.subr.mxu0 0.0
    %2344 = vmatpush1.xpose.msra.mxu0 0.0
    %2345 = vmatprep.subr.mxu0 0.0
    %2346 = vmatpush1.xpose.msra.mxu0 0.0
    %2347 = vmatprep.subr.mxu0 0.0
    %2348 = vmatpush1.xpose.msra.mxu0 0.0
    %2349 = vmatprep.subr.mxu0 0.0
    %2350 = vmatpush1.xpose.msra.mxu0 0.0
    %2351 = vmatprep.subr.mxu0 0.0
    %2352 = vmatpush1.xpose.msra.mxu0 0.0
    %2353 = vmatprep.subr.mxu0 0.0
    %2354 = vmatpush1.xpose.msra.mxu0 0.0
    %2355 = vmatprep.subr.mxu0 0.0
    %2356 = vmatpush1.xpose.msra.mxu0 %v2323
    %2357 = vmatprep.subr.mxu0 0.0
    %2358 = vmatpush2.xpose.msra.mxu0 0.0
    %2359 = vmatprep.subr.mxu0 0.0
    %2360 = vmatpush2.xpose.msra.mxu0 0.0
    %2361 = vmatprep.subr.mxu0 0.0
    %2362 = vmatpush2.xpose.msra.mxu0 0.0
    %2363 = vmatprep.subr.mxu0 0.0
    %2364 = vmatpush2.xpose.msra.mxu0 0.0
    %2365 = vmatprep.subr.mxu0 0.0
    %2366 = vmatpush2.xpose.msra.mxu0 0.0
    %2367 = vmatprep.subr.mxu0 0.0
    %2368 = vmatpush2.xpose.msra.mxu0 0.0
    %2369 = vmatprep.subr.mxu0 0.0
    %2370 = vmatpush2.xpose.msra.mxu0 0.0
    %2371 = vmatprep.subr.mxu0 0.0
    %2372 = vmatpush2.xpose.msra.mxu0 0.0
    %2373 = vmatprep.subr.mxu0 0.0
    %2374 = vmatpush2.xpose.msra.mxu0 0.0
    %2375 = vmatprep.subr.mxu0 0.0
    %2376 = vmatpush2.xpose.msra.mxu0 0.0
    %2377 = vmatprep.subr.mxu0 0.0
    %2378 = vmatpush2.xpose.msra.mxu0 0.0
    %2379 = vmatprep.subr.mxu0 0.0
    %2380 = vmatpush2.xpose.msra.mxu0 0.0
    %2381 = vmatprep.subr.mxu0 0.0
    %2382 = vmatpush2.xpose.msra.mxu0 0.0
    %2383 = vmatprep.subr.mxu0 0.0
    %2384 = vmatpush2.xpose.msra.mxu0 0.0
    %2385 = vmatprep.subr.mxu0 0.0
    %2386 = vmatpush2.xpose.msra.mxu0 0.0
    %2387 = vmatprep.subr.mxu0 0.0
    %2388 = vmatpush2.xpose.msra.mxu0 0.0
    %2389 = vmatprep.mubr.f32.mxu0 0.0
    %2390 = vmatmul.mubr.f32.gmra.mxu0 %v2321
    %v2391 = vpop.f32.mrf.mxu0
    %v2392 = vadd.f32 0.0, %v2391
    %v2393 = vpop.f32.mrf.mxu0
    %2394 = vdwg.mxu0
    %2396 = vrot.lane.b32.xlu0 %v2315, 96
    %v2397 = vpop.permute.xlu0 %2396
    %v2398 = vsel %vm511, %v2315, 0
    %v2400 = vsel %vm511, %v2397, 0
    %2402 = vmatprep.subr.mxu0 0.0
    %2403 = vmatpush1.xpose.msra.mxu0 0.0
    %2404 = vmatprep.subr.mxu0 0.0
    %2405 = vmatpush1.xpose.msra.mxu0 0.0
    %2406 = vmatprep.subr.mxu0 0.0
    %2407 = vmatpush1.xpose.msra.mxu0 0.0
    %2408 = vmatprep.subr.mxu0 0.0
    %2409 = vmatpush1.xpose.msra.mxu0 0.0
    %2410 = vmatprep.subr.mxu0 0.0
    %2411 = vmatpush1.xpose.msra.mxu0 0.0
    %2412 = vmatprep.subr.mxu0 0.0
    %2413 = vmatpush1.xpose.msra.mxu0 0.0
    %2414 = vmatprep.subr.mxu0 0.0
    %2415 = vmatpush1.xpose.msra.mxu0 0.0
    %2416 = vmatprep.subr.mxu0 0.0
    %2417 = vmatpush1.xpose.msra.mxu0 0.0
    %2418 = vmatprep.subr.mxu0 0.0
    %2419 = vmatpush1.xpose.msra.mxu0 0.0
    %2420 = vmatprep.subr.mxu0 0.0
    %2421 = vmatpush1.xpose.msra.mxu0 0.0
    %2422 = vmatprep.subr.mxu0 0.0
    %2423 = vmatpush1.xpose.msra.mxu0 0.0
    %2424 = vmatprep.subr.mxu0 0.0
    %2425 = vmatpush1.xpose.msra.mxu0 0.0
    %2426 = vmatprep.subr.mxu0 0.0
    %2427 = vmatpush1.xpose.msra.mxu0 0.0
    %2428 = vmatprep.subr.mxu0 0.0
    %2429 = vmatpush1.xpose.msra.mxu0 0.0
    %2430 = vmatprep.subr.mxu0 0.0
    %2431 = vmatpush1.xpose.msra.mxu0 0.0
    %2432 = vmatprep.subr.mxu0 0.0
    %2433 = vmatpush1.xpose.msra.mxu0 %v2400
    %2434 = vmatprep.subr.mxu0 0.0
    %2435 = vmatpush2.xpose.msra.mxu0 0.0
    %2436 = vmatprep.subr.mxu0 0.0
    %2437 = vmatpush2.xpose.msra.mxu0 0.0
    %2438 = vmatprep.subr.mxu0 0.0
    %2439 = vmatpush2.xpose.msra.mxu0 0.0
    %2440 = vmatprep.subr.mxu0 0.0
    %2441 = vmatpush2.xpose.msra.mxu0 0.0
    %2442 = vmatprep.subr.mxu0 0.0
    %2443 = vmatpush2.xpose.msra.mxu0 0.0
    %2444 = vmatprep.subr.mxu0 0.0
    %2445 = vmatpush2.xpose.msra.mxu0 0.0
    %2446 = vmatprep.subr.mxu0 0.0
    %2447 = vmatpush2.xpose.msra.mxu0 0.0
    %2448 = vmatprep.subr.mxu0 0.0
    %2449 = vmatpush2.xpose.msra.mxu0 0.0
    %2450 = vmatprep.subr.mxu0 0.0
    %2451 = vmatpush2.xpose.msra.mxu0 0.0
    %2452 = vmatprep.subr.mxu0 0.0
    %2453 = vmatpush2.xpose.msra.mxu0 0.0
    %2454 = vmatprep.subr.mxu0 0.0
    %2455 = vmatpush2.xpose.msra.mxu0 0.0
    %2456 = vmatprep.subr.mxu0 0.0
    %2457 = vmatpush2.xpose.msra.mxu0 0.0
    %2458 = vmatprep.subr.mxu0 0.0
    %2459 = vmatpush2.xpose.msra.mxu0 0.0
    %2460 = vmatprep.subr.mxu0 0.0
    %2461 = vmatpush2.xpose.msra.mxu0 0.0
    %2462 = vmatprep.subr.mxu0 0.0
    %2463 = vmatpush2.xpose.msra.mxu0 0.0
    %2464 = vmatprep.subr.mxu0 0.0
    %2465 = vmatpush2.xpose.msra.mxu0 0.0
    %2466 = vmatprep.mubr.f32.mxu0 0.0
    %2467 = vmatmul.mubr.f32.gmra.mxu0 %v2398
    %v2468 = vpop.f32.mrf.mxu0
    %v2469 = vadd.f32 0.0, %v2468
    %v2470 = vpop.f32.mrf.mxu0
    %2471 = vdwg.mxu0
    %v2472 = vmul.f32 %v2392, 0.35355338
    %v2473 = vmul.f32 %v2469, 0.35355338
    %v2474 = vsel %vm511, %v2472, -inf
    %2475 = vmax.xlane.f32.xlu0 %v2474
    %v2476 = vpop.xlane.xlu0 %2475
    %v2477 = vsel %vm511, %v2473, -inf
    %2478 = vmax.xlane.f32.xlu0 %v2477
    %v2479 = vpop.xlane.xlu0 %2478
    %v2480 = vsub.f32 %v2472, %v2476
    %v2481 = vsub.f32 %v2473, %v2479
    %v2482 = vmul.f32 %v2480, 1.442695
    %v2483 = vpow.pop %v2482
    %v2484 = vmul.f32 %v2481, 1.442695
    %v2485 = vpow.pop %v2484
    %v2486 = vsel %vm511, %v2483, 0.0
    %2487 = vadd.xlane.f32.xlu0 %v2486
    %v2488 = vpop.xlane.xlu0 %2487
    %v2489 = vsel %vm511, %v2485, 0.0
    %2490 = vadd.xlane.f32.xlu0 %v2489
    %v2491 = vpop.xlane.xlu0 %2490
    %v2492 = vrcp.pop %v2488
    %v2493 = vmul.f32 %v2483, %v2492
    %v2494 = vrcp.pop %v2491
    %v2495 = vmul.f32 %v2485, %v2494
    %2496 = vrot.lane.b32.xlu0 %v2310, 64
    %v2497 = vpop.permute.xlu0 %2496
    %v2500 = vsel %vm511, %v2493, 0
    %2502 = vmatprep.subr.mxu0 0.0
    %2503 = vmatpush1.msra.mxu0 0.0
    %2504 = vmatprep.subr.mxu0 0.0
    %2505 = vmatpush1.msra.mxu0 0.0
    %2506 = vmatprep.subr.mxu0 0.0
    %2507 = vmatpush1.msra.mxu0 0.0
    %2508 = vmatprep.subr.mxu0 0.0
    %2509 = vmatpush1.msra.mxu0 0.0
    %2510 = vmatprep.subr.mxu0 0.0
    %2511 = vmatpush1.msra.mxu0 0.0
    %2512 = vmatprep.subr.mxu0 0.0
    %2513 = vmatpush1.msra.mxu0 0.0
    %2514 = vmatprep.subr.mxu0 0.0
    %2515 = vmatpush1.msra.mxu0 0.0
    %2516 = vmatprep.subr.mxu0 0.0
    %2517 = vmatpush1.msra.mxu0 0.0
    %2518 = vmatprep.subr.mxu0 0.0
    %2519 = vmatpush1.msra.mxu0 0.0
    %2520 = vmatprep.subr.mxu0 0.0
    %2521 = vmatpush1.msra.mxu0 0.0
    %2522 = vmatprep.subr.mxu0 0.0
    %2523 = vmatpush1.msra.mxu0 0.0
    %2524 = vmatprep.subr.mxu0 0.0
    %2525 = vmatpush1.msra.mxu0 0.0
    %2526 = vmatprep.subr.mxu0 0.0
    %2527 = vmatpush1.msra.mxu0 0.0
    %2528 = vmatprep.subr.mxu0 0.0
    %2529 = vmatpush1.msra.mxu0 0.0
    %2530 = vmatprep.subr.mxu0 0.0
    %2531 = vmatpush1.msra.mxu0 0.0
    %2532 = vmatprep.subr.mxu0 0.0
    %2533 = vmatpush1.msra.mxu0 %v2497
    %2534 = vmatprep.subr.mxu0 0.0
    %2535 = vmatpush2.msra.mxu0 0.0
    %2536 = vmatprep.subr.mxu0 0.0
    %2537 = vmatpush2.msra.mxu0 0.0
    %2538 = vmatprep.subr.mxu0 0.0
    %2539 = vmatpush2.msra.mxu0 0.0
    %2540 = vmatprep.subr.mxu0 0.0
    %2541 = vmatpush2.msra.mxu0 0.0
    %2542 = vmatprep.subr.mxu0 0.0
    %2543 = vmatpush2.msra.mxu0 0.0
    %2544 = vmatprep.subr.mxu0 0.0
    %2545 = vmatpush2.msra.mxu0 0.0
    %2546 = vmatprep.subr.mxu0 0.0
    %2547 = vmatpush2.msra.mxu0 0.0
    %2548 = vmatprep.subr.mxu0 0.0
    %2549 = vmatpush2.msra.mxu0 0.0
    %2550 = vmatprep.subr.mxu0 0.0
    %2551 = vmatpush2.msra.mxu0 0.0
    %2552 = vmatprep.subr.mxu0 0.0
    %2553 = vmatpush2.msra.mxu0 0.0
    %2554 = vmatprep.subr.mxu0 0.0
    %2555 = vmatpush2.msra.mxu0 0.0
    %2556 = vmatprep.subr.mxu0 0.0
    %2557 = vmatpush2.msra.mxu0 0.0
    %2558 = vmatprep.subr.mxu0 0.0
    %2559 = vmatpush2.msra.mxu0 0.0
    %2560 = vmatprep.subr.mxu0 0.0
    %2561 = vmatpush2.msra.mxu0 0.0
    %2562 = vmatprep.subr.mxu0 0.0
    %2563 = vmatpush2.msra.mxu0 0.0
    %2564 = vmatprep.subr.mxu0 0.0
    %2565 = vmatpush2.msra.mxu0 0.0
    %2566 = vmatprep.mubr.f32.mxu0 0.0
    %2567 = vmatmul.mubr.f32.gmra.mxu0 %v2500
    %v2568 = vpop.f32.mrf.mxu0
    %v2569 = vadd.f32 0.0, %v2568
    %v2570 = vpop.f32.mrf.mxu0
    %2571 = vdwg.mxu0
    %2572 = vrot.lane.b32.xlu0 %v2315, 64
    %v2573 = vpop.permute.xlu0 %2572
    %v2576 = vsel %vm511, %v2495, 0
    %2578 = vmatprep.subr.mxu0 0.0
    %2579 = vmatpush1.msra.mxu0 0.0
    %2580 = vmatprep.subr.mxu0 0.0
    %2581 = vmatpush1.msra.mxu0 0.0
    %2582 = vmatprep.subr.mxu0 0.0
    %2583 = vmatpush1.msra.mxu0 0.0
    %2584 = vmatprep.subr.mxu0 0.0
    %2585 = vmatpush1.msra.mxu0 0.0
    %2586 = vmatprep.subr.mxu0 0.0
    %2587 = vmatpush1.msra.mxu0 0.0
    %2588 = vmatprep.subr.mxu0 0.0
    %2589 = vmatpush1.msra.mxu0 0.0
    %2590 = vmatprep.subr.mxu0 0.0
    %2591 = vmatpush1.msra.mxu0 0.0
    %2592 = vmatprep.subr.mxu0 0.0
    %2593 = vmatpush1.msra.mxu0 0.0
    %2594 = vmatprep.subr.mxu0 0.0
    %2595 = vmatpush1.msra.mxu0 0.0
    %2596 = vmatprep.subr.mxu0 0.0
    %2597 = vmatpush1.msra.mxu0 0.0
    %2598 = vmatprep.subr.mxu0 0.0
    %2599 = vmatpush1.msra.mxu0 0.0
    %2600 = vmatprep.subr.mxu0 0.0
    %2601 = vmatpush1.msra.mxu0 0.0
    %2602 = vmatprep.subr.mxu0 0.0
    %2603 = vmatpush1.msra.mxu0 0.0
    %2604 = vmatprep.subr.mxu0 0.0
    %2605 = vmatpush1.msra.mxu0 0.0
    %2606 = vmatprep.subr.mxu0 0.0
    %2607 = vmatpush1.msra.mxu0 0.0
    %2608 = vmatprep.subr.mxu0 0.0
    %2609 = vmatpush1.msra.mxu0 %v2573
    %2610 = vmatprep.subr.mxu0 0.0
    %2611 = vmatpush2.msra.mxu0 0.0
    %2612 = vmatprep.subr.mxu0 0.0
    %2613 = vmatpush2.msra.mxu0 0.0
    %2614 = vmatprep.subr.mxu0 0.0
    %2615 = vmatpush2.msra.mxu0 0.0
    %2616 = vmatprep.subr.mxu0 0.0
    %2617 = vmatpush2.msra.mxu0 0.0
    %2618 = vmatprep.subr.mxu0 0.0
    %2619 = vmatpush2.msra.mxu0 0.0
    %2620 = vmatprep.subr.mxu0 0.0
    %2621 = vmatpush2.msra.mxu0 0.0
    %2622 = vmatprep.subr.mxu0 0.0
    %2623 = vmatpush2.msra.mxu0 0.0
    %2624 = vmatprep.subr.mxu0 0.0
    %2625 = vmatpush2.msra.mxu0 0.0
    %2626 = vmatprep.subr.mxu0 0.0
    %2627 = vmatpush2.msra.mxu0 0.0
    %2628 = vmatprep.subr.mxu0 0.0
    %2629 = vmatpush2.msra.mxu0 0.0
    %2630 = vmatprep.subr.mxu0 0.0
    %2631 = vmatpush2.msra.mxu0 0.0
    %2632 = vmatprep.subr.mxu0 0.0
    %2633 = vmatpush2.msra.mxu0 0.0
    %2634 = vmatprep.subr.mxu0 0.0
    %2635 = vmatpush2.msra.mxu0 0.0
    %2636 = vmatprep.subr.mxu0 0.0
    %2637 = vmatpush2.msra.mxu0 0.0
    %2638 = vmatprep.subr.mxu0 0.0
    %2639 = vmatpush2.msra.mxu0 0.0
    %2640 = vmatprep.subr.mxu0 0.0
    %2641 = vmatpush2.msra.mxu0 0.0
    %2642 = vmatprep.mubr.f32.mxu0 0.0
    %2643 = vmatmul.mubr.f32.gmra.mxu0 %v2576
    %v2644 = vpop.f32.mrf.mxu0
    %v2645 = vadd.f32 0.0, %v2644
    %v2646 = vpop.f32.mrf.mxu0
    %2647 = vdwg.mxu0
    %2648 = vrot.lane.b32.xlu0 %v2310, 120
    %v2649 = vpop.permute.xlu0 %2648
    %2650 = vrot.lane.b32.xlu0 %v2310, 88
    %v2651 = vpop.permute.xlu0 %2650
    %v2652 = vsel %vm511, %v2649, 0
    %v2654 = vsel %vm511, %v2651, 0
    %2656 = vmatprep.subr.mxu0 0.0
    %2657 = vmatpush1.xpose.msra.mxu0 0.0
    %2658 = vmatprep.subr.mxu0 0.0
    %2659 = vmatpush1.xpose.msra.mxu0 0.0
    %2660 = vmatprep.subr.mxu0 0.0
    %2661 = vmatpush1.xpose.msra.mxu0 0.0
    %2662 = vmatprep.subr.mxu0 0.0
    %2663 = vmatpush1.xpose.msra.mxu0 0.0
    %2664 = vmatprep.subr.mxu0 0.0
    %2665 = vmatpush1.xpose.msra.mxu0 0.0
    %2666 = vmatprep.subr.mxu0 0.0
    %2667 = vmatpush1.xpose.msra.mxu0 0.0
    %2668 = vmatprep.subr.mxu0 0.0
    %2669 = vmatpush1.xpose.msra.mxu0 0.0
    %2670 = vmatprep.subr.mxu0 0.0
    %2671 = vmatpush1.xpose.msra.mxu0 0.0
    %2672 = vmatprep.subr.mxu0 0.0
    %2673 = vmatpush1.xpose.msra.mxu0 0.0
    %2674 = vmatprep.subr.mxu0 0.0
    %2675 = vmatpush1.xpose.msra.mxu0 0.0
    %2676 = vmatprep.subr.mxu0 0.0
    %2677 = vmatpush1.xpose.msra.mxu0 0.0
    %2678 = vmatprep.subr.mxu0 0.0
    %2679 = vmatpush1.xpose.msra.mxu0 0.0
    %2680 = vmatprep.subr.mxu0 0.0
    %2681 = vmatpush1.xpose.msra.mxu0 0.0
    %2682 = vmatprep.subr.mxu0 0.0
    %2683 = vmatpush1.xpose.msra.mxu0 0.0
    %2684 = vmatprep.subr.mxu0 0.0
    %2685 = vmatpush1.xpose.msra.mxu0 0.0
    %2686 = vmatprep.subr.mxu0 0.0
    %2687 = vmatpush1.xpose.msra.mxu0 %v2654
    %2688 = vmatprep.subr.mxu0 0.0
    %2689 = vmatpush2.xpose.msra.mxu0 0.0
    %2690 = vmatprep.subr.mxu0 0.0
    %2691 = vmatpush2.xpose.msra.mxu0 0.0
    %2692 = vmatprep.subr.mxu0 0.0
    %2693 = vmatpush2.xpose.msra.mxu0 0.0
    %2694 = vmatprep.subr.mxu0 0.0
    %2695 = vmatpush2.xpose.msra.mxu0 0.0
    %2696 = vmatprep.subr.mxu0 0.0
    %2697 = vmatpush2.xpose.msra.mxu0 0.0
    %2698 = vmatprep.subr.mxu0 0.0
    %2699 = vmatpush2.xpose.msra.mxu0 0.0
    %2700 = vmatprep.subr.mxu0 0.0
    %2701 = vmatpush2.xpose.msra.mxu0 0.0
    %2702 = vmatprep.subr.mxu0 0.0
    %2703 = vmatpush2.xpose.msra.mxu0 0.0
    %2704 = vmatprep.subr.mxu0 0.0
    %2705 = vmatpush2.xpose.msra.mxu0 0.0
    %2706 = vmatprep.subr.mxu0 0.0
    %2707 = vmatpush2.xpose.msra.mxu0 0.0
    %2708 = vmatprep.subr.mxu0 0.0
    %2709 = vmatpush2.xpose.msra.mxu0 0.0
    %2710 = vmatprep.subr.mxu0 0.0
    %2711 = vmatpush2.xpose.msra.mxu0 0.0
    %2712 = vmatprep.subr.mxu0 0.0
    %2713 = vmatpush2.xpose.msra.mxu0 0.0
    %2714 = vmatprep.subr.mxu0 0.0
    %2715 = vmatpush2.xpose.msra.mxu0 0.0
    %2716 = vmatprep.subr.mxu0 0.0
    %2717 = vmatpush2.xpose.msra.mxu0 0.0
    %2718 = vmatprep.subr.mxu0 0.0
    %2719 = vmatpush2.xpose.msra.mxu0 0.0
    %2720 = vmatprep.mubr.f32.mxu0 0.0
    %2721 = vmatmul.mubr.f32.gmra.mxu0 %v2652
    %v2722 = vpop.f32.mrf.mxu0
    %v2723 = vadd.f32 0.0, %v2722
    %v2724 = vpop.f32.mrf.mxu0
    %2725 = vdwg.mxu0
    %2726 = vrot.lane.b32.xlu0 %v2315, 120
    %v2727 = vpop.permute.xlu0 %2726
    %2728 = vrot.lane.b32.xlu0 %v2315, 88
    %v2729 = vpop.permute.xlu0 %2728
    %v2730 = vsel %vm511, %v2727, 0
    %v2732 = vsel %vm511, %v2729, 0
    %2734 = vmatprep.subr.mxu0 0.0
    %2735 = vmatpush1.xpose.msra.mxu0 0.0
    %2736 = vmatprep.subr.mxu0 0.0
    %2737 = vmatpush1.xpose.msra.mxu0 0.0
    %2738 = vmatprep.subr.mxu0 0.0
    %2739 = vmatpush1.xpose.msra.mxu0 0.0
    %2740 = vmatprep.subr.mxu0 0.0
    %2741 = vmatpush1.xpose.msra.mxu0 0.0
    %2742 = vmatprep.subr.mxu0 0.0
    %2743 = vmatpush1.xpose.msra.mxu0 0.0
    %2744 = vmatprep.subr.mxu0 0.0
    %2745 = vmatpush1.xpose.msra.mxu0 0.0
    %2746 = vmatprep.subr.mxu0 0.0
    %2747 = vmatpush1.xpose.msra.mxu0 0.0
    %2748 = vmatprep.subr.mxu0 0.0
    %2749 = vmatpush1.xpose.msra.mxu0 0.0
    %2750 = vmatprep.subr.mxu0 0.0
    %2751 = vmatpush1.xpose.msra.mxu0 0.0
    %2752 = vmatprep.subr.mxu0 0.0
    %2753 = vmatpush1.xpose.msra.mxu0 0.0
    %2754 = vmatprep.subr.mxu0 0.0
    %2755 = vmatpush1.xpose.msra.mxu0 0.0
    %2756 = vmatprep.subr.mxu0 0.0
    %2757 = vmatpush1.xpose.msra.mxu0 0.0
    %2758 = vmatprep.subr.mxu0 0.0
    %2759 = vmatpush1.xpose.msra.mxu0 0.0
    %2760 = vmatprep.subr.mxu0 0.0
    %2761 = vmatpush1.xpose.msra.mxu0 0.0
    %2762 = vmatprep.subr.mxu0 0.0
    %2763 = vmatpush1.xpose.msra.mxu0 0.0
    %2764 = vmatprep.subr.mxu0 0.0
    %2765 = vmatpush1.xpose.msra.mxu0 %v2732
    %2766 = vmatprep.subr.mxu0 0.0
    %2767 = vmatpush2.xpose.msra.mxu0 0.0
    %2768 = vmatprep.subr.mxu0 0.0
    %2769 = vmatpush2.xpose.msra.mxu0 0.0
    %2770 = vmatprep.subr.mxu0 0.0
    %2771 = vmatpush2.xpose.msra.mxu0 0.0
    %2772 = vmatprep.subr.mxu0 0.0
    %2773 = vmatpush2.xpose.msra.mxu0 0.0
    %2774 = vmatprep.subr.mxu0 0.0
    %2775 = vmatpush2.xpose.msra.mxu0 0.0
    %2776 = vmatprep.subr.mxu0 0.0
    %2777 = vmatpush2.xpose.msra.mxu0 0.0
    %2778 = vmatprep.subr.mxu0 0.0
    %2779 = vmatpush2.xpose.msra.mxu0 0.0
    %2780 = vmatprep.subr.mxu0 0.0
    %2781 = vmatpush2.xpose.msra.mxu0 0.0
    %2782 = vmatprep.subr.mxu0 0.0
    %2783 = vmatpush2.xpose.msra.mxu0 0.0
    %2784 = vmatprep.subr.mxu0 0.0
    %2785 = vmatpush2.xpose.msra.mxu0 0.0
    %2786 = vmatprep.subr.mxu0 0.0
    %2787 = vmatpush2.xpose.msra.mxu0 0.0
    %2788 = vmatprep.subr.mxu0 0.0
    %2789 = vmatpush2.xpose.msra.mxu0 0.0
    %2790 = vmatprep.subr.mxu0 0.0
    %2791 = vmatpush2.xpose.msra.mxu0 0.0
    %2792 = vmatprep.subr.mxu0 0.0
    %2793 = vmatpush2.xpose.msra.mxu0 0.0
    %2794 = vmatprep.subr.mxu0 0.0
    %2795 = vmatpush2.xpose.msra.mxu0 0.0
    %2796 = vmatprep.subr.mxu0 0.0
    %2797 = vmatpush2.xpose.msra.mxu0 0.0
    %2798 = vmatprep.mubr.f32.mxu0 0.0
    %2799 = vmatmul.mubr.f32.gmra.mxu0 %v2730
    %v2800 = vpop.f32.mrf.mxu0
    %v2801 = vadd.f32 0.0, %v2800
    %v2802 = vpop.f32.mrf.mxu0
    %2803 = vdwg.mxu0
    %v2804 = vmul.f32 %v2723, 0.35355338
    %v2805 = vmul.f32 %v2801, 0.35355338
    %v2806 = vsel %vm511, %v2804, -inf
    %2807 = vmax.xlane.f32.xlu0 %v2806
    %v2808 = vpop.xlane.xlu0 %2807
    %v2809 = vsel %vm511, %v2805, -inf
    %2810 = vmax.xlane.f32.xlu0 %v2809
    %v2811 = vpop.xlane.xlu0 %2810
    %v2812 = vsub.f32 %v2804, %v2808
    %v2813 = vsub.f32 %v2805, %v2811
    %v2814 = vmul.f32 %v2812, 1.442695
    %v2815 = vpow.pop %v2814
    %v2816 = vmul.f32 %v2813, 1.442695
    %v2817 = vpow.pop %v2816
    %v2818 = vsel %vm511, %v2815, 0.0
    %2819 = vadd.xlane.f32.xlu0 %v2818
    %v2820 = vpop.xlane.xlu0 %2819
    %v2821 = vsel %vm511, %v2817, 0.0
    %2822 = vadd.xlane.f32.xlu0 %v2821
    %v2823 = vpop.xlane.xlu0 %2822
    %v2824 = vrcp.pop %v2820
    %v2825 = vmul.f32 %v2815, %v2824
    %v2826 = vrcp.pop %v2823
    %v2827 = vmul.f32 %v2817, %v2826
    %2828 = vrot.lane.b32.xlu0 %v2310, 56
    %v2829 = vpop.permute.xlu0 %2828
    %v2832 = vsel %vm511, %v2825, 0
    %2834 = vmatprep.subr.mxu0 0.0
    %2835 = vmatpush1.msra.mxu0 0.0
    %2836 = vmatprep.subr.mxu0 0.0
    %2837 = vmatpush1.msra.mxu0 0.0
    %2838 = vmatprep.subr.mxu0 0.0
    %2839 = vmatpush1.msra.mxu0 0.0
    %2840 = vmatprep.subr.mxu0 0.0
    %2841 = vmatpush1.msra.mxu0 0.0
    %2842 = vmatprep.subr.mxu0 0.0
    %2843 = vmatpush1.msra.mxu0 0.0
    %2844 = vmatprep.subr.mxu0 0.0
    %2845 = vmatpush1.msra.mxu0 0.0
    %2846 = vmatprep.subr.mxu0 0.0
    %2847 = vmatpush1.msra.mxu0 0.0
    %2848 = vmatprep.subr.mxu0 0.0
    %2849 = vmatpush1.msra.mxu0 0.0
    %2850 = vmatprep.subr.mxu0 0.0
    %2851 = vmatpush1.msra.mxu0 0.0
    %2852 = vmatprep.subr.mxu0 0.0
    %2853 = vmatpush1.msra.mxu0 0.0
    %2854 = vmatprep.subr.mxu0 0.0
    %2855 = vmatpush1.msra.mxu0 0.0
    %2856 = vmatprep.subr.mxu0 0.0
    %2857 = vmatpush1.msra.mxu0 0.0
    %2858 = vmatprep.subr.mxu0 0.0
    %2859 = vmatpush1.msra.mxu0 0.0
    %2860 = vmatprep.subr.mxu0 0.0
    %2861 = vmatpush1.msra.mxu0 0.0
    %2862 = vmatprep.subr.mxu0 0.0
    %2863 = vmatpush1.msra.mxu0 0.0
    %2864 = vmatprep.subr.mxu0 0.0
    %2865 = vmatpush1.msra.mxu0 %v2829
    %2866 = vmatprep.subr.mxu0 0.0
    %2867 = vmatpush2.msra.mxu0 0.0
    %2868 = vmatprep.subr.mxu0 0.0
    %2869 = vmatpush2.msra.mxu0 0.0
    %2870 = vmatprep.subr.mxu0 0.0
    %2871 = vmatpush2.msra.mxu0 0.0
    %2872 = vmatprep.subr.mxu0 0.0
    %2873 = vmatpush2.msra.mxu0 0.0
    %2874 = vmatprep.subr.mxu0 0.0
    %2875 = vmatpush2.msra.mxu0 0.0
    %2876 = vmatprep.subr.mxu0 0.0
    %2877 = vmatpush2.msra.mxu0 0.0
    %2878 = vmatprep.subr.mxu0 0.0
    %2879 = vmatpush2.msra.mxu0 0.0
    %2880 = vmatprep.subr.mxu0 0.0
    %2881 = vmatpush2.msra.mxu0 0.0
    %2882 = vmatprep.subr.mxu0 0.0
    %2883 = vmatpush2.msra.mxu0 0.0
    %2884 = vmatprep.subr.mxu0 0.0
    %2885 = vmatpush2.msra.mxu0 0.0
    %2886 = vmatprep.subr.mxu0 0.0
    %2887 = vmatpush2.msra.mxu0 0.0
    %2888 = vmatprep.subr.mxu0 0.0
    %2889 = vmatpush2.msra.mxu0 0.0
    %2890 = vmatprep.subr.mxu0 0.0
    %2891 = vmatpush2.msra.mxu0 0.0
    %2892 = vmatprep.subr.mxu0 0.0
    %2893 = vmatpush2.msra.mxu0 0.0
    %2894 = vmatprep.subr.mxu0 0.0
    %2895 = vmatpush2.msra.mxu0 0.0
    %2896 = vmatprep.subr.mxu0 0.0
    %2897 = vmatpush2.msra.mxu0 0.0
    %2898 = vmatprep.mubr.f32.mxu0 0.0
    %2899 = vmatmul.mubr.f32.gmra.mxu0 %v2832
    %v2900 = vpop.f32.mrf.mxu0
    %v2901 = vadd.f32 0.0, %v2900
    %v2902 = vpop.f32.mrf.mxu0
    %2903 = vdwg.mxu0
    %2904 = vrot.lane.b32.xlu0 %v2315, 56
    %v2905 = vpop.permute.xlu0 %2904
    %v2908 = vsel %vm511, %v2827, 0
    %2910 = vmatprep.subr.mxu0 0.0
    %2911 = vmatpush1.msra.mxu0 0.0
    %2912 = vmatprep.subr.mxu0 0.0
    %2913 = vmatpush1.msra.mxu0 0.0
    %2914 = vmatprep.subr.mxu0 0.0
    %2915 = vmatpush1.msra.mxu0 0.0
    %2916 = vmatprep.subr.mxu0 0.0
    %2917 = vmatpush1.msra.mxu0 0.0
    %2918 = vmatprep.subr.mxu0 0.0
    %2919 = vmatpush1.msra.mxu0 0.0
    %2920 = vmatprep.subr.mxu0 0.0
    %2921 = vmatpush1.msra.mxu0 0.0
    %2922 = vmatprep.subr.mxu0 0.0
    %2923 = vmatpush1.msra.mxu0 0.0
    %2924 = vmatprep.subr.mxu0 0.0
    %2925 = vmatpush1.msra.mxu0 0.0
    %2926 = vmatprep.subr.mxu0 0.0
    %2927 = vmatpush1.msra.mxu0 0.0
    %2928 = vmatprep.subr.mxu0 0.0
    %2929 = vmatpush1.msra.mxu0 0.0
    %2930 = vmatprep.subr.mxu0 0.0
    %2931 = vmatpush1.msra.mxu0 0.0
    %2932 = vmatprep.subr.mxu0 0.0
    %2933 = vmatpush1.msra.mxu0 0.0
    %2934 = vmatprep.subr.mxu0 0.0
    %2935 = vmatpush1.msra.mxu0 0.0
    %2936 = vmatprep.subr.mxu0 0.0
    %2937 = vmatpush1.msra.mxu0 0.0
    %2938 = vmatprep.subr.mxu0 0.0
    %2939 = vmatpush1.msra.mxu0 0.0
    %2940 = vmatprep.subr.mxu0 0.0
    %2941 = vmatpush1.msra.mxu0 %v2905
    %2942 = vmatprep.subr.mxu0 0.0
    %2943 = vmatpush2.msra.mxu0 0.0
    %2944 = vmatprep.subr.mxu0 0.0
    %2945 = vmatpush2.msra.mxu0 0.0
    %2946 = vmatprep.subr.mxu0 0.0
    %2947 = vmatpush2.msra.mxu0 0.0
    %2948 = vmatprep.subr.mxu0 0.0
    %2949 = vmatpush2.msra.mxu0 0.0
    %2950 = vmatprep.subr.mxu0 0.0
    %2951 = vmatpush2.msra.mxu0 0.0
    %2952 = vmatprep.subr.mxu0 0.0
    %2953 = vmatpush2.msra.mxu0 0.0
    %2954 = vmatprep.subr.mxu0 0.0
    %2955 = vmatpush2.msra.mxu0 0.0
    %2956 = vmatprep.subr.mxu0 0.0
    %2957 = vmatpush2.msra.mxu0 0.0
    %2958 = vmatprep.subr.mxu0 0.0
    %2959 = vmatpush2.msra.mxu0 0.0
    %2960 = vmatprep.subr.mxu0 0.0
    %2961 = vmatpush2.msra.mxu0 0.0
    %2962 = vmatprep.subr.mxu0 0.0
    %2963 = vmatpush2.msra.mxu0 0.0
    %2964 = vmatprep.subr.mxu0 0.0
    %2965 = vmatpush2.msra.mxu0 0.0
    %2966 = vmatprep.subr.mxu0 0.0
    %2967 = vmatpush2.msra.mxu0 0.0
    %2968 = vmatprep.subr.mxu0 0.0
    %2969 = vmatpush2.msra.mxu0 0.0
    %2970 = vmatprep.subr.mxu0 0.0
    %2971 = vmatpush2.msra.mxu0 0.0
    %2972 = vmatprep.subr.mxu0 0.0
    %2973 = vmatpush2.msra.mxu0 0.0
    %2974 = vmatprep.mubr.f32.mxu0 0.0
    %2975 = vmatmul.mubr.f32.gmra.mxu0 %v2908
    %v2976 = vpop.f32.mrf.mxu0
    %v2977 = vadd.f32 0.0, %v2976
    %v2978 = vpop.f32.mrf.mxu0
    %2979 = vdwg.mxu0
    %2980 = vrot.lane.b32.xlu0 %v2310, 112
    %v2981 = vpop.permute.xlu0 %2980
    %2982 = vrot.lane.b32.xlu0 %v2310, 80
    %v2983 = vpop.permute.xlu0 %2982
    %v2984 = vsel %vm511, %v2981, 0
    %v2986 = vsel %vm511, %v2983, 0
    %2988 = vmatprep.subr.mxu0 0.0
    %2989 = vmatpush1.xpose.msra.mxu0 0.0
    %2990 = vmatprep.subr.mxu0 0.0
    %2991 = vmatpush1.xpose.msra.mxu0 0.0
    %2992 = vmatprep.subr.mxu0 0.0
    %2993 = vmatpush1.xpose.msra.mxu0 0.0
    %2994 = vmatprep.subr.mxu0 0.0
    %2995 = vmatpush1.xpose.msra.mxu0 0.0
    %2996 = vmatprep.subr.mxu0 0.0
    %2997 = vmatpush1.xpose.msra.mxu0 0.0
    %2998 = vmatprep.subr.mxu0 0.0
    %2999 = vmatpush1.xpose.msra.mxu0 0.0
    %3000 = vmatprep.subr.mxu0 0.0
    %3001 = vmatpush1.xpose.msra.mxu0 0.0
    %3002 = vmatprep.subr.mxu0 0.0
    %3003 = vmatpush1.xpose.msra.mxu0 0.0
    %3004 = vmatprep.subr.mxu0 0.0
    %3005 = vmatpush1.xpose.msra.mxu0 0.0
    %3006 = vmatprep.subr.mxu0 0.0
    %3007 = vmatpush1.xpose.msra.mxu0 0.0
    %3008 = vmatprep.subr.mxu0 0.0
    %3009 = vmatpush1.xpose.msra.mxu0 0.0
    %3010 = vmatprep.subr.mxu0 0.0
    %3011 = vmatpush1.xpose.msra.mxu0 0.0
    %3012 = vmatprep.subr.mxu0 0.0
    %3013 = vmatpush1.xpose.msra.mxu0 0.0
    %3014 = vmatprep.subr.mxu0 0.0
    %3015 = vmatpush1.xpose.msra.mxu0 0.0
    %3016 = vmatprep.subr.mxu0 0.0
    %3017 = vmatpush1.xpose.msra.mxu0 0.0
    %3018 = vmatprep.subr.mxu0 0.0
    %3019 = vmatpush1.xpose.msra.mxu0 %v2986
    %3020 = vmatprep.subr.mxu0 0.0
    %3021 = vmatpush2.xpose.msra.mxu0 0.0
    %3022 = vmatprep.subr.mxu0 0.0
    %3023 = vmatpush2.xpose.msra.mxu0 0.0
    %3024 = vmatprep.subr.mxu0 0.0
    %3025 = vmatpush2.xpose.msra.mxu0 0.0
    %3026 = vmatprep.subr.mxu0 0.0
    %3027 = vmatpush2.xpose.msra.mxu0 0.0
    %3028 = vmatprep.subr.mxu0 0.0
    %3029 = vmatpush2.xpose.msra.mxu0 0.0
    %3030 = vmatprep.subr.mxu0 0.0
    %3031 = vmatpush2.xpose.msra.mxu0 0.0
    %3032 = vmatprep.subr.mxu0 0.0
    %3033 = vmatpush2.xpose.msra.mxu0 0.0
    %3034 = vmatprep.subr.mxu0 0.0
    %3035 = vmatpush2.xpose.msra.mxu0 0.0
    %3036 = vmatprep.subr.mxu0 0.0
    %3037 = vmatpush2.xpose.msra.mxu0 0.0
    %3038 = vmatprep.subr.mxu0 0.0
    %3039 = vmatpush2.xpose.msra.mxu0 0.0
    %3040 = vmatprep.subr.mxu0 0.0
    %3041 = vmatpush2.xpose.msra.mxu0 0.0
    %3042 = vmatprep.subr.mxu0 0.0
    %3043 = vmatpush2.xpose.msra.mxu0 0.0
    %3044 = vmatprep.subr.mxu0 0.0
    %3045 = vmatpush2.xpose.msra.mxu0 0.0
    %3046 = vmatprep.subr.mxu0 0.0
    %3047 = vmatpush2.xpose.msra.mxu0 0.0
    %3048 = vmatprep.subr.mxu0 0.0
    %3049 = vmatpush2.xpose.msra.mxu0 0.0
    %3050 = vmatprep.subr.mxu0 0.0
    %3051 = vmatpush2.xpose.msra.mxu0 0.0
    %3052 = vmatprep.mubr.f32.mxu0 0.0
    %3053 = vmatmul.mubr.f32.gmra.mxu0 %v2984
    %v3054 = vpop.f32.mrf.mxu0
    %v3055 = vadd.f32 0.0, %v3054
    %v3056 = vpop.f32.mrf.mxu0
    %3057 = vdwg.mxu0
    %3058 = vrot.lane.b32.xlu0 %v2315, 112
    %v3059 = vpop.permute.xlu0 %3058
    %3060 = vrot.lane.b32.xlu0 %v2315, 80
    %v3061 = vpop.permute.xlu0 %3060
    %v3062 = vsel %vm511, %v3059, 0
    %v3064 = vsel %vm511, %v3061, 0
    %3066 = vmatprep.subr.mxu0 0.0
    %3067 = vmatpush1.xpose.msra.mxu0 0.0
    %3068 = vmatprep.subr.mxu0 0.0
    %3069 = vmatpush1.xpose.msra.mxu0 0.0
    %3070 = vmatprep.subr.mxu0 0.0
    %3071 = vmatpush1.xpose.msra.mxu0 0.0
    %3072 = vmatprep.subr.mxu0 0.0
    %3073 = vmatpush1.xpose.msra.mxu0 0.0
    %3074 = vmatprep.subr.mxu0 0.0
    %3075 = vmatpush1.xpose.msra.mxu0 0.0
    %3076 = vmatprep.subr.mxu0 0.0
    %3077 = vmatpush1.xpose.msra.mxu0 0.0
    %3078 = vmatprep.subr.mxu0 0.0
    %3079 = vmatpush1.xpose.msra.mxu0 0.0
    %3080 = vmatprep.subr.mxu0 0.0
    %3081 = vmatpush1.xpose.msra.mxu0 0.0
    %3082 = vmatprep.subr.mxu0 0.0
    %3083 = vmatpush1.xpose.msra.mxu0 0.0
    %3084 = vmatprep.subr.mxu0 0.0
    %3085 = vmatpush1.xpose.msra.mxu0 0.0
    %3086 = vmatprep.subr.mxu0 0.0
    %3087 = vmatpush1.xpose.msra.mxu0 0.0
    %3088 = vmatprep.subr.mxu0 0.0
    %3089 = vmatpush1.xpose.msra.mxu0 0.0
    %3090 = vmatprep.subr.mxu0 0.0
    %3091 = vmatpush1.xpose.msra.mxu0 0.0
    %3092 = vmatprep.subr.mxu0 0.0
    %3093 = vmatpush1.xpose.msra.mxu0 0.0
    %3094 = vmatprep.subr.mxu0 0.0
    %3095 = vmatpush1.xpose.msra.mxu0 0.0
    %3096 = vmatprep.subr.mxu0 0.0
    %3097 = vmatpush1.xpose.msra.mxu0 %v3064
    %3098 = vmatprep.subr.mxu0 0.0
    %3099 = vmatpush2.xpose.msra.mxu0 0.0
    %3100 = vmatprep.subr.mxu0 0.0
    %3101 = vmatpush2.xpose.msra.mxu0 0.0
    %3102 = vmatprep.subr.mxu0 0.0
    %3103 = vmatpush2.xpose.msra.mxu0 0.0
    %3104 = vmatprep.subr.mxu0 0.0
    %3105 = vmatpush2.xpose.msra.mxu0 0.0
    %3106 = vmatprep.subr.mxu0 0.0
    %3107 = vmatpush2.xpose.msra.mxu0 0.0
    %3108 = vmatprep.subr.mxu0 0.0
    %3109 = vmatpush2.xpose.msra.mxu0 0.0
    %3110 = vmatprep.subr.mxu0 0.0
    %3111 = vmatpush2.xpose.msra.mxu0 0.0
    %3112 = vmatprep.subr.mxu0 0.0
    %3113 = vmatpush2.xpose.msra.mxu0 0.0
    %3114 = vmatprep.subr.mxu0 0.0
    %3115 = vmatpush2.xpose.msra.mxu0 0.0
    %3116 = vmatprep.subr.mxu0 0.0
    %3117 = vmatpush2.xpose.msra.mxu0 0.0
    %3118 = vmatprep.subr.mxu0 0.0
    %3119 = vmatpush2.xpose.msra.mxu0 0.0
    %3120 = vmatprep.subr.mxu0 0.0
    %3121 = vmatpush2.xpose.msra.mxu0 0.0
    %3122 = vmatprep.subr.mxu0 0.0
    %3123 = vmatpush2.xpose.msra.mxu0 0.0
    %3124 = vmatprep.subr.mxu0 0.0
    %3125 = vmatpush2.xpose.msra.mxu0 0.0
    %3126 = vmatprep.subr.mxu0 0.0
    %3127 = vmatpush2.xpose.msra.mxu0 0.0
    %3128 = vmatprep.subr.mxu0 0.0
    %3129 = vmatpush2.xpose.msra.mxu0 0.0
    %3130 = vmatprep.mubr.f32.mxu0 0.0
    %3131 = vmatmul.mubr.f32.gmra.mxu0 %v3062
    %v3132 = vpop.f32.mrf.mxu0
    %v3133 = vadd.f32 0.0, %v3132
    %v3134 = vpop.f32.mrf.mxu0
    %3135 = vdwg.mxu0
    %v3136 = vmul.f32 %v3055, 0.35355338
    %v3137 = vmul.f32 %v3133, 0.35355338
    %v3138 = vsel %vm511, %v3136, -inf
    %3139 = vmax.xlane.f32.xlu0 %v3138
    %v3140 = vpop.xlane.xlu0 %3139
    %v3141 = vsel %vm511, %v3137, -inf
    %3142 = vmax.xlane.f32.xlu0 %v3141
    %v3143 = vpop.xlane.xlu0 %3142
    %v3144 = vsub.f32 %v3136, %v3140
    %v3145 = vsub.f32 %v3137, %v3143
    %v3146 = vmul.f32 %v3144, 1.442695
    %v3147 = vpow.pop %v3146
    %v3148 = vmul.f32 %v3145, 1.442695
    %v3149 = vpow.pop %v3148
    %v3150 = vsel %vm511, %v3147, 0.0
    %3151 = vadd.xlane.f32.xlu0 %v3150
    %v3152 = vpop.xlane.xlu0 %3151
    %v3153 = vsel %vm511, %v3149, 0.0
    %3154 = vadd.xlane.f32.xlu0 %v3153
    %v3155 = vpop.xlane.xlu0 %3154
    %v3156 = vrcp.pop %v3152
    %v3157 = vmul.f32 %v3147, %v3156
    %v3158 = vrcp.pop %v3155
    %v3159 = vmul.f32 %v3149, %v3158
    %3160 = vrot.lane.b32.xlu0 %v2310, 48
    %v3161 = vpop.permute.xlu0 %3160
    %v3164 = vsel %vm511, %v3157, 0
    %3166 = vmatprep.subr.mxu0 0.0
    %3167 = vmatpush1.msra.mxu0 0.0
    %3168 = vmatprep.subr.mxu0 0.0
    %3169 = vmatpush1.msra.mxu0 0.0
    %3170 = vmatprep.subr.mxu0 0.0
    %3171 = vmatpush1.msra.mxu0 0.0
    %3172 = vmatprep.subr.mxu0 0.0
    %3173 = vmatpush1.msra.mxu0 0.0
    %3174 = vmatprep.subr.mxu0 0.0
    %3175 = vmatpush1.msra.mxu0 0.0
    %3176 = vmatprep.subr.mxu0 0.0
    %3177 = vmatpush1.msra.mxu0 0.0
    %3178 = vmatprep.subr.mxu0 0.0
    %3179 = vmatpush1.msra.mxu0 0.0
    %3180 = vmatprep.subr.mxu0 0.0
    %3181 = vmatpush1.msra.mxu0 0.0
    %3182 = vmatprep.subr.mxu0 0.0
    %3183 = vmatpush1.msra.mxu0 0.0
    %3184 = vmatprep.subr.mxu0 0.0
    %3185 = vmatpush1.msra.mxu0 0.0
    %3186 = vmatprep.subr.mxu0 0.0
    %3187 = vmatpush1.msra.mxu0 0.0
    %3188 = vmatprep.subr.mxu0 0.0
    %3189 = vmatpush1.msra.mxu0 0.0
    %3190 = vmatprep.subr.mxu0 0.0
    %3191 = vmatpush1.msra.mxu0 0.0
    %3192 = vmatprep.subr.mxu0 0.0
    %3193 = vmatpush1.msra.mxu0 0.0
    %3194 = vmatprep.subr.mxu0 0.0
    %3195 = vmatpush1.msra.mxu0 0.0
    %3196 = vmatprep.subr.mxu0 0.0
    %3197 = vmatpush1.msra.mxu0 %v3161
    %3198 = vmatprep.subr.mxu0 0.0
    %3199 = vmatpush2.msra.mxu0 0.0
    %3200 = vmatprep.subr.mxu0 0.0
    %3201 = vmatpush2.msra.mxu0 0.0
    %3202 = vmatprep.subr.mxu0 0.0
    %3203 = vmatpush2.msra.mxu0 0.0
    %3204 = vmatprep.subr.mxu0 0.0
    %3205 = vmatpush2.msra.mxu0 0.0
    %3206 = vmatprep.subr.mxu0 0.0
    %3207 = vmatpush2.msra.mxu0 0.0
    %3208 = vmatprep.subr.mxu0 0.0
    %3209 = vmatpush2.msra.mxu0 0.0
    %3210 = vmatprep.subr.mxu0 0.0
    %3211 = vmatpush2.msra.mxu0 0.0
    %3212 = vmatprep.subr.mxu0 0.0
    %3213 = vmatpush2.msra.mxu0 0.0
    %3214 = vmatprep.subr.mxu0 0.0
    %3215 = vmatpush2.msra.mxu0 0.0
    %3216 = vmatprep.subr.mxu0 0.0
    %3217 = vmatpush2.msra.mxu0 0.0
    %3218 = vmatprep.subr.mxu0 0.0
    %3219 = vmatpush2.msra.mxu0 0.0
    %3220 = vmatprep.subr.mxu0 0.0
    %3221 = vmatpush2.msra.mxu0 0.0
    %3222 = vmatprep.subr.mxu0 0.0
    %3223 = vmatpush2.msra.mxu0 0.0
    %3224 = vmatprep.subr.mxu0 0.0
    %3225 = vmatpush2.msra.mxu0 0.0
    %3226 = vmatprep.subr.mxu0 0.0
    %3227 = vmatpush2.msra.mxu0 0.0
    %3228 = vmatprep.subr.mxu0 0.0
    %3229 = vmatpush2.msra.mxu0 0.0
    %3230 = vmatprep.mubr.f32.mxu0 0.0
    %3231 = vmatmul.mubr.f32.gmra.mxu0 %v3164
    %v3232 = vpop.f32.mrf.mxu0
    %v3233 = vadd.f32 0.0, %v3232
    %v3234 = vpop.f32.mrf.mxu0
    %3235 = vdwg.mxu0
    %3236 = vrot.lane.b32.xlu0 %v2315, 48
    %v3237 = vpop.permute.xlu0 %3236
    %v3240 = vsel %vm511, %v3159, 0
    %3242 = vmatprep.subr.mxu0 0.0
    %3243 = vmatpush1.msra.mxu0 0.0
    %3244 = vmatprep.subr.mxu0 0.0
    %3245 = vmatpush1.msra.mxu0 0.0
    %3246 = vmatprep.subr.mxu0 0.0
    %3247 = vmatpush1.msra.mxu0 0.0
    %3248 = vmatprep.subr.mxu0 0.0
    %3249 = vmatpush1.msra.mxu0 0.0
    %3250 = vmatprep.subr.mxu0 0.0
    %3251 = vmatpush1.msra.mxu0 0.0
    %3252 = vmatprep.subr.mxu0 0.0
    %3253 = vmatpush1.msra.mxu0 0.0
    %3254 = vmatprep.subr.mxu0 0.0
    %3255 = vmatpush1.msra.mxu0 0.0
    %3256 = vmatprep.subr.mxu0 0.0
    %3257 = vmatpush1.msra.mxu0 0.0
    %3258 = vmatprep.subr.mxu0 0.0
    %3259 = vmatpush1.msra.mxu0 0.0
    %3260 = vmatprep.subr.mxu0 0.0
    %3261 = vmatpush1.msra.mxu0 0.0
    %3262 = vmatprep.subr.mxu0 0.0
    %3263 = vmatpush1.msra.mxu0 0.0
    %3264 = vmatprep.subr.mxu0 0.0
    %3265 = vmatpush1.msra.mxu0 0.0
    %3266 = vmatprep.subr.mxu0 0.0
    %3267 = vmatpush1.msra.mxu0 0.0
    %3268 = vmatprep.subr.mxu0 0.0
    %3269 = vmatpush1.msra.mxu0 0.0
    %3270 = vmatprep.subr.mxu0 0.0
    %3271 = vmatpush1.msra.mxu0 0.0
    %3272 = vmatprep.subr.mxu0 0.0
    %3273 = vmatpush1.msra.mxu0 %v3237
    %3274 = vmatprep.subr.mxu0 0.0
    %3275 = vmatpush2.msra.mxu0 0.0
    %3276 = vmatprep.subr.mxu0 0.0
    %3277 = vmatpush2.msra.mxu0 0.0
    %3278 = vmatprep.subr.mxu0 0.0
    %3279 = vmatpush2.msra.mxu0 0.0
    %3280 = vmatprep.subr.mxu0 0.0
    %3281 = vmatpush2.msra.mxu0 0.0
    %3282 = vmatprep.subr.mxu0 0.0
    %3283 = vmatpush2.msra.mxu0 0.0
    %3284 = vmatprep.subr.mxu0 0.0
    %3285 = vmatpush2.msra.mxu0 0.0
    %3286 = vmatprep.subr.mxu0 0.0
    %3287 = vmatpush2.msra.mxu0 0.0
    %3288 = vmatprep.subr.mxu0 0.0
    %3289 = vmatpush2.msra.mxu0 0.0
    %3290 = vmatprep.subr.mxu0 0.0
    %3291 = vmatpush2.msra.mxu0 0.0
    %3292 = vmatprep.subr.mxu0 0.0
    %3293 = vmatpush2.msra.mxu0 0.0
    %3294 = vmatprep.subr.mxu0 0.0
    %3295 = vmatpush2.msra.mxu0 0.0
    %3296 = vmatprep.subr.mxu0 0.0
    %3297 = vmatpush2.msra.mxu0 0.0
    %3298 = vmatprep.subr.mxu0 0.0
    %3299 = vmatpush2.msra.mxu0 0.0
    %3300 = vmatprep.subr.mxu0 0.0
    %3301 = vmatpush2.msra.mxu0 0.0
    %3302 = vmatprep.subr.mxu0 0.0
    %3303 = vmatpush2.msra.mxu0 0.0
    %3304 = vmatprep.subr.mxu0 0.0
    %3305 = vmatpush2.msra.mxu0 0.0
    %3306 = vmatprep.mubr.f32.mxu0 0.0
    %3307 = vmatmul.mubr.f32.gmra.mxu0 %v3240
    %v3308 = vpop.f32.mrf.mxu0
    %v3309 = vadd.f32 0.0, %v3308
    %v3310 = vpop.f32.mrf.mxu0
    %3311 = vdwg.mxu0
    %3312 = vrot.lane.b32.xlu0 %v2310, 104
    %v3313 = vpop.permute.xlu0 %3312
    %3314 = vrot.lane.b32.xlu0 %v2310, 72
    %v3315 = vpop.permute.xlu0 %3314
    %v3316 = vsel %vm511, %v3313, 0
    %v3318 = vsel %vm511, %v3315, 0
    %3320 = vmatprep.subr.mxu0 0.0
    %3321 = vmatpush1.xpose.msra.mxu0 0.0
    %3322 = vmatprep.subr.mxu0 0.0
    %3323 = vmatpush1.xpose.msra.mxu0 0.0
    %3324 = vmatprep.subr.mxu0 0.0
    %3325 = vmatpush1.xpose.msra.mxu0 0.0
    %3326 = vmatprep.subr.mxu0 0.0
    %3327 = vmatpush1.xpose.msra.mxu0 0.0
    %3328 = vmatprep.subr.mxu0 0.0
    %3329 = vmatpush1.xpose.msra.mxu0 0.0
    %3330 = vmatprep.subr.mxu0 0.0
    %3331 = vmatpush1.xpose.msra.mxu0 0.0
    %3332 = vmatprep.subr.mxu0 0.0
    %3333 = vmatpush1.xpose.msra.mxu0 0.0
    %3334 = vmatprep.subr.mxu0 0.0
    %3335 = vmatpush1.xpose.msra.mxu0 0.0
    %3336 = vmatprep.subr.mxu0 0.0
    %3337 = vmatpush1.xpose.msra.mxu0 0.0
    %3338 = vmatprep.subr.mxu0 0.0
    %3339 = vmatpush1.xpose.msra.mxu0 0.0
    %3340 = vmatprep.subr.mxu0 0.0
    %3341 = vmatpush1.xpose.msra.mxu0 0.0
    %3342 = vmatprep.subr.mxu0 0.0
    %3343 = vmatpush1.xpose.msra.mxu0 0.0
    %3344 = vmatprep.subr.mxu0 0.0
    %3345 = vmatpush1.xpose.msra.mxu0 0.0
    %3346 = vmatprep.subr.mxu0 0.0
    %3347 = vmatpush1.xpose.msra.mxu0 0.0
    %3348 = vmatprep.subr.mxu0 0.0
    %3349 = vmatpush1.xpose.msra.mxu0 0.0
    %3350 = vmatprep.subr.mxu0 0.0
    %3351 = vmatpush1.xpose.msra.mxu0 %v3318
    %3352 = vmatprep.subr.mxu0 0.0
    %3353 = vmatpush2.xpose.msra.mxu0 0.0
    %3354 = vmatprep.subr.mxu0 0.0
    %3355 = vmatpush2.xpose.msra.mxu0 0.0
    %3356 = vmatprep.subr.mxu0 0.0
    %3357 = vmatpush2.xpose.msra.mxu0 0.0
    %3358 = vmatprep.subr.mxu0 0.0
    %3359 = vmatpush2.xpose.msra.mxu0 0.0
    %3360 = vmatprep.subr.mxu0 0.0
    %3361 = vmatpush2.xpose.msra.mxu0 0.0
    %3362 = vmatprep.subr.mxu0 0.0
    %3363 = vmatpush2.xpose.msra.mxu0 0.0
    %3364 = vmatprep.subr.mxu0 0.0
    %3365 = vmatpush2.xpose.msra.mxu0 0.0
    %3366 = vmatprep.subr.mxu0 0.0
    %3367 = vmatpush2.xpose.msra.mxu0 0.0
    %3368 = vmatprep.subr.mxu0 0.0
    %3369 = vmatpush2.xpose.msra.mxu0 0.0
    %3370 = vmatprep.subr.mxu0 0.0
    %3371 = vmatpush2.xpose.msra.mxu0 0.0
    %3372 = vmatprep.subr.mxu0 0.0
    %3373 = vmatpush2.xpose.msra.mxu0 0.0
    %3374 = vmatprep.subr.mxu0 0.0
    %3375 = vmatpush2.xpose.msra.mxu0 0.0
    %3376 = vmatprep.subr.mxu0 0.0
    %3377 = vmatpush2.xpose.msra.mxu0 0.0
    %3378 = vmatprep.subr.mxu0 0.0
    %3379 = vmatpush2.xpose.msra.mxu0 0.0
    %3380 = vmatprep.subr.mxu0 0.0
    %3381 = vmatpush2.xpose.msra.mxu0 0.0
    %3382 = vmatprep.subr.mxu0 0.0
    %3383 = vmatpush2.xpose.msra.mxu0 0.0
    %3384 = vmatprep.mubr.f32.mxu0 0.0
    %3385 = vmatmul.mubr.f32.gmra.mxu0 %v3316
    %v3386 = vpop.f32.mrf.mxu0
    %v3387 = vadd.f32 0.0, %v3386
    %v3388 = vpop.f32.mrf.mxu0
    %3389 = vdwg.mxu0
    %3390 = vrot.lane.b32.xlu0 %v2315, 104
    %v3391 = vpop.permute.xlu0 %3390
    %3392 = vrot.lane.b32.xlu0 %v2315, 72
    %v3393 = vpop.permute.xlu0 %3392
    %v3394 = vsel %vm511, %v3391, 0
    %v3396 = vsel %vm511, %v3393, 0
    %3398 = vmatprep.subr.mxu0 0.0
    %3399 = vmatpush1.xpose.msra.mxu0 0.0
    %3400 = vmatprep.subr.mxu0 0.0
    %3401 = vmatpush1.xpose.msra.mxu0 0.0
    %3402 = vmatprep.subr.mxu0 0.0
    %3403 = vmatpush1.xpose.msra.mxu0 0.0
    %3404 = vmatprep.subr.mxu0 0.0
    %3405 = vmatpush1.xpose.msra.mxu0 0.0
    %3406 = vmatprep.subr.mxu0 0.0
    %3407 = vmatpush1.xpose.msra.mxu0 0.0
    %3408 = vmatprep.subr.mxu0 0.0
    %3409 = vmatpush1.xpose.msra.mxu0 0.0
    %3410 = vmatprep.subr.mxu0 0.0
    %3411 = vmatpush1.xpose.msra.mxu0 0.0
    %3412 = vmatprep.subr.mxu0 0.0
    %3413 = vmatpush1.xpose.msra.mxu0 0.0
    %3414 = vmatprep.subr.mxu0 0.0
    %3415 = vmatpush1.xpose.msra.mxu0 0.0
    %3416 = vmatprep.subr.mxu0 0.0
    %3417 = vmatpush1.xpose.msra.mxu0 0.0
    %3418 = vmatprep.subr.mxu0 0.0
    %3419 = vmatpush1.xpose.msra.mxu0 0.0
    %3420 = vmatprep.subr.mxu0 0.0
    %3421 = vmatpush1.xpose.msra.mxu0 0.0
    %3422 = vmatprep.subr.mxu0 0.0
    %3423 = vmatpush1.xpose.msra.mxu0 0.0
    %3424 = vmatprep.subr.mxu0 0.0
    %3425 = vmatpush1.xpose.msra.mxu0 0.0
    %3426 = vmatprep.subr.mxu0 0.0
    %3427 = vmatpush1.xpose.msra.mxu0 0.0
    %3428 = vmatprep.subr.mxu0 0.0
    %3429 = vmatpush1.xpose.msra.mxu0 %v3396
    %3430 = vmatprep.subr.mxu0 0.0
    %3431 = vmatpush2.xpose.msra.mxu0 0.0
    %3432 = vmatprep.subr.mxu0 0.0
    %3433 = vmatpush2.xpose.msra.mxu0 0.0
    %3434 = vmatprep.subr.mxu0 0.0
    %3435 = vmatpush2.xpose.msra.mxu0 0.0
    %3436 = vmatprep.subr.mxu0 0.0
    %3437 = vmatpush2.xpose.msra.mxu0 0.0
    %3438 = vmatprep.subr.mxu0 0.0
    %3439 = vmatpush2.xpose.msra.mxu0 0.0
    %3440 = vmatprep.subr.mxu0 0.0
    %3441 = vmatpush2.xpose.msra.mxu0 0.0
    %3442 = vmatprep.subr.mxu0 0.0
    %3443 = vmatpush2.xpose.msra.mxu0 0.0
    %3444 = vmatprep.subr.mxu0 0.0
    %3445 = vmatpush2.xpose.msra.mxu0 0.0
    %3446 = vmatprep.subr.mxu0 0.0
    %3447 = vmatpush2.xpose.msra.mxu0 0.0
    %3448 = vmatprep.subr.mxu0 0.0
    %3449 = vmatpush2.xpose.msra.mxu0 0.0
    %3450 = vmatprep.subr.mxu0 0.0
    %3451 = vmatpush2.xpose.msra.mxu0 0.0
    %3452 = vmatprep.subr.mxu0 0.0
    %3453 = vmatpush2.xpose.msra.mxu0 0.0
    %3454 = vmatprep.subr.mxu0 0.0
    %3455 = vmatpush2.xpose.msra.mxu0 0.0
    %3456 = vmatprep.subr.mxu0 0.0
    %3457 = vmatpush2.xpose.msra.mxu0 0.0
    %3458 = vmatprep.subr.mxu0 0.0
    %3459 = vmatpush2.xpose.msra.mxu0 0.0
    %3460 = vmatprep.subr.mxu0 0.0
    %3461 = vmatpush2.xpose.msra.mxu0 0.0
    %3462 = vmatprep.mubr.f32.mxu0 0.0
    %3463 = vmatmul.mubr.f32.gmra.mxu0 %v3394
    %v3464 = vpop.f32.mrf.mxu0
    %v3465 = vadd.f32 0.0, %v3464
    %v3466 = vpop.f32.mrf.mxu0
    %3467 = vdwg.mxu0
    %v3468 = vmul.f32 %v3387, 0.35355338
    %v3469 = vmul.f32 %v3465, 0.35355338
    %v3470 = vsel %vm511, %v3468, -inf
    %3471 = vmax.xlane.f32.xlu0 %v3470
    %v3472 = vpop.xlane.xlu0 %3471
    %v3473 = vsel %vm511, %v3469, -inf
    %3474 = vmax.xlane.f32.xlu0 %v3473
    %v3475 = vpop.xlane.xlu0 %3474
    %v3476 = vsub.f32 %v3468, %v3472
    %v3477 = vsub.f32 %v3469, %v3475
    %v3478 = vmul.f32 %v3476, 1.442695
    %v3479 = vpow.pop %v3478
    %v3480 = vmul.f32 %v3477, 1.442695
    %v3481 = vpow.pop %v3480
    %v3482 = vsel %vm511, %v3479, 0.0
    %3483 = vadd.xlane.f32.xlu0 %v3482
    %v3484 = vpop.xlane.xlu0 %3483
    %v3485 = vsel %vm511, %v3481, 0.0
    %3486 = vadd.xlane.f32.xlu0 %v3485
    %v3487 = vpop.xlane.xlu0 %3486
    %v3488 = vrcp.pop %v3484
    %v3489 = vmul.f32 %v3479, %v3488
    %v3490 = vrcp.pop %v3487
    %v3491 = vmul.f32 %v3481, %v3490
    %3492 = vrot.lane.b32.xlu0 %v2310, 40
    %v3493 = vpop.permute.xlu0 %3492
    %v3496 = vsel %vm511, %v3489, 0
    %3498 = vmatprep.subr.mxu0 0.0
    %3499 = vmatpush1.msra.mxu0 0.0
    %3500 = vmatprep.subr.mxu0 0.0
    %3501 = vmatpush1.msra.mxu0 0.0
    %3502 = vmatprep.subr.mxu0 0.0
    %3503 = vmatpush1.msra.mxu0 0.0
    %3504 = vmatprep.subr.mxu0 0.0
    %3505 = vmatpush1.msra.mxu0 0.0
    %3506 = vmatprep.subr.mxu0 0.0
    %3507 = vmatpush1.msra.mxu0 0.0
    %3508 = vmatprep.subr.mxu0 0.0
    %3509 = vmatpush1.msra.mxu0 0.0
    %3510 = vmatprep.subr.mxu0 0.0
    %3511 = vmatpush1.msra.mxu0 0.0
    %3512 = vmatprep.subr.mxu0 0.0
    %3513 = vmatpush1.msra.mxu0 0.0
    %3514 = vmatprep.subr.mxu0 0.0
    %3515 = vmatpush1.msra.mxu0 0.0
    %3516 = vmatprep.subr.mxu0 0.0
    %3517 = vmatpush1.msra.mxu0 0.0
    %3518 = vmatprep.subr.mxu0 0.0
    %3519 = vmatpush1.msra.mxu0 0.0
    %3520 = vmatprep.subr.mxu0 0.0
    %3521 = vmatpush1.msra.mxu0 0.0
    %3522 = vmatprep.subr.mxu0 0.0
    %3523 = vmatpush1.msra.mxu0 0.0
    %3524 = vmatprep.subr.mxu0 0.0
    %3525 = vmatpush1.msra.mxu0 0.0
    %3526 = vmatprep.subr.mxu0 0.0
    %3527 = vmatpush1.msra.mxu0 0.0
    %3528 = vmatprep.subr.mxu0 0.0
    %3529 = vmatpush1.msra.mxu0 %v3493
    %3530 = vmatprep.subr.mxu0 0.0
    %3531 = vmatpush2.msra.mxu0 0.0
    %3532 = vmatprep.subr.mxu0 0.0
    %3533 = vmatpush2.msra.mxu0 0.0
    %3534 = vmatprep.subr.mxu0 0.0
    %3535 = vmatpush2.msra.mxu0 0.0
    %3536 = vmatprep.subr.mxu0 0.0
    %3537 = vmatpush2.msra.mxu0 0.0
    %3538 = vmatprep.subr.mxu0 0.0
    %3539 = vmatpush2.msra.mxu0 0.0
    %3540 = vmatprep.subr.mxu0 0.0
    %3541 = vmatpush2.msra.mxu0 0.0
    %3542 = vmatprep.subr.mxu0 0.0
    %3543 = vmatpush2.msra.mxu0 0.0
    %3544 = vmatprep.subr.mxu0 0.0
    %3545 = vmatpush2.msra.mxu0 0.0
    %3546 = vmatprep.subr.mxu0 0.0
    %3547 = vmatpush2.msra.mxu0 0.0
    %3548 = vmatprep.subr.mxu0 0.0
    %3549 = vmatpush2.msra.mxu0 0.0
    %3550 = vmatprep.subr.mxu0 0.0
    %3551 = vmatpush2.msra.mxu0 0.0
    %3552 = vmatprep.subr.mxu0 0.0
    %3553 = vmatpush2.msra.mxu0 0.0
    %3554 = vmatprep.subr.mxu0 0.0
    %3555 = vmatpush2.msra.mxu0 0.0
    %3556 = vmatprep.subr.mxu0 0.0
    %3557 = vmatpush2.msra.mxu0 0.0
    %3558 = vmatprep.subr.mxu0 0.0
    %3559 = vmatpush2.msra.mxu0 0.0
    %3560 = vmatprep.subr.mxu0 0.0
    %3561 = vmatpush2.msra.mxu0 0.0
    %3562 = vmatprep.mubr.f32.mxu0 0.0
    %3563 = vmatmul.mubr.f32.gmra.mxu0 %v3496
    %v3564 = vpop.f32.mrf.mxu0
    %v3565 = vadd.f32 0.0, %v3564
    %v3566 = vpop.f32.mrf.mxu0
    %3567 = vdwg.mxu0
    %3568 = vrot.lane.b32.xlu0 %v2315, 40
    %v3569 = vpop.permute.xlu0 %3568
    %v3572 = vsel %vm511, %v3491, 0
    %3574 = vmatprep.subr.mxu0 0.0
    %3575 = vmatpush1.msra.mxu0 0.0
    %3576 = vmatprep.subr.mxu0 0.0
    %3577 = vmatpush1.msra.mxu0 0.0
    %3578 = vmatprep.subr.mxu0 0.0
    %3579 = vmatpush1.msra.mxu0 0.0
    %3580 = vmatprep.subr.mxu0 0.0
    %3581 = vmatpush1.msra.mxu0 0.0
    %3582 = vmatprep.subr.mxu0 0.0
    %3583 = vmatpush1.msra.mxu0 0.0
    %3584 = vmatprep.subr.mxu0 0.0
    %3585 = vmatpush1.msra.mxu0 0.0
    %3586 = vmatprep.subr.mxu0 0.0
    %3587 = vmatpush1.msra.mxu0 0.0
    %3588 = vmatprep.subr.mxu0 0.0
    %3589 = vmatpush1.msra.mxu0 0.0
    %3590 = vmatprep.subr.mxu0 0.0
    %3591 = vmatpush1.msra.mxu0 0.0
    %3592 = vmatprep.subr.mxu0 0.0
    %3593 = vmatpush1.msra.mxu0 0.0
    %3594 = vmatprep.subr.mxu0 0.0
    %3595 = vmatpush1.msra.mxu0 0.0
    %3596 = vmatprep.subr.mxu0 0.0
    %3597 = vmatpush1.msra.mxu0 0.0
    %3598 = vmatprep.subr.mxu0 0.0
    %3599 = vmatpush1.msra.mxu0 0.0
    %3600 = vmatprep.subr.mxu0 0.0
    %3601 = vmatpush1.msra.mxu0 0.0
    %3602 = vmatprep.subr.mxu0 0.0
    %3603 = vmatpush1.msra.mxu0 0.0
    %3604 = vmatprep.subr.mxu0 0.0
    %3605 = vmatpush1.msra.mxu0 %v3569
    %3606 = vmatprep.subr.mxu0 0.0
    %3607 = vmatpush2.msra.mxu0 0.0
    %3608 = vmatprep.subr.mxu0 0.0
    %3609 = vmatpush2.msra.mxu0 0.0
    %3610 = vmatprep.subr.mxu0 0.0
    %3611 = vmatpush2.msra.mxu0 0.0
    %3612 = vmatprep.subr.mxu0 0.0
    %3613 = vmatpush2.msra.mxu0 0.0
    %3614 = vmatprep.subr.mxu0 0.0
    %3615 = vmatpush2.msra.mxu0 0.0
    %3616 = vmatprep.subr.mxu0 0.0
    %3617 = vmatpush2.msra.mxu0 0.0
    %3618 = vmatprep.subr.mxu0 0.0
    %3619 = vmatpush2.msra.mxu0 0.0
    %3620 = vmatprep.subr.mxu0 0.0
    %3621 = vmatpush2.msra.mxu0 0.0
    %3622 = vmatprep.subr.mxu0 0.0
    %3623 = vmatpush2.msra.mxu0 0.0
    %3624 = vmatprep.subr.mxu0 0.0
    %3625 = vmatpush2.msra.mxu0 0.0
    %3626 = vmatprep.subr.mxu0 0.0
    %3627 = vmatpush2.msra.mxu0 0.0
    %3628 = vmatprep.subr.mxu0 0.0
    %3629 = vmatpush2.msra.mxu0 0.0
    %3630 = vmatprep.subr.mxu0 0.0
    %3631 = vmatpush2.msra.mxu0 0.0
    %3632 = vmatprep.subr.mxu0 0.0
    %3633 = vmatpush2.msra.mxu0 0.0
    %3634 = vmatprep.subr.mxu0 0.0
    %3635 = vmatpush2.msra.mxu0 0.0
    %3636 = vmatprep.subr.mxu0 0.0
    %3637 = vmatpush2.msra.mxu0 0.0
    %3638 = vmatprep.mubr.f32.mxu0 0.0
    %3639 = vmatmul.mubr.f32.gmra.mxu0 %v3572
    %v3640 = vpop.f32.mrf.mxu0
    %v3641 = vadd.f32 0.0, %v3640
    %v3642 = vpop.f32.mrf.mxu0
    %3643 = vdwg.mxu0
    %3646 = vrot.lane.b32.xlu0 %v2901, 8
    %v3647 = vpop.permute.xlu0 %3646
    %3648 = vrot.lane.b32.xlu0 %v2977, 8
    %v3649 = vpop.permute.xlu0 %3648
    %3654 = vrot.lane.b32.xlu0 %v3233, 16
    %v3655 = vpop.permute.xlu0 %3654
    %3656 = vrot.lane.b32.xlu0 %v3309, 16
    %v3657 = vpop.permute.xlu0 %3656
    %3662 = vrot.lane.b32.xlu0 %v3565, 24
    %v3663 = vpop.permute.xlu0 %3662
    %3664 = vrot.lane.b32.xlu0 %v3641, 24
    %v3665 = vpop.permute.xlu0 %3664
    %v3668 = vsel %vm511, %v2569, %v3647
    %v3669 = vsel %vm511, %v2645, %v3649
    %v3670 = vsel %vm43, %v3668, %v3655
    %v3671 = vsel %vm43, %v3669, %v3657
    %v3672 = vsel %vm1863, %v3670, %v3663
    %v3673 = vsel %vm1863, %v3671, %v3665
    %v3674 = vld [vmem:[#allocation2 + $0x120] sm:$0xff]
    %v3675 = vld [vmem:[#allocation2 + $0x128] sm:$0xff]
    %v3676 = vld [vmem:[#allocation2 + $0x130] sm:$0xff]
    %v3677 = vld [vmem:[#allocation2 + $0x138] sm:$0xff]
    %v3678 = vld [vmem:[%s4 + $0xd] sm:$0x1]
    %v3679 = vlaneseq
    %v3680 = vshrl.u32 %v3679, 7
    %v3681 = vsub.s32 0, %v3680
    %v3682 = vrot.slane %v3678, %v3681
    %v3684 = vsel %vm227, %v3672, 0
    %v3687 = vsel %vm227, %v3673, 0
    %3689 = vmatprep.subr.mxu0 0.0
    %3690 = vmatpush1.msra.mxu0 0.0
    %3691 = vmatprep.subr.mxu0 0.0
    %3692 = vmatpush1.msra.mxu0 0.0
    %3693 = vmatprep.subr.mxu0 0.0
    %3694 = vmatpush1.msra.mxu0 0.0
    %3695 = vmatprep.subr.mxu0 0.0
    %3696 = vmatpush1.msra.mxu0 0.0
    %3697 = vmatprep.subr.mxu0 0.0
    %3698 = vmatpush1.msra.mxu0 0.0
    %3699 = vmatprep.subr.mxu0 0.0
    %3700 = vmatpush1.msra.mxu0 0.0
    %3701 = vmatprep.subr.mxu0 0.0
    %3702 = vmatpush1.msra.mxu0 0.0
    %3703 = vmatprep.subr.mxu0 0.0
    %3704 = vmatpush1.msra.mxu0 0.0
    %3705 = vmatprep.subr.mxu0 0.0
    %3706 = vmatpush1.msra.mxu0 0.0
    %3707 = vmatprep.subr.mxu0 0.0
    %3708 = vmatpush1.msra.mxu0 0.0
    %3709 = vmatprep.subr.mxu0 0.0
    %3710 = vmatpush1.msra.mxu0 0.0
    %3711 = vmatprep.subr.mxu0 0.0
    %3712 = vmatpush1.msra.mxu0 0.0
    %3713 = vmatprep.subr.mxu0 0.0
    %3714 = vmatpush1.msra.mxu0 %v3677
    %3715 = vmatprep.subr.mxu0 0.0
    %3716 = vmatpush1.msra.mxu0 %v3676
    %3717 = vmatprep.subr.mxu0 0.0
    %3718 = vmatpush1.msra.mxu0 %v3675
    %3719 = vmatprep.subr.mxu0 0.0
    %3720 = vmatpush1.msra.mxu0 %v3674
    %3721 = vmatprep.subr.mxu0 0.0
    %3722 = vmatpush2.msra.mxu0 0.0
    %3723 = vmatprep.subr.mxu0 0.0
    %3724 = vmatpush2.msra.mxu0 0.0
    %3725 = vmatprep.subr.mxu0 0.0
    %3726 = vmatpush2.msra.mxu0 0.0
    %3727 = vmatprep.subr.mxu0 0.0
    %3728 = vmatpush2.msra.mxu0 0.0
    %3729 = vmatprep.subr.mxu0 0.0
    %3730 = vmatpush2.msra.mxu0 0.0
    %3731 = vmatprep.subr.mxu0 0.0
    %3732 = vmatpush2.msra.mxu0 0.0
    %3733 = vmatprep.subr.mxu0 0.0
    %3734 = vmatpush2.msra.mxu0 0.0
    %3735 = vmatprep.subr.mxu0 0.0
    %3736 = vmatpush2.msra.mxu0 0.0
    %3737 = vmatprep.subr.mxu0 0.0
    %3738 = vmatpush2.msra.mxu0 0.0
    %3739 = vmatprep.subr.mxu0 0.0
    %3740 = vmatpush2.msra.mxu0 0.0
    %3741 = vmatprep.subr.mxu0 0.0
    %3742 = vmatpush2.msra.mxu0 0.0
    %3743 = vmatprep.subr.mxu0 0.0
    %3744 = vmatpush2.msra.mxu0 0.0
    %3745 = vmatprep.subr.mxu0 0.0
    %3746 = vmatpush2.msra.mxu0 0.0
    %3747 = vmatprep.subr.mxu0 0.0
    %3748 = vmatpush2.msra.mxu0 0.0
    %3749 = vmatprep.subr.mxu0 0.0
    %3750 = vmatpush2.msra.mxu0 0.0
    %3751 = vmatprep.subr.mxu0 0.0
    %3752 = vmatpush2.msra.mxu0 0.0
    %3753 = vmatprep.mubr.f32.mxu0 0.0
    %3754 = vmatmul.mubr.f32.gmra.mxu0 %v3684
    %v3755 = vpop.f32.mrf.mxu0
    %v3756 = vadd.f32 %v3682, %v3755
    %v3757 = vpop.f32.mrf.mxu0
    %3758 = vmatprep.mubr.f32.mxu0 0.0
    %3759 = vmatmul.mubr.f32.gmra.mxu0 %v3687
    %v3760 = vpop.f32.mrf.mxu0
    %v3761 = vadd.f32 %v3682, %v3760
    %v3762 = vpop.f32.mrf.mxu0
    %3763 = vdwg.mxu0
    %v3764 = vadd.f32 %v2226, %v3756
    %v3765 = vadd.f32 %v2227, %v3761
    %v3766 = vld [vmem:[%s4 + $0xe] sm:$0x1]
    %v3767 = vld [vmem:[%s4 + $0xf] sm:$0x1]
    %v3768 = vsel %vm227, %v3764, 0.0
    %3769 = vadd.xlane.f32.xlu0 %v3768
    %v3770 = vpop.xlane.xlu0 %3769
    %v3771 = vsel %vm227, %v3765, 0.0
    %3772 = vadd.xlane.f32.xlu0 %v3771
    %v3773 = vpop.xlane.xlu0 %3772
    %v3774 = vmul.f32 %v3770, %v1966
    %v3775 = vmul.f32 %v3773, %v1966
    %v3776 = vsub.f32 %v3764, %v3774
    %v3777 = vsub.f32 %v3765, %v3775
    %v3778 = vmul.f32 %v3776, %v3776
    %v3779 = vmul.f32 %v3777, %v3777
    %v3780 = vsel %vm227, %v3778, 0.0
    %3781 = vadd.xlane.f32.xlu0 %v3780
    %v3782 = vpop.xlane.xlu0 %3781
    %v3783 = vsel %vm227, %v3779, 0.0
    %3784 = vadd.xlane.f32.xlu0 %v3783
    %v3785 = vpop.xlane.xlu0 %3784
    %v3786 = vmul.f32 %v3782, %v1966
    %v3787 = vmul.f32 %v3785, %v1966
    %v3788 = vadd.f32 %v3786, 1e-05
    %v3789 = vadd.f32 %v3787, 1e-05
    %v3790 = vrsqrt.pop %v3788
    %v3791 = vrsqrt.pop %v3789
    %v3792 = vmul.f32 %v3776, %v3790
    %v3793 = vmul.f32 %v3777, %v3791
    %v3794 = vlaneseq
    %v3795 = vshrl.u32 %v3794, 7
    %v3796 = vsub.s32 0, %v3795
    %v3797 = vrot.slane %v3766, %v3796
    %v3798 = vmul.f32 %v3792, %v3797
    %v3799 = vmul.f32 %v3793, %v3797
    %v3800 = vlaneseq
    %v3801 = vshrl.u32 %v3800, 7
    %v3802 = vsub.s32 0, %v3801
    %v3803 = vrot.slane %v3767, %v3802
    %v3804 = vadd.f32 %v3798, %v3803
    %v3805 = vadd.f32 %v3799, %v3803
    %v3806 = vld [vmem:[#allocation2 + $0x140] sm:$0xff]
    %v3807 = vld [vmem:[#allocation2 + $0x148] sm:$0xff]
    %v3808 = vld [vmem:[#allocation2 + $0x150] sm:$0xff]
    %v3809 = vld [vmem:[#allocation2 + $0x158] sm:$0xff]
    %v3810 = vld [vmem:[%s4 + $0x10] sm:$0x1]
    %v3811 = vlaneseq
    %v3812 = vshrl.u32 %v3811, 7
    %v3813 = vsub.s32 0, %v3812
    %v3814 = vrot.slane %v3810, %v3813
    %v3816 = vsel %vm227, %v3804, 0
    %v3819 = vsel %vm227, %v3805, 0
    %3821 = vmatprep.subr.mxu0 0.0
    %3822 = vmatpush1.msra.mxu0 0.0
    %3823 = vmatprep.subr.mxu0 0.0
    %3824 = vmatpush1.msra.mxu0 0.0
    %3825 = vmatprep.subr.mxu0 0.0
    %3826 = vmatpush1.msra.mxu0 0.0
    %3827 = vmatprep.subr.mxu0 0.0
    %3828 = vmatpush1.msra.mxu0 0.0
    %3829 = vmatprep.subr.mxu0 0.0
    %3830 = vmatpush1.msra.mxu0 0.0
    %3831 = vmatprep.subr.mxu0 0.0
    %3832 = vmatpush1.msra.mxu0 0.0
    %3833 = vmatprep.subr.mxu0 0.0
    %3834 = vmatpush1.msra.mxu0 0.0
    %3835 = vmatprep.subr.mxu0 0.0
    %3836 = vmatpush1.msra.mxu0 0.0
    %3837 = vmatprep.subr.mxu0 0.0
    %3838 = vmatpush1.msra.mxu0 0.0
    %3839 = vmatprep.subr.mxu0 0.0
    %3840 = vmatpush1.msra.mxu0 0.0
    %3841 = vmatprep.subr.mxu0 0.0
    %3842 = vmatpush1.msra.mxu0 0.0
    %3843 = vmatprep.subr.mxu0 0.0
    %3844 = vmatpush1.msra.mxu0 0.0
    %3845 = vmatprep.subr.mxu0 0.0
    %3846 = vmatpush1.msra.mxu0 %v3809
    %3847 = vmatprep.subr.mxu0 0.0
    %3848 = vmatpush1.msra.mxu0 %v3808
    %3849 = vmatprep.subr.mxu0 0.0
    %3850 = vmatpush1.msra.mxu0 %v3807
    %3851 = vmatprep.subr.mxu0 0.0
    %3852 = vmatpush1.msra.mxu0 %v3806
    %3853 = vmatprep.subr.mxu0 0.0
    %3854 = vmatpush2.msra.mxu0 0.0
    %3855 = vmatprep.subr.mxu0 0.0
    %3856 = vmatpush2.msra.mxu0 0.0
    %3857 = vmatprep.subr.mxu0 0.0
    %3858 = vmatpush2.msra.mxu0 0.0
    %3859 = vmatprep.subr.mxu0 0.0
    %3860 = vmatpush2.msra.mxu0 0.0
    %3861 = vmatprep.subr.mxu0 0.0
    %3862 = vmatpush2.msra.mxu0 0.0
    %3863 = vmatprep.subr.mxu0 0.0
    %3864 = vmatpush2.msra.mxu0 0.0
    %3865 = vmatprep.subr.mxu0 0.0
    %3866 = vmatpush2.msra.mxu0 0.0
    %3867 = vmatprep.subr.mxu0 0.0
    %3868 = vmatpush2.msra.mxu0 0.0
    %3869 = vmatprep.subr.mxu0 0.0
    %3870 = vmatpush2.msra.mxu0 0.0
    %3871 = vmatprep.subr.mxu0 0.0
    %3872 = vmatpush2.msra.mxu0 0.0
    %3873 = vmatprep.subr.mxu0 0.0
    %3874 = vmatpush2.msra.mxu0 0.0
    %3875 = vmatprep.subr.mxu0 0.0
    %3876 = vmatpush2.msra.mxu0 0.0
    %3877 = vmatprep.subr.mxu0 0.0
    %3878 = vmatpush2.msra.mxu0 0.0
    %3879 = vmatprep.subr.mxu0 0.0
    %3880 = vmatpush2.msra.mxu0 0.0
    %3881 = vmatprep.subr.mxu0 0.0
    %3882 = vmatpush2.msra.mxu0 0.0
    %3883 = vmatprep.subr.mxu0 0.0
    %3884 = vmatpush2.msra.mxu0 0.0
    %3885 = vmatprep.mubr.f32.mxu0 0.0
    %3886 = vmatmul.mubr.f32.gmra.mxu0 %v3816
    %v3887 = vpop.f32.mrf.mxu0
    %v3888 = vadd.f32 %v3814, %v3887
    %v3889 = vpop.f32.mrf.mxu0
    %3890 = vmatprep.mubr.f32.mxu0 0.0
    %3891 = vmatmul.mubr.f32.gmra.mxu0 %v3819
    %v3892 = vpop.f32.mrf.mxu0
    %v3893 = vadd.f32 %v3814, %v3892
    %v3894 = vpop.f32.mrf.mxu0
    %3895 = vdwg.mxu0
    %v3896 = vmax.f32 %v3888, 0.0
    %v3897 = vmax.f32 %v3893, 0.0
    %v3898 = vld [vmem:[#allocation2 + $0x160] sm:$0xff]
    %v3899 = vld [vmem:[#allocation2 + $0x168] sm:$0xff]
    %v3900 = vld [vmem:[#allocation2 + $0x170] sm:$0xff]
    %v3901 = vld [vmem:[#allocation2 + $0x178] sm:$0xff]
    %v3902 = vld [vmem:[#allocation2 + $0x180] sm:$0xff]
    %v3903 = vld [vmem:[#allocation2 + $0x188] sm:$0xff]
    %v3904 = vld [vmem:[#allocation2 + $0x190] sm:$0xff]
    %v3905 = vld [vmem:[#allocation2 + $0x198] sm:$0xff]
    %v3906 = vld [vmem:[%s4 + $0x11] sm:$0x1]
    %v3907 = vlaneseq
    %v3908 = vshrl.u32 %v3907, 7
    %v3909 = vsub.s32 0, %v3908
    %v3910 = vrot.slane %v3906, %v3909
    %v3912 = vsel %vm2104, %v3896, 0
    %v3915 = vsel %vm2104, %v3897, 0
    %3917 = vmatprep.subr.mxu0 0.0
    %3918 = vmatpush1.msra.mxu0 0.0
    %3919 = vmatprep.subr.mxu0 0.0
    %3920 = vmatpush1.msra.mxu0 0.0
    %3921 = vmatprep.subr.mxu0 0.0
    %3922 = vmatpush1.msra.mxu0 0.0
    %3923 = vmatprep.subr.mxu0 0.0
    %3924 = vmatpush1.msra.mxu0 0.0
    %3925 = vmatprep.subr.mxu0 0.0
    %3926 = vmatpush1.msra.mxu0 0.0
    %3927 = vmatprep.subr.mxu0 0.0
    %3928 = vmatpush1.msra.mxu0 0.0
    %3929 = vmatprep.subr.mxu0 0.0
    %3930 = vmatpush1.msra.mxu0 0.0
    %3931 = vmatprep.subr.mxu0 0.0
    %3932 = vmatpush1.msra.mxu0 0.0
    %3933 = vmatprep.subr.mxu0 0.0
    %3934 = vmatpush1.msra.mxu0 %v3905
    %3935 = vmatprep.subr.mxu0 0.0
    %3936 = vmatpush1.msra.mxu0 %v3904
    %3937 = vmatprep.subr.mxu0 0.0
    %3938 = vmatpush1.msra.mxu0 %v3903
    %3939 = vmatprep.subr.mxu0 0.0
    %3940 = vmatpush1.msra.mxu0 %v3902
    %3941 = vmatprep.subr.mxu0 0.0
    %3942 = vmatpush1.msra.mxu0 %v3901
    %3943 = vmatprep.subr.mxu0 0.0
    %3944 = vmatpush1.msra.mxu0 %v3900
    %3945 = vmatprep.subr.mxu0 0.0
    %3946 = vmatpush1.msra.mxu0 %v3899
    %3947 = vmatprep.subr.mxu0 0.0
    %3948 = vmatpush1.msra.mxu0 %v3898
    %3949 = vmatprep.subr.mxu0 0.0
    %3950 = vmatpush2.msra.mxu0 0.0
    %3951 = vmatprep.subr.mxu0 0.0
    %3952 = vmatpush2.msra.mxu0 0.0
    %3953 = vmatprep.subr.mxu0 0.0
    %3954 = vmatpush2.msra.mxu0 0.0
    %3955 = vmatprep.subr.mxu0 0.0
    %3956 = vmatpush2.msra.mxu0 0.0
    %3957 = vmatprep.subr.mxu0 0.0
    %3958 = vmatpush2.msra.mxu0 0.0
    %3959 = vmatprep.subr.mxu0 0.0
    %3960 = vmatpush2.msra.mxu0 0.0
    %3961 = vmatprep.subr.mxu0 0.0
    %3962 = vmatpush2.msra.mxu0 0.0
    %3963 = vmatprep.subr.mxu0 0.0
    %3964 = vmatpush2.msra.mxu0 0.0
    %3965 = vmatprep.subr.mxu0 0.0
    %3966 = vmatpush2.msra.mxu0 0.0
    %3967 = vmatprep.subr.mxu0 0.0
    %3968 = vmatpush2.msra.mxu0 0.0
    %3969 = vmatprep.subr.mxu0 0.0
    %3970 = vmatpush2.msra.mxu0 0.0
    %3971 = vmatprep.subr.mxu0 0.0
    %3972 = vmatpush2.msra.mxu0 0.0
    %3973 = vmatprep.subr.mxu0 0.0
    %3974 = vmatpush2.msra.mxu0 0.0
    %3975 = vmatprep.subr.mxu0 0.0
    %3976 = vmatpush2.msra.mxu0 0.0
    %3977 = vmatprep.subr.mxu0 0.0
    %3978 = vmatpush2.msra.mxu0 0.0
    %3979 = vmatprep.subr.mxu0 0.0
    %3980 = vmatpush2.msra.mxu0 0.0
    %3981 = vmatprep.mubr.f32.mxu0 0.0
    %3982 = vmatmul.mubr.f32.gmra.mxu0 %v3912
    %v3983 = vpop.f32.mrf.mxu0
    %v3984 = vadd.f32 %v3910, %v3983
    %v3985 = vpop.f32.mrf.mxu0
    %3986 = vmatprep.mubr.f32.mxu0 0.0
    %3987 = vmatmul.mubr.f32.gmra.mxu0 %v3915
    %v3988 = vpop.f32.mrf.mxu0
    %v3989 = vadd.f32 %v3910, %v3988
    %v3990 = vpop.f32.mrf.mxu0
    %3991 = vdwg.mxu0
    %v3992 = vadd.f32 %v3804, %v3984
    %v3993 = vadd.f32 %v3805, %v3989
    %v3994 = vld [vmem:[%s4 + $0x12] sm:$0x1]
    %v3995 = vld [vmem:[%s4 + $0x13] sm:$0x1]
    %v3996 = vsel %vm227, %v3992, 0.0
    %3997 = vadd.xlane.f32.xlu0 %v3996
    %v3998 = vpop.xlane.xlu0 %3997
    %v3999 = vsel %vm227, %v3993, 0.0
    %4000 = vadd.xlane.f32.xlu0 %v3999
    %v4001 = vpop.xlane.xlu0 %4000
    %v4002 = vmul.f32 %v3998, %v1966
    %v4003 = vmul.f32 %v4001, %v1966
    %v4004 = vsub.f32 %v3992, %v4002
    %v4005 = vsub.f32 %v3993, %v4003
    %v4006 = vmul.f32 %v4004, %v4004
    %v4007 = vmul.f32 %v4005, %v4005
    %v4008 = vsel %vm227, %v4006, 0.0
    %4009 = vadd.xlane.f32.xlu0 %v4008
    %v4010 = vpop.xlane.xlu0 %4009
    %v4011 = vsel %vm227, %v4007, 0.0
    %4012 = vadd.xlane.f32.xlu0 %v4011
    %v4013 = vpop.xlane.xlu0 %4012
    %v4014 = vmul.f32 %v4010, %v1966
    %v4015 = vmul.f32 %v4013, %v1966
    %v4016 = vadd.f32 %v4014, 1e-05
    %v4017 = vadd.f32 %v4015, 1e-05
    %v4018 = vrsqrt.pop %v4016
    %v4019 = vrsqrt.pop %v4017
    %v4020 = vmul.f32 %v4004, %v4018
    %v4021 = vmul.f32 %v4005, %v4019
    %v4022 = vlaneseq
    %v4023 = vshrl.u32 %v4022, 7
    %v4024 = vsub.s32 0, %v4023
    %v4025 = vrot.slane %v3994, %v4024
    %v4026 = vmul.f32 %v4020, %v4025
    %v4027 = vmul.f32 %v4021, %v4025
    %v4028 = vlaneseq
    %v4029 = vshrl.u32 %v4028, 7
    %v4030 = vsub.s32 0, %v4029
    %v4031 = vrot.slane %v3995, %v4030
    %v4032 = vadd.f32 %v4026, %v4031
    %v4033 = vadd.f32 %v4027, %v4031
    %v4034 = vld [vmem:[#allocation2 + $0x1a0] sm:$0xff]
    %v4035 = vld [vmem:[#allocation2 + $0x1a8] sm:$0xff]
    %v4036 = vld [vmem:[#allocation2 + $0x1b0] sm:$0xff]
    %v4037 = vld [vmem:[#allocation2 + $0x1b8] sm:$0xff]
    %v4038 = vld [vmem:[%s4 + $0x14] sm:$0x1]
    %v4039 = vlaneseq
    %v4040 = vshrl.u32 %v4039, 7
    %v4041 = vsub.s32 0, %v4040
    %v4042 = vrot.slane %v4038, %v4041
    %v4044 = vsel %vm227, %v4032, 0
    %v4047 = vsel %vm227, %v4033, 0
    %4049 = vmatprep.subr.mxu0 0.0
    %4050 = vmatpush1.msra.mxu0 0.0
    %4051 = vmatprep.subr.mxu0 0.0
    %4052 = vmatpush1.msra.mxu0 0.0
    %4053 = vmatprep.subr.mxu0 0.0
    %4054 = vmatpush1.msra.mxu0 0.0
    %4055 = vmatprep.subr.mxu0 0.0
    %4056 = vmatpush1.msra.mxu0 0.0
    %4057 = vmatprep.subr.mxu0 0.0
    %4058 = vmatpush1.msra.mxu0 0.0
    %4059 = vmatprep.subr.mxu0 0.0
    %4060 = vmatpush1.msra.mxu0 0.0
    %4061 = vmatprep.subr.mxu0 0.0
    %4062 = vmatpush1.msra.mxu0 0.0
    %4063 = vmatprep.subr.mxu0 0.0
    %4064 = vmatpush1.msra.mxu0 0.0
    %4065 = vmatprep.subr.mxu0 0.0
    %4066 = vmatpush1.msra.mxu0 0.0
    %4067 = vmatprep.subr.mxu0 0.0
    %4068 = vmatpush1.msra.mxu0 0.0
    %4069 = vmatprep.subr.mxu0 0.0
    %4070 = vmatpush1.msra.mxu0 0.0
    %4071 = vmatprep.subr.mxu0 0.0
    %4072 = vmatpush1.msra.mxu0 0.0
    %4073 = vmatprep.subr.mxu0 0.0
    %4074 = vmatpush1.msra.mxu0 %v4037
    %4075 = vmatprep.subr.mxu0 0.0
    %4076 = vmatpush1.msra.mxu0 %v4036
    %4077 = vmatprep.subr.mxu0 0.0
    %4078 = vmatpush1.msra.mxu0 %v4035
    %4079 = vmatprep.subr.mxu0 0.0
    %4080 = vmatpush1.msra.mxu0 %v4034
    %4081 = vmatprep.subr.mxu0 0.0
    %4082 = vmatpush2.msra.mxu0 0.0
    %4083 = vmatprep.subr.mxu0 0.0
    %4084 = vmatpush2.msra.mxu0 0.0
    %4085 = vmatprep.subr.mxu0 0.0
    %4086 = vmatpush2.msra.mxu0 0.0
    %4087 = vmatprep.subr.mxu0 0.0
    %4088 = vmatpush2.msra.mxu0 0.0
    %4089 = vmatprep.subr.mxu0 0.0
    %4090 = vmatpush2.msra.mxu0 0.0
    %4091 = vmatprep.subr.mxu0 0.0
    %4092 = vmatpush2.msra.mxu0 0.0
    %4093 = vmatprep.subr.mxu0 0.0
    %4094 = vmatpush2.msra.mxu0 0.0
    %4095 = vmatprep.subr.mxu0 0.0
    %4096 = vmatpush2.msra.mxu0 0.0
    %4097 = vmatprep.subr.mxu0 0.0
    %4098 = vmatpush2.msra.mxu0 0.0
    %4099 = vmatprep.subr.mxu0 0.0
    %4100 = vmatpush2.msra.mxu0 0.0
    %4101 = vmatprep.subr.mxu0 0.0
    %4102 = vmatpush2.msra.mxu0 0.0
    %4103 = vmatprep.subr.mxu0 0.0
    %4104 = vmatpush2.msra.mxu0 0.0
    %4105 = vmatprep.subr.mxu0 0.0
    %4106 = vmatpush2.msra.mxu0 0.0
    %4107 = vmatprep.subr.mxu0 0.0
    %4108 = vmatpush2.msra.mxu0 0.0
    %4109 = vmatprep.subr.mxu0 0.0
    %4110 = vmatpush2.msra.mxu0 0.0
    %4111 = vmatprep.subr.mxu0 0.0
    %4112 = vmatpush2.msra.mxu0 0.0
    %4113 = vmatprep.mubr.f32.mxu0 0.0
    %4114 = vmatmul.mubr.f32.gmra.mxu0 %v4044
    %v4115 = vpop.f32.mrf.mxu0
    %v4116 = vadd.f32 %v4042, %v4115
    %v4117 = vpop.f32.mrf.mxu0
    %4118 = vmatprep.mubr.f32.mxu0 0.0
    %4119 = vmatmul.mubr.f32.gmra.mxu0 %v4047
    %v4120 = vpop.f32.mrf.mxu0
    %v4121 = vadd.f32 %v4042, %v4120
    %v4122 = vpop.f32.mrf.mxu0
    %4123 = vdwg.mxu0
    %v4125 = vrot.slane %v4116, 7
    %4126 = vrot.lane.b32.xlu0 %v4116, 96
    %v4127 = vpop.permute.xlu0 %4126
    %v4128 = vsel %vm511, %v4125, 0
    %v4130 = vsel %vm511, %v4127, 0
    %4132 = vmatprep.subr.mxu0 0.0
    %4133 = vmatpush1.xpose.msra.mxu0 0.0
    %4134 = vmatprep.subr.mxu0 0.0
    %4135 = vmatpush1.xpose.msra.mxu0 0.0
    %4136 = vmatprep.subr.mxu0 0.0
    %4137 = vmatpush1.xpose.msra.mxu0 0.0
    %4138 = vmatprep.subr.mxu0 0.0
    %4139 = vmatpush1.xpose.msra.mxu0 0.0
    %4140 = vmatprep.subr.mxu0 0.0
    %4141 = vmatpush1.xpose.msra.mxu0 0.0
    %4142 = vmatprep.subr.mxu0 0.0
    %4143 = vmatpush1.xpose.msra.mxu0 0.0
    %4144 = vmatprep.subr.mxu0 0.0
    %4145 = vmatpush1.xpose.msra.mxu0 0.0
    %4146 = vmatprep.subr.mxu0 0.0
    %4147 = vmatpush1.xpose.msra.mxu0 0.0
    %4148 = vmatprep.subr.mxu0 0.0
    %4149 = vmatpush1.xpose.msra.mxu0 0.0
    %4150 = vmatprep.subr.mxu0 0.0
    %4151 = vmatpush1.xpose.msra.mxu0 0.0
    %4152 = vmatprep.subr.mxu0 0.0
    %4153 = vmatpush1.xpose.msra.mxu0 0.0
    %4154 = vmatprep.subr.mxu0 0.0
    %4155 = vmatpush1.xpose.msra.mxu0 0.0
    %4156 = vmatprep.subr.mxu0 0.0
    %4157 = vmatpush1.xpose.msra.mxu0 0.0
    %4158 = vmatprep.subr.mxu0 0.0
    %4159 = vmatpush1.xpose.msra.mxu0 0.0
    %4160 = vmatprep.subr.mxu0 0.0
    %4161 = vmatpush1.xpose.msra.mxu0 0.0
    %4162 = vmatprep.subr.mxu0 0.0
    %4163 = vmatpush1.xpose.msra.mxu0 %v4130
    %4164 = vmatprep.subr.mxu0 0.0
    %4165 = vmatpush2.xpose.msra.mxu0 0.0
    %4166 = vmatprep.subr.mxu0 0.0
    %4167 = vmatpush2.xpose.msra.mxu0 0.0
    %4168 = vmatprep.subr.mxu0 0.0
    %4169 = vmatpush2.xpose.msra.mxu0 0.0
    %4170 = vmatprep.subr.mxu0 0.0
    %4171 = vmatpush2.xpose.msra.mxu0 0.0
    %4172 = vmatprep.subr.mxu0 0.0
    %4173 = vmatpush2.xpose.msra.mxu0 0.0
    %4174 = vmatprep.subr.mxu0 0.0
    %4175 = vmatpush2.xpose.msra.mxu0 0.0
    %4176 = vmatprep.subr.mxu0 0.0
    %4177 = vmatpush2.xpose.msra.mxu0 0.0
    %4178 = vmatprep.subr.mxu0 0.0
    %4179 = vmatpush2.xpose.msra.mxu0 0.0
    %4180 = vmatprep.subr.mxu0 0.0
    %4181 = vmatpush2.xpose.msra.mxu0 0.0
    %4182 = vmatprep.subr.mxu0 0.0
    %4183 = vmatpush2.xpose.msra.mxu0 0.0
    %4184 = vmatprep.subr.mxu0 0.0
    %4185 = vmatpush2.xpose.msra.mxu0 0.0
    %4186 = vmatprep.subr.mxu0 0.0
    %4187 = vmatpush2.xpose.msra.mxu0 0.0
    %4188 = vmatprep.subr.mxu0 0.0
    %4189 = vmatpush2.xpose.msra.mxu0 0.0
    %4190 = vmatprep.subr.mxu0 0.0
    %4191 = vmatpush2.xpose.msra.mxu0 0.0
    %4192 = vmatprep.subr.mxu0 0.0
    %4193 = vmatpush2.xpose.msra.mxu0 0.0
    %4194 = vmatprep.subr.mxu0 0.0
    %4195 = vmatpush2.xpose.msra.mxu0 0.0
    %4196 = vmatprep.mubr.f32.mxu0 0.0
    %4197 = vmatmul.mubr.f32.gmra.mxu0 %v4128
    %v4198 = vpop.f32.mrf.mxu0
    %v4199 = vadd.f32 0.0, %v4198
    %v4200 = vpop.f32.mrf.mxu0
    %4201 = vdwg.mxu0
    %v4203 = vrot.slane %v4121, 7
    %4204 = vrot.lane.b32.xlu0 %v4121, 96
    %v4205 = vpop.permute.xlu0 %4204
    %v4206 = vsel %vm511, %v4203, 0
    %v4208 = vsel %vm511, %v4205, 0
    %4210 = vmatprep.subr.mxu0 0.0
    %4211 = vmatpush1.xpose.msra.mxu0 0.0
    %4212 = vmatprep.subr.mxu0 0.0
    %4213 = vmatpush1.xpose.msra.mxu0 0.0
    %4214 = vmatprep.subr.mxu0 0.0
    %4215 = vmatpush1.xpose.msra.mxu0 0.0
    %4216 = vmatprep.subr.mxu0 0.0
    %4217 = vmatpush1.xpose.msra.mxu0 0.0
    %4218 = vmatprep.subr.mxu0 0.0
    %4219 = vmatpush1.xpose.msra.mxu0 0.0
    %4220 = vmatprep.subr.mxu0 0.0
    %4221 = vmatpush1.xpose.msra.mxu0 0.0
    %4222 = vmatprep.subr.mxu0 0.0
    %4223 = vmatpush1.xpose.msra.mxu0 0.0
    %4224 = vmatprep.subr.mxu0 0.0
    %4225 = vmatpush1.xpose.msra.mxu0 0.0
    %4226 = vmatprep.subr.mxu0 0.0
    %4227 = vmatpush1.xpose.msra.mxu0 0.0
    %4228 = vmatprep.subr.mxu0 0.0
    %4229 = vmatpush1.xpose.msra.mxu0 0.0
    %4230 = vmatprep.subr.mxu0 0.0
    %4231 = vmatpush1.xpose.msra.mxu0 0.0
    %4232 = vmatprep.subr.mxu0 0.0
    %4233 = vmatpush1.xpose.msra.mxu0 0.0
    %4234 = vmatprep.subr.mxu0 0.0
    %4235 = vmatpush1.xpose.msra.mxu0 0.0
    %4236 = vmatprep.subr.mxu0 0.0
    %4237 = vmatpush1.xpose.msra.mxu0 0.0
    %4238 = vmatprep.subr.mxu0 0.0
    %4239 = vmatpush1.xpose.msra.mxu0 0.0
    %4240 = vmatprep.subr.mxu0 0.0
    %4241 = vmatpush1.xpose.msra.mxu0 %v4208
    %4242 = vmatprep.subr.mxu0 0.0
    %4243 = vmatpush2.xpose.msra.mxu0 0.0
    %4244 = vmatprep.subr.mxu0 0.0
    %4245 = vmatpush2.xpose.msra.mxu0 0.0
    %4246 = vmatprep.subr.mxu0 0.0
    %4247 = vmatpush2.xpose.msra.mxu0 0.0
    %4248 = vmatprep.subr.mxu0 0.0
    %4249 = vmatpush2.xpose.msra.mxu0 0.0
    %4250 = vmatprep.subr.mxu0 0.0
    %4251 = vmatpush2.xpose.msra.mxu0 0.0
    %4252 = vmatprep.subr.mxu0 0.0
    %4253 = vmatpush2.xpose.msra.mxu0 0.0
    %4254 = vmatprep.subr.mxu0 0.0
    %4255 = vmatpush2.xpose.msra.mxu0 0.0
    %4256 = vmatprep.subr.mxu0 0.0
    %4257 = vmatpush2.xpose.msra.mxu0 0.0
    %4258 = vmatprep.subr.mxu0 0.0
    %4259 = vmatpush2.xpose.msra.mxu0 0.0
    %4260 = vmatprep.subr.mxu0 0.0
    %4261 = vmatpush2.xpose.msra.mxu0 0.0
    %4262 = vmatprep.subr.mxu0 0.0
    %4263 = vmatpush2.xpose.msra.mxu0 0.0
    %4264 = vmatprep.subr.mxu0 0.0
    %4265 = vmatpush2.xpose.msra.mxu0 0.0
    %4266 = vmatprep.subr.mxu0 0.0
    %4267 = vmatpush2.xpose.msra.mxu0 0.0
    %4268 = vmatprep.subr.mxu0 0.0
    %4269 = vmatpush2.xpose.msra.mxu0 0.0
    %4270 = vmatprep.subr.mxu0 0.0
    %4271 = vmatpush2.xpose.msra.mxu0 0.0
    %4272 = vmatprep.subr.mxu0 0.0
    %4273 = vmatpush2.xpose.msra.mxu0 0.0
    %4274 = vmatprep.mubr.f32.mxu0 0.0
    %4275 = vmatmul.mubr.f32.gmra.mxu0 %v4206
    %v4276 = vpop.f32.mrf.mxu0
    %v4277 = vadd.f32 0.0, %v4276
    %v4278 = vpop.f32.mrf.mxu0
    %4279 = vdwg.mxu0
    %v4280 = vmul.f32 %v4199, 0.35355338
    %v4281 = vmul.f32 %v4277, 0.35355338
    %vm4282 = vcmask 57344
    %v4283 = vsel %vm4282, %v4280, -inf
    %4284 = vmax.xlane.f32.xlu0 %v4283
    %v4285 = vpop.xlane.xlu0 %4284
    %v4286 = vsel %vm4282, %v4281, -inf
    %4287 = vmax.xlane.f32.xlu0 %v4286
    %v4288 = vpop.xlane.xlu0 %4287
    %v4289 = vsub.f32 %v4280, %v4285
    %v4290 = vsub.f32 %v4281, %v4288
    %v4291 = vmul.f32 %v4289, 1.442695
    %v4292 = vpow.pop %v4291
    %v4293 = vmul.f32 %v4290, 1.442695
    %v4294 = vpow.pop %v4293
    %v4295 = vsel %vm4282, %v4292, 0.0
    %4296 = vadd.xlane.f32.xlu0 %v4295
    %v4297 = vpop.xlane.xlu0 %4296
    %v4298 = vsel %vm4282, %v4294, 0.0
    %4299 = vadd.xlane.f32.xlu0 %v4298
    %v4300 = vpop.xlane.xlu0 %4299
    %v4301 = vrcp.pop %v4297
    %v4302 = vmul.f32 %v4292, %v4301
    %v4303 = vrcp.pop %v4300
    %v4304 = vmul.f32 %v4294, %v4303
    %4305 = vrot.lane.b32.xlu0 %v4116, 64
    %v4306 = vpop.permute.xlu0 %4305
    %v4309 = vsel %vm511, %v4302, 0
    %4311 = vmatprep.subr.mxu0 0.0
    %4312 = vmatpush1.msra.mxu0 0.0
    %4313 = vmatprep.subr.mxu0 0.0
    %4314 = vmatpush1.msra.mxu0 0.0
    %4315 = vmatprep.subr.mxu0 0.0
    %4316 = vmatpush1.msra.mxu0 0.0
    %4317 = vmatprep.subr.mxu0 0.0
    %4318 = vmatpush1.msra.mxu0 0.0
    %4319 = vmatprep.subr.mxu0 0.0
    %4320 = vmatpush1.msra.mxu0 0.0
    %4321 = vmatprep.subr.mxu0 0.0
    %4322 = vmatpush1.msra.mxu0 0.0
    %4323 = vmatprep.subr.mxu0 0.0
    %4324 = vmatpush1.msra.mxu0 0.0
    %4325 = vmatprep.subr.mxu0 0.0
    %4326 = vmatpush1.msra.mxu0 0.0
    %4327 = vmatprep.subr.mxu0 0.0
    %4328 = vmatpush1.msra.mxu0 0.0
    %4329 = vmatprep.subr.mxu0 0.0
    %4330 = vmatpush1.msra.mxu0 0.0
    %4331 = vmatprep.subr.mxu0 0.0
    %4332 = vmatpush1.msra.mxu0 0.0
    %4333 = vmatprep.subr.mxu0 0.0
    %4334 = vmatpush1.msra.mxu0 0.0
    %4335 = vmatprep.subr.mxu0 0.0
    %4336 = vmatpush1.msra.mxu0 0.0
    %4337 = vmatprep.subr.mxu0 0.0
    %4338 = vmatpush1.msra.mxu0 0.0
    %4339 = vmatprep.subr.mxu0 0.0
    %4340 = vmatpush1.msra.mxu0 0.0
    %4341 = vmatprep.subr.mxu0 0.0
    %4342 = vmatpush1.msra.mxu0 %v4306
    %4343 = vmatprep.subr.mxu0 0.0
    %4344 = vmatpush2.msra.mxu0 0.0
    %4345 = vmatprep.subr.mxu0 0.0
    %4346 = vmatpush2.msra.mxu0 0.0
    %4347 = vmatprep.subr.mxu0 0.0
    %4348 = vmatpush2.msra.mxu0 0.0
    %4349 = vmatprep.subr.mxu0 0.0
    %4350 = vmatpush2.msra.mxu0 0.0
    %4351 = vmatprep.subr.mxu0 0.0
    %4352 = vmatpush2.msra.mxu0 0.0
    %4353 = vmatprep.subr.mxu0 0.0
    %4354 = vmatpush2.msra.mxu0 0.0
    %4355 = vmatprep.subr.mxu0 0.0
    %4356 = vmatpush2.msra.mxu0 0.0
    %4357 = vmatprep.subr.mxu0 0.0
    %4358 = vmatpush2.msra.mxu0 0.0
    %4359 = vmatprep.subr.mxu0 0.0
    %4360 = vmatpush2.msra.mxu0 0.0
    %4361 = vmatprep.subr.mxu0 0.0
    %4362 = vmatpush2.msra.mxu0 0.0
    %4363 = vmatprep.subr.mxu0 0.0
    %4364 = vmatpush2.msra.mxu0 0.0
    %4365 = vmatprep.subr.mxu0 0.0
    %4366 = vmatpush2.msra.mxu0 0.0
    %4367 = vmatprep.subr.mxu0 0.0
    %4368 = vmatpush2.msra.mxu0 0.0
    %4369 = vmatprep.subr.mxu0 0.0
    %4370 = vmatpush2.msra.mxu0 0.0
    %4371 = vmatprep.subr.mxu0 0.0
    %4372 = vmatpush2.msra.mxu0 0.0
    %4373 = vmatprep.subr.mxu0 0.0
    %4374 = vmatpush2.msra.mxu0 0.0
    %4375 = vmatprep.mubr.f32.mxu0 0.0
    %4376 = vmatmul.mubr.f32.gmra.mxu0 %v4309
    %v4377 = vpop.f32.mrf.mxu0
    %v4378 = vadd.f32 0.0, %v4377
    %v4379 = vpop.f32.mrf.mxu0
    %4380 = vdwg.mxu0
    %4381 = vrot.lane.b32.xlu0 %v4121, 64
    %v4382 = vpop.permute.xlu0 %4381
    %v4385 = vsel %vm511, %v4304, 0
    %4387 = vmatprep.subr.mxu0 0.0
    %4388 = vmatpush1.msra.mxu0 0.0
    %4389 = vmatprep.subr.mxu0 0.0
    %4390 = vmatpush1.msra.mxu0 0.0
    %4391 = vmatprep.subr.mxu0 0.0
    %4392 = vmatpush1.msra.mxu0 0.0
    %4393 = vmatprep.subr.mxu0 0.0
    %4394 = vmatpush1.msra.mxu0 0.0
    %4395 = vmatprep.subr.mxu0 0.0
    %4396 = vmatpush1.msra.mxu0 0.0
    %4397 = vmatprep.subr.mxu0 0.0
    %4398 = vmatpush1.msra.mxu0 0.0
    %4399 = vmatprep.subr.mxu0 0.0
    %4400 = vmatpush1.msra.mxu0 0.0
    %4401 = vmatprep.subr.mxu0 0.0
    %4402 = vmatpush1.msra.mxu0 0.0
    %4403 = vmatprep.subr.mxu0 0.0
    %4404 = vmatpush1.msra.mxu0 0.0
    %4405 = vmatprep.subr.mxu0 0.0
    %4406 = vmatpush1.msra.mxu0 0.0
    %4407 = vmatprep.subr.mxu0 0.0
    %4408 = vmatpush1.msra.mxu0 0.0
    %4409 = vmatprep.subr.mxu0 0.0
    %4410 = vmatpush1.msra.mxu0 0.0
    %4411 = vmatprep.subr.mxu0 0.0
    %4412 = vmatpush1.msra.mxu0 0.0
    %4413 = vmatprep.subr.mxu0 0.0
    %4414 = vmatpush1.msra.mxu0 0.0
    %4415 = vmatprep.subr.mxu0 0.0
    %4416 = vmatpush1.msra.mxu0 0.0
    %4417 = vmatprep.subr.mxu0 0.0
    %4418 = vmatpush1.msra.mxu0 %v4382
    %4419 = vmatprep.subr.mxu0 0.0
    %4420 = vmatpush2.msra.mxu0 0.0
    %4421 = vmatprep.subr.mxu0 0.0
    %4422 = vmatpush2.msra.mxu0 0.0
    %4423 = vmatprep.subr.mxu0 0.0
    %4424 = vmatpush2.msra.mxu0 0.0
    %4425 = vmatprep.subr.mxu0 0.0
    %4426 = vmatpush2.msra.mxu0 0.0
    %4427 = vmatprep.subr.mxu0 0.0
    %4428 = vmatpush2.msra.mxu0 0.0
    %4429 = vmatprep.subr.mxu0 0.0
    %4430 = vmatpush2.msra.mxu0 0.0
    %4431 = vmatprep.subr.mxu0 0.0
    %4432 = vmatpush2.msra.mxu0 0.0
    %4433 = vmatprep.subr.mxu0 0.0
    %4434 = vmatpush2.msra.mxu0 0.0
    %4435 = vmatprep.subr.mxu0 0.0
    %4436 = vmatpush2.msra.mxu0 0.0
    %4437 = vmatprep.subr.mxu0 0.0
    %4438 = vmatpush2.msra.mxu0 0.0
    %4439 = vmatprep.subr.mxu0 0.0
    %4440 = vmatpush2.msra.mxu0 0.0
    %4441 = vmatprep.subr.mxu0 0.0
    %4442 = vmatpush2.msra.mxu0 0.0
    %4443 = vmatprep.subr.mxu0 0.0
    %4444 = vmatpush2.msra.mxu0 0.0
    %4445 = vmatprep.subr.mxu0 0.0
    %4446 = vmatpush2.msra.mxu0 0.0
    %4447 = vmatprep.subr.mxu0 0.0
    %4448 = vmatpush2.msra.mxu0 0.0
    %4449 = vmatprep.subr.mxu0 0.0
    %4450 = vmatpush2.msra.mxu0 0.0
    %4451 = vmatprep.mubr.f32.mxu0 0.0
    %4452 = vmatmul.mubr.f32.gmra.mxu0 %v4385
    %v4453 = vpop.f32.mrf.mxu0
    %v4454 = vadd.f32 0.0, %v4453
    %v4455 = vpop.f32.mrf.mxu0
    %4456 = vdwg.mxu0
    %4457 = vrot.lane.b32.xlu0 %v4125, 120
    %v4458 = vpop.permute.xlu0 %4457
    %4459 = vrot.lane.b32.xlu0 %v4116, 88
    %v4460 = vpop.permute.xlu0 %4459
    %v4461 = vsel %vm511, %v4458, 0
    %v4463 = vsel %vm511, %v4460, 0
    %4465 = vmatprep.subr.mxu0 0.0
    %4466 = vmatpush1.xpose.msra.mxu0 0.0
    %4467 = vmatprep.subr.mxu0 0.0
    %4468 = vmatpush1.xpose.msra.mxu0 0.0
    %4469 = vmatprep.subr.mxu0 0.0
    %4470 = vmatpush1.xpose.msra.mxu0 0.0
    %4471 = vmatprep.subr.mxu0 0.0
    %4472 = vmatpush1.xpose.msra.mxu0 0.0
    %4473 = vmatprep.subr.mxu0 0.0
    %4474 = vmatpush1.xpose.msra.mxu0 0.0
    %4475 = vmatprep.subr.mxu0 0.0
    %4476 = vmatpush1.xpose.msra.mxu0 0.0
    %4477 = vmatprep.subr.mxu0 0.0
    %4478 = vmatpush1.xpose.msra.mxu0 0.0
    %4479 = vmatprep.subr.mxu0 0.0
    %4480 = vmatpush1.xpose.msra.mxu0 0.0
    %4481 = vmatprep.subr.mxu0 0.0
    %4482 = vmatpush1.xpose.msra.mxu0 0.0
    %4483 = vmatprep.subr.mxu0 0.0
    %4484 = vmatpush1.xpose.msra.mxu0 0.0
    %4485 = vmatprep.subr.mxu0 0.0
    %4486 = vmatpush1.xpose.msra.mxu0 0.0
    %4487 = vmatprep.subr.mxu0 0.0
    %4488 = vmatpush1.xpose.msra.mxu0 0.0
    %4489 = vmatprep.subr.mxu0 0.0
    %4490 = vmatpush1.xpose.msra.mxu0 0.0
    %4491 = vmatprep.subr.mxu0 0.0
    %4492 = vmatpush1.xpose.msra.mxu0 0.0
    %4493 = vmatprep.subr.mxu0 0.0
    %4494 = vmatpush1.xpose.msra.mxu0 0.0
    %4495 = vmatprep.subr.mxu0 0.0
    %4496 = vmatpush1.xpose.msra.mxu0 %v4463
    %4497 = vmatprep.subr.mxu0 0.0
    %4498 = vmatpush2.xpose.msra.mxu0 0.0
    %4499 = vmatprep.subr.mxu0 0.0
    %4500 = vmatpush2.xpose.msra.mxu0 0.0
    %4501 = vmatprep.subr.mxu0 0.0
    %4502 = vmatpush2.xpose.msra.mxu0 0.0
    %4503 = vmatprep.subr.mxu0 0.0
    %4504 = vmatpush2.xpose.msra.mxu0 0.0
    %4505 = vmatprep.subr.mxu0 0.0
    %4506 = vmatpush2.xpose.msra.mxu0 0.0
    %4507 = vmatprep.subr.mxu0 0.0
    %4508 = vmatpush2.xpose.msra.mxu0 0.0
    %4509 = vmatprep.subr.mxu0 0.0
    %4510 = vmatpush2.xpose.msra.mxu0 0.0
    %4511 = vmatprep.subr.mxu0 0.0
    %4512 = vmatpush2.xpose.msra.mxu0 0.0
    %4513 = vmatprep.subr.mxu0 0.0
    %4514 = vmatpush2.xpose.msra.mxu0 0.0
    %4515 = vmatprep.subr.mxu0 0.0
    %4516 = vmatpush2.xpose.msra.mxu0 0.0
    %4517 = vmatprep.subr.mxu0 0.0
    %4518 = vmatpush2.xpose.msra.mxu0 0.0
    %4519 = vmatprep.subr.mxu0 0.0
    %4520 = vmatpush2.xpose.msra.mxu0 0.0
    %4521 = vmatprep.subr.mxu0 0.0
    %4522 = vmatpush2.xpose.msra.mxu0 0.0
    %4523 = vmatprep.subr.mxu0 0.0
    %4524 = vmatpush2.xpose.msra.mxu0 0.0
    %4525 = vmatprep.subr.mxu0 0.0
    %4526 = vmatpush2.xpose.msra.mxu0 0.0
    %4527 = vmatprep.subr.mxu0 0.0
    %4528 = vmatpush2.xpose.msra.mxu0 0.0
    %4529 = vmatprep.mubr.f32.mxu0 0.0
    %4530 = vmatmul.mubr.f32.gmra.mxu0 %v4461
    %v4531 = vpop.f32.mrf.mxu0
    %v4532 = vadd.f32 0.0, %v4531
    %v4533 = vpop.f32.mrf.mxu0
    %4534 = vdwg.mxu0
    %4535 = vrot.lane.b32.xlu0 %v4203, 120
    %v4536 = vpop.permute.xlu0 %4535
    %4537 = vrot.lane.b32.xlu0 %v4121, 88
    %v4538 = vpop.permute.xlu0 %4537
    %v4539 = vsel %vm511, %v4536, 0
    %v4541 = vsel %vm511, %v4538, 0
    %4543 = vmatprep.subr.mxu0 0.0
    %4544 = vmatpush1.xpose.msra.mxu0 0.0
    %4545 = vmatprep.subr.mxu0 0.0
    %4546 = vmatpush1.xpose.msra.mxu0 0.0
    %4547 = vmatprep.subr.mxu0 0.0
    %4548 = vmatpush1.xpose.msra.mxu0 0.0
    %4549 = vmatprep.subr.mxu0 0.0
    %4550 = vmatpush1.xpose.msra.mxu0 0.0
    %4551 = vmatprep.subr.mxu0 0.0
    %4552 = vmatpush1.xpose.msra.mxu0 0.0
    %4553 = vmatprep.subr.mxu0 0.0
    %4554 = vmatpush1.xpose.msra.mxu0 0.0
    %4555 = vmatprep.subr.mxu0 0.0
    %4556 = vmatpush1.xpose.msra.mxu0 0.0
    %4557 = vmatprep.subr.mxu0 0.0
    %4558 = vmatpush1.xpose.msra.mxu0 0.0
    %4559 = vmatprep.subr.mxu0 0.0
    %4560 = vmatpush1.xpose.msra.mxu0 0.0
    %4561 = vmatprep.subr.mxu0 0.0
    %4562 = vmatpush1.xpose.msra.mxu0 0.0
    %4563 = vmatprep.subr.mxu0 0.0
    %4564 = vmatpush1.xpose.msra.mxu0 0.0
    %4565 = vmatprep.subr.mxu0 0.0
    %4566 = vmatpush1.xpose.msra.mxu0 0.0
    %4567 = vmatprep.subr.mxu0 0.0
    %4568 = vmatpush1.xpose.msra.mxu0 0.0
    %4569 = vmatprep.subr.mxu0 0.0
    %4570 = vmatpush1.xpose.msra.mxu0 0.0
    %4571 = vmatprep.subr.mxu0 0.0
    %4572 = vmatpush1.xpose.msra.mxu0 0.0
    %4573 = vmatprep.subr.mxu0 0.0
    %4574 = vmatpush1.xpose.msra.mxu0 %v4541
    %4575 = vmatprep.subr.mxu0 0.0
    %4576 = vmatpush2.xpose.msra.mxu0 0.0
    %4577 = vmatprep.subr.mxu0 0.0
    %4578 = vmatpush2.xpose.msra.mxu0 0.0
    %4579 = vmatprep.subr.mxu0 0.0
    %4580 = vmatpush2.xpose.msra.mxu0 0.0
    %4581 = vmatprep.subr.mxu0 0.0
    %4582 = vmatpush2.xpose.msra.mxu0 0.0
    %4583 = vmatprep.subr.mxu0 0.0
    %4584 = vmatpush2.xpose.msra.mxu0 0.0
    %4585 = vmatprep.subr.mxu0 0.0
    %4586 = vmatpush2.xpose.msra.mxu0 0.0
    %4587 = vmatprep.subr.mxu0 0.0
    %4588 = vmatpush2.xpose.msra.mxu0 0.0
    %4589 = vmatprep.subr.mxu0 0.0
    %4590 = vmatpush2.xpose.msra.mxu0 0.0
    %4591 = vmatprep.subr.mxu0 0.0
    %4592 = vmatpush2.xpose.msra.mxu0 0.0
    %4593 = vmatprep.subr.mxu0 0.0
    %4594 = vmatpush2.xpose.msra.mxu0 0.0
    %4595 = vmatprep.subr.mxu0 0.0
    %4596 = vmatpush2.xpose.msra.mxu0 0.0
    %4597 = vmatprep.subr.mxu0 0.0
    %4598 = vmatpush2.xpose.msra.mxu0 0.0
    %4599 = vmatprep.subr.mxu0 0.0
    %4600 = vmatpush2.xpose.msra.mxu0 0.0
    %4601 = vmatprep.subr.mxu0 0.0
    %4602 = vmatpush2.xpose.msra.mxu0 0.0
    %4603 = vmatprep.subr.mxu0 0.0
    %4604 = vmatpush2.xpose.msra.mxu0 0.0
    %4605 = vmatprep.subr.mxu0 0.0
    %4606 = vmatpush2.xpose.msra.mxu0 0.0
    %4607 = vmatprep.mubr.f32.mxu0 0.0
    %4608 = vmatmul.mubr.f32.gmra.mxu0 %v4539
    %v4609 = vpop.f32.mrf.mxu0
    %v4610 = vadd.f32 0.0, %v4609
    %v4611 = vpop.f32.mrf.mxu0
    %4612 = vdwg.mxu0
    %v4613 = vmul.f32 %v4532, 0.35355338
    %v4614 = vmul.f32 %v4610, 0.35355338
    %v4615 = vsel %vm4282, %v4613, -inf
    %4616 = vmax.xlane.f32.xlu0 %v4615
    %v4617 = vpop.xlane.xlu0 %4616
    %v4618 = vsel %vm4282, %v4614, -inf
    %4619 = vmax.xlane.f32.xlu0 %v4618
    %v4620 = vpop.xlane.xlu0 %4619
    %v4621 = vsub.f32 %v4613, %v4617
    %v4622 = vsub.f32 %v4614, %v4620
    %v4623 = vmul.f32 %v4621, 1.442695
    %v4624 = vpow.pop %v4623
    %v4625 = vmul.f32 %v4622, 1.442695
    %v4626 = vpow.pop %v4625
    %v4627 = vsel %vm4282, %v4624, 0.0
    %4628 = vadd.xlane.f32.xlu0 %v4627
    %v4629 = vpop.xlane.xlu0 %4628
    %v4630 = vsel %vm4282, %v4626, 0.0
    %4631 = vadd.xlane.f32.xlu0 %v4630
    %v4632 = vpop.xlane.xlu0 %4631
    %v4633 = vrcp.pop %v4629
    %v4634 = vmul.f32 %v4624, %v4633
    %v4635 = vrcp.pop %v4632
    %v4636 = vmul.f32 %v4626, %v4635
    %4637 = vrot.lane.b32.xlu0 %v4116, 56
    %v4638 = vpop.permute.xlu0 %4637
    %v4641 = vsel %vm511, %v4634, 0
    %4643 = vmatprep.subr.mxu0 0.0
    %4644 = vmatpush1.msra.mxu0 0.0
    %4645 = vmatprep.subr.mxu0 0.0
    %4646 = vmatpush1.msra.mxu0 0.0
    %4647 = vmatprep.subr.mxu0 0.0
    %4648 = vmatpush1.msra.mxu0 0.0
    %4649 = vmatprep.subr.mxu0 0.0
    %4650 = vmatpush1.msra.mxu0 0.0
    %4651 = vmatprep.subr.mxu0 0.0
    %4652 = vmatpush1.msra.mxu0 0.0
    %4653 = vmatprep.subr.mxu0 0.0
    %4654 = vmatpush1.msra.mxu0 0.0
    %4655 = vmatprep.subr.mxu0 0.0
    %4656 = vmatpush1.msra.mxu0 0.0
    %4657 = vmatprep.subr.mxu0 0.0
    %4658 = vmatpush1.msra.mxu0 0.0
    %4659 = vmatprep.subr.mxu0 0.0
    %4660 = vmatpush1.msra.mxu0 0.0
    %4661 = vmatprep.subr.mxu0 0.0
    %4662 = vmatpush1.msra.mxu0 0.0
    %4663 = vmatprep.subr.mxu0 0.0
    %4664 = vmatpush1.msra.mxu0 0.0
    %4665 = vmatprep.subr.mxu0 0.0
    %4666 = vmatpush1.msra.mxu0 0.0
    %4667 = vmatprep.subr.mxu0 0.0
    %4668 = vmatpush1.msra.mxu0 0.0
    %4669 = vmatprep.subr.mxu0 0.0
    %4670 = vmatpush1.msra.mxu0 0.0
    %4671 = vmatprep.subr.mxu0 0.0
    %4672 = vmatpush1.msra.mxu0 0.0
    %4673 = vmatprep.subr.mxu0 0.0
    %4674 = vmatpush1.msra.mxu0 %v4638
    %4675 = vmatprep.subr.mxu0 0.0
    %4676 = vmatpush2.msra.mxu0 0.0
    %4677 = vmatprep.subr.mxu0 0.0
    %4678 = vmatpush2.msra.mxu0 0.0
    %4679 = vmatprep.subr.mxu0 0.0
    %4680 = vmatpush2.msra.mxu0 0.0
    %4681 = vmatprep.subr.mxu0 0.0
    %4682 = vmatpush2.msra.mxu0 0.0
    %4683 = vmatprep.subr.mxu0 0.0
    %4684 = vmatpush2.msra.mxu0 0.0
    %4685 = vmatprep.subr.mxu0 0.0
    %4686 = vmatpush2.msra.mxu0 0.0
    %4687 = vmatprep.subr.mxu0 0.0
    %4688 = vmatpush2.msra.mxu0 0.0
    %4689 = vmatprep.subr.mxu0 0.0
    %4690 = vmatpush2.msra.mxu0 0.0
    %4691 = vmatprep.subr.mxu0 0.0
    %4692 = vmatpush2.msra.mxu0 0.0
    %4693 = vmatprep.subr.mxu0 0.0
    %4694 = vmatpush2.msra.mxu0 0.0
    %4695 = vmatprep.subr.mxu0 0.0
    %4696 = vmatpush2.msra.mxu0 0.0
    %4697 = vmatprep.subr.mxu0 0.0
    %4698 = vmatpush2.msra.mxu0 0.0
    %4699 = vmatprep.subr.mxu0 0.0
    %4700 = vmatpush2.msra.mxu0 0.0
    %4701 = vmatprep.subr.mxu0 0.0
    %4702 = vmatpush2.msra.mxu0 0.0
    %4703 = vmatprep.subr.mxu0 0.0
    %4704 = vmatpush2.msra.mxu0 0.0
    %4705 = vmatprep.subr.mxu0 0.0
    %4706 = vmatpush2.msra.mxu0 0.0
    %4707 = vmatprep.mubr.f32.mxu0 0.0
    %4708 = vmatmul.mubr.f32.gmra.mxu0 %v4641
    %v4709 = vpop.f32.mrf.mxu0
    %v4710 = vadd.f32 0.0, %v4709
    %v4711 = vpop.f32.mrf.mxu0
    %4712 = vdwg.mxu0
    %4713 = vrot.lane.b32.xlu0 %v4121, 56
    %v4714 = vpop.permute.xlu0 %4713
    %v4717 = vsel %vm511, %v4636, 0
    %4719 = vmatprep.subr.mxu0 0.0
    %4720 = vmatpush1.msra.mxu0 0.0
    %4721 = vmatprep.subr.mxu0 0.0
    %4722 = vmatpush1.msra.mxu0 0.0
    %4723 = vmatprep.subr.mxu0 0.0
    %4724 = vmatpush1.msra.mxu0 0.0
    %4725 = vmatprep.subr.mxu0 0.0
    %4726 = vmatpush1.msra.mxu0 0.0
    %4727 = vmatprep.subr.mxu0 0.0
    %4728 = vmatpush1.msra.mxu0 0.0
    %4729 = vmatprep.subr.mxu0 0.0
    %4730 = vmatpush1.msra.mxu0 0.0
    %4731 = vmatprep.subr.mxu0 0.0
    %4732 = vmatpush1.msra.mxu0 0.0
    %4733 = vmatprep.subr.mxu0 0.0
    %4734 = vmatpush1.msra.mxu0 0.0
    %4735 = vmatprep.subr.mxu0 0.0
    %4736 = vmatpush1.msra.mxu0 0.0
    %4737 = vmatprep.subr.mxu0 0.0
    %4738 = vmatpush1.msra.mxu0 0.0
    %4739 = vmatprep.subr.mxu0 0.0
    %4740 = vmatpush1.msra.mxu0 0.0
    %4741 = vmatprep.subr.mxu0 0.0
    %4742 = vmatpush1.msra.mxu0 0.0
    %4743 = vmatprep.subr.mxu0 0.0
    %4744 = vmatpush1.msra.mxu0 0.0
    %4745 = vmatprep.subr.mxu0 0.0
    %4746 = vmatpush1.msra.mxu0 0.0
    %4747 = vmatprep.subr.mxu0 0.0
    %4748 = vmatpush1.msra.mxu0 0.0
    %4749 = vmatprep.subr.mxu0 0.0
    %4750 = vmatpush1.msra.mxu0 %v4714
    %4751 = vmatprep.subr.mxu0 0.0
    %4752 = vmatpush2.msra.mxu0 0.0
    %4753 = vmatprep.subr.mxu0 0.0
    %4754 = vmatpush2.msra.mxu0 0.0
    %4755 = vmatprep.subr.mxu0 0.0
    %4756 = vmatpush2.msra.mxu0 0.0
    %4757 = vmatprep.subr.mxu0 0.0
    %4758 = vmatpush2.msra.mxu0 0.0
    %4759 = vmatprep.subr.mxu0 0.0
    %4760 = vmatpush2.msra.mxu0 0.0
    %4761 = vmatprep.subr.mxu0 0.0
    %4762 = vmatpush2.msra.mxu0 0.0
    %4763 = vmatprep.subr.mxu0 0.0
    %4764 = vmatpush2.msra.mxu0 0.0
    %4765 = vmatprep.subr.mxu0 0.0
    %4766 = vmatpush2.msra.mxu0 0.0
    %4767 = vmatprep.subr.mxu0 0.0
    %4768 = vmatpush2.msra.mxu0 0.0
    %4769 = vmatprep.subr.mxu0 0.0
    %4770 = vmatpush2.msra.mxu0 0.0
    %4771 = vmatprep.subr.mxu0 0.0
    %4772 = vmatpush2.msra.mxu0 0.0
    %4773 = vmatprep.subr.mxu0 0.0
    %4774 = vmatpush2.msra.mxu0 0.0
    %4775 = vmatprep.subr.mxu0 0.0
    %4776 = vmatpush2.msra.mxu0 0.0
    %4777 = vmatprep.subr.mxu0 0.0
    %4778 = vmatpush2.msra.mxu0 0.0
    %4779 = vmatprep.subr.mxu0 0.0
    %4780 = vmatpush2.msra.mxu0 0.0
    %4781 = vmatprep.subr.mxu0 0.0
    %4782 = vmatpush2.msra.mxu0 0.0
    %4783 = vmatprep.mubr.f32.mxu0 0.0
    %4784 = vmatmul.mubr.f32.gmra.mxu0 %v4717
    %v4785 = vpop.f32.mrf.mxu0
    %v4786 = vadd.f32 0.0, %v4785
    %v4787 = vpop.f32.mrf.mxu0
    %4788 = vdwg.mxu0
    %4789 = vrot.lane.b32.xlu0 %v4125, 112
    %v4790 = vpop.permute.xlu0 %4789
    %4791 = vrot.lane.b32.xlu0 %v4116, 80
    %v4792 = vpop.permute.xlu0 %4791
    %v4793 = vsel %vm511, %v4790, 0
    %v4795 = vsel %vm511, %v4792, 0
    %4797 = vmatprep.subr.mxu0 0.0
    %4798 = vmatpush1.xpose.msra.mxu0 0.0
    %4799 = vmatprep.subr.mxu0 0.0
    %4800 = vmatpush1.xpose.msra.mxu0 0.0
    %4801 = vmatprep.subr.mxu0 0.0
    %4802 = vmatpush1.xpose.msra.mxu0 0.0
    %4803 = vmatprep.subr.mxu0 0.0
    %4804 = vmatpush1.xpose.msra.mxu0 0.0
    %4805 = vmatprep.subr.mxu0 0.0
    %4806 = vmatpush1.xpose.msra.mxu0 0.0
    %4807 = vmatprep.subr.mxu0 0.0
    %4808 = vmatpush1.xpose.msra.mxu0 0.0
    %4809 = vmatprep.subr.mxu0 0.0
    %4810 = vmatpush1.xpose.msra.mxu0 0.0
    %4811 = vmatprep.subr.mxu0 0.0
    %4812 = vmatpush1.xpose.msra.mxu0 0.0
    %4813 = vmatprep.subr.mxu0 0.0
    %4814 = vmatpush1.xpose.msra.mxu0 0.0
    %4815 = vmatprep.subr.mxu0 0.0
    %4816 = vmatpush1.xpose.msra.mxu0 0.0
    %4817 = vmatprep.subr.mxu0 0.0
    %4818 = vmatpush1.xpose.msra.mxu0 0.0
    %4819 = vmatprep.subr.mxu0 0.0
    %4820 = vmatpush1.xpose.msra.mxu0 0.0
    %4821 = vmatprep.subr.mxu0 0.0
    %4822 = vmatpush1.xpose.msra.mxu0 0.0
    %4823 = vmatprep.subr.mxu0 0.0
    %4824 = vmatpush1.xpose.msra.mxu0 0.0
    %4825 = vmatprep.subr.mxu0 0.0
    %4826 = vmatpush1.xpose.msra.mxu0 0.0
    %4827 = vmatprep.subr.mxu0 0.0
    %4828 = vmatpush1.xpose.msra.mxu0 %v4795
    %4829 = vmatprep.subr.mxu0 0.0
    %4830 = vmatpush2.xpose.msra.mxu0 0.0
    %4831 = vmatprep.subr.mxu0 0.0
    %4832 = vmatpush2.xpose.msra.mxu0 0.0
    %4833 = vmatprep.subr.mxu0 0.0
    %4834 = vmatpush2.xpose.msra.mxu0 0.0
    %4835 = vmatprep.subr.mxu0 0.0
    %4836 = vmatpush2.xpose.msra.mxu0 0.0
    %4837 = vmatprep.subr.mxu0 0.0
    %4838 = vmatpush2.xpose.msra.mxu0 0.0
    %4839 = vmatprep.subr.mxu0 0.0
    %4840 = vmatpush2.xpose.msra.mxu0 0.0
    %4841 = vmatprep.subr.mxu0 0.0
    %4842 = vmatpush2.xpose.msra.mxu0 0.0
    %4843 = vmatprep.subr.mxu0 0.0
    %4844 = vmatpush2.xpose.msra.mxu0 0.0
    %4845 = vmatprep.subr.mxu0 0.0
    %4846 = vmatpush2.xpose.msra.mxu0 0.0
    %4847 = vmatprep.subr.mxu0 0.0
    %4848 = vmatpush2.xpose.msra.mxu0 0.0
    %4849 = vmatprep.subr.mxu0 0.0
    %4850 = vmatpush2.xpose.msra.mxu0 0.0
    %4851 = vmatprep.subr.mxu0 0.0
    %4852 = vmatpush2.xpose.msra.mxu0 0.0
    %4853 = vmatprep.subr.mxu0 0.0
    %4854 = vmatpush2.xpose.msra.mxu0 0.0
    %4855 = vmatprep.subr.mxu0 0.0
    %4856 = vmatpush2.xpose.msra.mxu0 0.0
    %4857 = vmatprep.subr.mxu0 0.0
    %4858 = vmatpush2.xpose.msra.mxu0 0.0
    %4859 = vmatprep.subr.mxu0 0.0
    %4860 = vmatpush2.xpose.msra.mxu0 0.0
    %4861 = vmatprep.mubr.f32.mxu0 0.0
    %4862 = vmatmul.mubr.f32.gmra.mxu0 %v4793
    %v4863 = vpop.f32.mrf.mxu0
    %v4864 = vadd.f32 0.0, %v4863
    %v4865 = vpop.f32.mrf.mxu0
    %4866 = vdwg.mxu0
    %4867 = vrot.lane.b32.xlu0 %v4203, 112
    %v4868 = vpop.permute.xlu0 %4867
    %4869 = vrot.lane.b32.xlu0 %v4121, 80
    %v4870 = vpop.permute.xlu0 %4869
    %v4871 = vsel %vm511, %v4868, 0
    %v4873 = vsel %vm511, %v4870, 0
    %4875 = vmatprep.subr.mxu0 0.0
    %4876 = vmatpush1.xpose.msra.mxu0 0.0
    %4877 = vmatprep.subr.mxu0 0.0
    %4878 = vmatpush1.xpose.msra.mxu0 0.0
    %4879 = vmatprep.subr.mxu0 0.0
    %4880 = vmatpush1.xpose.msra.mxu0 0.0
    %4881 = vmatprep.subr.mxu0 0.0
    %4882 = vmatpush1.xpose.msra.mxu0 0.0
    %4883 = vmatprep.subr.mxu0 0.0
    %4884 = vmatpush1.xpose.msra.mxu0 0.0
    %4885 = vmatprep.subr.mxu0 0.0
    %4886 = vmatpush1.xpose.msra.mxu0 0.0
    %4887 = vmatprep.subr.mxu0 0.0
    %4888 = vmatpush1.xpose.msra.mxu0 0.0
    %4889 = vmatprep.subr.mxu0 0.0
    %4890 = vmatpush1.xpose.msra.mxu0 0.0
    %4891 = vmatprep.subr.mxu0 0.0
    %4892 = vmatpush1.xpose.msra.mxu0 0.0
    %4893 = vmatprep.subr.mxu0 0.0
    %4894 = vmatpush1.xpose.msra.mxu0 0.0
    %4895 = vmatprep.subr.mxu0 0.0
    %4896 = vmatpush1.xpose.msra.mxu0 0.0
    %4897 = vmatprep.subr.mxu0 0.0
    %4898 = vmatpush1.xpose.msra.mxu0 0.0
    %4899 = vmatprep.subr.mxu0 0.0
    %4900 = vmatpush1.xpose.msra.mxu0 0.0
    %4901 = vmatprep.subr.mxu0 0.0
    %4902 = vmatpush1.xpose.msra.mxu0 0.0
    %4903 = vmatprep.subr.mxu0 0.0
    %4904 = vmatpush1.xpose.msra.mxu0 0.0
    %4905 = vmatprep.subr.mxu0 0.0
    %4906 = vmatpush1.xpose.msra.mxu0 %v4873
    %4907 = vmatprep.subr.mxu0 0.0
    %4908 = vmatpush2.xpose.msra.mxu0 0.0
    %4909 = vmatprep.subr.mxu0 0.0
    %4910 = vmatpush2.xpose.msra.mxu0 0.0
    %4911 = vmatprep.subr.mxu0 0.0
    %4912 = vmatpush2.xpose.msra.mxu0 0.0
    %4913 = vmatprep.subr.mxu0 0.0
    %4914 = vmatpush2.xpose.msra.mxu0 0.0
    %4915 = vmatprep.subr.mxu0 0.0
    %4916 = vmatpush2.xpose.msra.mxu0 0.0
    %4917 = vmatprep.subr.mxu0 0.0
    %4918 = vmatpush2.xpose.msra.mxu0 0.0
    %4919 = vmatprep.subr.mxu0 0.0
    %4920 = vmatpush2.xpose.msra.mxu0 0.0
    %4921 = vmatprep.subr.mxu0 0.0
    %4922 = vmatpush2.xpose.msra.mxu0 0.0
    %4923 = vmatprep.subr.mxu0 0.0
    %4924 = vmatpush2.xpose.msra.mxu0 0.0
    %4925 = vmatprep.subr.mxu0 0.0
    %4926 = vmatpush2.xpose.msra.mxu0 0.0
    %4927 = vmatprep.subr.mxu0 0.0
    %4928 = vmatpush2.xpose.msra.mxu0 0.0
    %4929 = vmatprep.subr.mxu0 0.0
    %4930 = vmatpush2.xpose.msra.mxu0 0.0
    %4931 = vmatprep.subr.mxu0 0.0
    %4932 = vmatpush2.xpose.msra.mxu0 0.0
    %4933 = vmatprep.subr.mxu0 0.0
    %4934 = vmatpush2.xpose.msra.mxu0 0.0
    %4935 = vmatprep.subr.mxu0 0.0
    %4936 = vmatpush2.xpose.msra.mxu0 0.0
    %4937 = vmatprep.subr.mxu0 0.0
    %4938 = vmatpush2.xpose.msra.mxu0 0.0
    %4939 = vmatprep.mubr.f32.mxu0 0.0
    %4940 = vmatmul.mubr.f32.gmra.mxu0 %v4871
    %v4941 = vpop.f32.mrf.mxu0
    %v4942 = vadd.f32 0.0, %v4941
    %v4943 = vpop.f32.mrf.mxu0
    %4944 = vdwg.mxu0
    %v4945 = vmul.f32 %v4864, 0.35355338
    %v4946 = vmul.f32 %v4942, 0.35355338
    %v4947 = vsel %vm4282, %v4945, -inf
    %4948 = vmax.xlane.f32.xlu0 %v4947
    %v4949 = vpop.xlane.xlu0 %4948
    %v4950 = vsel %vm4282, %v4946, -inf
    %4951 = vmax.xlane.f32.xlu0 %v4950
    %v4952 = vpop.xlane.xlu0 %4951
    %v4953 = vsub.f32 %v4945, %v4949
    %v4954 = vsub.f32 %v4946, %v4952
    %v4955 = vmul.f32 %v4953, 1.442695
    %v4956 = vpow.pop %v4955
    %v4957 = vmul.f32 %v4954, 1.442695
    %v4958 = vpow.pop %v4957
    %v4959 = vsel %vm4282, %v4956, 0.0
    %4960 = vadd.xlane.f32.xlu0 %v4959
    %v4961 = vpop.xlane.xlu0 %4960
    %v4962 = vsel %vm4282, %v4958, 0.0
    %4963 = vadd.xlane.f32.xlu0 %v4962
    %v4964 = vpop.xlane.xlu0 %4963
    %v4965 = vrcp.pop %v4961
    %v4966 = vmul.f32 %v4956, %v4965
    %v4967 = vrcp.pop %v4964
    %v4968 = vmul.f32 %v4958, %v4967
    %4969 = vrot.lane.b32.xlu0 %v4116, 48
    %v4970 = vpop.permute.xlu0 %4969
    %v4973 = vsel %vm511, %v4966, 0
    %4975 = vmatprep.subr.mxu0 0.0
    %4976 = vmatpush1.msra.mxu0 0.0
    %4977 = vmatprep.subr.mxu0 0.0
    %4978 = vmatpush1.msra.mxu0 0.0
    %4979 = vmatprep.subr.mxu0 0.0
    %4980 = vmatpush1.msra.mxu0 0.0
    %4981 = vmatprep.subr.mxu0 0.0
    %4982 = vmatpush1.msra.mxu0 0.0
    %4983 = vmatprep.subr.mxu0 0.0
    %4984 = vmatpush1.msra.mxu0 0.0
    %4985 = vmatprep.subr.mxu0 0.0
    %4986 = vmatpush1.msra.mxu0 0.0
    %4987 = vmatprep.subr.mxu0 0.0
    %4988 = vmatpush1.msra.mxu0 0.0
    %4989 = vmatprep.subr.mxu0 0.0
    %4990 = vmatpush1.msra.mxu0 0.0
    %4991 = vmatprep.subr.mxu0 0.0
    %4992 = vmatpush1.msra.mxu0 0.0
    %4993 = vmatprep.subr.mxu0 0.0
    %4994 = vmatpush1.msra.mxu0 0.0
    %4995 = vmatprep.subr.mxu0 0.0
    %4996 = vmatpush1.msra.mxu0 0.0
    %4997 = vmatprep.subr.mxu0 0.0
    %4998 = vmatpush1.msra.mxu0 0.0
    %4999 = vmatprep.subr.mxu0 0.0
    %5000 = vmatpush1.msra.mxu0 0.0
    %5001 = vmatprep.subr.mxu0 0.0
    %5002 = vmatpush1.msra.mxu0 0.0
    %5003 = vmatprep.subr.mxu0 0.0
    %5004 = vmatpush1.msra.mxu0 0.0
    %5005 = vmatprep.subr.mxu0 0.0
    %5006 = vmatpush1.msra.mxu0 %v4970
    %5007 = vmatprep.subr.mxu0 0.0
    %5008 = vmatpush2.msra.mxu0 0.0
    %5009 = vmatprep.subr.mxu0 0.0
    %5010 = vmatpush2.msra.mxu0 0.0
    %5011 = vmatprep.subr.mxu0 0.0
    %5012 = vmatpush2.msra.mxu0 0.0
    %5013 = vmatprep.subr.mxu0 0.0
    %5014 = vmatpush2.msra.mxu0 0.0
    %5015 = vmatprep.subr.mxu0 0.0
    %5016 = vmatpush2.msra.mxu0 0.0
    %5017 = vmatprep.subr.mxu0 0.0
    %5018 = vmatpush2.msra.mxu0 0.0
    %5019 = vmatprep.subr.mxu0 0.0
    %5020 = vmatpush2.msra.mxu0 0.0
    %5021 = vmatprep.subr.mxu0 0.0
    %5022 = vmatpush2.msra.mxu0 0.0
    %5023 = vmatprep.subr.mxu0 0.0
    %5024 = vmatpush2.msra.mxu0 0.0
    %5025 = vmatprep.subr.mxu0 0.0
    %5026 = vmatpush2.msra.mxu0 0.0
    %5027 = vmatprep.subr.mxu0 0.0
    %5028 = vmatpush2.msra.mxu0 0.0
    %5029 = vmatprep.subr.mxu0 0.0
    %5030 = vmatpush2.msra.mxu0 0.0
    %5031 = vmatprep.subr.mxu0 0.0
    %5032 = vmatpush2.msra.mxu0 0.0
    %5033 = vmatprep.subr.mxu0 0.0
    %5034 = vmatpush2.msra.mxu0 0.0
    %5035 = vmatprep.subr.mxu0 0.0
    %5036 = vmatpush2.msra.mxu0 0.0
    %5037 = vmatprep.subr.mxu0 0.0
    %5038 = vmatpush2.msra.mxu0 0.0
    %5039 = vmatprep.mubr.f32.mxu0 0.0
    %5040 = vmatmul.mubr.f32.gmra.mxu0 %v4973
    %v5041 = vpop.f32.mrf.mxu0
    %v5042 = vadd.f32 0.0, %v5041
    %v5043 = vpop.f32.mrf.mxu0
    %5044 = vdwg.mxu0
    %5045 = vrot.lane.b32.xlu0 %v4121, 48
    %v5046 = vpop.permute.xlu0 %5045
    %v5049 = vsel %vm511, %v4968, 0
    %5051 = vmatprep.subr.mxu0 0.0
    %5052 = vmatpush1.msra.mxu0 0.0
    %5053 = vmatprep.subr.mxu0 0.0
    %5054 = vmatpush1.msra.mxu0 0.0
    %5055 = vmatprep.subr.mxu0 0.0
    %5056 = vmatpush1.msra.mxu0 0.0
    %5057 = vmatprep.subr.mxu0 0.0
    %5058 = vmatpush1.msra.mxu0 0.0
    %5059 = vmatprep.subr.mxu0 0.0
    %5060 = vmatpush1.msra.mxu0 0.0
    %5061 = vmatprep.subr.mxu0 0.0
    %5062 = vmatpush1.msra.mxu0 0.0
    %5063 = vmatprep.subr.mxu0 0.0
    %5064 = vmatpush1.msra.mxu0 0.0
    %5065 = vmatprep.subr.mxu0 0.0
    %5066 = vmatpush1.msra.mxu0 0.0
    %5067 = vmatprep.subr.mxu0 0.0
    %5068 = vmatpush1.msra.mxu0 0.0
    %5069 = vmatprep.subr.mxu0 0.0
    %5070 = vmatpush1.msra.mxu0 0.0
    %5071 = vmatprep.subr.mxu0 0.0
    %5072 = vmatpush1.msra.mxu0 0.0
    %5073 = vmatprep.subr.mxu0 0.0
    %5074 = vmatpush1.msra.mxu0 0.0
    %5075 = vmatprep.subr.mxu0 0.0
    %5076 = vmatpush1.msra.mxu0 0.0
    %5077 = vmatprep.subr.mxu0 0.0
    %5078 = vmatpush1.msra.mxu0 0.0
    %5079 = vmatprep.subr.mxu0 0.0
    %5080 = vmatpush1.msra.mxu0 0.0
    %5081 = vmatprep.subr.mxu0 0.0
    %5082 = vmatpush1.msra.mxu0 %v5046
    %5083 = vmatprep.subr.mxu0 0.0
    %5084 = vmatpush2.msra.mxu0 0.0
    %5085 = vmatprep.subr.mxu0 0.0
    %5086 = vmatpush2.msra.mxu0 0.0
    %5087 = vmatprep.subr.mxu0 0.0
    %5088 = vmatpush2.msra.mxu0 0.0
    %5089 = vmatprep.subr.mxu0 0.0
    %5090 = vmatpush2.msra.mxu0 0.0
    %5091 = vmatprep.subr.mxu0 0.0
    %5092 = vmatpush2.msra.mxu0 0.0
    %5093 = vmatprep.subr.mxu0 0.0
    %5094 = vmatpush2.msra.mxu0 0.0
    %5095 = vmatprep.subr.mxu0 0.0
    %5096 = vmatpush2.msra.mxu0 0.0
    %5097 = vmatprep.subr.mxu0 0.0
    %5098 = vmatpush2.msra.mxu0 0.0
    %5099 = vmatprep.subr.mxu0 0.0
    %5100 = vmatpush2.msra.mxu0 0.0
    %5101 = vmatprep.subr.mxu0 0.0
    %5102 = vmatpush2.msra.mxu0 0.0
    %5103 = vmatprep.subr.mxu0 0.0
    %5104 = vmatpush2.msra.mxu0 0.0
    %5105 = vmatprep.subr.mxu0 0.0
    %5106 = vmatpush2.msra.mxu0 0.0
    %5107 = vmatprep.subr.mxu0 0.0
    %5108 = vmatpush2.msra.mxu0 0.0
    %5109 = vmatprep.subr.mxu0 0.0
    %5110 = vmatpush2.msra.mxu0 0.0
    %5111 = vmatprep.subr.mxu0 0.0
    %5112 = vmatpush2.msra.mxu0 0.0
    %5113 = vmatprep.subr.mxu0 0.0
    %5114 = vmatpush2.msra.mxu0 0.0
    %5115 = vmatprep.mubr.f32.mxu0 0.0
    %5116 = vmatmul.mubr.f32.gmra.mxu0 %v5049
    %v5117 = vpop.f32.mrf.mxu0
    %v5118 = vadd.f32 0.0, %v5117
    %v5119 = vpop.f32.mrf.mxu0
    %5120 = vdwg.mxu0
    %5121 = vrot.lane.b32.xlu0 %v4125, 104
    %v5122 = vpop.permute.xlu0 %5121
    %5123 = vrot.lane.b32.xlu0 %v4116, 72
    %v5124 = vpop.permute.xlu0 %5123
    %v5125 = vsel %vm511, %v5122, 0
    %v5127 = vsel %vm511, %v5124, 0
    %5129 = vmatprep.subr.mxu0 0.0
    %5130 = vmatpush1.xpose.msra.mxu0 0.0
    %5131 = vmatprep.subr.mxu0 0.0
    %5132 = vmatpush1.xpose.msra.mxu0 0.0
    %5133 = vmatprep.subr.mxu0 0.0
    %5134 = vmatpush1.xpose.msra.mxu0 0.0
    %5135 = vmatprep.subr.mxu0 0.0
    %5136 = vmatpush1.xpose.msra.mxu0 0.0
    %5137 = vmatprep.subr.mxu0 0.0
    %5138 = vmatpush1.xpose.msra.mxu0 0.0
    %5139 = vmatprep.subr.mxu0 0.0
    %5140 = vmatpush1.xpose.msra.mxu0 0.0
    %5141 = vmatprep.subr.mxu0 0.0
    %5142 = vmatpush1.xpose.msra.mxu0 0.0
    %5143 = vmatprep.subr.mxu0 0.0
    %5144 = vmatpush1.xpose.msra.mxu0 0.0
    %5145 = vmatprep.subr.mxu0 0.0
    %5146 = vmatpush1.xpose.msra.mxu0 0.0
    %5147 = vmatprep.subr.mxu0 0.0
    %5148 = vmatpush1.xpose.msra.mxu0 0.0
    %5149 = vmatprep.subr.mxu0 0.0
    %5150 = vmatpush1.xpose.msra.mxu0 0.0
    %5151 = vmatprep.subr.mxu0 0.0
    %5152 = vmatpush1.xpose.msra.mxu0 0.0
    %5153 = vmatprep.subr.mxu0 0.0
    %5154 = vmatpush1.xpose.msra.mxu0 0.0
    %5155 = vmatprep.subr.mxu0 0.0
    %5156 = vmatpush1.xpose.msra.mxu0 0.0
    %5157 = vmatprep.subr.mxu0 0.0
    %5158 = vmatpush1.xpose.msra.mxu0 0.0
    %5159 = vmatprep.subr.mxu0 0.0
    %5160 = vmatpush1.xpose.msra.mxu0 %v5127
    %5161 = vmatprep.subr.mxu0 0.0
    %5162 = vmatpush2.xpose.msra.mxu0 0.0
    %5163 = vmatprep.subr.mxu0 0.0
    %5164 = vmatpush2.xpose.msra.mxu0 0.0
    %5165 = vmatprep.subr.mxu0 0.0
    %5166 = vmatpush2.xpose.msra.mxu0 0.0
    %5167 = vmatprep.subr.mxu0 0.0
    %5168 = vmatpush2.xpose.msra.mxu0 0.0
    %5169 = vmatprep.subr.mxu0 0.0
    %5170 = vmatpush2.xpose.msra.mxu0 0.0
    %5171 = vmatprep.subr.mxu0 0.0
    %5172 = vmatpush2.xpose.msra.mxu0 0.0
    %5173 = vmatprep.subr.mxu0 0.0
    %5174 = vmatpush2.xpose.msra.mxu0 0.0
    %5175 = vmatprep.subr.mxu0 0.0
    %5176 = vmatpush2.xpose.msra.mxu0 0.0
    %5177 = vmatprep.subr.mxu0 0.0
    %5178 = vmatpush2.xpose.msra.mxu0 0.0
    %5179 = vmatprep.subr.mxu0 0.0
    %5180 = vmatpush2.xpose.msra.mxu0 0.0
    %5181 = vmatprep.subr.mxu0 0.0
    %5182 = vmatpush2.xpose.msra.mxu0 0.0
    %5183 = vmatprep.subr.mxu0 0.0
    %5184 = vmatpush2.xpose.msra.mxu0 0.0
    %5185 = vmatprep.subr.mxu0 0.0
    %5186 = vmatpush2.xpose.msra.mxu0 0.0
    %5187 = vmatprep.subr.mxu0 0.0
    %5188 = vmatpush2.xpose.msra.mxu0 0.0
    %5189 = vmatprep.subr.mxu0 0.0
    %5190 = vmatpush2.xpose.msra.mxu0 0.0
    %5191 = vmatprep.subr.mxu0 0.0
    %5192 = vmatpush2.xpose.msra.mxu0 0.0
    %5193 = vmatprep.mubr.f32.mxu0 0.0
    %5194 = vmatmul.mubr.f32.gmra.mxu0 %v5125
    %v5195 = vpop.f32.mrf.mxu0
    %v5196 = vadd.f32 0.0, %v5195
    %v5197 = vpop.f32.mrf.mxu0
    %5198 = vdwg.mxu0
    %5199 = vrot.lane.b32.xlu0 %v4203, 104
    %v5200 = vpop.permute.xlu0 %5199
    %5201 = vrot.lane.b32.xlu0 %v4121, 72
    %v5202 = vpop.permute.xlu0 %5201
    %v5203 = vsel %vm511, %v5200, 0
    %v5205 = vsel %vm511, %v5202, 0
    %5207 = vmatprep.subr.mxu0 0.0
    %5208 = vmatpush1.xpose.msra.mxu0 0.0
    %5209 = vmatprep.subr.mxu0 0.0
    %5210 = vmatpush1.xpose.msra.mxu0 0.0
    %5211 = vmatprep.subr.mxu0 0.0
    %5212 = vmatpush1.xpose.msra.mxu0 0.0
    %5213 = vmatprep.subr.mxu0 0.0
    %5214 = vmatpush1.xpose.msra.mxu0 0.0
    %5215 = vmatprep.subr.mxu0 0.0
    %5216 = vmatpush1.xpose.msra.mxu0 0.0
    %5217 = vmatprep.subr.mxu0 0.0
    %5218 = vmatpush1.xpose.msra.mxu0 0.0
    %5219 = vmatprep.subr.mxu0 0.0
    %5220 = vmatpush1.xpose.msra.mxu0 0.0
    %5221 = vmatprep.subr.mxu0 0.0
    %5222 = vmatpush1.xpose.msra.mxu0 0.0
    %5223 = vmatprep.subr.mxu0 0.0
    %5224 = vmatpush1.xpose.msra.mxu0 0.0
    %5225 = vmatprep.subr.mxu0 0.0
    %5226 = vmatpush1.xpose.msra.mxu0 0.0
    %5227 = vmatprep.subr.mxu0 0.0
    %5228 = vmatpush1.xpose.msra.mxu0 0.0
    %5229 = vmatprep.subr.mxu0 0.0
    %5230 = vmatpush1.xpose.msra.mxu0 0.0
    %5231 = vmatprep.subr.mxu0 0.0
    %5232 = vmatpush1.xpose.msra.mxu0 0.0
    %5233 = vmatprep.subr.mxu0 0.0
    %5234 = vmatpush1.xpose.msra.mxu0 0.0
    %5235 = vmatprep.subr.mxu0 0.0
    %5236 = vmatpush1.xpose.msra.mxu0 0.0
    %5237 = vmatprep.subr.mxu0 0.0
    %5238 = vmatpush1.xpose.msra.mxu0 %v5205
    %5239 = vmatprep.subr.mxu0 0.0
    %5240 = vmatpush2.xpose.msra.mxu0 0.0
    %5241 = vmatprep.subr.mxu0 0.0
    %5242 = vmatpush2.xpose.msra.mxu0 0.0
    %5243 = vmatprep.subr.mxu0 0.0
    %5244 = vmatpush2.xpose.msra.mxu0 0.0
    %5245 = vmatprep.subr.mxu0 0.0
    %5246 = vmatpush2.xpose.msra.mxu0 0.0
    %5247 = vmatprep.subr.mxu0 0.0
    %5248 = vmatpush2.xpose.msra.mxu0 0.0
    %5249 = vmatprep.subr.mxu0 0.0
    %5250 = vmatpush2.xpose.msra.mxu0 0.0
    %5251 = vmatprep.subr.mxu0 0.0
    %5252 = vmatpush2.xpose.msra.mxu0 0.0
    %5253 = vmatprep.subr.mxu0 0.0
    %5254 = vmatpush2.xpose.msra.mxu0 0.0
    %5255 = vmatprep.subr.mxu0 0.0
    %5256 = vmatpush2.xpose.msra.mxu0 0.0
    %5257 = vmatprep.subr.mxu0 0.0
    %5258 = vmatpush2.xpose.msra.mxu0 0.0
    %5259 = vmatprep.subr.mxu0 0.0
    %5260 = vmatpush2.xpose.msra.mxu0 0.0
    %5261 = vmatprep.subr.mxu0 0.0
    %5262 = vmatpush2.xpose.msra.mxu0 0.0
    %5263 = vmatprep.subr.mxu0 0.0
    %5264 = vmatpush2.xpose.msra.mxu0 0.0
    %5265 = vmatprep.subr.mxu0 0.0
    %5266 = vmatpush2.xpose.msra.mxu0 0.0
    %5267 = vmatprep.subr.mxu0 0.0
    %5268 = vmatpush2.xpose.msra.mxu0 0.0
    %5269 = vmatprep.subr.mxu0 0.0
    %5270 = vmatpush2.xpose.msra.mxu0 0.0
    %5271 = vmatprep.mubr.f32.mxu0 0.0
    %5272 = vmatmul.mubr.f32.gmra.mxu0 %v5203
    %v5273 = vpop.f32.mrf.mxu0
    %v5274 = vadd.f32 0.0, %v5273
    %v5275 = vpop.f32.mrf.mxu0
    %5276 = vdwg.mxu0
    %v5277 = vmul.f32 %v5196, 0.35355338
    %v5278 = vmul.f32 %v5274, 0.35355338
    %v5279 = vsel %vm4282, %v5277, -inf
    %5280 = vmax.xlane.f32.xlu0 %v5279
    %v5281 = vpop.xlane.xlu0 %5280
    %v5282 = vsel %vm4282, %v5278, -inf
    %5283 = vmax.xlane.f32.xlu0 %v5282
    %v5284 = vpop.xlane.xlu0 %5283
    %v5285 = vsub.f32 %v5277, %v5281
    %v5286 = vsub.f32 %v5278, %v5284
    %v5287 = vmul.f32 %v5285, 1.442695
    %v5288 = vpow.pop %v5287
    %v5289 = vmul.f32 %v5286, 1.442695
    %v5290 = vpow.pop %v5289
    %v5291 = vsel %vm4282, %v5288, 0.0
    %5292 = vadd.xlane.f32.xlu0 %v5291
    %v5293 = vpop.xlane.xlu0 %5292
    %v5294 = vsel %vm4282, %v5290, 0.0
    %5295 = vadd.xlane.f32.xlu0 %v5294
    %v5296 = vpop.xlane.xlu0 %5295
    %v5297 = vrcp.pop %v5293
    %v5298 = vmul.f32 %v5288, %v5297
    %v5299 = vrcp.pop %v5296
    %v5300 = vmul.f32 %v5290, %v5299
    %5301 = vrot.lane.b32.xlu0 %v4116, 40
    %v5302 = vpop.permute.xlu0 %5301
    %v5305 = vsel %vm511, %v5298, 0
    %5307 = vmatprep.subr.mxu0 0.0
    %5308 = vmatpush1.msra.mxu0 0.0
    %5309 = vmatprep.subr.mxu0 0.0
    %5310 = vmatpush1.msra.mxu0 0.0
    %5311 = vmatprep.subr.mxu0 0.0
    %5312 = vmatpush1.msra.mxu0 0.0
    %5313 = vmatprep.subr.mxu0 0.0
    %5314 = vmatpush1.msra.mxu0 0.0
    %5315 = vmatprep.subr.mxu0 0.0
    %5316 = vmatpush1.msra.mxu0 0.0
    %5317 = vmatprep.subr.mxu0 0.0
    %5318 = vmatpush1.msra.mxu0 0.0
    %5319 = vmatprep.subr.mxu0 0.0
    %5320 = vmatpush1.msra.mxu0 0.0
    %5321 = vmatprep.subr.mxu0 0.0
    %5322 = vmatpush1.msra.mxu0 0.0
    %5323 = vmatprep.subr.mxu0 0.0
    %5324 = vmatpush1.msra.mxu0 0.0
    %5325 = vmatprep.subr.mxu0 0.0
    %5326 = vmatpush1.msra.mxu0 0.0
    %5327 = vmatprep.subr.mxu0 0.0
    %5328 = vmatpush1.msra.mxu0 0.0
    %5329 = vmatprep.subr.mxu0 0.0
    %5330 = vmatpush1.msra.mxu0 0.0
    %5331 = vmatprep.subr.mxu0 0.0
    %5332 = vmatpush1.msra.mxu0 0.0
    %5333 = vmatprep.subr.mxu0 0.0
    %5334 = vmatpush1.msra.mxu0 0.0
    %5335 = vmatprep.subr.mxu0 0.0
    %5336 = vmatpush1.msra.mxu0 0.0
    %5337 = vmatprep.subr.mxu0 0.0
    %5338 = vmatpush1.msra.mxu0 %v5302
    %5339 = vmatprep.subr.mxu0 0.0
    %5340 = vmatpush2.msra.mxu0 0.0
    %5341 = vmatprep.subr.mxu0 0.0
    %5342 = vmatpush2.msra.mxu0 0.0
    %5343 = vmatprep.subr.mxu0 0.0
    %5344 = vmatpush2.msra.mxu0 0.0
    %5345 = vmatprep.subr.mxu0 0.0
    %5346 = vmatpush2.msra.mxu0 0.0
    %5347 = vmatprep.subr.mxu0 0.0
    %5348 = vmatpush2.msra.mxu0 0.0
    %5349 = vmatprep.subr.mxu0 0.0
    %5350 = vmatpush2.msra.mxu0 0.0
    %5351 = vmatprep.subr.mxu0 0.0
    %5352 = vmatpush2.msra.mxu0 0.0
    %5353 = vmatprep.subr.mxu0 0.0
    %5354 = vmatpush2.msra.mxu0 0.0
    %5355 = vmatprep.subr.mxu0 0.0
    %5356 = vmatpush2.msra.mxu0 0.0
    %5357 = vmatprep.subr.mxu0 0.0
    %5358 = vmatpush2.msra.mxu0 0.0
    %5359 = vmatprep.subr.mxu0 0.0
    %5360 = vmatpush2.msra.mxu0 0.0
    %5361 = vmatprep.subr.mxu0 0.0
    %5362 = vmatpush2.msra.mxu0 0.0
    %5363 = vmatprep.subr.mxu0 0.0
    %5364 = vmatpush2.msra.mxu0 0.0
    %5365 = vmatprep.subr.mxu0 0.0
    %5366 = vmatpush2.msra.mxu0 0.0
    %5367 = vmatprep.subr.mxu0 0.0
    %5368 = vmatpush2.msra.mxu0 0.0
    %5369 = vmatprep.subr.mxu0 0.0
    %5370 = vmatpush2.msra.mxu0 0.0
    %5371 = vmatprep.mubr.f32.mxu0 0.0
    %5372 = vmatmul.mubr.f32.gmra.mxu0 %v5305
    %v5373 = vpop.f32.mrf.mxu0
    %v5374 = vadd.f32 0.0, %v5373
    %v5375 = vpop.f32.mrf.mxu0
    %5376 = vdwg.mxu0
    %5377 = vrot.lane.b32.xlu0 %v4121, 40
    %v5378 = vpop.permute.xlu0 %5377
    %v5381 = vsel %vm511, %v5300, 0
    %5383 = vmatprep.subr.mxu0 0.0
    %5384 = vmatpush1.msra.mxu0 0.0
    %5385 = vmatprep.subr.mxu0 0.0
    %5386 = vmatpush1.msra.mxu0 0.0
    %5387 = vmatprep.subr.mxu0 0.0
    %5388 = vmatpush1.msra.mxu0 0.0
    %5389 = vmatprep.subr.mxu0 0.0
    %5390 = vmatpush1.msra.mxu0 0.0
    %5391 = vmatprep.subr.mxu0 0.0
    %5392 = vmatpush1.msra.mxu0 0.0
    %5393 = vmatprep.subr.mxu0 0.0
    %5394 = vmatpush1.msra.mxu0 0.0
    %5395 = vmatprep.subr.mxu0 0.0
    %5396 = vmatpush1.msra.mxu0 0.0
    %5397 = vmatprep.subr.mxu0 0.0
    %5398 = vmatpush1.msra.mxu0 0.0
    %5399 = vmatprep.subr.mxu0 0.0
    %5400 = vmatpush1.msra.mxu0 0.0
    %5401 = vmatprep.subr.mxu0 0.0
    %5402 = vmatpush1.msra.mxu0 0.0
    %5403 = vmatprep.subr.mxu0 0.0
    %5404 = vmatpush1.msra.mxu0 0.0
    %5405 = vmatprep.subr.mxu0 0.0
    %5406 = vmatpush1.msra.mxu0 0.0
    %5407 = vmatprep.subr.mxu0 0.0
    %5408 = vmatpush1.msra.mxu0 0.0
    %5409 = vmatprep.subr.mxu0 0.0
    %5410 = vmatpush1.msra.mxu0 0.0
    %5411 = vmatprep.subr.mxu0 0.0
    %5412 = vmatpush1.msra.mxu0 0.0
    %5413 = vmatprep.subr.mxu0 0.0
    %5414 = vmatpush1.msra.mxu0 %v5378
    %5415 = vmatprep.subr.mxu0 0.0
    %5416 = vmatpush2.msra.mxu0 0.0
    %5417 = vmatprep.subr.mxu0 0.0
    %5418 = vmatpush2.msra.mxu0 0.0
    %5419 = vmatprep.subr.mxu0 0.0
    %5420 = vmatpush2.msra.mxu0 0.0
    %5421 = vmatprep.subr.mxu0 0.0
    %5422 = vmatpush2.msra.mxu0 0.0
    %5423 = vmatprep.subr.mxu0 0.0
    %5424 = vmatpush2.msra.mxu0 0.0
    %5425 = vmatprep.subr.mxu0 0.0
    %5426 = vmatpush2.msra.mxu0 0.0
    %5427 = vmatprep.subr.mxu0 0.0
    %5428 = vmatpush2.msra.mxu0 0.0
    %5429 = vmatprep.subr.mxu0 0.0
    %5430 = vmatpush2.msra.mxu0 0.0
    %5431 = vmatprep.subr.mxu0 0.0
    %5432 = vmatpush2.msra.mxu0 0.0
    %5433 = vmatprep.subr.mxu0 0.0
    %5434 = vmatpush2.msra.mxu0 0.0
    %5435 = vmatprep.subr.mxu0 0.0
    %5436 = vmatpush2.msra.mxu0 0.0
    %5437 = vmatprep.subr.mxu0 0.0
    %5438 = vmatpush2.msra.mxu0 0.0
    %5439 = vmatprep.subr.mxu0 0.0
    %5440 = vmatpush2.msra.mxu0 0.0
    %5441 = vmatprep.subr.mxu0 0.0
    %5442 = vmatpush2.msra.mxu0 0.0
    %5443 = vmatprep.subr.mxu0 0.0
    %5444 = vmatpush2.msra.mxu0 0.0
    %5445 = vmatprep.subr.mxu0 0.0
    %5446 = vmatpush2.msra.mxu0 0.0
    %5447 = vmatprep.mubr.f32.mxu0 0.0
    %5448 = vmatmul.mubr.f32.gmra.mxu0 %v5381
    %v5449 = vpop.f32.mrf.mxu0
    %v5450 = vadd.f32 0.0, %v5449
    %v5451 = vpop.f32.mrf.mxu0
    %5452 = vdwg.mxu0
    %5455 = vrot.lane.b32.xlu0 %v4710, 8
    %v5456 = vpop.permute.xlu0 %5455
    %5457 = vrot.lane.b32.xlu0 %v4786, 8
    %v5458 = vpop.permute.xlu0 %5457
    %5463 = vrot.lane.b32.xlu0 %v5042, 16
    %v5464 = vpop.permute.xlu0 %5463
    %5465 = vrot.lane.b32.xlu0 %v5118, 16
    %v5466 = vpop.permute.xlu0 %5465
    %5471 = vrot.lane.b32.xlu0 %v5374, 24
    %v5472 = vpop.permute.xlu0 %5471
    %5473 = vrot.lane.b32.xlu0 %v5450, 24
    %v5474 = vpop.permute.xlu0 %5473
    %v5477 = vsel %vm511, %v4378, %v5456
    %v5478 = vsel %vm511, %v4454, %v5458
    %v5479 = vsel %vm43, %v5477, %v5464
    %v5480 = vsel %vm43, %v5478, %v5466
    %v5481 = vsel %vm1863, %v5479, %v5472
    %v5482 = vsel %vm1863, %v5480, %v5474
    %v5483 = vld [vmem:[#allocation2 + $0x1c0] sm:$0xff]
    %v5484 = vld [vmem:[#allocation2 + $0x1c8] sm:$0xff]
    %v5485 = vld [vmem:[#allocation2 + $0x1d0] sm:$0xff]
    %v5486 = vld [vmem:[#allocation2 + $0x1d8] sm:$0xff]
    %v5487 = vld [vmem:[%s4 + $0x15] sm:$0x1]
    %v5488 = vlaneseq
    %v5489 = vshrl.u32 %v5488, 7
    %v5490 = vsub.s32 0, %v5489
    %v5491 = vrot.slane %v5487, %v5490
    %v5494 = vrot.slane %v5482, 7
    %vm5495 = vcmask 1041409
    %v5496 = vsel %vm5495, %v5494, %v5481
    %v5497 = vsel %vm227, %v5496, 0
    %5499 = vmatprep.subr.mxu0 0.0
    %5500 = vmatpush1.msra.mxu0 0.0
    %5501 = vmatprep.subr.mxu0 0.0
    %5502 = vmatpush1.msra.mxu0 0.0
    %5503 = vmatprep.subr.mxu0 0.0
    %5504 = vmatpush1.msra.mxu0 0.0
    %5505 = vmatprep.subr.mxu0 0.0
    %5506 = vmatpush1.msra.mxu0 0.0
    %5507 = vmatprep.subr.mxu0 0.0
    %5508 = vmatpush1.msra.mxu0 0.0
    %5509 = vmatprep.subr.mxu0 0.0
    %5510 = vmatpush1.msra.mxu0 0.0
    %5511 = vmatprep.subr.mxu0 0.0
    %5512 = vmatpush1.msra.mxu0 0.0
    %5513 = vmatprep.subr.mxu0 0.0
    %5514 = vmatpush1.msra.mxu0 0.0
    %5515 = vmatprep.subr.mxu0 0.0
    %5516 = vmatpush1.msra.mxu0 0.0
    %5517 = vmatprep.subr.mxu0 0.0
    %5518 = vmatpush1.msra.mxu0 0.0
    %5519 = vmatprep.subr.mxu0 0.0
    %5520 = vmatpush1.msra.mxu0 0.0
    %5521 = vmatprep.subr.mxu0 0.0
    %5522 = vmatpush1.msra.mxu0 0.0
    %5523 = vmatprep.subr.mxu0 0.0
    %5524 = vmatpush1.msra.mxu0 %v5486
    %5525 = vmatprep.subr.mxu0 0.0
    %5526 = vmatpush1.msra.mxu0 %v5485
    %5527 = vmatprep.subr.mxu0 0.0
    %5528 = vmatpush1.msra.mxu0 %v5484
    %5529 = vmatprep.subr.mxu0 0.0
    %5530 = vmatpush1.msra.mxu0 %v5483
    %5531 = vmatprep.subr.mxu0 0.0
    %5532 = vmatpush2.msra.mxu0 0.0
    %5533 = vmatprep.subr.mxu0 0.0
    %5534 = vmatpush2.msra.mxu0 0.0
    %5535 = vmatprep.subr.mxu0 0.0
    %5536 = vmatpush2.msra.mxu0 0.0
    %5537 = vmatprep.subr.mxu0 0.0
    %5538 = vmatpush2.msra.mxu0 0.0
    %5539 = vmatprep.subr.mxu0 0.0
    %5540 = vmatpush2.msra.mxu0 0.0
    %5541 = vmatprep.subr.mxu0 0.0
    %5542 = vmatpush2.msra.mxu0 0.0
    %5543 = vmatprep.subr.mxu0 0.0
    %5544 = vmatpush2.msra.mxu0 0.0
    %5545 = vmatprep.subr.mxu0 0.0
    %5546 = vmatpush2.msra.mxu0 0.0
    %5547 = vmatprep.subr.mxu0 0.0
    %5548 = vmatpush2.msra.mxu0 0.0
    %5549 = vmatprep.subr.mxu0 0.0
    %5550 = vmatpush2.msra.mxu0 0.0
    %5551 = vmatprep.subr.mxu0 0.0
    %5552 = vmatpush2.msra.mxu0 0.0
    %5553 = vmatprep.subr.mxu0 0.0
    %5554 = vmatpush2.msra.mxu0 0.0
    %5555 = vmatprep.subr.mxu0 0.0
    %5556 = vmatpush2.msra.mxu0 0.0
    %5557 = vmatprep.subr.mxu0 0.0
    %5558 = vmatpush2.msra.mxu0 0.0
    %5559 = vmatprep.subr.mxu0 0.0
    %5560 = vmatpush2.msra.mxu0 0.0
    %5561 = vmatprep.subr.mxu0 0.0
    %5562 = vmatpush2.msra.mxu0 0.0
    %5563 = vmatprep.mubr.f32.mxu0 0.0
    %5564 = vmatmul.mubr.f32.gmra.mxu0 %v5497
    %v5565 = vpop.f32.mrf.mxu0
    %v5566 = vadd.f32 %v5491, %v5565
    %v5567 = vpop.f32.mrf.mxu0
    %5568 = vdwg.mxu0
    %v5569 = vld [vmem:[#allocation2 + $0x1e0] sm:$0xff]
    %v5570 = vld [vmem:[#allocation2 + $0x1e8] sm:$0xff]
    %v5571 = vld [vmem:[#allocation2 + $0x1f0] sm:$0xff]
    %v5572 = vld [vmem:[#allocation2 + $0x1f8] sm:$0xff]
    %v5573 = vld [vmem:[%s4 + $0x16] sm:$0x1]
    %v5574 = vlaneseq
    %v5575 = vshrl.u32 %v5574, 7
    %v5576 = vsub.s32 0, %v5575
    %v5577 = vrot.slane %v5573, %v5576
    %v5579 = vsel %vm227, %v5566, 0
    %5581 = vmatprep.subr.mxu0 0.0
    %5582 = vmatpush1.msra.mxu0 0.0
    %5583 = vmatprep.subr.mxu0 0.0
    %5584 = vmatpush1.msra.mxu0 0.0
    %5585 = vmatprep.subr.mxu0 0.0
    %5586 = vmatpush1.msra.mxu0 0.0
    %5587 = vmatprep.subr.mxu0 0.0
    %5588 = vmatpush1.msra.mxu0 0.0
    %5589 = vmatprep.subr.mxu0 0.0
    %5590 = vmatpush1.msra.mxu0 0.0
    %5591 = vmatprep.subr.mxu0 0.0
    %5592 = vmatpush1.msra.mxu0 0.0
    %5593 = vmatprep.subr.mxu0 0.0
    %5594 = vmatpush1.msra.mxu0 0.0
    %5595 = vmatprep.subr.mxu0 0.0
    %5596 = vmatpush1.msra.mxu0 0.0
    %5597 = vmatprep.subr.mxu0 0.0
    %5598 = vmatpush1.msra.mxu0 0.0
    %5599 = vmatprep.subr.mxu0 0.0
    %5600 = vmatpush1.msra.mxu0 0.0
    %5601 = vmatprep.subr.mxu0 0.0
    %5602 = vmatpush1.msra.mxu0 0.0
    %5603 = vmatprep.subr.mxu0 0.0
    %5604 = vmatpush1.msra.mxu0 0.0
    %5605 = vmatprep.subr.mxu0 0.0
    %5606 = vmatpush1.msra.mxu0 %v5572
    %5607 = vmatprep.subr.mxu0 0.0
    %5608 = vmatpush1.msra.mxu0 %v5571
    %5609 = vmatprep.subr.mxu0 0.0
    %5610 = vmatpush1.msra.mxu0 %v5570
    %5611 = vmatprep.subr.mxu0 0.0
    %5612 = vmatpush1.msra.mxu0 %v5569
    %5613 = vmatprep.subr.mxu0 0.0
    %5614 = vmatpush2.msra.mxu0 0.0
    %5615 = vmatprep.subr.mxu0 0.0
    %5616 = vmatpush2.msra.mxu0 0.0
    %5617 = vmatprep.subr.mxu0 0.0
    %5618 = vmatpush2.msra.mxu0 0.0
    %5619 = vmatprep.subr.mxu0 0.0
    %5620 = vmatpush2.msra.mxu0 0.0
    %5621 = vmatprep.subr.mxu0 0.0
    %5622 = vmatpush2.msra.mxu0 0.0
    %5623 = vmatprep.subr.mxu0 0.0
    %5624 = vmatpush2.msra.mxu0 0.0
    %5625 = vmatprep.subr.mxu0 0.0
    %5626 = vmatpush2.msra.mxu0 0.0
    %5627 = vmatprep.subr.mxu0 0.0
    %5628 = vmatpush2.msra.mxu0 0.0
    %5629 = vmatprep.subr.mxu0 0.0
    %5630 = vmatpush2.msra.mxu0 0.0
    %5631 = vmatprep.subr.mxu0 0.0
    %5632 = vmatpush2.msra.mxu0 0.0
    %5633 = vmatprep.subr.mxu0 0.0
    %5634 = vmatpush2.msra.mxu0 0.0
    %5635 = vmatprep.subr.mxu0 0.0
    %5636 = vmatpush2.msra.mxu0 0.0
    %5637 = vmatprep.subr.mxu0 0.0
    %5638 = vmatpush2.msra.mxu0 0.0
    %5639 = vmatprep.subr.mxu0 0.0
    %5640 = vmatpush2.msra.mxu0 0.0
    %5641 = vmatprep.subr.mxu0 0.0
    %5642 = vmatpush2.msra.mxu0 0.0
    %5643 = vmatprep.subr.mxu0 0.0
    %5644 = vmatpush2.msra.mxu0 0.0
    %5645 = vmatprep.mubr.f32.mxu0 0.0
    %5646 = vmatmul.mubr.f32.gmra.mxu0 %v5579
    %v5647 = vpop.f32.mrf.mxu0
    %v5648 = vadd.f32 %v5577, %v5647
    %v5649 = vpop.f32.mrf.mxu0
    %5650 = vdwg.mxu0
    %v5651 = vmax.f32 %v5648, 0.0
    %v5652 = vld [vmem:[#allocation2 + $0x200] sm:$0xff]
    %v5653 = vld [vmem:[#allocation2 + $0x208] sm:$0xff]
    %v5654 = vld [vmem:[#allocation2 + $0x210] sm:$0xff]
    %v5655 = vld [vmem:[#allocation2 + $0x218] sm:$0xff]
    %v5656 = vld [vmem:[#allocation2 + $0x220] sm:$0xff]
    %v5657 = vld [vmem:[#allocation2 + $0x228] sm:$0xff]
    %v5658 = vld [vmem:[%s4 + $0x17] sm:$0x1]
    %v5659 = vlaneseq
    %v5660 = vshrl.u32 %v5659, 7
    %v5661 = vsub.s32 0, %v5660
    %v5662 = vrot.slane %v5658, %v5661
    %vm5663 = vcmask 392192
    %v5665 = vsel %vm5663, %v5651, 0
    %5667 = vmatprep.subr.mxu0 0.0
    %5668 = vmatpush1.msra.mxu0 0.0
    %5669 = vmatprep.subr.mxu0 0.0
    %5670 = vmatpush1.msra.mxu0 0.0
    %5671 = vmatprep.subr.mxu0 0.0
    %5672 = vmatpush1.msra.mxu0 0.0
    %5673 = vmatprep.subr.mxu0 0.0
    %5674 = vmatpush1.msra.mxu0 0.0
    %5675 = vmatprep.subr.mxu0 0.0
    %5676 = vmatpush1.msra.mxu0 0.0
    %5677 = vmatprep.subr.mxu0 0.0
    %5678 = vmatpush1.msra.mxu0 0.0
    %5679 = vmatprep.subr.mxu0 0.0
    %5680 = vmatpush1.msra.mxu0 0.0
    %5681 = vmatprep.subr.mxu0 0.0
    %5682 = vmatpush1.msra.mxu0 0.0
    %5683 = vmatprep.subr.mxu0 0.0
    %5684 = vmatpush1.msra.mxu0 0.0
    %5685 = vmatprep.subr.mxu0 0.0
    %5686 = vmatpush1.msra.mxu0 0.0
    %5687 = vmatprep.subr.mxu0 0.0
    %5688 = vmatpush1.msra.mxu0 %v5657
    %5689 = vmatprep.subr.mxu0 0.0
    %5690 = vmatpush1.msra.mxu0 %v5656
    %5691 = vmatprep.subr.mxu0 0.0
    %5692 = vmatpush1.msra.mxu0 %v5655
    %5693 = vmatprep.subr.mxu0 0.0
    %5694 = vmatpush1.msra.mxu0 %v5654
    %5695 = vmatprep.subr.mxu0 0.0
    %5696 = vmatpush1.msra.mxu0 %v5653
    %5697 = vmatprep.subr.mxu0 0.0
    %5698 = vmatpush1.msra.mxu0 %v5652
    %5699 = vmatprep.subr.mxu0 0.0
    %5700 = vmatpush2.msra.mxu0 0.0
    %5701 = vmatprep.subr.mxu0 0.0
    %5702 = vmatpush2.msra.mxu0 0.0
    %5703 = vmatprep.subr.mxu0 0.0
    %5704 = vmatpush2.msra.mxu0 0.0
    %5705 = vmatprep.subr.mxu0 0.0
    %5706 = vmatpush2.msra.mxu0 0.0
    %5707 = vmatprep.subr.mxu0 0.0
    %5708 = vmatpush2.msra.mxu0 0.0
    %5709 = vmatprep.subr.mxu0 0.0
    %5710 = vmatpush2.msra.mxu0 0.0
    %5711 = vmatprep.subr.mxu0 0.0
    %5712 = vmatpush2.msra.mxu0 0.0
    %5713 = vmatprep.subr.mxu0 0.0
    %5714 = vmatpush2.msra.mxu0 0.0
    %5715 = vmatprep.subr.mxu0 0.0
    %5716 = vmatpush2.msra.mxu0 0.0
    %5717 = vmatprep.subr.mxu0 0.0
    %5718 = vmatpush2.msra.mxu0 0.0
    %5719 = vmatprep.subr.mxu0 0.0
    %5720 = vmatpush2.msra.mxu0 0.0
    %5721 = vmatprep.subr.mxu0 0.0
    %5722 = vmatpush2.msra.mxu0 0.0
    %5723 = vmatprep.subr.mxu0 0.0
    %5724 = vmatpush2.msra.mxu0 0.0
    %5725 = vmatprep.subr.mxu0 0.0
    %5726 = vmatpush2.msra.mxu0 0.0
    %5727 = vmatprep.subr.mxu0 0.0
    %5728 = vmatpush2.msra.mxu0 0.0
    %5729 = vmatprep.subr.mxu0 0.0
    %5730 = vmatpush2.msra.mxu0 0.0
    %5731 = vmatprep.mubr.f32.mxu0 0.0
    %5732 = vmatmul.mubr.f32.gmra.mxu0 %v5665
    %v5733 = vpop.f32.mrf.mxu0
    %v5734 = vadd.f32 %v5662, %v5733
    %v5735 = vpop.f32.mrf.mxu0
    %5736 = vdwg.mxu0
    %v5737 = vld [vmem:[#allocation2 + $0x230] sm:$0xff]
    %v5738 = vld [vmem:[#allocation2 + $0x238] sm:$0xff]
    %v5739 = vld [vmem:[#allocation2 + $0x240] sm:$0xff]
    %v5740 = vld [vmem:[#allocation2 + $0x248] sm:$0xff]
    %v5741 = vld [vmem:[%s4 + $0x18] sm:$0x1]
    %5743 = vset.pattern.permute.xlu0 0
    %5744 = vperm.xlu0 %5743, %v5734
    %v5745 = vpop.permute.xlu0 %5744
    %v5747 = vlaneseq
    %v5748 = vshrl.u32 %v5747, 7
    %v5749 = vsub.s32 0, %v5748
    %v5750 = vrot.slane %v5741, %v5749
    %v5751 = vmul.f32 %v5745, %v5750
    %5752 = vmatprep.subr.mxu0 0.0
    %5753 = vmatpush1.msra.mxu0 0.0
    %5754 = vmatprep.subr.mxu0 0.0
    %5755 = vmatpush1.msra.mxu0 0.0
    %5756 = vmatprep.subr.mxu0 0.0
    %5757 = vmatpush1.msra.mxu0 0.0
    %5758 = vmatprep.subr.mxu0 0.0
    %5759 = vmatpush1.msra.mxu0 0.0
    %5760 = vmatprep.subr.mxu0 0.0
    %5761 = vmatpush1.msra.mxu0 0.0
    %5762 = vmatprep.subr.mxu0 0.0
    %5763 = vmatpush1.msra.mxu0 0.0
    %5764 = vmatprep.subr.mxu0 0.0
    %5765 = vmatpush1.msra.mxu0 0.0
    %5766 = vmatprep.subr.mxu0 0.0
    %5767 = vmatpush1.msra.mxu0 0.0
    %5768 = vmatprep.subr.mxu0 0.0
    %5769 = vmatpush1.msra.mxu0 0.0
    %5770 = vmatprep.subr.mxu0 0.0
    %5771 = vmatpush1.msra.mxu0 0.0
    %5772 = vmatprep.subr.mxu0 0.0
    %5773 = vmatpush1.msra.mxu0 0.0
    %5774 = vmatprep.subr.mxu0 0.0
    %5775 = vmatpush1.msra.mxu0 0.0
    %5776 = vmatprep.subr.mxu0 0.0
    %5777 = vmatpush1.msra.mxu0 %v5740
    %5778 = vmatprep.subr.mxu0 0.0
    %5779 = vmatpush1.msra.mxu0 %v5739
    %5780 = vmatprep.subr.mxu0 0.0
    %5781 = vmatpush1.msra.mxu0 %v5738
    %5782 = vmatprep.subr.mxu0 0.0
    %5783 = vmatpush1.msra.mxu0 %v5737
    %5784 = vmatprep.subr.mxu0 0.0
    %5785 = vmatpush2.msra.mxu0 0.0
    %5786 = vmatprep.subr.mxu0 0.0
    %5787 = vmatpush2.msra.mxu0 0.0
    %5788 = vmatprep.subr.mxu0 0.0
    %5789 = vmatpush2.msra.mxu0 0.0
    %5790 = vmatprep.subr.mxu0 0.0
    %5791 = vmatpush2.msra.mxu0 0.0
    %5792 = vmatprep.subr.mxu0 0.0
    %5793 = vmatpush2.msra.mxu0 0.0
    %5794 = vmatprep.subr.mxu0 0.0
    %5795 = vmatpush2.msra.mxu0 0.0
    %5796 = vmatprep.subr.mxu0 0.0
    %5797 = vmatpush2.msra.mxu0 0.0
    %5798 = vmatprep.subr.mxu0 0.0
    %5799 = vmatpush2.msra.mxu0 0.0
    %5800 = vmatprep.subr.mxu0 0.0
    %5801 = vmatpush2.msra.mxu0 0.0
    %5802 = vmatprep.subr.mxu0 0.0
    %5803 = vmatpush2.msra.mxu0 0.0
    %5804 = vmatprep.subr.mxu0 0.0
    %5805 = vmatpush2.msra.mxu0 0.0
    %5806 = vmatprep.subr.mxu0 0.0
    %5807 = vmatpush2.msra.mxu0 0.0
    %5808 = vmatprep.subr.mxu0 0.0
    %5809 = vmatpush2.msra.mxu0 0.0
    %5810 = vmatprep.subr.mxu0 0.0
    %5811 = vmatpush2.msra.mxu0 0.0
    %5812 = vmatprep.subr.mxu0 0.0
    %5813 = vmatpush2.msra.mxu0 0.0
    %5814 = vmatprep.subr.mxu0 0.0
    %5815 = vmatpush2.msra.mxu0 0.0
    %5816 = vmatprep.mubr.f32.mxu0 0.0
    %5817 = vmatmul.mubr.f32.gmra.mxu0 %v5579
    %v5818 = vpop.f32.mrf.mxu0
    %v5819 = vadd.f32 %v5751, %v5818
    %v5820 = vpop.f32.mrf.mxu0
    %5821 = vdwg.mxu0
    %v5822 = vld [vmem:[#allocation2 + $0x250] sm:$0x7f]
    %5823 = vrot.lane.b32.xlu0 %v5734, 127
    %v5824 = vpop.permute.xlu0 %5823
    %vm5825 = vcmask 56320
    %v5826 = vsel %vm5825, %v5824, 0
    %vm5828 = vcmask 1046528
    %v5830 = vsel %vm5828, %v5822, 0
    %5832 = vmatprep.subr.mxu0 0.0
    %5833 = vmatpush1.msra.mxu0 0.0
    %5834 = vmatprep.subr.mxu0 0.0
    %5835 = vmatpush1.msra.mxu0 0.0
    %5836 = vmatprep.subr.mxu0 0.0
    %5837 = vmatpush1.msra.mxu0 0.0
    %5838 = vmatprep.subr.mxu0 0.0
    %5839 = vmatpush1.msra.mxu0 0.0
    %5840 = vmatprep.subr.mxu0 0.0
    %5841 = vmatpush1.msra.mxu0 0.0
    %5842 = vmatprep.subr.mxu0 0.0
    %5843 = vmatpush1.msra.mxu0 0.0
    %5844 = vmatprep.subr.mxu0 0.0
    %5845 = vmatpush1.msra.mxu0 0.0
    %5846 = vmatprep.subr.mxu0 0.0
    %5847 = vmatpush1.msra.mxu0 0.0
    %5848 = vmatprep.subr.mxu0 0.0
    %5849 = vmatpush1.msra.mxu0 0.0
    %5850 = vmatprep.subr.mxu0 0.0
    %5851 = vmatpush1.msra.mxu0 0.0
    %5852 = vmatprep.subr.mxu0 0.0
    %5853 = vmatpush1.msra.mxu0 0.0
    %5854 = vmatprep.subr.mxu0 0.0
    %5855 = vmatpush1.msra.mxu0 0.0
    %5856 = vmatprep.subr.mxu0 0.0
    %5857 = vmatpush1.msra.mxu0 0.0
    %5858 = vmatprep.subr.mxu0 0.0
    %5859 = vmatpush1.msra.mxu0 0.0
    %5860 = vmatprep.subr.mxu0 0.0
    %5861 = vmatpush1.msra.mxu0 0.0
    %5862 = vmatprep.subr.mxu0 0.0
    %5863 = vmatpush1.msra.mxu0 %v5830
    %5864 = vmatprep.subr.mxu0 0.0
    %5865 = vmatpush2.msra.mxu0 0.0
    %5866 = vmatprep.subr.mxu0 0.0
    %5867 = vmatpush2.msra.mxu0 0.0
    %5868 = vmatprep.subr.mxu0 0.0
    %5869 = vmatpush2.msra.mxu0 0.0
    %5870 = vmatprep.subr.mxu0 0.0
    %5871 = vmatpush2.msra.mxu0 0.0
    %5872 = vmatprep.subr.mxu0 0.0
    %5873 = vmatpush2.msra.mxu0 0.0
    %5874 = vmatprep.subr.mxu0 0.0
    %5875 = vmatpush2.msra.mxu0 0.0
    %5876 = vmatprep.subr.mxu0 0.0
    %5877 = vmatpush2.msra.mxu0 0.0
    %5878 = vmatprep.subr.mxu0 0.0
    %5879 = vmatpush2.msra.mxu0 0.0
    %5880 = vmatprep.subr.mxu0 0.0
    %5881 = vmatpush2.msra.mxu0 0.0
    %5882 = vmatprep.subr.mxu0 0.0
    %5883 = vmatpush2.msra.mxu0 0.0
    %5884 = vmatprep.subr.mxu0 0.0
    %5885 = vmatpush2.msra.mxu0 0.0
    %5886 = vmatprep.subr.mxu0 0.0
    %5887 = vmatpush2.msra.mxu0 0.0
    %5888 = vmatprep.subr.mxu0 0.0
    %5889 = vmatpush2.msra.mxu0 0.0
    %5890 = vmatprep.subr.mxu0 0.0
    %5891 = vmatpush2.msra.mxu0 0.0
    %5892 = vmatprep.subr.mxu0 0.0
    %5893 = vmatpush2.msra.mxu0 0.0
    %5894 = vmatprep.subr.mxu0 0.0
    %5895 = vmatpush2.msra.mxu0 0.0
    %5896 = vmatprep.mubr.f32.mxu0 0.0
    %5897 = vmatmul.mubr.f32.gmra.mxu0 %v5826
    %v5898 = vpop.f32.mrf.mxu0
    %v5899 = vadd.f32 0.0, %v5898
    %v5900 = vpop.f32.mrf.mxu0
    %5901 = vdwg.mxu0
    %v5902 = vadd.f32 %v5819, %v5899
    %v5903 = vld [vmem:[%s4 + $0x19] sm:$0x1]
    %v5904 = vlaneseq
    %v5905 = vshrl.u32 %v5904, 7
    %v5906 = vsub.s32 0, %v5905
    %v5907 = vrot.slane %v5903, %v5906
    %v5908 = vadd.f32 %v5902, %v5907
    %v5909 = vmax.f32 %v5908, 0.0
    %v5910 = vld [vmem:[#allocation2 + $0x258] sm:$0xff]
    %v5911 = vld [vmem:[#allocation2 + $0x260] sm:$0xff]
    %v5912 = vld [vmem:[#allocation2 + $0x268] sm:$0xff]
    %v5913 = vld [vmem:[#allocation2 + $0x270] sm:$0xff]
    %v5914 = vld [vmem:[%s4 + $0x1a] sm:$0x1]
    %v5915 = vlaneseq
    %v5916 = vshrl.u32 %v5915, 7
    %v5917 = vsub.s32 0, %v5916
    %v5918 = vrot.slane %v5914, %v5917
    %v5920 = vsel %vm227, %v5909, 0
    %5922 = vmatprep.subr.mxu0 0.0
    %5923 = vmatpush1.msra.mxu0 0.0
    %5924 = vmatprep.subr.mxu0 0.0
    %5925 = vmatpush1.msra.mxu0 0.0
    %5926 = vmatprep.subr.mxu0 0.0
    %5927 = vmatpush1.msra.mxu0 0.0
    %5928 = vmatprep.subr.mxu0 0.0
    %5929 = vmatpush1.msra.mxu0 0.0
    %5930 = vmatprep.subr.mxu0 0.0
    %5931 = vmatpush1.msra.mxu0 0.0
    %5932 = vmatprep.subr.mxu0 0.0
    %5933 = vmatpush1.msra.mxu0 0.0
    %5934 = vmatprep.subr.mxu0 0.0
    %5935 = vmatpush1.msra.mxu0 0.0
    %5936 = vmatprep.subr.mxu0 0.0
    %5937 = vmatpush1.msra.mxu0 0.0
    %5938 = vmatprep.subr.mxu0 0.0
    %5939 = vmatpush1.msra.mxu0 0.0
    %5940 = vmatprep.subr.mxu0 0.0
    %5941 = vmatpush1.msra.mxu0 0.0
    %5942 = vmatprep.subr.mxu0 0.0
    %5943 = vmatpush1.msra.mxu0 0.0
    %5944 = vmatprep.subr.mxu0 0.0
    %5945 = vmatpush1.msra.mxu0 0.0
    %5946 = vmatprep.subr.mxu0 0.0
    %5947 = vmatpush1.msra.mxu0 %v5913
    %5948 = vmatprep.subr.mxu0 0.0
    %5949 = vmatpush1.msra.mxu0 %v5912
    %5950 = vmatprep.subr.mxu0 0.0
    %5951 = vmatpush1.msra.mxu0 %v5911
    %5952 = vmatprep.subr.mxu0 0.0
    %5953 = vmatpush1.msra.mxu0 %v5910
    %5954 = vmatprep.subr.mxu0 0.0
    %5955 = vmatpush2.msra.mxu0 0.0
    %5956 = vmatprep.subr.mxu0 0.0
    %5957 = vmatpush2.msra.mxu0 0.0
    %5958 = vmatprep.subr.mxu0 0.0
    %5959 = vmatpush2.msra.mxu0 0.0
    %5960 = vmatprep.subr.mxu0 0.0
    %5961 = vmatpush2.msra.mxu0 0.0
    %5962 = vmatprep.subr.mxu0 0.0
    %5963 = vmatpush2.msra.mxu0 0.0
    %5964 = vmatprep.subr.mxu0 0.0
    %5965 = vmatpush2.msra.mxu0 0.0
    %5966 = vmatprep.subr.mxu0 0.0
    %5967 = vmatpush2.msra.mxu0 0.0
    %5968 = vmatprep.subr.mxu0 0.0
    %5969 = vmatpush2.msra.mxu0 0.0
    %5970 = vmatprep.subr.mxu0 0.0
    %5971 = vmatpush2.msra.mxu0 0.0
    %5972 = vmatprep.subr.mxu0 0.0
    %5973 = vmatpush2.msra.mxu0 0.0
    %5974 = vmatprep.subr.mxu0 0.0
    %5975 = vmatpush2.msra.mxu0 0.0
    %5976 = vmatprep.subr.mxu0 0.0
    %5977 = vmatpush2.msra.mxu0 0.0
    %5978 = vmatprep.subr.mxu0 0.0
    %5979 = vmatpush2.msra.mxu0 0.0
    %5980 = vmatprep.subr.mxu0 0.0
    %5981 = vmatpush2.msra.mxu0 0.0
    %5982 = vmatprep.subr.mxu0 0.0
    %5983 = vmatpush2.msra.mxu0 0.0
    %5984 = vmatprep.subr.mxu0 0.0
    %5985 = vmatpush2.msra.mxu0 0.0
    %5986 = vmatprep.mubr.f32.mxu0 0.0
    %5987 = vmatmul.mubr.f32.gmra.mxu0 %v5920
    %v5988 = vpop.f32.mrf.mxu0
    %v5989 = vadd.f32 %v5918, %v5988
    %v5990 = vpop.f32.mrf.mxu0
    %5991 = vdwg.mxu0
    %v5992 = vmax.f32 %v5989, 0.0
    %v5993 = vld [vmem:[#allocation2 + $0x278] sm:$0xff]
    %v5994 = vld [vmem:[#allocation2 + $0x280] sm:$0xff]
    %v5995 = vld [vmem:[%s4 + $0x1b] sm:$0x1]
    %v5996 = vlaneseq
    %v5997 = vshrl.u32 %v5996, 7
    %v5998 = vsub.s32 0, %v5997
    %v5999 = vrot.slane %v5995, %v5998
    %v6001 = vsel %vm43, %v5992, 0
    %6003 = vmatprep.subr.mxu0 0.0
    %6004 = vmatpush1.msra.mxu0 0.0
    %6005 = vmatprep.subr.mxu0 0.0
    %6006 = vmatpush1.msra.mxu0 0.0
    %6007 = vmatprep.subr.mxu0 0.0
    %6008 = vmatpush1.msra.mxu0 0.0
    %6009 = vmatprep.subr.mxu0 0.0
    %6010 = vmatpush1.msra.mxu0 0.0
    %6011 = vmatprep.subr.mxu0 0.0
    %6012 = vmatpush1.msra.mxu0 0.0
    %6013 = vmatprep.subr.mxu0 0.0
    %6014 = vmatpush1.msra.mxu0 0.0
    %6015 = vmatprep.subr.mxu0 0.0
    %6016 = vmatpush1.msra.mxu0 0.0
    %6017 = vmatprep.subr.mxu0 0.0
    %6018 = vmatpush1.msra.mxu0 0.0
    %6019 = vmatprep.subr.mxu0 0.0
    %6020 = vmatpush1.msra.mxu0 0.0
    %6021 = vmatprep.subr.mxu0 0.0
    %6022 = vmatpush1.msra.mxu0 0.0
    %6023 = vmatprep.subr.mxu0 0.0
    %6024 = vmatpush1.msra.mxu0 0.0
    %6025 = vmatprep.subr.mxu0 0.0
    %6026 = vmatpush1.msra.mxu0 0.0
    %6027 = vmatprep.subr.mxu0 0.0
    %6028 = vmatpush1.msra.mxu0 0.0
    %6029 = vmatprep.subr.mxu0 0.0
    %6030 = vmatpush1.msra.mxu0 0.0
    %6031 = vmatprep.subr.mxu0 0.0
    %6032 = vmatpush1.msra.mxu0 %v5994
    %6033 = vmatprep.subr.mxu0 0.0
    %6034 = vmatpush1.msra.mxu0 %v5993
    %6035 = vmatprep.subr.mxu0 0.0
    %6036 = vmatpush2.msra.mxu0 0.0
    %6037 = vmatprep.subr.mxu0 0.0
    %6038 = vmatpush2.msra.mxu0 0.0
    %6039 = vmatprep.subr.mxu0 0.0
    %6040 = vmatpush2.msra.mxu0 0.0
    %6041 = vmatprep.subr.mxu0 0.0
    %6042 = vmatpush2.msra.mxu0 0.0
    %6043 = vmatprep.subr.mxu0 0.0
    %6044 = vmatpush2.msra.mxu0 0.0
    %6045 = vmatprep.subr.mxu0 0.0
    %6046 = vmatpush2.msra.mxu0 0.0
    %6047 = vmatprep.subr.mxu0 0.0
    %6048 = vmatpush2.msra.mxu0 0.0
    %6049 = vmatprep.subr.mxu0 0.0
    %6050 = vmatpush2.msra.mxu0 0.0
    %6051 = vmatprep.subr.mxu0 0.0
    %6052 = vmatpush2.msra.mxu0 0.0
    %6053 = vmatprep.subr.mxu0 0.0
    %6054 = vmatpush2.msra.mxu0 0.0
    %6055 = vmatprep.subr.mxu0 0.0
    %6056 = vmatpush2.msra.mxu0 0.0
    %6057 = vmatprep.subr.mxu0 0.0
    %6058 = vmatpush2.msra.mxu0 0.0
    %6059 = vmatprep.subr.mxu0 0.0
    %6060 = vmatpush2.msra.mxu0 0.0
    %6061 = vmatprep.subr.mxu0 0.0
    %6062 = vmatpush2.msra.mxu0 0.0
    %6063 = vmatprep.subr.mxu0 0.0
    %6064 = vmatpush2.msra.mxu0 0.0
    %6065 = vmatprep.subr.mxu0 0.0
    %6066 = vmatpush2.msra.mxu0 0.0
    %6067 = vmatprep.mubr.f32.mxu0 0.0
    %6068 = vmatmul.mubr.f32.gmra.mxu0 %v6001
    %v6069 = vpop.f32.mrf.mxu0
    %v6070 = vadd.f32 %v5999, %v6069
    %v6071 = vpop.f32.mrf.mxu0
    %6072 = vdwg.mxu0
    %6073 = vrot.lane.b32.xlu0 %v5734, 4
    %v6074 = vpop.permute.xlu0 %6073
    %vm6076 = vcmask 31744
    %v6077 = vsel %vm6076, %v6070, %v6074
    %vm6078 = vcmask 107520
    %6079 = vst.msk [vmem:[%s5] sm:$0x3] %vm6078, %v6077
    // Predicated region
    $region26: #{ultra_forward.1} parent=1 // pred_check
      _
    $region27: #{ultra_forward.1} parent=1 // pred_check_branch
      %6081 = sbr.rel (0) target = $region29
    $region28: #{ultra_forward.1} parent=1 // pred_region
      _
    $region29: #{ultra_forward.1} parent=1 // pred_fallthru
      _
    // Predicated region
    $region30: #{ultra_forward.1} parent=1 // pred_check
      _
    $region31: #{ultra_forward.1} parent=1 // pred_check_branch
      %6083 = sbr.rel (0) target = $region33
    $region32: #{ultra_forward.1} parent=1 // pred_region
      _
    $region33: #{ultra_forward.1} parent=1 // pred_fallthru
      _
    %6084 = vsyncpa [#allocation3], 1

</llo_original>
